<compile_context>
chip_gen: v7x
topology: tpu7x:2x2x1
jax: 0.10.0
libtpu: 0.0.40
codegen_flags: <defaults>
</compile_context>

<pallas_src>
import functools
import math

import jax
import jax.numpy as jnp
from jax.experimental import pallas as pl
from jax.experimental.pallas import tpu as pltpu

VMEM = pltpu.MemorySpace.VMEM
_WHOLE = pl.BlockSpec(memory_space=VMEM)         # whole-array spec (gridless calls)


def _full_spec(arr):
    return pl.BlockSpec(arr.shape, lambda *_, n=arr.ndim: (0,) * n)


# ---------------------------------------------------------------------------
# Small helper kernels
# ---------------------------------------------------------------------------
def _matmul_kernel(x_ref, w_ref, o_ref):
    o_ref[...] = jnp.dot(x_ref[...].astype(jnp.bfloat16), w_ref[...],
                         preferred_element_type=jnp.float32)


def matmul_pallas(x, w_bf16):
    """x: (M, Din) f32, w_bf16: (Din, Dout) bf16 -> (M, Dout) f32."""
    M = x.shape[0]
    Dout = w_bf16.shape[1]
    return pl.pallas_call(
        _matmul_kernel,
        out_shape=jax.ShapeDtypeStruct((M, Dout), jnp.float32),
        in_specs=[_WHOLE, _WHOLE],
        out_specs=_WHOLE,
    )(x, w_bf16)


def _kl_kernel(mu_ref, lv_ref, o_ref):
    mu, lv = mu_ref[...], lv_ref[...]
    o_ref[...] = jnp.sum(-0.5 * (1.0 + lv - jnp.exp(lv) - mu * mu))[None, None]


def kl_total_pallas(mu_a, logvar_a):
    out = pl.pallas_call(
        _kl_kernel,
        out_shape=jax.ShapeDtypeStruct((1, 1), jnp.float32),
        in_specs=[_WHOLE, _WHOLE],
        out_specs=_WHOLE,
    )(mu_a, logvar_a)
    return out[0, 0]


# ---------------------------------------------------------------------------
# Fused SBD decode + slot-mixture likelihood (one frame per grid block)
# ---------------------------------------------------------------------------
def _decode_kernel(hzT_ref, x_ref, ccT_ref, w2T_ref, b2_ref,
                   rec_ref, ll_ref, sq_ref, *, neg_inv_2var, C, K):
    hzT = hzT_ref[0]                                   # (hid, K)   f32
    ccT = ccT_ref[...]                                 # (hid, P)   f32 (coords@w1+b1)
    x = x_ref[0]                                       # (C, P)     f32
    P = ccT.shape[-1]

    # Pre-activations for all K slots as one lane-dense (hid, K*P) slab.
    pre = jnp.concatenate([hzT[:, k:k + 1] + ccT for k in range(K)], axis=-1)
    # ELU with clamped exp argument (no inf in the discarded branch).
    act = jnp.where(pre > 0.0, pre, jnp.exp(jnp.minimum(pre, 0.0)) - 1.0)
    out = (jnp.dot(w2T_ref[...], act.astype(jnp.bfloat16),
                   preferred_element_type=jnp.float32) + b2_ref[...])   # (C+1, K*P)

    mu = [out[:C, k * P:(k + 1) * P] for k in range(K)]                 # (C, P) each
    logit = [out[C:C + 1, k * P:(k + 1) * P] for k in range(K)]         # (1, P) each

    # Stabilized softmax over slots (mask weights).
    lmax = logit[0]
    for k in range(1, K):
        lmax = jnp.maximum(lmax, logit[k])
    exp_l = [jnp.exp(l - lmax) for l in logit]
    denom = exp_l[0]
    for k in range(1, K):
        denom = denom + exp_l[k]
    inv_denom = 1.0 / denom                                             # exact, (1, P)
    log_denom = jnp.log(denom)

    # Stabilized log sum_k mask_k * exp(-(mu_k - x)^2 / (2 var_x)).
    t = [(mu[k] - x) ** 2 * neg_inv_2var + (logit[k] - lmax) - log_denom
         for k in range(K)]
    tmax = t[0]
    for k in range(1, K):
        tmax = jnp.maximum(tmax, t[k])
    ssum = jnp.exp(t[0] - tmax)
    for k in range(1, K):
        ssum = ssum + jnp.exp(t[k] - tmax)
    ll_frame = jnp.sum(tmax + jnp.log(ssum))

    rec = (exp_l[0] * inv_denom) * mu[0]
    for k in range(1, K):
        rec = rec + (exp_l[k] * inv_denom) * mu[k]                      # (C, P)
    sq = jnp.sum((rec - x) ** 2)

    rec_ref[0] = rec
    ll_ref[...] = jnp.broadcast_to(ll_frame, (1, 1, 128))
    sq_ref[...] = jnp.broadcast_to(sq, (1, 1, 128))


def decode_pallas(hzT3, x_flat, ccT, w2T_bf, b2c, neg_inv_2var, C, K):
    """hzT3: (t_outer*Nb_x, hid, K), x_flat: (Nb_x, C, P)."""
    Nb_total = hzT3.shape[0]
    Nb_x = x_flat.shape[0]
    assert Nb_total % Nb_x == 0
    t_outer = Nb_total // Nb_x
    hid, P = ccT.shape
    frame_map = lambda t, f: (t * Nb_x + f, 0, 0)
    return pl.pallas_call(
        functools.partial(_decode_kernel, neg_inv_2var=neg_inv_2var, C=C, K=K),
        out_shape=(
            jax.ShapeDtypeStruct((Nb_total, C, P), jnp.float32),
            jax.ShapeDtypeStruct((Nb_total, 1, 128), jnp.float32),
            jax.ShapeDtypeStruct((Nb_total, 1, 128), jnp.float32),
        ),
        grid=(t_outer, Nb_x),
        in_specs=[
            pl.BlockSpec((1, hid, K), frame_map),
            pl.BlockSpec((1, C, P), lambda t, f: (f, 0, 0)),
            _full_spec(ccT), _full_spec(w2T_bf), _full_spec(b2c),
        ],
        out_specs=(
            pl.BlockSpec((1, C, P), frame_map),
            pl.BlockSpec((1, 1, 128), frame_map),
            pl.BlockSpec((1, 1, 128), frame_map),
        ),
        compiler_params=pltpu.CompilerParams(
            dimension_semantics=("parallel", "parallel")),
    )(hzT3, x_flat, ccT, w2T_bf, b2c)


# ---------------------------------------------------------------------------
# Fused prediction step: in_proj + pos-enc + all encoder layers + out_proj
# ---------------------------------------------------------------------------
def _pred_step_kernel(inx_ref, pe_ref, bias_ref, inw_ref, inb_ref,
                      wqkv_ref, bqkv_ref, wo_ref, bo_ref, g1_ref, t1_ref,
                      w1_ref, b1_ref, w2_ref, b2_ref, g2_ref, t2_ref,
                      ow_ref, ob_ref, o_ref, *,
                      num_layers, num_heads, S, B, K, eps=1e-5):
    E = pe_ref.shape[-1]
    Dh = E // num_heads
    scale = 1.0 / math.sqrt(Dh)
    bias = bias_ref[...]                                                # (M, M)

    def layer_norm(v, g, b):
        mu = jnp.mean(v, axis=-1, keepdims=True)
        var = jnp.mean((v - mu) ** 2, axis=-1, keepdims=True)
        return (v - mu) * jax.lax.rsqrt(var + eps) * g + b

    # in_proj + positional encoding (rows are sequence-major: row = s*B + b)
    x = (jnp.dot(inx_ref[...].astype(jnp.bfloat16), inw_ref[...],
                 preferred_element_type=jnp.float32)
         + inb_ref[...] + pe_ref[...])                                  # (M, E)

    for l in range(num_layers):
        qkv = (jnp.dot(x.astype(jnp.bfloat16), wqkv_ref[l],
                       preferred_element_type=jnp.float32) + bqkv_ref[l])   # (M, 3E)
        q = (qkv[:, :E] * scale).astype(jnp.bfloat16)
        k = qkv[:, E:2 * E].astype(jnp.bfloat16)
        v = qkv[:, 2 * E:].astype(jnp.bfloat16)
        heads = []
        for h in range(num_heads):                       # small static head loop
            qh = q[:, h * Dh:(h + 1) * Dh]
            kh = k[:, h * Dh:(h + 1) * Dh]
            vh = v[:, h * Dh:(h + 1) * Dh]
            s = jax.lax.dot_general(qh, kh, (((1,), (1,)), ((), ())),
                                    preferred_element_type=jnp.float32)  # (M, M)
            s = s + bias                                 # -1e30 where batch differs
            s = s - jnp.max(s, axis=-1, keepdims=True)
            p = jnp.exp(s)
            p = p * (1.0 / jnp.sum(p, axis=-1, keepdims=True))
            heads.append(jnp.dot(p.astype(jnp.bfloat16), vh,
                                 preferred_element_type=jnp.float32))    # (M, Dh)
        attn = jnp.concatenate(heads, axis=-1)                           # (M, E)

        h1 = layer_norm(jnp.dot(attn.astype(jnp.bfloat16), wo_ref[l],
                                preferred_element_type=jnp.float32)
                        + bo_ref[l] + x, g1_ref[l], t1_ref[l])
        f = jnp.maximum(jnp.dot(h1.astype(jnp.bfloat16), w1_ref[l],
                                preferred_element_type=jnp.float32) + b1_ref[l],
                        0.0)
        f = jnp.dot(f.astype(jnp.bfloat16), w2_ref[l],
                    preferred_element_type=jnp.float32) + b2_ref[l]
        x = layer_norm(h1 + f, g2_ref[l], t2_ref[l])

    # select the last K batch rows of every sequence position, out-project
    sel = jnp.concatenate([x[s * B + B - K:s * B + B, :] for s in range(S)],
                          axis=0)                                        # (S*K, E)
    o_ref[...] = (jnp.dot(sel.astype(jnp.bfloat16), ow_ref[...],
                          preferred_element_type=jnp.float32) + ob_ref[...])


def transformer_pred_pallas(inx, pe, bias, inw, inb,
                            Wqkv, Bqkv, Wo, Bo, G1, T1, W1, B1, W2, B2, G2, T2,
                            ow, ob, *, num_layers, num_heads, S, B, K):
    a_dim = inx.shape[-1]
    kern = functools.partial(_pred_step_kernel, num_layers=num_layers,
                             num_heads=num_heads, S=S, B=B, K=K)
    return pl.pallas_call(
        kern,
        out_shape=jax.ShapeDtypeStruct((S * K, a_dim), jnp.float32),
        in_specs=[_WHOLE] * 19,
        out_specs=_WHOLE,
    )(inx, pe, bias, inw, inb, Wqkv, Bqkv, Wo, Bo, G1, T1,
      W1, B1, W2, B2, G2, T2, ow, ob)


# ---------------------------------------------------------------------------
# Model glue (plain JAX around the kernels)
# ---------------------------------------------------------------------------
def build_sin_pos_enc(seq_len, d_model):
    pos = jnp.arange(seq_len, dtype=jnp.float32)[:, None]
    i = jnp.arange(d_model // 2, dtype=jnp.float32)[None, :]
    div = jnp.exp(-(2.0 * i) * math.log(10000.0) / d_model)
    pe = jnp.zeros((seq_len, d_model), jnp.float32)
    pe = pe.at[:, 0::2].set(jnp.sin(pos * div))
    pe = pe.at[:, 1::2].set(jnp.cos(pos * div))
    return pe[None]                                          # (1, seq_len, d_model)


def inphy_gpt_forward(vid, params, cfg, rng):
    N, F, C, H, W = vid.shape
    K, T, a_dim = cfg["K"], cfg["T"], cfg["a_dim"]
    hist, n_preds = cfg["history_len"], cfg["n_preds"]
    beta, var_x = cfg["beta"], cfg["var_x"]
    d_model, num_heads = cfg["d_model"], cfg["num_heads"]
    P = H * W
    assert hist + n_preds <= F
    assert d_model % num_heads == 0

    Nb_rec, Nb_pred = N * hist, N * n_preds
    x_rec_flat = vid[:, :hist].reshape(Nb_rec, C, P)
    x_preds_flat = vid[:, hist:hist + n_preds].reshape(Nb_pred, C, P)

    # ---- one-time parameter prep: bf16 matmul weights, stacked layers -------
    bf16 = jnp.bfloat16
    layers = params["layers"]
    L = len(layers)
    Wqkv = jnp.stack([l["wqkv"] for l in layers]).astype(bf16)       # (L, E, 3E)
    Bqkv = jnp.stack([l["bqkv"].reshape(1, -1) for l in layers])     # (L, 1, 3E)
    Wo = jnp.stack([l["wo"] for l in layers]).astype(bf16)
    Bo = jnp.stack([l["bo"].reshape(1, -1) for l in layers])
    G1 = jnp.stack([l["ln1_g"] for l in layers])                     # (L, 1, E)
    T1 = jnp.stack([l["ln1_b"] for l in layers])
    W1 = jnp.stack([l["w1"] for l in layers]).astype(bf16)
    B1 = jnp.stack([l["b1"].reshape(1, -1) for l in layers])
    W2 = jnp.stack([l["w2"] for l in layers]).astype(bf16)
    B2 = jnp.stack([l["b2"].reshape(1, -1) for l in layers])
    G2 = jnp.stack([l["ln2_g"] for l in layers])
    T2 = jnp.stack([l["ln2_b"] for l in layers])
    in_w = params["in_proj_w"].astype(bf16)
    in_b = params["in_proj_b"].reshape(1, -1)
    out_w = params["out_proj_w"].astype(bf16)
    out_b = params["out_proj_b"].reshape(1, -1)

    # ---- hoisted SBD constants (shared by every decode call) ----------------
    sbd = params["sbd"]
    hid = sbd["w1"].shape[1]
    ys, xs = jnp.meshgrid(jnp.linspace(-1.0, 1.0, H), jnp.linspace(-1.0, 1.0, W),
                          indexing="ij")
    coords = jnp.stack([ys.reshape(-1), xs.reshape(-1)], axis=-1)        # (P, 2)
    ccT = (coords @ sbd["w1"][a_dim:] + sbd["b1"]).T                     # (hid, P) f32
    w1z_bf = sbd["w1"][:a_dim].astype(bf16)                              # (a_dim, hid)
    w2T_bf = sbd["w2"].T.astype(bf16)                                    # (C+1, hid)
    b2c = sbd["b2"].reshape(-1, 1)                                       # (C+1, 1)
    neg_inv_2var = -1.0 / (2.0 * var_x)

    def decode(a, x_flat):
        nb_frames = a.shape[0] // K
        hz = matmul_pallas(a, w1z_bf)                                    # (nb*K, hid)
        hzT3 = hz.reshape(nb_frames, K, hid).transpose(0, 2, 1)          # (nb, hid, K)
        return decode_pallas(hzT3, x_flat, ccT, w2T_bf, b2c, neg_inv_2var, C, K)

    # ---- IODINE iterations: refinement skipped, all T iterations batched ----
    # TODO(synk): IODINE refinement step (torch.autograd.grad inside forward,
    # RefineNetLSTM, pretrained SqueezeNet feature extractor, F.interpolate)
    # has no forward-only Pallas equivalent; lmbda stays un-refined.
    mu0 = params["lmbda0"][:, :a_dim]                                    # (1, a_dim)
    lv0 = params["lmbda0"][:, a_dim:]
    div_a = float(K) * kl_total_pallas(mu0, lv0)

    eps = jax.random.normal(rng, (T, Nb_rec * K, a_dim), jnp.float32)
    a_all = mu0[None] + eps * jnp.exp(0.5 * lv0)[None]                   # (T, Nb*K, a)
    a_last = a_all[T - 1]

    rec_r, ll_r, sq_r = decode(a_all.reshape(T * Nb_rec * K, a_dim), x_rec_flat)
    nll_t = -jnp.mean(ll_r[:, 0, 0].reshape(T, Nb_rec), axis=1)          # (T,)
    scales = jnp.arange(1, T + 1, dtype=jnp.float32) / float(T)
    loss_rec_scalar = jnp.sum(scales * (beta * nll_t + div_a))
    loss_rec = jnp.zeros((Nb_rec, 1), jnp.float32) + loss_rec_scalar
    rec_last = rec_r[(T - 1) * Nb_rec:]
    mse = jnp.sum(sq_r[(T - 1) * Nb_rec:, 0, 0]) / float(Nb_rec * C * P)

    # ---- autoregressive transformer prediction (one fused kernel per step) --
    Bb = hist * K                       # transformer "batch" axis (dim 1)
    M = N * Bb                          # flattened rows, sequence(=N)-major
    pe = build_sin_pos_enc(hist, d_model)                                # (1, hist, E)
    pe_flat = jnp.tile(pe[:, :, None, :], (N, 1, K, 1)).reshape(M, d_model)
    rows_b = jnp.arange(M) % Bb
    attn_bias = jnp.where(rows_b[:, None] == rows_b[None, :], 0.0,
                          -1e30).astype(jnp.float32)                     # (M, M)

    def pred_step(in_x, _):
        pred = transformer_pred_pallas(
            in_x.reshape(M, a_dim), pe_flat, attn_bias, in_w, in_b,
            Wqkv, Bqkv, Wo, Bo, G1, T1, W1, B1, W2, B2, G2, T2, out_w, out_b,
            num_layers=L, num_heads=num_heads, S=N, B=Bb, K=K)
        pred = pred.reshape(N, K, a_dim)
        new_in_x = jnp.concatenate([in_x[:, K:], pred], axis=1)
        return new_in_x, pred

    in_x0 = a_last.reshape(N, Bb, a_dim)
    _, preds = jax.lax.scan(pred_step, in_x0, None, length=n_preds)      # (np, N, K, a)
    a_preds = jnp.transpose(preds, (1, 0, 2, 3)).reshape(Nb_pred * K, a_dim)

    rec_p, ll_p, sq_p = decode(a_preds, x_preds_flat)
    nll_preds = -jnp.mean(ll_p[:, 0, 0])
    loss_preds = beta * nll_preds
    mse_preds = jnp.sum(sq_p[:, 0, 0]) / float(Nb_pred * C * P)

    rec_img = rec_last.reshape(N, hist, C, H, W).transpose(0, 2, 3, 1, 4).reshape(
        N, C, H, hist * W)
    rec_preds_img = rec_p.reshape(N, n_preds, C, H, W).transpose(
        0, 2, 3, 1, 4).reshape(N, C, H, n_preds * W)

    return {
        "loss_rec": loss_rec,
        "loss_preds": loss_preds,
        "reconstruction": rec_img,
        "prediction": rec_preds_img,
        "mse": mse,
        "mse_preds": mse_preds,
    }


# ---------------------------------------------------------------------------
# Deterministic parameter initialization
# ---------------------------------------------------------------------------
def init_params(key, cfg):
    a_dim, d_model = cfg["a_dim"], cfg["d_model"]
    ffn, nl, sbd_hid = cfg["ffn_dim"], cfg["num_layers"], cfg["sbd_hidden"]
    keys = iter(jax.random.split(key, 16 + 8 * nl))

    def w(shape, scale=0.05):
        return jax.random.normal(next(keys), shape, jnp.float32) * scale

    params = {
        "lmbda0": jax.random.uniform(next(keys), (1, 2 * a_dim), jnp.float32) - 0.5,
        "in_proj_w": w((a_dim, d_model)),
        "in_proj_b": jnp.zeros((d_model,), jnp.float32),
        "out_proj_w": w((d_model, a_dim)),
        "out_proj_b": jnp.zeros((a_dim,), jnp.float32),
        "sbd": {
            "w1": w((a_dim + 2, sbd_hid)),
            "b1": jnp.zeros((sbd_hid,), jnp.float32),
            "w2": w((sbd_hid, 4)),
            "b2": jnp.zeros((4,), jnp.float32),
        },
        "layers": [],
    }
    for _ in range(nl):
        params["layers"].append(
            {
                "wqkv": w((d_model, 3 * d_model)),
                "bqkv": jnp.zeros((3 * d_model,), jnp.float32),
                "wo": w((d_model, d_model)),
                "bo": jnp.zeros((d_model,), jnp.float32),
                "ln1_g": jnp.ones((1, d_model), jnp.float32),
                "ln1_b": jnp.zeros((1, d_model), jnp.float32),
                "w1": w((d_model, ffn)), "b1": jnp.zeros((ffn,), jnp.float32),
                "w2": w((ffn, d_model)), "b2": jnp.zeros((d_model,), jnp.float32),
                "ln2_g": jnp.ones((1, d_model), jnp.float32),
                "ln2_b": jnp.zeros((1, d_model), jnp.float32),
            }
        )
    return params


if __name__ == "__main__":
    cfg = dict(
        n_preds=2, T=2, K=2, a_dim=8, H=16, W=16, history_len=3,
        d_model=128, num_layers=2, num_heads=8, ffn_dim=256,
        beta=1.0, var_x=0.3, sbd_hidden=64,
    )
    key = jax.random.PRNGKey(0)
    kp, kv, ks = jax.random.split(key, 3)
    params = init_params(kp, cfg)

    N, F, C = 2, 5, 3
    vid = jax.random.normal(kv, (N, F, C, cfg["H"], cfg["W"]), jnp.float32)

    fwd = jax.jit(lambda v, p, r: inphy_gpt_forward(v, p, cfg, r))
    out = jax.block_until_ready(fwd(vid, params, ks))

    assert out["reconstruction"].shape == (N, C, cfg["H"], cfg["history_len"] * cfg["W"])
    assert out["prediction"].shape == (N, C, cfg["H"], cfg["n_preds"] * cfg["W"])
    assert out["loss_rec"].shape == (N * cfg["history_len"], 1)
    assert bool(jnp.all(jnp.isfinite(out["loss_rec"])))
    assert bool(jnp.isfinite(out["loss_preds"]))
    assert bool(jnp.isfinite(out["mse"])) and bool(jnp.isfinite(out["mse_preds"]))
    assert bool(jnp.all(jnp.isfinite(out["reconstruction"])))
    assert bool(jnp.all(jnp.isfinite(out["prediction"])))
    print("KERNEL_OK")
</pallas_src>

<mosaic_0001>
module attributes {stable_mosaic.version = 11 : i64} {
  func.func @_matmul_kernel(%arg0: memref<8x8xf32, #tpu.memory_space<vmem>>, %arg1: memref<8x64xbf16, #tpu.memory_space<vmem>>, %arg2: memref<8x64xf32, #tpu.memory_space<vmem>>) attributes {dimension_semantics = [], scalar_prefetch = 0 : i64, scratch_operands = 0 : i64, tpu.core_type = #tpu.core_type<tc>} {
    %c0 = arith.constant 0 : index
    %c0_0 = arith.constant 0 : index
    %0 = vector.load %arg0[%c0, %c0_0] : memref<8x8xf32, #tpu.memory_space<vmem>>, vector<8x8xf32>
    %1 = arith.truncf %0 : vector<8x8xf32> to vector<8x8xbf16>
    %c0_1 = arith.constant 0 : index
    %c0_2 = arith.constant 0 : index
    %2 = vector.load %arg1[%c0_1, %c0_2] : memref<8x64xbf16, #tpu.memory_space<vmem>>, vector<8x64xbf16>
    %cst = arith.constant dense<0.000000e+00> : vector<8x64xf32>
    %3 = tpu.matmul %1, %2, %cst {dimension_numbers = #tpu.dot_dimension_numbers<[1], [0], [0], [1], [0, 0, 1, 1], [], []>} : vector<8x8xbf16>, vector<8x64xbf16>, vector<8x64xf32> -> vector<8x64xf32>
    %c0_3 = arith.constant 0 : index
    %c0_4 = arith.constant 0 : index
    %4 = vector.load %arg2[%c0_3, %c0_4] : memref<8x64xf32, #tpu.memory_space<vmem>>, vector<8x64xf32>
    tpu.vector_store %arg2[%c0_3, %c0_4], %3 {strides = array<i32>} : memref<8x64xf32, #tpu.memory_space<vmem>>, vector<8x64xf32>,
    return
  }
}

module attributes {stable_mosaic.version = 11 : i64} {
  func.func @_pred_step_kernel(%arg0: memref<12x8xf32, #tpu.memory_space<vmem>>, %arg1: memref<12x128xf32, #tpu.memory_space<vmem>>, %arg2: memref<12x12xf32, #tpu.memory_space<vmem>>, %arg3: memref<8x128xbf16, #tpu.memory_space<vmem>>, %arg4: memref<1x128xf32, #tpu.memory_space<vmem>>, %arg5: memref<2x128x384xbf16, #tpu.memory_space<vmem>>, %arg6: memref<2x1x384xf32, #tpu.memory_space<vmem>>, %arg7: memref<2x128x128xbf16, #tpu.memory_space<vmem>>, %arg8: memref<2x1x128xf32, #tpu.memory_space<vmem>>, %arg9: memref<2x1x128xf32, #tpu.memory_space<vmem>>, %arg10: memref<2x1x128xf32, #tpu.memory_space<vmem>>, %arg11: memref<2x128x256xbf16, #tpu.memory_space<vmem>>, %arg12: memref<2x1x256xf32, #tpu.memory_space<vmem>>, %arg13: memref<2x256x128xbf16, #tpu.memory_space<vmem>>, %arg14: memref<2x1x128xf32, #tpu.memory_space<vmem>>, %arg15: memref<2x1x128xf32, #tpu.memory_space<vmem>>, %arg16: memref<2x1x128xf32, #tpu.memory_space<vmem>>, %arg17: memref<128x8xbf16, #tpu.memory_space<vmem>>, %arg18: memref<1x8xf32, #tpu.memory_space<vmem>>, %arg19: memref<4x8xf32, #tpu.memory_space<vmem>>) attributes {dimension_semantics = [], scalar_prefetch = 0 : i64, scratch_operands = 0 : i64, tpu.core_type = #tpu.core_type<tc>} {
    %c0 = arith.constant 0 : index
    %c0_0 = arith.constant 0 : index
    %0 = vector.load %arg2[%c0, %c0_0] : memref<12x12xf32, #tpu.memory_space<vmem>>, vector<12x12xf32>
    %c0_1 = arith.constant 0 : index
    %c0_2 = arith.constant 0 : index
    %1 = vector.load %arg0[%c0_1, %c0_2] : memref<12x8xf32, #tpu.memory_space<vmem>>, vector<12x8xf32>
    %2 = arith.truncf %1 : vector<12x8xf32> to vector<12x8xbf16>
    %c0_3 = arith.constant 0 : index
    %c0_4 = arith.constant 0 : index
    %3 = vector.load %arg3[%c0_3, %c0_4] : memref<8x128xbf16, #tpu.memory_space<vmem>>, vector<8x128xbf16>
    %cst = arith.constant dense<0.000000e+00> : vector<12x128xf32>
    %4 = tpu.matmul %2, %3, %cst {dimension_numbers = #tpu.dot_dimension_numbers<[1], [0], [0], [1], [0, 0, 1, 1], [], []>} : vector<12x8xbf16>, vector<8x128xbf16>, vector<12x128xf32> -> vector<12x128xf32>
    %c0_5 = arith.constant 0 : index
    %c0_6 = arith.constant 0 : index
    %5 = vector.load %arg4[%c0_5, %c0_6] : memref<1x128xf32, #tpu.memory_space<vmem>>, vector<1x128xf32>
    %6 = vector.broadcast %5 : vector<1x128xf32> to vector<12x128xf32>
    %7 = arith.addf %4, %6 : vector<12x128xf32>
    %c0_7 = arith.constant 0 : index
    %c0_8 = arith.constant 0 : index
    %8 = vector.load %arg1[%c0_7, %c0_8] : memref<12x128xf32, #tpu.memory_space<vmem>>, vector<12x128xf32>
    %9 = arith.addf %7, %8 : vector<12x128xf32>
    %10 = arith.truncf %9 : vector<12x128xf32> to vector<12x128xbf16>
    %c0_9 = arith.constant 0 : index
    %c0_10 = arith.constant 0 : index
    %c0_11 = arith.constant 0 : index
    %11 = vector.load %arg5[%c0_9, %c0_10, %c0_11] : memref<2x128x384xbf16, #tpu.memory_space<vmem>>, vector<1x128x384xbf16>
    %12 = vector.shape_cast %11 : vector<1x128x384xbf16> to vector<128x384xbf16>
    %cst_12 = arith.constant dense<0.000000e+00> : vector<12x384xf32>
    %13 = tpu.matmul %10, %12, %cst_12 {dimension_numbers = #tpu.dot_dimension_numbers<[1], [0], [0], [1], [0, 0, 1, 1], [], []>} : vector<12x128xbf16>, vector<128x384xbf16>, vector<12x384xf32> -> vector<12x384xf32>
    %c0_13 = arith.constant 0 : index
    %c0_14 = arith.constant 0 : index
    %c0_15 = arith.constant 0 : index
    %14 = vector.load %arg6[%c0_13, %c0_14, %c0_15] : memref<2x1x384xf32, #tpu.memory_space<vmem>>, vector<1x1x384xf32>
    %15 = vector.shape_cast %14 : vector<1x1x384xf32> to vector<1x384xf32>
    %16 = vector.broadcast %15 : vector<1x384xf32> to vector<12x384xf32>
    %17 = arith.addf %13, %16 : vector<12x384xf32>
    %18 = vector.extract_strided_slice %17 {offsets = [0, 0], sizes = [12, 128], strides = [1, 1]} : vector<12x384xf32> to vector<12x128xf32>
    %cst_16 = arith.constant 2.500000e-01 : f32
    %19 = vector.broadcast %cst_16 : f32 to vector<12x128xf32>
    %20 = arith.mulf %18, %19 : vector<12x128xf32>
    %21 = arith.truncf %20 : vector<12x128xf32> to vector<12x128xbf16>
    %22 = vector.extract_strided_slice %17 {offsets = [0, 128], sizes = [12, 128], strides = [1, 1]} : vector<12x384xf32> to vector<12x128xf32>
    %23 = arith.truncf %22 : vector<12x128xf32> to vector<12x128xbf16>
    %24 = vector.extract_strided_slice %17 {offsets = [0, 256], sizes = [12, 128], strides = [1, 1]} : vector<12x384xf32> to vector<12x128xf32>
    %25 = arith.truncf %24 : vector<12x128xf32> to vector<12x128xbf16>
    %26 = vector.extract_strided_slice %21 {offsets = [0, 0], sizes = [12, 16], strides = [1, 1]} : vector<12x128xbf16> to vector<12x16xbf16>
    %27 = vector.extract_strided_slice %23 {offsets = [0, 0], sizes = [12, 16], strides = [1, 1]} : vector<12x128xbf16> to vector<12x16xbf16>
    %28 = vector.extract_strided_slice %25 {offsets = [0, 0], sizes = [12, 16], strides = [1, 1]} : vector<12x128xbf16> to vector<12x16xbf16>
    %cst_17 = arith.constant dense<0.000000e+00> : vector<12x12xf32>
    %29 = tpu.matmul %26, %27, %cst_17 {dimension_numbers = #tpu.dot_dimension_numbers<[1], [1], [0], [0], [0, 0, 1, 0], [], []>} : vector<12x16xbf16>, vector<12x16xbf16>, vector<12x12xf32> -> vector<12x12xf32>
    %30 = arith.addf %29, %0 : vector<12x12xf32>
    %cst_18 = arith.constant dense<0xFF800000> : vector<12xf32>
    %31 = vector.multi_reduction <maximumf>, %30, %cst_18 [1] : vector<12x12xf32> to vector<12xf32>
    %32 = vector.shape_cast %31 : vector<12xf32> to vector<12x1xf32>
    %33 = vector.broadcast %32 : vector<12x1xf32> to vector<12x12xf32>
    %34 = arith.subf %30, %33 : vector<12x12xf32>
    %35 = math.exp %34 : vector<12x12xf32>
    %cst_19 = arith.constant dense<0.000000e+00> : vector<12xf32>
    %36 = vector.multi_reduction <add>, %35, %cst_19 [1] : vector<12x12xf32> to vector<12xf32>
    %37 = vector.shape_cast %36 : vector<12xf32> to vector<12x1xf32>
    %cst_20 = arith.constant 1.000000e+00 : f32
    %38 = vector.broadcast %cst_20 : f32 to vector<12x1xf32>
    %39 = arith.divf %38, %37 : vector<12x1xf32>
    %40 = vector.broadcast %39 : vector<12x1xf32> to vector<12x12xf32>
    %41 = arith.mulf %35, %40 : vector<12x12xf32>
    %42 = arith.truncf %41 : vector<12x12xf32> to vector<12x12xbf16>
    %cst_21 = arith.constant dense<0.000000e+00> : vector<12x16xf32>
    %43 = tpu.matmul %42, %28, %cst_21 {dimension_numbers = #tpu.dot_dimension_numbers<[1], [0], [0], [1], [0, 0, 1, 1], [], []>} : vector<12x12xbf16>, vector<12x16xbf16>, vector<12x16xf32> -> vector<12x16xf32>
    %44 = vector.extract_strided_slice %21 {offsets = [0, 16], sizes = [12, 16], strides = [1, 1]} : vector<12x128xbf16> to vector<12x16xbf16>
    %45 = vector.extract_strided_slice %23 {offsets = [0, 16], sizes = [12, 16], strides = [1, 1]} : vector<12x128xbf16> to vector<12x16xbf16>
    %46 = vector.extract_strided_slice %25 {offsets = [0, 16], sizes = [12, 16], strides = [1, 1]} : vector<12x128xbf16> to vector<12x16xbf16>
    %cst_22 = arith.constant dense<0.000000e+00> : vector<12x12xf32>
    %47 = tpu.matmul %44, %45, %cst_22 {dimension_numbers = #tpu.dot_dimension_numbers<[1], [1], [0], [0], [0, 0, 1, 0], [], []>} : vector<12x16xbf16>, vector<12x16xbf16>, vector<12x12xf32> -> vector<12x12xf32>
    %48 = arith.addf %47, %0 : vector<12x12xf32>
    %cst_23 = arith.constant dense<0xFF800000> : vector<12xf32>
    %49 = vector.multi_reduction <maximumf>, %48, %cst_23 [1] : vector<12x12xf32> to vector<12xf32>
    %50 = vector.shape_cast %49 : vector<12xf32> to vector<12x1xf32>
    %51 = vector.broadcast %50 : vector<12x1xf32> to vector<12x12xf32>
    %52 = arith.subf %48, %51 : vector<12x12xf32>
    %53 = math.exp %52 : vector<12x12xf32>
    %cst_24 = arith.constant dense<0.000000e+00> : vector<12xf32>
    %54 = vector.multi_reduction <add>, %53, %cst_24 [1] : vector<12x12xf32> to vector<12xf32>
    %55 = vector.shape_cast %54 : vector<12xf32> to vector<12x1xf32>
    %cst_25 = arith.constant 1.000000e+00 : f32
    %56 = vector.broadcast %cst_25 : f32 to vector<12x1xf32>
    %57 = arith.divf %56, %55 : vector<12x1xf32>
    %58 = vector.broadcast %57 : vector<12x1xf32> to vector<12x12xf32>
    %59 = arith.mulf %53, %58 : vector<12x12xf32>
    %60 = arith.truncf %59 : vector<12x12xf32> to vector<12x12xbf16>
    %cst_26 = arith.constant dense<0.000000e+00> : vector<12x16xf32>
    %61 = tpu.matmul %60, %46, %cst_26 {dimension_numbers = #tpu.dot_dimension_numbers<[1], [0], [0], [1], [0, 0, 1, 1], [], []>} : vector<12x12xbf16>, vector<12x16xbf16>, vector<12x16xf32> -> vector<12x16xf32>
    %62 = vector.extract_strided_slice %21 {offsets = [0, 32], sizes = [12, 16], strides = [1, 1]} : vector<12x128xbf16> to vector<12x16xbf16>
    %63 = vector.extract_strided_slice %23 {offsets = [0, 32], sizes = [12, 16], strides = [1, 1]} : vector<12x128xbf16> to vector<12x16xbf16>
    %64 = vector.extract_strided_slice %25 {offsets = [0, 32], sizes = [12, 16], strides = [1, 1]} : vector<12x128xbf16> to vector<12x16xbf16>
    %cst_27 = arith.constant dense<0.000000e+00> : vector<12x12xf32>
    %65 = tpu.matmul %62, %63, %cst_27 {dimension_numbers = #tpu.dot_dimension_numbers<[1], [1], [0], [0], [0, 0, 1, 0], [], []>} : vector<12x16xbf16>, vector<12x16xbf16>, vector<12x12xf32> -> vector<12x12xf32>
    %66 = arith.addf %65, %0 : vector<12x12xf32>
    %cst_28 = arith.constant dense<0xFF800000> : vector<12xf32>
    %67 = vector.multi_reduction <maximumf>, %66, %cst_28 [1] : vector<12x12xf32> to vector<12xf32>
    %68 = vector.shape_cast %67 : vector<12xf32> to vector<12x1xf32>
    %69 = vector.broadcast %68 : vector<12x1xf32> to vector<12x12xf32>
    %70 = arith.subf %66, %69 : vector<12x12xf32>
    %71 = math.exp %70 : vector<12x12xf32>
    %cst_29 = arith.constant dense<0.000000e+00> : vector<12xf32>
    %72 = vector.multi_reduction <add>, %71, %cst_29 [1] : vector<12x12xf32> to vector<12xf32>
    %73 = vector.shape_cast %72 : vector<12xf32> to vector<12x1xf32>
    %cst_30 = arith.constant 1.000000e+00 : f32
    %74 = vector.broadcast %cst_30 : f32 to vector<12x1xf32>
    %75 = arith.divf %74, %73 : vector<12x1xf32>
    %76 = vector.broadcast %75 : vector<12x1xf32> to vector<12x12xf32>
    %77 = arith.mulf %71, %76 : vector<12x12xf32>
    %78 = arith.truncf %77 : vector<12x12xf32> to vector<12x12xbf16>
    %cst_31 = arith.constant dense<0.000000e+00> : vector<12x16xf32>
    %79 = tpu.matmul %78, %64, %cst_31 {dimension_numbers = #tpu.dot_dimension_numbers<[1], [0], [0], [1], [0, 0, 1, 1], [], []>} : vector<12x12xbf16>, vector<12x16xbf16>, vector<12x16xf32> -> vector<12x16xf32>
    %80 = vector.extract_strided_slice %21 {offsets = [0, 48], sizes = [12, 16], strides = [1, 1]} : vector<12x128xbf16> to vector<12x16xbf16>
    %81 = vector.extract_strided_slice %23 {offsets = [0, 48], sizes = [12, 16], strides = [1, 1]} : vector<12x128xbf16> to vector<12x16xbf16>
    %82 = vector.extract_strided_slice %25 {offsets = [0, 48], sizes = [12, 16], strides = [1, 1]} : vector<12x128xbf16> to vector<12x16xbf16>
    %cst_32 = arith.constant dense<0.000000e+00> : vector<12x12xf32>
    %83 = tpu.matmul %80, %81, %cst_32 {dimension_numbers = #tpu.dot_dimension_numbers<[1], [1], [0], [0], [0, 0, 1, 0], [], []>} : vector<12x16xbf16>, vector<12x16xbf16>, vector<12x12xf32> -> vector<12x12xf32>
    %84 = arith.addf %83, %0 : vector<12x12xf32>
    %cst_33 = arith.constant dense<0xFF800000> : vector<12xf32>
    %85 = vector.multi_reduction <maximumf>, %84, %cst_33 [1] : vector<12x12xf32> to vector<12xf32>
    %86 = vector.shape_cast %85 : vector<12xf32> to vector<12x1xf32>
    %87 = vector.broadcast %86 : vector<12x1xf32> to vector<12x12xf32>
    %88 = arith.subf %84, %87 : vector<12x12xf32>
    %89 = math.exp %88 : vector<12x12xf32>
    %cst_34 = arith.constant dense<0.000000e+00> : vector<12xf32>
    %90 = vector.multi_reduction <add>, %89, %cst_34 [1] : vector<12x12xf32> to vector<12xf32>
    %91 = vector.shape_cast %90 : vector<12xf32> to vector<12x1xf32>
    %cst_35 = arith.constant 1.000000e+00 : f32
    %92 = vector.broadcast %cst_35 : f32 to vector<12x1xf32>
    %93 = arith.divf %92, %91 : vector<12x1xf32>
    %94 = vector.broadcast %93 : vector<12x1xf32> to vector<12x12xf32>
    %95 = arith.mulf %89, %94 : vector<12x12xf32>
    %96 = arith.truncf %95 : vector<12x12xf32> to vector<12x12xbf16>
    %cst_36 = arith.constant dense<0.000000e+00> : vector<12x16xf32>
    %97 = tpu.matmul %96, %82, %cst_36 {dimension_numbers = #tpu.dot_dimension_numbers<[1], [0], [0], [1], [0, 0, 1, 1], [], []>} : vector<12x12xbf16>, vector<12x16xbf16>, vector<12x16xf32> -> vector<12x16xf32>
    %98 = vector.extract_strided_slice %21 {offsets = [0, 64], sizes = [12, 16], strides = [1, 1]} : vector<12x128xbf16> to vector<12x16xbf16>
    %99 = vector.extract_strided_slice %23 {offsets = [0, 64], sizes = [12, 16], strides = [1, 1]} : vector<12x128xbf16> to vector<12x16xbf16>
    %100 = vector.extract_strided_slice %25 {offsets = [0, 64], sizes = [12, 16], strides = [1, 1]} : vector<12x128xbf16> to vector<12x16xbf16>
    %cst_37 = arith.constant dense<0.000000e+00> : vector<12x12xf32>
    %101 = tpu.matmul %98, %99, %cst_37 {dimension_numbers = #tpu.dot_dimension_numbers<[1], [1], [0], [0], [0, 0, 1, 0], [], []>} : vector<12x16xbf16>, vector<12x16xbf16>, vector<12x12xf32> -> vector<12x12xf32>
    %102 = arith.addf %101, %0 : vector<12x12xf32>
    %cst_38 = arith.constant dense<0xFF800000> : vector<12xf32>
    %103 = vector.multi_reduction <maximumf>, %102, %cst_38 [1] : vector<12x12xf32> to vector<12xf32>
    %104 = vector.shape_cast %103 : vector<12xf32> to vector<12x1xf32>
    %105 = vector.broadcast %104 : vector<12x1xf32> to vector<12x12xf32>
    %106 = arith.subf %102, %105 : vector<12x12xf32>
    %107 = math.exp %106 : vector<12x12xf32>
    %cst_39 = arith.constant dense<0.000000e+00> : vector<12xf32>
    %108 = vector.multi_reduction <add>, %107, %cst_39 [1] : vector<12x12xf32> to vector<12xf32>
    %109 = vector.shape_cast %108 : vector<12xf32> to vector<12x1xf32>
    %cst_40 = arith.constant 1.000000e+00 : f32
    %110 = vector.broadcast %cst_40 : f32 to vector<12x1xf32>
    %111 = arith.divf %110, %109 : vector<12x1xf32>
    %112 = vector.broadcast %111 : vector<12x1xf32> to vector<12x12xf32>
    %113 = arith.mulf %107, %112 : vector<12x12xf32>
    %114 = arith.truncf %113 : vector<12x12xf32> to vector<12x12xbf16>
    %cst_41 = arith.constant dense<0.000000e+00> : vector<12x16xf32>
    %115 = tpu.matmul %114, %100, %cst_41 {dimension_numbers = #tpu.dot_dimension_numbers<[1], [0], [0], [1], [0, 0, 1, 1], [], []>} : vector<12x12xbf16>, vector<12x16xbf16>, vector<12x16xf32> -> vector<12x16xf32>
    %116 = vector.extract_strided_slice %21 {offsets = [0, 80], sizes = [12, 16], strides = [1, 1]} : vector<12x128xbf16> to vector<12x16xbf16>
    %117 = vector.extract_strided_slice %23 {offsets = [0, 80], sizes = [12, 16], strides = [1, 1]} : vector<12x128xbf16> to vector<12x16xbf16>
    %118 = vector.extract_strided_slice %25 {offsets = [0, 80], sizes = [12, 16], strides = [1, 1]} : vector<12x128xbf16> to vector<12x16xbf16>
    %cst_42 = arith.constant dense<0.000000e+00> : vector<12x12xf32>
    %119 = tpu.matmul %116, %117, %cst_42 {dimension_numbers = #tpu.dot_dimension_numbers<[1], [1], [0], [0], [0, 0, 1, 0], [], []>} : vector<12x16xbf16>, vector<12x16xbf16>, vector<12x12xf32> -> vector<12x12xf32>
    %120 = arith.addf %119, %0 : vector<12x12xf32>
    %cst_43 = arith.constant dense<0xFF800000> : vector<12xf32>
    %121 = vector.multi_reduction <maximumf>, %120, %cst_43 [1] : vector<12x12xf32> to vector<12xf32>
    %122 = vector.shape_cast %121 : vector<12xf32> to vector<12x1xf32>
    %123 = vector.broadcast %122 : vector<12x1xf32> to vector<12x12xf32>
    %124 = arith.subf %120, %123 : vector<12x12xf32>
    %125 = math.exp %124 : vector<12x12xf32>
    %cst_44 = arith.constant dense<0.000000e+00> : vector<12xf32>
    %126 = vector.multi_reduction <add>, %125, %cst_44 [1] : vector<12x12xf32> to vector<12xf32>
    %127 = vector.shape_cast %126 : vector<12xf32> to vector<12x1xf32>
    %cst_45 = arith.constant 1.000000e+00 : f32
    %128 = vector.broadcast %cst_45 : f32 to vector<12x1xf32>
    %129 = arith.divf %128, %127 : vector<12x1xf32>
    %130 = vector.broadcast %129 : vector<12x1xf32> to vector<12x12xf32>
    %131 = arith.mulf %125, %130 : vector<12x12xf32>
    %132 = arith.truncf %131 : vector<12x12xf32> to vector<12x12xbf16>
    %cst_46 = arith.constant dense<0.000000e+00> : vector<12x16xf32>
    %133 = tpu.matmul %132, %118, %cst_46 {dimension_numbers = #tpu.dot_dimension_numbers<[1], [0], [0], [1], [0, 0, 1, 1], [], []>} : vector<12x12xbf16>, vector<12x16xbf16>, vector<12x16xf32> -> vector<12x16xf32>
    %134 = vector.extract_strided_slice %21 {offsets = [0, 96], sizes = [12, 16], strides = [1, 1]} : vector<12x128xbf16> to vector<12x16xbf16>
    %135 = vector.extract_strided_slice %23 {offsets = [0, 96], sizes = [12, 16], strides = [1, 1]} : vector<12x128xbf16> to vector<12x16xbf16>
    %136 = vector.extract_strided_slice %25 {offsets = [0, 96], sizes = [12, 16], strides = [1, 1]} : vector<12x128xbf16> to vector<12x16xbf16>
    %cst_47 = arith.constant dense<0.000000e+00> : vector<12x12xf32>
    %137 = tpu.matmul %134, %135, %cst_47 {dimension_numbers = #tpu.dot_dimension_numbers<[1], [1], [0], [0], [0, 0, 1, 0], [], []>} : vector<12x16xbf16>, vector<12x16xbf16>, vector<12x12xf32> -> vector<12x12xf32>
    %138 = arith.addf %137, %0 : vector<12x12xf32>
    %cst_48 = arith.constant dense<0xFF800000> : vector<12xf32>
    %139 = vector.multi_reduction <maximumf>, %138, %cst_48 [1] : vector<12x12xf32> to vector<12xf32>
    %140 = vector.shape_cast %139 : vector<12xf32> to vector<12x1xf32>
    %141 = vector.broadcast %140 : vector<12x1xf32> to vector<12x12xf32>
    %142 = arith.subf %138, %141 : vector<12x12xf32>
    %143 = math.exp %142 : vector<12x12xf32>
    %cst_49 = arith.constant dense<0.000000e+00> : vector<12xf32>
    %144 = vector.multi_reduction <add>, %143, %cst_49 [1] : vector<12x12xf32> to vector<12xf32>
    %145 = vector.shape_cast %144 : vector<12xf32> to vector<12x1xf32>
    %cst_50 = arith.constant 1.000000e+00 : f32
    %146 = vector.broadcast %cst_50 : f32 to vector<12x1xf32>
    %147 = arith.divf %146, %145 : vector<12x1xf32>
    %148 = vector.broadcast %147 : vector<12x1xf32> to vector<12x12xf32>
    %149 = arith.mulf %143, %148 : vector<12x12xf32>
    %150 = arith.truncf %149 : vector<12x12xf32> to vector<12x12xbf16>
    %cst_51 = arith.constant dense<0.000000e+00> : vector<12x16xf32>
    %151 = tpu.matmul %150, %136, %cst_51 {dimension_numbers = #tpu.dot_dimension_numbers<[1], [0], [0], [1], [0, 0, 1, 1], [], []>} : vector<12x12xbf16>, vector<12x16xbf16>, vector<12x16xf32> -> vector<12x16xf32>
    %152 = vector.extract_strided_slice %21 {offsets = [0, 112], sizes = [12, 16], strides = [1, 1]} : vector<12x128xbf16> to vector<12x16xbf16>
    %153 = vector.extract_strided_slice %23 {offsets = [0, 112], sizes = [12, 16], strides = [1, 1]} : vector<12x128xbf16> to vector<12x16xbf16>
    %154 = vector.extract_strided_slice %25 {offsets = [0, 112], sizes = [12, 16], strides = [1, 1]} : vector<12x128xbf16> to vector<12x16xbf16>
    %cst_52 = arith.constant dense<0.000000e+00> : vector<12x12xf32>
    %155 = tpu.matmul %152, %153, %cst_52 {dimension_numbers = #tpu.dot_dimension_numbers<[1], [1], [0], [0], [0, 0, 1, 0], [], []>} : vector<12x16xbf16>, vector<12x16xbf16>, vector<12x12xf32> -> vector<12x12xf32>
    %156 = arith.addf %155, %0 : vector<12x12xf32>
    %cst_53 = arith.constant dense<0xFF800000> : vector<12xf32>
    %157 = vector.multi_reduction <maximumf>, %156, %cst_53 [1] : vector<12x12xf32> to vector<12xf32>
    %158 = vector.shape_cast %157 : vector<12xf32> to vector<12x1xf32>
    %159 = vector.broadcast %158 : vector<12x1xf32> to vector<12x12xf32>
    %160 = arith.subf %156, %159 : vector<12x12xf32>
    %161 = math.exp %160 : vector<12x12xf32>
    %cst_54 = arith.constant dense<0.000000e+00> : vector<12xf32>
    %162 = vector.multi_reduction <add>, %161, %cst_54 [1] : vector<12x12xf32> to vector<12xf32>
    %163 = vector.shape_cast %162 : vector<12xf32> to vector<12x1xf32>
    %cst_55 = arith.constant 1.000000e+00 : f32
    %164 = vector.broadcast %cst_55 : f32 to vector<12x1xf32>
    %165 = arith.divf %164, %163 : vector<12x1xf32>
    %166 = vector.broadcast %165 : vector<12x1xf32> to vector<12x12xf32>
    %167 = arith.mulf %161, %166 : vector<12x12xf32>
    %168 = arith.truncf %167 : vector<12x12xf32> to vector<12x12xbf16>
    %cst_56 = arith.constant dense<0.000000e+00> : vector<12x16xf32>
    %169 = tpu.matmul %168, %154, %cst_56 {dimension_numbers = #tpu.dot_dimension_numbers<[1], [0], [0], [1], [0, 0, 1, 1], [], []>} : vector<12x12xbf16>, vector<12x16xbf16>, vector<12x16xf32> -> vector<12x16xf32>
    %170 = tpu.concatenate %43, %61, %79, %97, %115, %133, %151, %169 in 1 : vector<12x16xf32>, vector<12x16xf32>, vector<12x16xf32>, vector<12x16xf32>, vector<12x16xf32>, vector<12x16xf32>, vector<12x16xf32>, vector<12x16xf32> -> vector<12x128xf32>
    %171 = arith.truncf %170 : vector<12x128xf32> to vector<12x128xbf16>
    %c0_57 = arith.constant 0 : index
    %c0_58 = arith.constant 0 : index
    %c0_59 = arith.constant 0 : index
    %172 = vector.load %arg7[%c0_57, %c0_58, %c0_59] : memref<2x128x128xbf16, #tpu.memory_space<vmem>>, vector<1x128x128xbf16>
    %173 = vector.shape_cast %172 : vector<1x128x128xbf16> to vector<128x128xbf16>
    %cst_60 = arith.constant dense<0.000000e+00> : vector<12x128xf32>
    %174 = tpu.matmul %171, %173, %cst_60 {dimension_numbers = #tpu.dot_dimension_numbers<[1], [0], [0], [1], [0, 0, 1, 1], [], []>} : vector<12x128xbf16>, vector<128x128xbf16>, vector<12x128xf32> -> vector<12x128xf32>
    %c0_61 = arith.constant 0 : index
    %c0_62 = arith.constant 0 : index
    %c0_63 = arith.constant 0 : index
    %175 = vector.load %arg8[%c0_61, %c0_62, %c0_63] : memref<2x1x128xf32, #tpu.memory_space<vmem>>, vector<1x1x128xf32>
    %176 = vector.shape_cast %175 : vector<1x1x128xf32> to vector<1x128xf32>
    %177 = vector.broadcast %176 : vector<1x128xf32> to vector<12x128xf32>
    %178 = arith.addf %174, %177 : vector<12x128xf32>
    %179 = arith.addf %178, %9 : vector<12x128xf32>
    %c0_64 = arith.constant 0 : index
    %c0_65 = arith.constant 0 : index
    %c0_66 = arith.constant 0 : index
    %180 = vector.load %arg9[%c0_64, %c0_65, %c0_66] : memref<2x1x128xf32, #tpu.memory_space<vmem>>, vector<1x1x128xf32>
    %181 = vector.shape_cast %180 : vector<1x1x128xf32> to vector<1x128xf32>
    %c0_67 = arith.constant 0 : index
    %c0_68 = arith.constant 0 : index
    %c0_69 = arith.constant 0 : index
    %182 = vector.load %arg10[%c0_67, %c0_68, %c0_69] : memref<2x1x128xf32, #tpu.memory_space<vmem>>, vector<1x1x128xf32>
    %183 = vector.shape_cast %182 : vector<1x1x128xf32> to vector<1x128xf32>
    %cst_70 = arith.constant dense<0.000000e+00> : vector<12xf32>
    %184 = vector.multi_reduction <add>, %179, %cst_70 [1] : vector<12x128xf32> to vector<12xf32>
    %185 = vector.shape_cast %184 : vector<12xf32> to vector<12x1xf32>
    %cst_71 = arith.constant 1.280000e+02 : f32
    %186 = vector.broadcast %cst_71 : f32 to vector<12x1xf32>
    %187 = arith.divf %185, %186 : vector<12x1xf32>
    %188 = vector.broadcast %187 : vector<12x1xf32> to vector<12x128xf32>
    %189 = arith.subf %179, %188 : vector<12x128xf32>
    %190 = arith.mulf %189, %189 : vector<12x128xf32>
    %cst_72 = arith.constant dense<0.000000e+00> : vector<12xf32>
    %191 = vector.multi_reduction <add>, %190, %cst_72 [1] : vector<12x128xf32> to vector<12xf32>
    %192 = vector.shape_cast %191 : vector<12xf32> to vector<12x1xf32>
    %cst_73 = arith.constant 1.280000e+02 : f32
    %193 = vector.broadcast %cst_73 : f32 to vector<12x1xf32>
    %194 = arith.divf %192, %193 : vector<12x1xf32>
    %195 = vector.broadcast %187 : vector<12x1xf32> to vector<12x128xf32>
    %196 = arith.subf %179, %195 : vector<12x128xf32>
    %cst_74 = arith.constant 9.99999974E-6 : f32
    %197 = vector.broadcast %cst_74 : f32 to vector<12x1xf32>
    %198 = arith.addf %194, %197 : vector<12x1xf32>
    %199 = math.rsqrt %198 : vector<12x1xf32>
    %200 = vector.broadcast %199 : vector<12x1xf32> to vector<12x128xf32>
    %201 = arith.mulf %196, %200 : vector<12x128xf32>
    %202 = vector.broadcast %181 : vector<1x128xf32> to vector<12x128xf32>
    %203 = arith.mulf %201, %202 : vector<12x128xf32>
    %204 = vector.broadcast %183 : vector<1x128xf32> to vector<12x128xf32>
    %205 = arith.addf %203, %204 : vector<12x128xf32>
    %206 = arith.truncf %205 : vector<12x128xf32> to vector<12x128xbf16>
    %c0_75 = arith.constant 0 : index
    %c0_76 = arith.constant 0 : index
    %c0_77 = arith.constant 0 : index
    %207 = vector.load %arg11[%c0_75, %c0_76, %c0_77] : memref<2x128x256xbf16, #tpu.memory_space<vmem>>, vector<1x128x256xbf16>
    %208 = vector.shape_cast %207 : vector<1x128x256xbf16> to vector<128x256xbf16>
    %cst_78 = arith.constant dense<0.000000e+00> : vector<12x256xf32>
    %209 = tpu.matmul %206, %208, %cst_78 {dimension_numbers = #tpu.dot_dimension_numbers<[1], [0], [0], [1], [0, 0, 1, 1], [], []>} : vector<12x128xbf16>, vector<128x256xbf16>, vector<12x256xf32> -> vector<12x256xf32>
    %c0_79 = arith.constant 0 : index
    %c0_80 = arith.constant 0 : index
    %c0_81 = arith.constant 0 : index
    %210 = vector.load %arg12[%c0_79, %c0_80, %c0_81] : memref<2x1x256xf32, #tpu.memory_space<vmem>>, vector<1x1x256xf32>
    %211 = vector.shape_cast %210 : vector<1x1x256xf32> to vector<1x256xf32>
    %212 = vector.broadcast %211 : vector<1x256xf32> to vector<12x256xf32>
    %213 = arith.addf %209, %212 : vector<12x256xf32>
    %cst_82 = arith.constant 0.000000e+00 : f32
    %214 = vector.broadcast %cst_82 : f32 to vector<12x256xf32>
    %215 = arith.maximumf %213, %214 : vector<12x256xf32>
    %216 = arith.truncf %215 : vector<12x256xf32> to vector<12x256xbf16>
    %c0_83 = arith.constant 0 : index
    %c0_84 = arith.constant 0 : index
    %c0_85 = arith.constant 0 : index
    %217 = vector.load %arg13[%c0_83, %c0_84, %c0_85] : memref<2x256x128xbf16, #tpu.memory_space<vmem>>, vector<1x256x128xbf16>
    %218 = vector.shape_cast %217 : vector<1x256x128xbf16> to vector<256x128xbf16>
    %cst_86 = arith.constant dense<0.000000e+00> : vector<12x128xf32>
    %219 = tpu.matmul %216, %218, %cst_86 {dimension_numbers = #tpu.dot_dimension_numbers<[1], [0], [0], [1], [0, 0, 1, 1], [], []>} : vector<12x256xbf16>, vector<256x128xbf16>, vector<12x128xf32> -> vector<12x128xf32>
    %c0_87 = arith.constant 0 : index
    %c0_88 = arith.constant 0 : index
    %c0_89 = arith.constant 0 : index
    %220 = vector.load %arg14[%c0_87, %c0_88, %c0_89] : memref<2x1x128xf32, #tpu.memory_space<vmem>>, vector<1x1x128xf32>
    %221 = vector.shape_cast %220 : vector<1x1x128xf32> to vector<1x128xf32>
    %222 = vector.broadcast %221 : vector<1x128xf32> to vector<12x128xf32>
    %223 = arith.addf %219, %222 : vector<12x128xf32>
    %224 = arith.addf %205, %223 : vector<12x128xf32>
    %c0_90 = arith.constant 0 : index
    %c0_91 = arith.constant 0 : index
    %c0_92 = arith.constant 0 : index
    %225 = vector.load %arg15[%c0_90, %c0_91, %c0_92] : memref<2x1x128xf32, #tpu.memory_space<vmem>>, vector<1x1x128xf32>
    %226 = vector.shape_cast %225 : vector<1x1x128xf32> to vector<1x128xf32>
    %c0_93 = arith.constant 0 : index
    %c0_94 = arith.constant 0 : index
    %c0_95 = arith.constant 0 : index
    %227 = vector.load %arg16[%c0_93, %c0_94, %c0_95] : memref<2x1x128xf32, #tpu.memory_space<vmem>>, vector<1x1x128xf32>
    %228 = vector.shape_cast %227 : vector<1x1x128xf32> to vector<1x128xf32>
    %cst_96 = arith.constant dense<0.000000e+00> : vector<12xf32>
    %229 = vector.multi_reduction <add>, %224, %cst_96 [1] : vector<12x128xf32> to vector<12xf32>
    %230 = vector.shape_cast %229 : vector<12xf32> to vector<12x1xf32>
    %cst_97 = arith.constant 1.280000e+02 : f32
    %231 = vector.broadcast %cst_97 : f32 to vector<12x1xf32>
    %232 = arith.divf %230, %231 : vector<12x1xf32>
    %233 = vector.broadcast %232 : vector<12x1xf32> to vector<12x128xf32>
    %234 = arith.subf %224, %233 : vector<12x128xf32>
    %235 = arith.mulf %234, %234 : vector<12x128xf32>
    %cst_98 = arith.constant dense<0.000000e+00> : vector<12xf32>
    %236 = vector.multi_reduction <add>, %235, %cst_98 [1] : vector<12x128xf32> to vector<12xf32>
    %237 = vector.shape_cast %236 : vector<12xf32> to vector<12x1xf32>
    %cst_99 = arith.constant 1.280000e+02 : f32
    %238 = vector.broadcast %cst_99 : f32 to vector<12x1xf32>
    %239 = arith.divf %237, %238 : vector<12x1xf32>
    %240 = vector.broadcast %232 : vector<12x1xf32> to vector<12x128xf32>
    %241 = arith.subf %224, %240 : vector<12x128xf32>
    %cst_100 = arith.constant 9.99999974E-6 : f32
    %242 = vector.broadcast %cst_100 : f32 to vector<12x1xf32>
    %243 = arith.addf %239, %242 : vector<12x1xf32>
    %244 = math.rsqrt %243 : vector<12x1xf32>
    %245 = vector.broadcast %244 : vector<12x1xf32> to vector<12x128xf32>
    %246 = arith.mulf %241, %245 : vector<12x128xf32>
    %247 = vector.broadcast %226 : vector<1x128xf32> to vector<12x128xf32>
    %248 = arith.mulf %246, %247 : vector<12x128xf32>
    %249 = vector.broadcast %228 : vector<1x128xf32> to vector<12x128xf32>
    %250 = arith.addf %248, %249 : vector<12x128xf32>
    %251 = arith.truncf %250 : vector<12x128xf32> to vector<12x128xbf16>
    %c1 = arith.constant 1 : index
    %c0_101 = arith.constant 0 : index
    %c0_102 = arith.constant 0 : index
    %252 = vector.load %arg5[%c1, %c0_101, %c0_102] : memref<2x128x384xbf16, #tpu.memory_space<vmem>>, vector<1x128x384xbf16>
    %253 = vector.shape_cast %252 : vector<1x128x384xbf16> to vector<128x384xbf16>
    %cst_103 = arith.constant dense<0.000000e+00> : vector<12x384xf32>
    %254 = tpu.matmul %251, %253, %cst_103 {dimension_numbers = #tpu.dot_dimension_numbers<[1], [0], [0], [1], [0, 0, 1, 1], [], []>} : vector<12x128xbf16>, vector<128x384xbf16>, vector<12x384xf32> -> vector<12x384xf32>
    %c1_104 = arith.constant 1 : index
    %c0_105 = arith.constant 0 : index
    %c0_106 = arith.constant 0 : index
    %255 = vector.load %arg6[%c1_104, %c0_105, %c0_106] : memref<2x1x384xf32, #tpu.memory_space<vmem>>, vector<1x1x384xf32>
    %256 = vector.shape_cast %255 : vector<1x1x384xf32> to vector<1x384xf32>
    %257 = vector.broadcast %256 : vector<1x384xf32> to vector<12x384xf32>
    %258 = arith.addf %254, %257 : vector<12x384xf32>
    %259 = vector.extract_strided_slice %258 {offsets = [0, 0], sizes = [12, 128], strides = [1, 1]} : vector<12x384xf32> to vector<12x128xf32>
    %cst_107 = arith.constant 2.500000e-01 : f32
    %260 = vector.broadcast %cst_107 : f32 to vector<12x128xf32>
    %261 = arith.mulf %259, %260 : vector<12x128xf32>
    %262 = arith.truncf %261 : vector<12x128xf32> to vector<12x128xbf16>
    %263 = vector.extract_strided_slice %258 {offsets = [0, 128], sizes = [12, 128], strides = [1, 1]} : vector<12x384xf32> to vector<12x128xf32>
    %264 = arith.truncf %263 : vector<12x128xf32> to vector<12x128xbf16>
    %265 = vector.extract_strided_slice %258 {offsets = [0, 256], sizes = [12, 128], strides = [1, 1]} : vector<12x384xf32> to vector<12x128xf32>
    %266 = arith.truncf %265 : vector<12x128xf32> to vector<12x128xbf16>
    %267 = vector.extract_strided_slice %262 {offsets = [0, 0], sizes = [12, 16], strides = [1, 1]} : vector<12x128xbf16> to vector<12x16xbf16>
    %268 = vector.extract_strided_slice %264 {offsets = [0, 0], sizes = [12, 16], strides = [1, 1]} : vector<12x128xbf16> to vector<12x16xbf16>
    %269 = vector.extract_strided_slice %266 {offsets = [0, 0], sizes = [12, 16], strides = [1, 1]} : vector<12x128xbf16> to vector<12x16xbf16>
    %cst_108 = arith.constant dense<0.000000e+00> : vector<12x12xf32>
    %270 = tpu.matmul %267, %268, %cst_108 {dimension_numbers = #tpu.dot_dimension_numbers<[1], [1], [0], [0], [0, 0, 1, 0], [], []>} : vector<12x16xbf16>, vector<12x16xbf16>, vector<12x12xf32> -> vector<12x12xf32>
    %271 = arith.addf %270, %0 : vector<12x12xf32>
    %cst_109 = arith.constant dense<0xFF800000> : vector<12xf32>
    %272 = vector.multi_reduction <maximumf>, %271, %cst_109 [1] : vector<12x12xf32> to vector<12xf32>
    %273 = vector.shape_cast %272 : vector<12xf32> to vector<12x1xf32>
    %274 = vector.broadcast %273 : vector<12x1xf32> to vector<12x12xf32>
    %275 = arith.subf %271, %274 : vector<12x12xf32>
    %276 = math.exp %275 : vector<12x12xf32>
    %cst_110 = arith.constant dense<0.000000e+00> : vector<12xf32>
    %277 = vector.multi_reduction <add>, %276, %cst_110 [1] : vector<12x12xf32> to vector<12xf32>
    %278 = vector.shape_cast %277 : vector<12xf32> to vector<12x1xf32>
    %cst_111 = arith.constant 1.000000e+00 : f32
    %279 = vector.broadcast %cst_111 : f32 to vector<12x1xf32>
    %280 = arith.divf %279, %278 : vector<12x1xf32>
    %281 = vector.broadcast %280 : vector<12x1xf32> to vector<12x12xf32>
    %282 = arith.mulf %276, %281 : vector<12x12xf32>
    %283 = arith.truncf %282 : vector<12x12xf32> to vector<12x12xbf16>
    %cst_112 = arith.constant dense<0.000000e+00> : vector<12x16xf32>
    %284 = tpu.matmul %283, %269, %cst_112 {dimension_numbers = #tpu.dot_dimension_numbers<[1], [0], [0], [1], [0, 0, 1, 1], [], []>} : vector<12x12xbf16>, vector<12x16xbf16>, vector<12x16xf32> -> vector<12x16xf32>
    %285 = vector.extract_strided_slice %262 {offsets = [0, 16], sizes = [12, 16], strides = [1, 1]} : vector<12x128xbf16> to vector<12x16xbf16>
    %286 = vector.extract_strided_slice %264 {offsets = [0, 16], sizes = [12, 16], strides = [1, 1]} : vector<12x128xbf16> to vector<12x16xbf16>
    %287 = vector.extract_strided_slice %266 {offsets = [0, 16], sizes = [12, 16], strides = [1, 1]} : vector<12x128xbf16> to vector<12x16xbf16>
    %cst_113 = arith.constant dense<0.000000e+00> : vector<12x12xf32>
    %288 = tpu.matmul %285, %286, %cst_113 {dimension_numbers = #tpu.dot_dimension_numbers<[1], [1], [0], [0], [0, 0, 1, 0], [], []>} : vector<12x16xbf16>, vector<12x16xbf16>, vector<12x12xf32> -> vector<12x12xf32>
    %289 = arith.addf %288, %0 : vector<12x12xf32>
    %cst_114 = arith.constant dense<0xFF800000> : vector<12xf32>
    %290 = vector.multi_reduction <maximumf>, %289, %cst_114 [1] : vector<12x12xf32> to vector<12xf32>
    %291 = vector.shape_cast %290 : vector<12xf32> to vector<12x1xf32>
    %292 = vector.broadcast %291 : vector<12x1xf32> to vector<12x12xf32>
    %293 = arith.subf %289, %292 : vector<12x12xf32>
    %294 = math.exp %293 : vector<12x12xf32>
    %cst_115 = arith.constant dense<0.000000e+00> : vector<12xf32>
    %295 = vector.multi_reduction <add>, %294, %cst_115 [1] : vector<12x12xf32> to vector<12xf32>
    %296 = vector.shape_cast %295 : vector<12xf32> to vector<12x1xf32>
    %cst_116 = arith.constant 1.000000e+00 : f32
    %297 = vector.broadcast %cst_116 : f32 to vector<12x1xf32>
    %298 = arith.divf %297, %296 : vector<12x1xf32>
    %299 = vector.broadcast %298 : vector<12x1xf32> to vector<12x12xf32>
    %300 = arith.mulf %294, %299 : vector<12x12xf32>
    %301 = arith.truncf %300 : vector<12x12xf32> to vector<12x12xbf16>
    %cst_117 = arith.constant dense<0.000000e+00> : vector<12x16xf32>
    %302 = tpu.matmul %301, %287, %cst_117 {dimension_numbers = #tpu.dot_dimension_numbers<[1], [0], [0], [1], [0, 0, 1, 1], [], []>} : vector<12x12xbf16>, vector<12x16xbf16>, vector<12x16xf32> -> vector<12x16xf32>
    %303 = vector.extract_strided_slice %262 {offsets = [0, 32], sizes = [12, 16], strides = [1, 1]} : vector<12x128xbf16> to vector<12x16xbf16>
    %304 = vector.extract_strided_slice %264 {offsets = [0, 32], sizes = [12, 16], strides = [1, 1]} : vector<12x128xbf16> to vector<12x16xbf16>
    %305 = vector.extract_strided_slice %266 {offsets = [0, 32], sizes = [12, 16], strides = [1, 1]} : vector<12x128xbf16> to vector<12x16xbf16>
    %cst_118 = arith.constant dense<0.000000e+00> : vector<12x12xf32>
    %306 = tpu.matmul %303, %304, %cst_118 {dimension_numbers = #tpu.dot_dimension_numbers<[1], [1], [0], [0], [0, 0, 1, 0], [], []>} : vector<12x16xbf16>, vector<12x16xbf16>, vector<12x12xf32> -> vector<12x12xf32>
    %307 = arith.addf %306, %0 : vector<12x12xf32>
    %cst_119 = arith.constant dense<0xFF800000> : vector<12xf32>
    %308 = vector.multi_reduction <maximumf>, %307, %cst_119 [1] : vector<12x12xf32> to vector<12xf32>
    %309 = vector.shape_cast %308 : vector<12xf32> to vector<12x1xf32>
    %310 = vector.broadcast %309 : vector<12x1xf32> to vector<12x12xf32>
    %311 = arith.subf %307, %310 : vector<12x12xf32>
    %312 = math.exp %311 : vector<12x12xf32>
    %cst_120 = arith.constant dense<0.000000e+00> : vector<12xf32>
    %313 = vector.multi_reduction <add>, %312, %cst_120 [1] : vector<12x12xf32> to vector<12xf32>
    %314 = vector.shape_cast %313 : vector<12xf32> to vector<12x1xf32>
    %cst_121 = arith.constant 1.000000e+00 : f32
    %315 = vector.broadcast %cst_121 : f32 to vector<12x1xf32>
    %316 = arith.divf %315, %314 : vector<12x1xf32>
    %317 = vector.broadcast %316 : vector<12x1xf32> to vector<12x12xf32>
    %318 = arith.mulf %312, %317 : vector<12x12xf32>
    %319 = arith.truncf %318 : vector<12x12xf32> to vector<12x12xbf16>
    %cst_122 = arith.constant dense<0.000000e+00> : vector<12x16xf32>
    %320 = tpu.matmul %319, %305, %cst_122 {dimension_numbers = #tpu.dot_dimension_numbers<[1], [0], [0], [1], [0, 0, 1, 1], [], []>} : vector<12x12xbf16>, vector<12x16xbf16>, vector<12x16xf32> -> vector<12x16xf32>
    %321 = vector.extract_strided_slice %262 {offsets = [0, 48], sizes = [12, 16], strides = [1, 1]} : vector<12x128xbf16> to vector<12x16xbf16>
    %322 = vector.extract_strided_slice %264 {offsets = [0, 48], sizes = [12, 16], strides = [1, 1]} : vector<12x128xbf16> to vector<12x16xbf16>
    %323 = vector.extract_strided_slice %266 {offsets = [0, 48], sizes = [12, 16], strides = [1, 1]} : vector<12x128xbf16> to vector<12x16xbf16>
    %cst_123 = arith.constant dense<0.000000e+00> : vector<12x12xf32>
    %324 = tpu.matmul %321, %322, %cst_123 {dimension_numbers = #tpu.dot_dimension_numbers<[1], [1], [0], [0], [0, 0, 1, 0], [], []>} : vector<12x16xbf16>, vector<12x16xbf16>, vector<12x12xf32> -> vector<12x12xf32>
    %325 = arith.addf %324, %0 : vector<12x12xf32>
    %cst_124 = arith.constant dense<0xFF800000> : vector<12xf32>
    %326 = vector.multi_reduction <maximumf>, %325, %cst_124 [1] : vector<12x12xf32> to vector<12xf32>
    %327 = vector.shape_cast %326 : vector<12xf32> to vector<12x1xf32>
    %328 = vector.broadcast %327 : vector<12x1xf32> to vector<12x12xf32>
    %329 = arith.subf %325, %328 : vector<12x12xf32>
    %330 = math.exp %329 : vector<12x12xf32>
    %cst_125 = arith.constant dense<0.000000e+00> : vector<12xf32>
    %331 = vector.multi_reduction <add>, %330, %cst_125 [1] : vector<12x12xf32> to vector<12xf32>
    %332 = vector.shape_cast %331 : vector<12xf32> to vector<12x1xf32>
    %cst_126 = arith.constant 1.000000e+00 : f32
    %333 = vector.broadcast %cst_126 : f32 to vector<12x1xf32>
    %334 = arith.divf %333, %332 : vector<12x1xf32>
    %335 = vector.broadcast %334 : vector<12x1xf32> to vector<12x12xf32>
    %336 = arith.mulf %330, %335 : vector<12x12xf32>
    %337 = arith.truncf %336 : vector<12x12xf32> to vector<12x12xbf16>
    %cst_127 = arith.constant dense<0.000000e+00> : vector<12x16xf32>
    %338 = tpu.matmul %337, %323, %cst_127 {dimension_numbers = #tpu.dot_dimension_numbers<[1], [0], [0], [1], [0, 0, 1, 1], [], []>} : vector<12x12xbf16>, vector<12x16xbf16>, vector<12x16xf32> -> vector<12x16xf32>
    %339 = vector.extract_strided_slice %262 {offsets = [0, 64], sizes = [12, 16], strides = [1, 1]} : vector<12x128xbf16> to vector<12x16xbf16>
    %340 = vector.extract_strided_slice %264 {offsets = [0, 64], sizes = [12, 16], strides = [1, 1]} : vector<12x128xbf16> to vector<12x16xbf16>
    %341 = vector.extract_strided_slice %266 {offsets = [0, 64], sizes = [12, 16], strides = [1, 1]} : vector<12x128xbf16> to vector<12x16xbf16>
    %cst_128 = arith.constant dense<0.000000e+00> : vector<12x12xf32>
    %342 = tpu.matmul %339, %340, %cst_128 {dimension_numbers = #tpu.dot_dimension_numbers<[1], [1], [0], [0], [0, 0, 1, 0], [], []>} : vector<12x16xbf16>, vector<12x16xbf16>, vector<12x12xf32> -> vector<12x12xf32>
    %343 = arith.addf %342, %0 : vector<12x12xf32>
    %cst_129 = arith.constant dense<0xFF800000> : vector<12xf32>
    %344 = vector.multi_reduction <maximumf>, %343, %cst_129 [1] : vector<12x12xf32> to vector<12xf32>
    %345 = vector.shape_cast %344 : vector<12xf32> to vector<12x1xf32>
    %346 = vector.broadcast %345 : vector<12x1xf32> to vector<12x12xf32>
    %347 = arith.subf %343, %346 : vector<12x12xf32>
    %348 = math.exp %347 : vector<12x12xf32>
    %cst_130 = arith.constant dense<0.000000e+00> : vector<12xf32>
    %349 = vector.multi_reduction <add>, %348, %cst_130 [1] : vector<12x12xf32> to vector<12xf32>
    %350 = vector.shape_cast %349 : vector<12xf32> to vector<12x1xf32>
    %cst_131 = arith.constant 1.000000e+00 : f32
    %351 = vector.broadcast %cst_131 : f32 to vector<12x1xf32>
    %352 = arith.divf %351, %350 : vector<12x1xf32>
    %353 = vector.broadcast %352 : vector<12x1xf32> to vector<12x12xf32>
    %354 = arith.mulf %348, %353 : vector<12x12xf32>
    %355 = arith.truncf %354 : vector<12x12xf32> to vector<12x12xbf16>
    %cst_132 = arith.constant dense<0.000000e+00> : vector<12x16xf32>
    %356 = tpu.matmul %355, %341, %cst_132 {dimension_numbers = #tpu.dot_dimension_numbers<[1], [0], [0], [1], [0, 0, 1, 1], [], []>} : vector<12x12xbf16>, vector<12x16xbf16>, vector<12x16xf32> -> vector<12x16xf32>
    %357 = vector.extract_strided_slice %262 {offsets = [0, 80], sizes = [12, 16], strides = [1, 1]} : vector<12x128xbf16> to vector<12x16xbf16>
    %358 = vector.extract_strided_slice %264 {offsets = [0, 80], sizes = [12, 16], strides = [1, 1]} : vector<12x128xbf16> to vector<12x16xbf16>
    %359 = vector.extract_strided_slice %266 {offsets = [0, 80], sizes = [12, 16], strides = [1, 1]} : vector<12x128xbf16> to vector<12x16xbf16>
    %cst_133 = arith.constant dense<0.000000e+00> : vector<12x12xf32>
    %360 = tpu.matmul %357, %358, %cst_133 {dimension_numbers = #tpu.dot_dimension_numbers<[1], [1], [0], [0], [0, 0, 1, 0], [], []>} : vector<12x16xbf16>, vector<12x16xbf16>, vector<12x12xf32> -> vector<12x12xf32>
    %361 = arith.addf %360, %0 : vector<12x12xf32>
    %cst_134 = arith.constant dense<0xFF800000> : vector<12xf32>
    %362 = vector.multi_reduction <maximumf>, %361, %cst_134 [1] : vector<12x12xf32> to vector<12xf32>
    %363 = vector.shape_cast %362 : vector<12xf32> to vector<12x1xf32>
    %364 = vector.broadcast %363 : vector<12x1xf32> to vector<12x12xf32>
    %365 = arith.subf %361, %364 : vector<12x12xf32>
    %366 = math.exp %365 : vector<12x12xf32>
    %cst_135 = arith.constant dense<0.000000e+00> : vector<12xf32>
    %367 = vector.multi_reduction <add>, %366, %cst_135 [1] : vector<12x12xf32> to vector<12xf32>
    %368 = vector.shape_cast %367 : vector<12xf32> to vector<12x1xf32>
    %cst_136 = arith.constant 1.000000e+00 : f32
    %369 = vector.broadcast %cst_136 : f32 to vector<12x1xf32>
    %370 = arith.divf %369, %368 : vector<12x1xf32>
    %371 = vector.broadcast %370 : vector<12x1xf32> to vector<12x12xf32>
    %372 = arith.mulf %366, %371 : vector<12x12xf32>
    %373 = arith.truncf %372 : vector<12x12xf32> to vector<12x12xbf16>
    %cst_137 = arith.constant dense<0.000000e+00> : vector<12x16xf32>
    %374 = tpu.matmul %373, %359, %cst_137 {dimension_numbers = #tpu.dot_dimension_numbers<[1], [0], [0], [1], [0, 0, 1, 1], [], []>} : vector<12x12xbf16>, vector<12x16xbf16>, vector<12x16xf32> -> vector<12x16xf32>
    %375 = vector.extract_strided_slice %262 {offsets = [0, 96], sizes = [12, 16], strides = [1, 1]} : vector<12x128xbf16> to vector<12x16xbf16>
    %376 = vector.extract_strided_slice %264 {offsets = [0, 96], sizes = [12, 16], strides = [1, 1]} : vector<12x128xbf16> to vector<12x16xbf16>
    %377 = vector.extract_strided_slice %266 {offsets = [0, 96], sizes = [12, 16], strides = [1, 1]} : vector<12x128xbf16> to vector<12x16xbf16>
    %cst_138 = arith.constant dense<0.000000e+00> : vector<12x12xf32>
    %378 = tpu.matmul %375, %376, %cst_138 {dimension_numbers = #tpu.dot_dimension_numbers<[1], [1], [0], [0], [0, 0, 1, 0], [], []>} : vector<12x16xbf16>, vector<12x16xbf16>, vector<12x12xf32> -> vector<12x12xf32>
    %379 = arith.addf %378, %0 : vector<12x12xf32>
    %cst_139 = arith.constant dense<0xFF800000> : vector<12xf32>
    %380 = vector.multi_reduction <maximumf>, %379, %cst_139 [1] : vector<12x12xf32> to vector<12xf32>
    %381 = vector.shape_cast %380 : vector<12xf32> to vector<12x1xf32>
    %382 = vector.broadcast %381 : vector<12x1xf32> to vector<12x12xf32>
    %383 = arith.subf %379, %382 : vector<12x12xf32>
    %384 = math.exp %383 : vector<12x12xf32>
    %cst_140 = arith.constant dense<0.000000e+00> : vector<12xf32>
    %385 = vector.multi_reduction <add>, %384, %cst_140 [1] : vector<12x12xf32> to vector<12xf32>
    %386 = vector.shape_cast %385 : vector<12xf32> to vector<12x1xf32>
    %cst_141 = arith.constant 1.000000e+00 : f32
    %387 = vector.broadcast %cst_141 : f32 to vector<12x1xf32>
    %388 = arith.divf %387, %386 : vector<12x1xf32>
    %389 = vector.broadcast %388 : vector<12x1xf32> to vector<12x12xf32>
    %390 = arith.mulf %384, %389 : vector<12x12xf32>
    %391 = arith.truncf %390 : vector<12x12xf32> to vector<12x12xbf16>
    %cst_142 = arith.constant dense<0.000000e+00> : vector<12x16xf32>
    %392 = tpu.matmul %391, %377, %cst_142 {dimension_numbers = #tpu.dot_dimension_numbers<[1], [0], [0], [1], [0, 0, 1, 1], [], []>} : vector<12x12xbf16>, vector<12x16xbf16>, vector<12x16xf32> -> vector<12x16xf32>
    %393 = vector.extract_strided_slice %262 {offsets = [0, 112], sizes = [12, 16], strides = [1, 1]} : vector<12x128xbf16> to vector<12x16xbf16>
    %394 = vector.extract_strided_slice %264 {offsets = [0, 112], sizes = [12, 16], strides = [1, 1]} : vector<12x128xbf16> to vector<12x16xbf16>
    %395 = vector.extract_strided_slice %266 {offsets = [0, 112], sizes = [12, 16], strides = [1, 1]} : vector<12x128xbf16> to vector<12x16xbf16>
    %cst_143 = arith.constant dense<0.000000e+00> : vector<12x12xf32>
    %396 = tpu.matmul %393, %394, %cst_143 {dimension_numbers = #tpu.dot_dimension_numbers<[1], [1], [0], [0], [0, 0, 1, 0], [], []>} : vector<12x16xbf16>, vector<12x16xbf16>, vector<12x12xf32> -> vector<12x12xf32>
    %397 = arith.addf %396, %0 : vector<12x12xf32>
    %cst_144 = arith.constant dense<0xFF800000> : vector<12xf32>
    %398 = vector.multi_reduction <maximumf>, %397, %cst_144 [1] : vector<12x12xf32> to vector<12xf32>
    %399 = vector.shape_cast %398 : vector<12xf32> to vector<12x1xf32>
    %400 = vector.broadcast %399 : vector<12x1xf32> to vector<12x12xf32>
    %401 = arith.subf %397, %400 : vector<12x12xf32>
    %402 = math.exp %401 : vector<12x12xf32>
    %cst_145 = arith.constant dense<0.000000e+00> : vector<12xf32>
    %403 = vector.multi_reduction <add>, %402, %cst_145 [1] : vector<12x12xf32> to vector<12xf32>
    %404 = vector.shape_cast %403 : vector<12xf32> to vector<12x1xf32>
    %cst_146 = arith.constant 1.000000e+00 : f32
    %405 = vector.broadcast %cst_146 : f32 to vector<12x1xf32>
    %406 = arith.divf %405, %404 : vector<12x1xf32>
    %407 = vector.broadcast %406 : vector<12x1xf32> to vector<12x12xf32>
    %408 = arith.mulf %402, %407 : vector<12x12xf32>
    %409 = arith.truncf %408 : vector<12x12xf32> to vector<12x12xbf16>
    %cst_147 = arith.constant dense<0.000000e+00> : vector<12x16xf32>
    %410 = tpu.matmul %409, %395, %cst_147 {dimension_numbers = #tpu.dot_dimension_numbers<[1], [0], [0], [1], [0, 0, 1, 1], [], []>} : vector<12x12xbf16>, vector<12x16xbf16>, vector<12x16xf32> -> vector<12x16xf32>
    %411 = tpu.concatenate %284, %302, %320, %338, %356, %374, %392, %410 in 1 : vector<12x16xf32>, vector<12x16xf32>, vector<12x16xf32>, vector<12x16xf32>, vector<12x16xf32>, vector<12x16xf32>, vector<12x16xf32>, vector<12x16xf32> -> vector<12x128xf32>
    %412 = arith.truncf %411 : vector<12x128xf32> to vector<12x128xbf16>
    %c1_148 = arith.constant 1 : index
    %c0_149 = arith.constant 0 : index
    %c0_150 = arith.constant 0 : index
    %413 = vector.load %arg7[%c1_148, %c0_149, %c0_150] : memref<2x128x128xbf16, #tpu.memory_space<vmem>>, vector<1x128x128xbf16>
    %414 = vector.shape_cast %413 : vector<1x128x128xbf16> to vector<128x128xbf16>
    %cst_151 = arith.constant dense<0.000000e+00> : vector<12x128xf32>
    %415 = tpu.matmul %412, %414, %cst_151 {dimension_numbers = #tpu.dot_dimension_numbers<[1], [0], [0], [1], [0, 0, 1, 1], [], []>} : vector<12x128xbf16>, vector<128x128xbf16>, vector<12x128xf32> -> vector<12x128xf32>
    %c1_152 = arith.constant 1 : index
    %c0_153 = arith.constant 0 : index
    %c0_154 = arith.constant 0 : index
    %416 = vector.load %arg8[%c1_152, %c0_153, %c0_154] : memref<2x1x128xf32, #tpu.memory_space<vmem>>, vector<1x1x128xf32>
    %417 = vector.shape_cast %416 : vector<1x1x128xf32> to vector<1x128xf32>
    %418 = vector.broadcast %417 : vector<1x128xf32> to vector<12x128xf32>
    %419 = arith.addf %415, %418 : vector<12x128xf32>
    %420 = arith.addf %419, %250 : vector<12x128xf32>
    %c1_155 = arith.constant 1 : index
    %c0_156 = arith.constant 0 : index
    %c0_157 = arith.constant 0 : index
    %421 = vector.load %arg9[%c1_155, %c0_156, %c0_157] : memref<2x1x128xf32, #tpu.memory_space<vmem>>, vector<1x1x128xf32>
    %422 = vector.shape_cast %421 : vector<1x1x128xf32> to vector<1x128xf32>
    %c1_158 = arith.constant 1 : index
    %c0_159 = arith.constant 0 : index
    %c0_160 = arith.constant 0 : index
    %423 = vector.load %arg10[%c1_158, %c0_159, %c0_160] : memref<2x1x128xf32, #tpu.memory_space<vmem>>, vector<1x1x128xf32>
    %424 = vector.shape_cast %423 : vector<1x1x128xf32> to vector<1x128xf32>
    %cst_161 = arith.constant dense<0.000000e+00> : vector<12xf32>
    %425 = vector.multi_reduction <add>, %420, %cst_161 [1] : vector<12x128xf32> to vector<12xf32>
    %426 = vector.shape_cast %425 : vector<12xf32> to vector<12x1xf32>
    %cst_162 = arith.constant 1.280000e+02 : f32
    %427 = vector.broadcast %cst_162 : f32 to vector<12x1xf32>
    %428 = arith.divf %426, %427 : vector<12x1xf32>
    %429 = vector.broadcast %428 : vector<12x1xf32> to vector<12x128xf32>
    %430 = arith.subf %420, %429 : vector<12x128xf32>
    %431 = arith.mulf %430, %430 : vector<12x128xf32>
    %cst_163 = arith.constant dense<0.000000e+00> : vector<12xf32>
    %432 = vector.multi_reduction <add>, %431, %cst_163 [1] : vector<12x128xf32> to vector<12xf32>
    %433 = vector.shape_cast %432 : vector<12xf32> to vector<12x1xf32>
    %cst_164 = arith.constant 1.280000e+02 : f32
    %434 = vector.broadcast %cst_164 : f32 to vector<12x1xf32>
    %435 = arith.divf %433, %434 : vector<12x1xf32>
    %436 = vector.broadcast %428 : vector<12x1xf32> to vector<12x128xf32>
    %437 = arith.subf %420, %436 : vector<12x128xf32>
    %cst_165 = arith.constant 9.99999974E-6 : f32
    %438 = vector.broadcast %cst_165 : f32 to vector<12x1xf32>
    %439 = arith.addf %435, %438 : vector<12x1xf32>
    %440 = math.rsqrt %439 : vector<12x1xf32>
    %441 = vector.broadcast %440 : vector<12x1xf32> to vector<12x128xf32>
    %442 = arith.mulf %437, %441 : vector<12x128xf32>
    %443 = vector.broadcast %422 : vector<1x128xf32> to vector<12x128xf32>
    %444 = arith.mulf %442, %443 : vector<12x128xf32>
    %445 = vector.broadcast %424 : vector<1x128xf32> to vector<12x128xf32>
    %446 = arith.addf %444, %445 : vector<12x128xf32>
    %447 = arith.truncf %446 : vector<12x128xf32> to vector<12x128xbf16>
    %c1_166 = arith.constant 1 : index
    %c0_167 = arith.constant 0 : index
    %c0_168 = arith.constant 0 : index
    %448 = vector.load %arg11[%c1_166, %c0_167, %c0_168] : memref<2x128x256xbf16, #tpu.memory_space<vmem>>, vector<1x128x256xbf16>
    %449 = vector.shape_cast %448 : vector<1x128x256xbf16> to vector<128x256xbf16>
    %cst_169 = arith.constant dense<0.000000e+00> : vector<12x256xf32>
    %450 = tpu.matmul %447, %449, %cst_169 {dimension_numbers = #tpu.dot_dimension_numbers<[1], [0], [0], [1], [0, 0, 1, 1], [], []>} : vector<12x128xbf16>, vector<128x256xbf16>, vector<12x256xf32> -> vector<12x256xf32>
    %c1_170 = arith.constant 1 : index
    %c0_171 = arith.constant 0 : index
    %c0_172 = arith.constant 0 : index
    %451 = vector.load %arg12[%c1_170, %c0_171, %c0_172] : memref<2x1x256xf32, #tpu.memory_space<vmem>>, vector<1x1x256xf32>
    %452 = vector.shape_cast %451 : vector<1x1x256xf32> to vector<1x256xf32>
    %453 = vector.broadcast %452 : vector<1x256xf32> to vector<12x256xf32>
    %454 = arith.addf %450, %453 : vector<12x256xf32>
    %cst_173 = arith.constant 0.000000e+00 : f32
    %455 = vector.broadcast %cst_173 : f32 to vector<12x256xf32>
    %456 = arith.maximumf %454, %455 : vector<12x256xf32>
    %457 = arith.truncf %456 : vector<12x256xf32> to vector<12x256xbf16>
    %c1_174 = arith.constant 1 : index
    %c0_175 = arith.constant 0 : index
    %c0_176 = arith.constant 0 : index
    %458 = vector.load %arg13[%c1_174, %c0_175, %c0_176] : memref<2x256x128xbf16, #tpu.memory_space<vmem>>, vector<1x256x128xbf16>
    %459 = vector.shape_cast %458 : vector<1x256x128xbf16> to vector<256x128xbf16>
    %cst_177 = arith.constant dense<0.000000e+00> : vector<12x128xf32>
    %460 = tpu.matmul %457, %459, %cst_177 {dimension_numbers = #tpu.dot_dimension_numbers<[1], [0], [0], [1], [0, 0, 1, 1], [], []>} : vector<12x256xbf16>, vector<256x128xbf16>, vector<12x128xf32> -> vector<12x128xf32>
    %c1_178 = arith.constant 1 : index
    %c0_179 = arith.constant 0 : index
    %c0_180 = arith.constant 0 : index
    %461 = vector.load %arg14[%c1_178, %c0_179, %c0_180] : memref<2x1x128xf32, #tpu.memory_space<vmem>>, vector<1x1x128xf32>
    %462 = vector.shape_cast %461 : vector<1x1x128xf32> to vector<1x128xf32>
    %463 = vector.broadcast %462 : vector<1x128xf32> to vector<12x128xf32>
    %464 = arith.addf %460, %463 : vector<12x128xf32>
    %465 = arith.addf %446, %464 : vector<12x128xf32>
    %c1_181 = arith.constant 1 : index
    %c0_182 = arith.constant 0 : index
    %c0_183 = arith.constant 0 : index
    %466 = vector.load %arg15[%c1_181, %c0_182, %c0_183] : memref<2x1x128xf32, #tpu.memory_space<vmem>>, vector<1x1x128xf32>
    %467 = vector.shape_cast %466 : vector<1x1x128xf32> to vector<1x128xf32>
    %c1_184 = arith.constant 1 : index
    %c0_185 = arith.constant 0 : index
    %c0_186 = arith.constant 0 : index
    %468 = vector.load %arg16[%c1_184, %c0_185, %c0_186] : memref<2x1x128xf32, #tpu.memory_space<vmem>>, vector<1x1x128xf32>
    %469 = vector.shape_cast %468 : vector<1x1x128xf32> to vector<1x128xf32>
    %cst_187 = arith.constant dense<0.000000e+00> : vector<12xf32>
    %470 = vector.multi_reduction <add>, %465, %cst_187 [1] : vector<12x128xf32> to vector<12xf32>
    %471 = vector.shape_cast %470 : vector<12xf32> to vector<12x1xf32>
    %cst_188 = arith.constant 1.280000e+02 : f32
    %472 = vector.broadcast %cst_188 : f32 to vector<12x1xf32>
    %473 = arith.divf %471, %472 : vector<12x1xf32>
    %474 = vector.broadcast %473 : vector<12x1xf32> to vector<12x128xf32>
    %475 = arith.subf %465, %474 : vector<12x128xf32>
    %476 = arith.mulf %475, %475 : vector<12x128xf32>
    %cst_189 = arith.constant dense<0.000000e+00> : vector<12xf32>
    %477 = vector.multi_reduction <add>, %476, %cst_189 [1] : vector<12x128xf32> to vector<12xf32>
    %478 = vector.shape_cast %477 : vector<12xf32> to vector<12x1xf32>
    %cst_190 = arith.constant 1.280000e+02 : f32
    %479 = vector.broadcast %cst_190 : f32 to vector<12x1xf32>
    %480 = arith.divf %478, %479 : vector<12x1xf32>
    %481 = vector.broadcast %473 : vector<12x1xf32> to vector<12x128xf32>
    %482 = arith.subf %465, %481 : vector<12x128xf32>
    %cst_191 = arith.constant 9.99999974E-6 : f32
    %483 = vector.broadcast %cst_191 : f32 to vector<12x1xf32>
    %484 = arith.addf %480, %483 : vector<12x1xf32>
    %485 = math.rsqrt %484 : vector<12x1xf32>
    %486 = vector.broadcast %485 : vector<12x1xf32> to vector<12x128xf32>
    %487 = arith.mulf %482, %486 : vector<12x128xf32>
    %488 = vector.broadcast %467 : vector<1x128xf32> to vector<12x128xf32>
    %489 = arith.mulf %487, %488 : vector<12x128xf32>
    %490 = vector.broadcast %469 : vector<1x128xf32> to vector<12x128xf32>
    %491 = arith.addf %489, %490 : vector<12x128xf32>
    %492 = vector.extract_strided_slice %491 {offsets = [4, 0], sizes = [2, 128], strides = [1, 1]} : vector<12x128xf32> to vector<2x128xf32>
    %493 = vector.extract_strided_slice %491 {offsets = [10, 0], sizes = [2, 128], strides = [1, 1]} : vector<12x128xf32> to vector<2x128xf32>
    %494 = tpu.concatenate %492, %493 in 0 : vector<2x128xf32>, vector<2x128xf32> -> vector<4x128xf32>
    %495 = arith.truncf %494 : vector<4x128xf32> to vector<4x128xbf16>
    %c0_192 = arith.constant 0 : index
    %c0_193 = arith.constant 0 : index
    %496 = vector.load %arg17[%c0_192, %c0_193] : memref<128x8xbf16, #tpu.memory_space<vmem>>, vector<128x8xbf16>
    %cst_194 = arith.constant dense<0.000000e+00> : vector<4x8xf32>
    %497 = tpu.matmul %495, %496, %cst_194 {dimension_numbers = #tpu.dot_dimension_numbers<[1], [0], [0], [1], [0, 0, 1, 1], [], []>} : vector<4x128xbf16>, vector<128x8xbf16>, vector<4x8xf32> -> vector<4x8xf32>
    %c0_195 = arith.constant 0 : index
    %c0_196 = arith.constant 0 : index
    %498 = vector.load %arg18[%c0_195, %c0_196] : memref<1x8xf32, #tpu.memory_space<vmem>>, vector<1x8xf32>
    %499 = vector.broadcast %498 : vector<1x8xf32> to vector<4x8xf32>
    %500 = arith.addf %497, %499 : vector<4x8xf32>
    %c0_197 = arith.constant 0 : index
    %c0_198 = arith.constant 0 : index
    %501 = vector.load %arg19[%c0_197, %c0_198] : memref<4x8xf32, #tpu.memory_space<vmem>>, vector<4x8xf32>
    tpu.vector_store %arg19[%c0_197, %c0_198], %500 {strides = array<i32>} : memref<4x8xf32, #tpu.memory_space<vmem>>, vector<4x8xf32>,
    return
  }
}

module attributes {stable_mosaic.version = 11 : i64} {
  func.func @_decode_kernel(%arg0: i32, %arg1: i32, %arg2: memref<1x64x2xf32, #tpu.memory_space<vmem>>, %arg3: memref<1x3x256xf32, #tpu.memory_space<vmem>>, %arg4: memref<64x256xf32, #tpu.memory_space<vmem>>, %arg5: memref<4x64xbf16, #tpu.memory_space<vmem>>, %arg6: memref<4x1xf32, #tpu.memory_space<vmem>>, %arg7: memref<1x3x256xf32, #tpu.memory_space<vmem>>, %arg8: memref<1x1x128xf32, #tpu.memory_space<vmem>>, %arg9: memref<1x1x128xf32, #tpu.memory_space<vmem>>) attributes {dimension_semantics = [#tpu.dimension_semantics<parallel>, #tpu.dimension_semantics<parallel>], iteration_bounds = array<i64: 1, 4>, scalar_prefetch = 0 : i64, scratch_operands = 0 : i64, tpu.core_type = #tpu.core_type<tc>, window_params = [{transform_indices = @transform_0, window_bounds = array<i64: 1, 64, 2>}, {transform_indices = @transform_1, window_bounds = array<i64: 1, 3, 256>}, {pipeline_mode = #tpu.pipeline_mode<synchronous>, transform_indices = @transform_2, window_bounds = array<i64: 64, 256>}, {pipeline_mode = #tpu.pipeline_mode<synchronous>, transform_indices = @transform_3, window_bounds = array<i64: 4, 64>}, {pipeline_mode = #tpu.pipeline_mode<synchronous>, transform_indices = @transform_4, window_bounds = array<i64: 4, 1>}, {transform_indices = @transform_5, window_bounds = array<i64: 1, 3, 256>}, {transform_indices = @transform_6, window_bounds = array<i64: 1, 1, 128>}, {transform_indices = @transform_7, window_bounds = array<i64: 1, 1, 128>}]} {
    %c0 = arith.constant 0 : index
    %c0_0 = arith.constant 0 : index
    %c0_1 = arith.constant 0 : index
    %0 = vector.load %arg2[%c0, %c0_0, %c0_1] : memref<1x64x2xf32, #tpu.memory_space<vmem>>, vector<1x64x2xf32>
    %1 = vector.shape_cast %0 : vector<1x64x2xf32> to vector<64x2xf32>
    %c0_2 = arith.constant 0 : index
    %c0_3 = arith.constant 0 : index
    %2 = vector.load %arg4[%c0_2, %c0_3] : memref<64x256xf32, #tpu.memory_space<vmem>>, vector<64x256xf32>
    %c0_4 = arith.constant 0 : index
    %c0_5 = arith.constant 0 : index
    %c0_6 = arith.constant 0 : index
    %3 = vector.load %arg3[%c0_4, %c0_5, %c0_6] : memref<1x3x256xf32, #tpu.memory_space<vmem>>, vector<1x3x256xf32>
    %4 = vector.shape_cast %3 : vector<1x3x256xf32> to vector<3x256xf32>
    %5 = vector.extract_strided_slice %1 {offsets = [0, 0], sizes = [64, 1], strides = [1, 1]} : vector<64x2xf32> to vector<64x1xf32>
    %6 = vector.broadcast %5 : vector<64x1xf32> to vector<64x256xf32>
    %7 = arith.addf %6, %2 : vector<64x256xf32>
    %8 = vector.extract_strided_slice %1 {offsets = [0, 1], sizes = [64, 1], strides = [1, 1]} : vector<64x2xf32> to vector<64x1xf32>
    %9 = vector.broadcast %8 : vector<64x1xf32> to vector<64x256xf32>
    %10 = arith.addf %9, %2 : vector<64x256xf32>
    %11 = tpu.concatenate %7, %10 in 1 : vector<64x256xf32>, vector<64x256xf32> -> vector<64x512xf32>
    %cst = arith.constant 0.000000e+00 : f32
    %12 = vector.broadcast %cst : f32 to vector<64x512xf32>
    %13 = arith.cmpf ogt, %11, %12 : vector<64x512xf32>
    %cst_7 = arith.constant 0.000000e+00 : f32
    %14 = vector.broadcast %cst_7 : f32 to vector<64x512xf32>
    %15 = arith.minimumf %11, %14 : vector<64x512xf32>
    %16 = math.exp %15 : vector<64x512xf32>
    %cst_8 = arith.constant 1.000000e+00 : f32
    %17 = vector.broadcast %cst_8 : f32 to vector<64x512xf32>
    %18 = arith.subf %16, %17 : vector<64x512xf32>
    %19 = arith.select %13, %11, %18 : vector<64x512xi1>, vector<64x512xf32>
    %c0_9 = arith.constant 0 : index
    %c0_10 = arith.constant 0 : index
    %20 = vector.load %arg5[%c0_9, %c0_10] : memref<4x64xbf16, #tpu.memory_space<vmem>>, vector<4x64xbf16>
    %21 = arith.truncf %19 : vector<64x512xf32> to vector<64x512xbf16>
    %cst_11 = arith.constant dense<0.000000e+00> : vector<4x512xf32>
    %22 = tpu.matmul %20, %21, %cst_11 {dimension_numbers = #tpu.dot_dimension_numbers<[1], [0], [0], [1], [0, 0, 1, 1], [], []>} : vector<4x64xbf16>, vector<64x512xbf16>, vector<4x512xf32> -> vector<4x512xf32>
    %c0_12 = arith.constant 0 : index
    %c0_13 = arith.constant 0 : index
    %23 = vector.load %arg6[%c0_12, %c0_13] : memref<4x1xf32, #tpu.memory_space<vmem>>, vector<4x1xf32>
    %24 = vector.broadcast %23 : vector<4x1xf32> to vector<4x512xf32>
    %25 = arith.addf %22, %24 : vector<4x512xf32>
    %26 = vector.extract_strided_slice %25 {offsets = [0, 0], sizes = [3, 256], strides = [1, 1]} : vector<4x512xf32> to vector<3x256xf32>
    %27 = vector.extract_strided_slice %25 {offsets = [0, 256], sizes = [3, 256], strides = [1, 1]} : vector<4x512xf32> to vector<3x256xf32>
    %28 = vector.extract_strided_slice %25 {offsets = [3, 0], sizes = [1, 256], strides = [1, 1]} : vector<4x512xf32> to vector<1x256xf32>
    %29 = vector.extract_strided_slice %25 {offsets = [3, 256], sizes = [1, 256], strides = [1, 1]} : vector<4x512xf32> to vector<1x256xf32>
    %30 = arith.maximumf %28, %29 : vector<1x256xf32>
    %31 = arith.subf %28, %30 : vector<1x256xf32>
    %32 = math.exp %31 : vector<1x256xf32>
    %33 = arith.subf %29, %30 : vector<1x256xf32>
    %34 = math.exp %33 : vector<1x256xf32>
    %35 = arith.addf %32, %34 : vector<1x256xf32>
    %cst_14 = arith.constant 1.000000e+00 : f32
    %36 = vector.broadcast %cst_14 : f32 to vector<1x256xf32>
    %37 = arith.divf %36, %35 : vector<1x256xf32>
    %38 = math.log %35 : vector<1x256xf32>
    %39 = arith.subf %26, %4 : vector<3x256xf32>
    %40 = arith.mulf %39, %39 : vector<3x256xf32>
    %cst_15 = arith.constant -1.66666663 : f32
    %41 = vector.broadcast %cst_15 : f32 to vector<3x256xf32>
    %42 = arith.mulf %40, %41 : vector<3x256xf32>
    %43 = arith.subf %28, %30 : vector<1x256xf32>
    %44 = vector.broadcast %43 : vector<1x256xf32> to vector<3x256xf32>
    %45 = arith.addf %42, %44 : vector<3x256xf32>
    %46 = vector.broadcast %38 : vector<1x256xf32> to vector<3x256xf32>
    %47 = arith.subf %45, %46 : vector<3x256xf32>
    %48 = arith.subf %27, %4 : vector<3x256xf32>
    %49 = arith.mulf %48, %48 : vector<3x256xf32>
    %cst_16 = arith.constant -1.66666663 : f32
    %50 = vector.broadcast %cst_16 : f32 to vector<3x256xf32>
    %51 = arith.mulf %49, %50 : vector<3x256xf32>
    %52 = arith.subf %29, %30 : vector<1x256xf32>
    %53 = vector.broadcast %52 : vector<1x256xf32> to vector<3x256xf32>
    %54 = arith.addf %51, %53 : vector<3x256xf32>
    %55 = vector.broadcast %38 : vector<1x256xf32> to vector<3x256xf32>
    %56 = arith.subf %54, %55 : vector<3x256xf32>
    %57 = arith.maximumf %47, %56 : vector<3x256xf32>
    %58 = arith.subf %47, %57 : vector<3x256xf32>
    %59 = math.exp %58 : vector<3x256xf32>
    %60 = arith.subf %56, %57 : vector<3x256xf32>
    %61 = math.exp %60 : vector<3x256xf32>
    %62 = arith.addf %59, %61 : vector<3x256xf32>
    %63 = math.log %62 : vector<3x256xf32>
    %64 = arith.addf %57, %63 : vector<3x256xf32>
    %65 = vector.shape_cast %64 : vector<3x256xf32> to vector<1x3x256xf32>
    %cst_17 = arith.constant dense<0.000000e+00> : vector<1xf32>
    %66 = vector.multi_reduction <add>, %65, %cst_17 [1, 2] : vector<1x3x256xf32> to vector<1xf32>
    %67 = vector.shape_cast %66 : vector<1xf32> to vector<1x1x1xf32>
    %68 = vector.extract %67[0, 0, 0] : f32 from vector<1x1x1xf32>
    %69 = arith.mulf %32, %37 : vector<1x256xf32>
    %70 = vector.broadcast %69 : vector<1x256xf32> to vector<3x256xf32>
    %71 = arith.mulf %70, %26 : vector<3x256xf32>
    %72 = arith.mulf %34, %37 : vector<1x256xf32>
    %73 = vector.broadcast %72 : vector<1x256xf32> to vector<3x256xf32>
    %74 = arith.mulf %73, %27 : vector<3x256xf32>
    %75 = arith.addf %71, %74 : vector<3x256xf32>
    %76 = arith.subf %75, %4 : vector<3x256xf32>
    %77 = arith.mulf %76, %76 : vector<3x256xf32>
    %78 = vector.shape_cast %77 : vector<3x256xf32> to vector<1x3x256xf32>
    %cst_18 = arith.constant dense<0.000000e+00> : vector<1xf32>
    %79 = vector.multi_reduction <add>, %78, %cst_18 [1, 2] : vector<1x3x256xf32> to vector<1xf32>
    %80 = vector.shape_cast %79 : vector<1xf32> to vector<1x1x1xf32>
    %81 = vector.extract %80[0, 0, 0] : f32 from vector<1x1x1xf32>
    %c0_19 = arith.constant 0 : index
    %c0_20 = arith.constant 0 : index
    %c0_21 = arith.constant 0 : index
    %82 = vector.load %arg7[%c0_19, %c0_20, %c0_21] : memref<1x3x256xf32, #tpu.memory_space<vmem>>, vector<1x3x256xf32>
    %83 = vector.shape_cast %82 : vector<1x3x256xf32> to vector<3x256xf32>
    %84 = vector.shape_cast %75 : vector<3x256xf32> to vector<1x3x256xf32>
    tpu.vector_store %arg7[%c0_19, %c0_20, %c0_21], %84 {strides = array<i32>} : memref<1x3x256xf32, #tpu.memory_space<vmem>>, vector<1x3x256xf32>,
    %85 = vector.broadcast %68 : f32 to vector<1x1x128xf32>
    %c0_22 = arith.constant 0 : index
    %c0_23 = arith.constant 0 : index
    %c0_24 = arith.constant 0 : index
    %86 = vector.load %arg8[%c0_22, %c0_23, %c0_24] : memref<1x1x128xf32, #tpu.memory_space<vmem>>, vector<1x1x128xf32>
    tpu.vector_store %arg8[%c0_22, %c0_23, %c0_24], %85 {strides = array<i32>} : memref<1x1x128xf32, #tpu.memory_space<vmem>>, vector<1x1x128xf32>,
    %87 = vector.broadcast %81 : f32 to vector<1x1x128xf32>
    %c0_25 = arith.constant 0 : index
    %c0_26 = arith.constant 0 : index
    %c0_27 = arith.constant 0 : index
    %88 = vector.load %arg9[%c0_25, %c0_26, %c0_27] : memref<1x1x128xf32, #tpu.memory_space<vmem>>, vector<1x1x128xf32>
    tpu.vector_store %arg9[%c0_25, %c0_26, %c0_27], %87 {strides = array<i32>} : memref<1x1x128xf32, #tpu.memory_space<vmem>>, vector<1x1x128xf32>,
    return
  }
  func.func @transform_0(%arg0: i32, %arg1: i32) -> (i32, i32, i32) {
    %c4_i32 = arith.constant 4 : i32
    %0 = arith.muli %arg0, %c4_i32 : i32
    %1 = arith.addi %0, %arg1 : i32
    %c0_i32 = arith.constant 0 : i32
    %c0_i32_0 = arith.constant 0 : i32
    %c0_i32_1 = arith.constant 0 : i32
    return %1, %c0_i32, %c0_i32_0 : i32, i32, i32
  }
  func.func @transform_1(%arg0: i32, %arg1: i32) -> (i32, i32, i32) {
    %c0_i32 = arith.constant 0 : i32
    %c0_i32_0 = arith.constant 0 : i32
    %c0_i32_1 = arith.constant 0 : i32
    return %arg1, %c0_i32, %c0_i32_0 : i32, i32, i32
  }
  func.func @transform_2(%arg0: i32, %arg1: i32) -> (i32, i32) {
    %c0_i32 = arith.constant 0 : i32
    %c0_i32_0 = arith.constant 0 : i32
    %c0_i32_1 = arith.constant 0 : i32
    return %c0_i32, %c0_i32_0 : i32, i32
  }
  func.func @transform_3(%arg0: i32, %arg1: i32) -> (i32, i32) {
    %c0_i32 = arith.constant 0 : i32
    %c0_i32_0 = arith.constant 0 : i32
    %c0_i32_1 = arith.constant 0 : i32
    return %c0_i32, %c0_i32_0 : i32, i32
  }
  func.func @transform_4(%arg0: i32, %arg1: i32) -> (i32, i32) {
    %c0_i32 = arith.constant 0 : i32
    %c0_i32_0 = arith.constant 0 : i32
    %c0_i32_1 = arith.constant 0 : i32
    return %c0_i32, %c0_i32_0 : i32, i32
  }
  func.func @transform_5(%arg0: i32, %arg1: i32) -> (i32, i32, i32) {
    %c4_i32 = arith.constant 4 : i32
    %0 = arith.muli %arg0, %c4_i32 : i32
    %1 = arith.addi %0, %arg1 : i32
    %c0_i32 = arith.constant 0 : i32
    %c0_i32_0 = arith.constant 0 : i32
    %c0_i32_1 = arith.constant 0 : i32
    return %1, %c0_i32, %c0_i32_0 : i32, i32, i32
  }
  func.func @transform_6(%arg0: i32, %arg1: i32) -> (i32, i32, i32) {
    %c4_i32 = arith.constant 4 : i32
    %0 = arith.muli %arg0, %c4_i32 : i32
    %1 = arith.addi %0, %arg1 : i32
    %c0_i32 = arith.constant 0 : i32
    %c0_i32_0 = arith.constant 0 : i32
    %c0_i32_1 = arith.constant 0 : i32
    return %1, %c0_i32, %c0_i32_0 : i32, i32, i32
  }
  func.func @transform_7(%arg0: i32, %arg1: i32) -> (i32, i32, i32) {
    %c4_i32 = arith.constant 4 : i32
    %0 = arith.muli %arg0, %c4_i32 : i32
    %1 = arith.addi %0, %arg1 : i32
    %c0_i32 = arith.constant 0 : i32
    %c0_i32_0 = arith.constant 0 : i32
    %c0_i32_1 = arith.constant 0 : i32
    return %1, %c0_i32, %c0_i32_0 : i32, i32, i32
  }
}

module attributes {stable_mosaic.version = 11 : i64} {
  func.func @_matmul_kernel(%arg0: memref<24x8xf32, #tpu.memory_space<vmem>>, %arg1: memref<8x64xbf16, #tpu.memory_space<vmem>>, %arg2: memref<24x64xf32, #tpu.memory_space<vmem>>) attributes {dimension_semantics = [], scalar_prefetch = 0 : i64, scratch_operands = 0 : i64, tpu.core_type = #tpu.core_type<tc>} {
    %c0 = arith.constant 0 : index
    %c0_0 = arith.constant 0 : index
    %0 = vector.load %arg0[%c0, %c0_0] : memref<24x8xf32, #tpu.memory_space<vmem>>, vector<24x8xf32>
    %1 = arith.truncf %0 : vector<24x8xf32> to vector<24x8xbf16>
    %c0_1 = arith.constant 0 : index
    %c0_2 = arith.constant 0 : index
    %2 = vector.load %arg1[%c0_1, %c0_2] : memref<8x64xbf16, #tpu.memory_space<vmem>>, vector<8x64xbf16>
    %cst = arith.constant dense<0.000000e+00> : vector<24x64xf32>
    %3 = tpu.matmul %1, %2, %cst {dimension_numbers = #tpu.dot_dimension_numbers<[1], [0], [0], [1], [0, 0, 1, 1], [], []>} : vector<24x8xbf16>, vector<8x64xbf16>, vector<24x64xf32> -> vector<24x64xf32>
    %c0_3 = arith.constant 0 : index
    %c0_4 = arith.constant 0 : index
    %4 = vector.load %arg2[%c0_3, %c0_4] : memref<24x64xf32, #tpu.memory_space<vmem>>, vector<24x64xf32>
    tpu.vector_store %arg2[%c0_3, %c0_4], %3 {strides = array<i32>} : memref<24x64xf32, #tpu.memory_space<vmem>>, vector<24x64xf32>,
    return
  }
}

module attributes {stable_mosaic.version = 11 : i64} {
  func.func @_decode_kernel(%arg0: i32, %arg1: i32, %arg2: memref<1x64x2xf32, #tpu.memory_space<vmem>>, %arg3: memref<1x3x256xf32, #tpu.memory_space<vmem>>, %arg4: memref<64x256xf32, #tpu.memory_space<vmem>>, %arg5: memref<4x64xbf16, #tpu.memory_space<vmem>>, %arg6: memref<4x1xf32, #tpu.memory_space<vmem>>, %arg7: memref<1x3x256xf32, #tpu.memory_space<vmem>>, %arg8: memref<1x1x128xf32, #tpu.memory_space<vmem>>, %arg9: memref<1x1x128xf32, #tpu.memory_space<vmem>>) attributes {dimension_semantics = [#tpu.dimension_semantics<parallel>, #tpu.dimension_semantics<parallel>], iteration_bounds = array<i64: 2, 6>, scalar_prefetch = 0 : i64, scratch_operands = 0 : i64, tpu.core_type = #tpu.core_type<tc>, window_params = [{transform_indices = @transform_0, window_bounds = array<i64: 1, 64, 2>}, {transform_indices = @transform_1, window_bounds = array<i64: 1, 3, 256>}, {pipeline_mode = #tpu.pipeline_mode<synchronous>, transform_indices = @transform_2, window_bounds = array<i64: 64, 256>}, {pipeline_mode = #tpu.pipeline_mode<synchronous>, transform_indices = @transform_3, window_bounds = array<i64: 4, 64>}, {pipeline_mode = #tpu.pipeline_mode<synchronous>, transform_indices = @transform_4, window_bounds = array<i64: 4, 1>}, {transform_indices = @transform_5, window_bounds = array<i64: 1, 3, 256>}, {transform_indices = @transform_6, window_bounds = array<i64: 1, 1, 128>}, {transform_indices = @transform_7, window_bounds = array<i64: 1, 1, 128>}]} {
    %c0 = arith.constant 0 : index
    %c0_0 = arith.constant 0 : index
    %c0_1 = arith.constant 0 : index
    %0 = vector.load %arg2[%c0, %c0_0, %c0_1] : memref<1x64x2xf32, #tpu.memory_space<vmem>>, vector<1x64x2xf32>
    %1 = vector.shape_cast %0 : vector<1x64x2xf32> to vector<64x2xf32>
    %c0_2 = arith.constant 0 : index
    %c0_3 = arith.constant 0 : index
    %2 = vector.load %arg4[%c0_2, %c0_3] : memref<64x256xf32, #tpu.memory_space<vmem>>, vector<64x256xf32>
    %c0_4 = arith.constant 0 : index
    %c0_5 = arith.constant 0 : index
    %c0_6 = arith.constant 0 : index
    %3 = vector.load %arg3[%c0_4, %c0_5, %c0_6] : memref<1x3x256xf32, #tpu.memory_space<vmem>>, vector<1x3x256xf32>
    %4 = vector.shape_cast %3 : vector<1x3x256xf32> to vector<3x256xf32>
    %5 = vector.extract_strided_slice %1 {offsets = [0, 0], sizes = [64, 1], strides = [1, 1]} : vector<64x2xf32> to vector<64x1xf32>
    %6 = vector.broadcast %5 : vector<64x1xf32> to vector<64x256xf32>
    %7 = arith.addf %6, %2 : vector<64x256xf32>
    %8 = vector.extract_strided_slice %1 {offsets = [0, 1], sizes = [64, 1], strides = [1, 1]} : vector<64x2xf32> to vector<64x1xf32>
    %9 = vector.broadcast %8 : vector<64x1xf32> to vector<64x256xf32>
    %10 = arith.addf %9, %2 : vector<64x256xf32>
    %11 = tpu.concatenate %7, %10 in 1 : vector<64x256xf32>, vector<64x256xf32> -> vector<64x512xf32>
    %cst = arith.constant 0.000000e+00 : f32
    %12 = vector.broadcast %cst : f32 to vector<64x512xf32>
    %13 = arith.cmpf ogt, %11, %12 : vector<64x512xf32>
    %cst_7 = arith.constant 0.000000e+00 : f32
    %14 = vector.broadcast %cst_7 : f32 to vector<64x512xf32>
    %15 = arith.minimumf %11, %14 : vector<64x512xf32>
    %16 = math.exp %15 : vector<64x512xf32>
    %cst_8 = arith.constant 1.000000e+00 : f32
    %17 = vector.broadcast %cst_8 : f32 to vector<64x512xf32>
    %18 = arith.subf %16, %17 : vector<64x512xf32>
    %19 = arith.select %13, %11, %18 : vector<64x512xi1>, vector<64x512xf32>
    %c0_9 = arith.constant 0 : index
    %c0_10 = arith.constant 0 : index
    %20 = vector.load %arg5[%c0_9, %c0_10] : memref<4x64xbf16, #tpu.memory_space<vmem>>, vector<4x64xbf16>
    %21 = arith.truncf %19 : vector<64x512xf32> to vector<64x512xbf16>
    %cst_11 = arith.constant dense<0.000000e+00> : vector<4x512xf32>
    %22 = tpu.matmul %20, %21, %cst_11 {dimension_numbers = #tpu.dot_dimension_numbers<[1], [0], [0], [1], [0, 0, 1, 1], [], []>} : vector<4x64xbf16>, vector<64x512xbf16>, vector<4x512xf32> -> vector<4x512xf32>
    %c0_12 = arith.constant 0 : index
    %c0_13 = arith.constant 0 : index
    %23 = vector.load %arg6[%c0_12, %c0_13] : memref<4x1xf32, #tpu.memory_space<vmem>>, vector<4x1xf32>
    %24 = vector.broadcast %23 : vector<4x1xf32> to vector<4x512xf32>
    %25 = arith.addf %22, %24 : vector<4x512xf32>
    %26 = vector.extract_strided_slice %25 {offsets = [0, 0], sizes = [3, 256], strides = [1, 1]} : vector<4x512xf32> to vector<3x256xf32>
    %27 = vector.extract_strided_slice %25 {offsets = [0, 256], sizes = [3, 256], strides = [1, 1]} : vector<4x512xf32> to vector<3x256xf32>
    %28 = vector.extract_strided_slice %25 {offsets = [3, 0], sizes = [1, 256], strides = [1, 1]} : vector<4x512xf32> to vector<1x256xf32>
    %29 = vector.extract_strided_slice %25 {offsets = [3, 256], sizes = [1, 256], strides = [1, 1]} : vector<4x512xf32> to vector<1x256xf32>
    %30 = arith.maximumf %28, %29 : vector<1x256xf32>
    %31 = arith.subf %28, %30 : vector<1x256xf32>
    %32 = math.exp %31 : vector<1x256xf32>
    %33 = arith.subf %29, %30 : vector<1x256xf32>
    %34 = math.exp %33 : vector<1x256xf32>
    %35 = arith.addf %32, %34 : vector<1x256xf32>
    %cst_14 = arith.constant 1.000000e+00 : f32
    %36 = vector.broadcast %cst_14 : f32 to vector<1x256xf32>
    %37 = arith.divf %36, %35 : vector<1x256xf32>
    %38 = math.log %35 : vector<1x256xf32>
    %39 = arith.subf %26, %4 : vector<3x256xf32>
    %40 = arith.mulf %39, %39 : vector<3x256xf32>
    %cst_15 = arith.constant -1.66666663 : f32
    %41 = vector.broadcast %cst_15 : f32 to vector<3x256xf32>
    %42 = arith.mulf %40, %41 : vector<3x256xf32>
    %43 = arith.subf %28, %30 : vector<1x256xf32>
    %44 = vector.broadcast %43 : vector<1x256xf32> to vector<3x256xf32>
    %45 = arith.addf %42, %44 : vector<3x256xf32>
    %46 = vector.broadcast %38 : vector<1x256xf32> to vector<3x256xf32>
    %47 = arith.subf %45, %46 : vector<3x256xf32>
    %48 = arith.subf %27, %4 : vector<3x256xf32>
    %49 = arith.mulf %48, %48 : vector<3x256xf32>
    %cst_16 = arith.constant -1.66666663 : f32
    %50 = vector.broadcast %cst_16 : f32 to vector<3x256xf32>
    %51 = arith.mulf %49, %50 : vector<3x256xf32>
    %52 = arith.subf %29, %30 : vector<1x256xf32>
    %53 = vector.broadcast %52 : vector<1x256xf32> to vector<3x256xf32>
    %54 = arith.addf %51, %53 : vector<3x256xf32>
    %55 = vector.broadcast %38 : vector<1x256xf32> to vector<3x256xf32>
    %56 = arith.subf %54, %55 : vector<3x256xf32>
    %57 = arith.maximumf %47, %56 : vector<3x256xf32>
    %58 = arith.subf %47, %57 : vector<3x256xf32>
    %59 = math.exp %58 : vector<3x256xf32>
    %60 = arith.subf %56, %57 : vector<3x256xf32>
    %61 = math.exp %60 : vector<3x256xf32>
    %62 = arith.addf %59, %61 : vector<3x256xf32>
    %63 = math.log %62 : vector<3x256xf32>
    %64 = arith.addf %57, %63 : vector<3x256xf32>
    %65 = vector.shape_cast %64 : vector<3x256xf32> to vector<1x3x256xf32>
    %cst_17 = arith.constant dense<0.000000e+00> : vector<1xf32>
    %66 = vector.multi_reduction <add>, %65, %cst_17 [1, 2] : vector<1x3x256xf32> to vector<1xf32>
    %67 = vector.shape_cast %66 : vector<1xf32> to vector<1x1x1xf32>
    %68 = vector.extract %67[0, 0, 0] : f32 from vector<1x1x1xf32>
    %69 = arith.mulf %32, %37 : vector<1x256xf32>
    %70 = vector.broadcast %69 : vector<1x256xf32> to vector<3x256xf32>
    %71 = arith.mulf %70, %26 : vector<3x256xf32>
    %72 = arith.mulf %34, %37 : vector<1x256xf32>
    %73 = vector.broadcast %72 : vector<1x256xf32> to vector<3x256xf32>
    %74 = arith.mulf %73, %27 : vector<3x256xf32>
    %75 = arith.addf %71, %74 : vector<3x256xf32>
    %76 = arith.subf %75, %4 : vector<3x256xf32>
    %77 = arith.mulf %76, %76 : vector<3x256xf32>
    %78 = vector.shape_cast %77 : vector<3x256xf32> to vector<1x3x256xf32>
    %cst_18 = arith.constant dense<0.000000e+00> : vector<1xf32>
    %79 = vector.multi_reduction <add>, %78, %cst_18 [1, 2] : vector<1x3x256xf32> to vector<1xf32>
    %80 = vector.shape_cast %79 : vector<1xf32> to vector<1x1x1xf32>
    %81 = vector.extract %80[0, 0, 0] : f32 from vector<1x1x1xf32>
    %c0_19 = arith.constant 0 : index
    %c0_20 = arith.constant 0 : index
    %c0_21 = arith.constant 0 : index
    %82 = vector.load %arg7[%c0_19, %c0_20, %c0_21] : memref<1x3x256xf32, #tpu.memory_space<vmem>>, vector<1x3x256xf32>
    %83 = vector.shape_cast %82 : vector<1x3x256xf32> to vector<3x256xf32>
    %84 = vector.shape_cast %75 : vector<3x256xf32> to vector<1x3x256xf32>
    tpu.vector_store %arg7[%c0_19, %c0_20, %c0_21], %84 {strides = array<i32>} : memref<1x3x256xf32, #tpu.memory_space<vmem>>, vector<1x3x256xf32>,
    %85 = vector.broadcast %68 : f32 to vector<1x1x128xf32>
    %c0_22 = arith.constant 0 : index
    %c0_23 = arith.constant 0 : index
    %c0_24 = arith.constant 0 : index
    %86 = vector.load %arg8[%c0_22, %c0_23, %c0_24] : memref<1x1x128xf32, #tpu.memory_space<vmem>>, vector<1x1x128xf32>
    tpu.vector_store %arg8[%c0_22, %c0_23, %c0_24], %85 {strides = array<i32>} : memref<1x1x128xf32, #tpu.memory_space<vmem>>, vector<1x1x128xf32>,
    %87 = vector.broadcast %81 : f32 to vector<1x1x128xf32>
    %c0_25 = arith.constant 0 : index
    %c0_26 = arith.constant 0 : index
    %c0_27 = arith.constant 0 : index
    %88 = vector.load %arg9[%c0_25, %c0_26, %c0_27] : memref<1x1x128xf32, #tpu.memory_space<vmem>>, vector<1x1x128xf32>
    tpu.vector_store %arg9[%c0_25, %c0_26, %c0_27], %87 {strides = array<i32>} : memref<1x1x128xf32, #tpu.memory_space<vmem>>, vector<1x1x128xf32>,
    return
  }
  func.func @transform_0(%arg0: i32, %arg1: i32) -> (i32, i32, i32) {
    %c6_i32 = arith.constant 6 : i32
    %0 = arith.muli %arg0, %c6_i32 : i32
    %1 = arith.addi %0, %arg1 : i32
    %c0_i32 = arith.constant 0 : i32
    %c0_i32_0 = arith.constant 0 : i32
    %c0_i32_1 = arith.constant 0 : i32
    return %1, %c0_i32, %c0_i32_0 : i32, i32, i32
  }
  func.func @transform_1(%arg0: i32, %arg1: i32) -> (i32, i32, i32) {
    %c0_i32 = arith.constant 0 : i32
    %c0_i32_0 = arith.constant 0 : i32
    %c0_i32_1 = arith.constant 0 : i32
    return %arg1, %c0_i32, %c0_i32_0 : i32, i32, i32
  }
  func.func @transform_2(%arg0: i32, %arg1: i32) -> (i32, i32) {
    %c0_i32 = arith.constant 0 : i32
    %c0_i32_0 = arith.constant 0 : i32
    %c0_i32_1 = arith.constant 0 : i32
    return %c0_i32, %c0_i32_0 : i32, i32
  }
  func.func @transform_3(%arg0: i32, %arg1: i32) -> (i32, i32) {
    %c0_i32 = arith.constant 0 : i32
    %c0_i32_0 = arith.constant 0 : i32
    %c0_i32_1 = arith.constant 0 : i32
    return %c0_i32, %c0_i32_0 : i32, i32
  }
  func.func @transform_4(%arg0: i32, %arg1: i32) -> (i32, i32) {
    %c0_i32 = arith.constant 0 : i32
    %c0_i32_0 = arith.constant 0 : i32
    %c0_i32_1 = arith.constant 0 : i32
    return %c0_i32, %c0_i32_0 : i32, i32
  }
  func.func @transform_5(%arg0: i32, %arg1: i32) -> (i32, i32, i32) {
    %c6_i32 = arith.constant 6 : i32
    %0 = arith.muli %arg0, %c6_i32 : i32
    %1 = arith.addi %0, %arg1 : i32
    %c0_i32 = arith.constant 0 : i32
    %c0_i32_0 = arith.constant 0 : i32
    %c0_i32_1 = arith.constant 0 : i32
    return %1, %c0_i32, %c0_i32_0 : i32, i32, i32
  }
  func.func @transform_6(%arg0: i32, %arg1: i32) -> (i32, i32, i32) {
    %c6_i32 = arith.constant 6 : i32
    %0 = arith.muli %arg0, %c6_i32 : i32
    %1 = arith.addi %0, %arg1 : i32
    %c0_i32 = arith.constant 0 : i32
    %c0_i32_0 = arith.constant 0 : i32
    %c0_i32_1 = arith.constant 0 : i32
    return %1, %c0_i32, %c0_i32_0 : i32, i32, i32
  }
  func.func @transform_7(%arg0: i32, %arg1: i32) -> (i32, i32, i32) {
    %c6_i32 = arith.constant 6 : i32
    %0 = arith.muli %arg0, %c6_i32 : i32
    %1 = arith.addi %0, %arg1 : i32
    %c0_i32 = arith.constant 0 : i32
    %c0_i32_0 = arith.constant 0 : i32
    %c0_i32_1 = arith.constant 0 : i32
    return %1, %c0_i32, %c0_i32_0 : i32, i32, i32
  }
}

module attributes {stable_mosaic.version = 11 : i64} {
  func.func @_kl_kernel(%arg0: memref<1x8xf32, #tpu.memory_space<vmem>>, %arg1: memref<1x8xf32, #tpu.memory_space<vmem>>, %arg2: memref<1x1xf32, #tpu.memory_space<vmem>>) attributes {dimension_semantics = [], scalar_prefetch = 0 : i64, scratch_operands = 0 : i64, tpu.core_type = #tpu.core_type<tc>} {
    %c0 = arith.constant 0 : index
    %c0_0 = arith.constant 0 : index
    %0 = vector.load %arg0[%c0, %c0_0] : memref<1x8xf32, #tpu.memory_space<vmem>>, vector<1x8xf32>
    %c0_1 = arith.constant 0 : index
    %c0_2 = arith.constant 0 : index
    %1 = vector.load %arg1[%c0_1, %c0_2] : memref<1x8xf32, #tpu.memory_space<vmem>>, vector<1x8xf32>
    %cst = arith.constant 1.000000e+00 : f32
    %2 = vector.broadcast %cst : f32 to vector<1x8xf32>
    %3 = arith.addf %2, %1 : vector<1x8xf32>
    %4 = math.exp %1 : vector<1x8xf32>
    %5 = arith.subf %3, %4 : vector<1x8xf32>
    %6 = arith.mulf %0, %0 : vector<1x8xf32>
    %7 = arith.subf %5, %6 : vector<1x8xf32>
    %cst_3 = arith.constant -5.000000e-01 : f32
    %8 = vector.broadcast %cst_3 : f32 to vector<1x8xf32>
    %9 = arith.mulf %8, %7 : vector<1x8xf32>
    %10 = vector.shape_cast %9 : vector<1x8xf32> to vector<1x1x8xf32>
    %cst_4 = arith.constant dense<0.000000e+00> : vector<1xf32>
    %11 = vector.multi_reduction <add>, %10, %cst_4 [1, 2] : vector<1x1x8xf32> to vector<1xf32>
    %12 = vector.shape_cast %11 : vector<1xf32> to vector<1x1x1xf32>
    %13 = vector.extract %12[0, 0, 0] : f32 from vector<1x1x1xf32>
    %14 = vector.broadcast %13 : f32 to vector<1x1xf32>
    %c0_5 = arith.constant 0 : index
    %c0_6 = arith.constant 0 : index
    %15 = vector.load %arg2[%c0_5, %c0_6] : memref<1x1xf32, #tpu.memory_space<vmem>>, vector<1x1xf32>
    tpu.vector_store %arg2[%c0_5, %c0_6], %14 {strides = array<i32>} : memref<1x1xf32, #tpu.memory_space<vmem>>, vector<1x1xf32>,
    return
  }
}

</mosaic_0001>

<llo_original>
// kernel: squeeze.13
$region0: #{squeeze.13}
  %s0 = inlined_call_operand.vmem [shape: f32[1,12,8], index: 0, kind: input, shape index: {}]
  %s1 = inlined_call_operand.vmem [shape: f32[2,6,8], index: 1, kind: output, shape index: {}]
  $region1: #{squeeze.13} parent=0
    #allocation0 [shape = 'u8[32768]{0}', space=vmem, size = 0x8000, scoped, tag = 'scoped mem for output reshape']
    %v2 = vld [vmem:[%s0] sm:$0xff]
    %vm3 = vcmask 48128
    %4 = vst.msk [vmem:[#allocation0] ss:$8 sm:$0xf] %vm3, %v2
    %5 = vst.msk [vmem:[#allocation0] ss:$8 sm:$0xf0] %vm3, %v2
    %v6 = vld [vmem:[%s0] sm:$0xff]
    %7 = vrot.lane.b32.xlu0 %v6, 122
    %v8 = vpop.permute.xlu0 %7
    %vm9 = vcmask 48128
    %s10 = scalar_lea.vmem [#allocation0], 1
    %11 = vst.msk [vmem:[%s10] ss:$8 sm:$0xf] %vm9, %v8
    %s12 = scalar_lea.vmem [#allocation0], 1
    %13 = vst.msk [vmem:[%s12] ss:$8 sm:$0xf0] %vm9, %v8
    %s15 = sshllo.u32 0, 2
    %v17 = vld [vmem:[#allocation0] sm:%s15]
    %s18 = sshllo.u32 0, 2
    %19 = vst [vmem:[%s1] sm:%s18] %v17
    %s20 = scalar_lea.vmem [#allocation0], 8
    %v21 = vld [vmem:[%s20] sm:%s15]
    %s22 = sshllo.u32 0, 2
    %s23 = scalar_lea.vmem %s1, 2
    %24 = vst [vmem:[%s23] sm:%s22] %v21
    %s25 = scalar_lea.vmem [#allocation0], 16
    %v26 = vld [vmem:[%s25] sm:%s15]
    %s27 = sshllo.u32 0, 2
    %s28 = smul.addr 2, 2
    %s29 = scalar_lea.vmem %s1, %s28
    %30 = vst [vmem:[%s29] sm:%s27] %v26
    %s31 = scalar_lea.vmem [#allocation0], 24
    %v32 = vld [vmem:[%s31] sm:%s15]
    %s33 = sshllo.u32 0, 2
    %s34 = smul.addr 2, 3
    %s35 = scalar_lea.vmem %s1, %s34
    %36 = vst [vmem:[%s35] sm:%s33] %v32
    %s37 = scalar_lea.vmem [#allocation0], 32
    %v38 = vld [vmem:[%s37] sm:%s15]
    %s39 = sshllo.u32 0, 2
    %s40 = smul.addr 2, 4
    %s41 = scalar_lea.vmem %s1, %s40
    %42 = vst [vmem:[%s41] sm:%s39] %v38
    %s43 = scalar_lea.vmem [#allocation0], 40
    %v44 = vld [vmem:[%s43] sm:%s15]
    %s45 = sshllo.u32 0, 2
    %s46 = smul.addr 2, 5
    %s47 = scalar_lea.vmem %s1, %s46
    %48 = vst [vmem:[%s47] sm:%s45] %v44
    %s49 = scalar_lea.vmem [#allocation0], 48
    %v50 = vld [vmem:[%s49] sm:%s15]
    %s51 = sshllo.u32 0, 2
    %s52 = smul.addr 2, 6
    %s53 = scalar_lea.vmem %s1, %s52
    %54 = vst [vmem:[%s53] sm:%s51] %v50
    %s55 = scalar_lea.vmem [#allocation0], 56
    %v56 = vld [vmem:[%s55] sm:%s15]
    %s57 = sshllo.u32 0, 2
    %s58 = smul.addr 2, 7
    %s59 = scalar_lea.vmem %s1, %s58
    %60 = vst [vmem:[%s59] sm:%s57] %v56

// kernel: custom-call
$region0: #{custom-call}
  %s0 = inlined_call_operand.vmem [shape: f32[2,2,2,8], index: 0, kind: output, shape index: {}]

// kernel: tile.9
$region0: #{tile.9}
  %s0 = inlined_call_operand.vmem [shape: f32[2,1,1,3,2,128], index: 0, kind: input, shape index: {}]
  %s1 = inlined_call_operand.vmem [shape: f32[12,128], index: 1, kind: output, shape index: {}]
  $region1: #{tile.9} parent=0
    #allocation0 [shape = 'u8[24576]{0}', space=vmem, size = 0x6000, scoped, tag = 'scoped mem for input reshape']
    %s3 = sshllo.u32 0, 2
    %s4 = smul.addr 2, 5
    %s5 = scalar_lea.vmem %s0, %s4
    %v6 = vld [vmem:[%s5] sm:%s3]
    %s7 = scalar_lea.vmem [#allocation0], 40
    %8 = vst [vmem:[%s7] sm:%s3] %v6
    %s9 = smul.addr 2, 4
    %s10 = scalar_lea.vmem %s0, %s9
    %v11 = vld [vmem:[%s10] sm:%s3]
    %s12 = scalar_lea.vmem [#allocation0], 32
    %13 = vst [vmem:[%s12] sm:%s3] %v11
    %s14 = smul.addr 2, 3
    %s15 = scalar_lea.vmem %s0, %s14
    %v16 = vld [vmem:[%s15] sm:%s3]
    %s17 = scalar_lea.vmem [#allocation0], 24
    %18 = vst [vmem:[%s17] sm:%s3] %v16
    %s19 = smul.addr 2, 2
    %s20 = scalar_lea.vmem %s0, %s19
    %v21 = vld [vmem:[%s20] sm:%s3]
    %s22 = scalar_lea.vmem [#allocation0], 16
    %23 = vst [vmem:[%s22] sm:%s3] %v21
    %s24 = scalar_lea.vmem %s0, 2
    %v25 = vld [vmem:[%s24] sm:%s3]
    %s26 = scalar_lea.vmem [#allocation0], 8
    %27 = vst [vmem:[%s26] sm:%s3] %v25
    %v28 = vld [vmem:[%s0] sm:%s3]
    %29 = vst [vmem:[#allocation0] sm:%s3] %v28
    %v30 = vld [vmem:[#allocation0] sm:$0x3]
    %31 = vst [vmem:[%s1] sm:$0x3] %v30
    %s32 = scalar_lea.vmem [#allocation0], 8
    %v33 = vld [vmem:[%s32] sm:$0x3]
    %s34 = scalar_lea.vmem %s1, 2
    %35 = vst [vmem:[%s34] sm:$0x3] %v33
    %s36 = scalar_lea.vmem [#allocation0], 16
    %v37 = vld [vmem:[%s36] sm:$0x3]
    %s38 = scalar_lea.vmem %s1, 4
    %39 = vst [vmem:[%s38] sm:$0x3] %v37
    %s40 = scalar_lea.vmem [#allocation0], 24
    %v41 = vld [vmem:[%s40] sm:$0x3]
    %s42 = scalar_lea.vmem %s1, 6
    %43 = vst [vmem:[%s42] sm:$0x3] %v41
    %s44 = scalar_lea.vmem [#allocation0], 32
    %v45 = vld [vmem:[%s44] sm:$0x3]
    %s46 = scalar_lea.vmem %s1, 8
    %47 = vst [vmem:[%s46] sm:$0x3] %v45
    %s48 = scalar_lea.vmem [#allocation0], 40
    %v49 = vld [vmem:[%s48] sm:$0x3]
    %s50 = scalar_lea.vmem %s1, 10
    %51 = vst [vmem:[%s50] sm:$0x3] %v49

// kernel: _lambda_.5
$region0: #{_lambda_.5}
  #allocation0 [shape = 'u32[]', space=smem, size = 0x4, offset = 0x4, fixed_abs, tag = 'smem constant byte address 0x4 - core index']
  #allocation1 [shape = 'u32[144,128]{1,0:T(1,128)}', space=vmem, size = 0x12000, scoped, tag = 'internal scratch']
  %s0 = inlined_call_operand.vmem [shape: f32[8,8], index: 0, kind: input, shape index: {}]
  %s1 = inlined_call_operand.vmem [shape: bf16[8,64], index: 1, kind: input, shape index: {}]
  %s2 = inlined_call_operand.vmem [shape: f32[8,64], index: 2, kind: output, shape index: {}]
  %s3 = sld [smem:[#allocation0]]
  $region18: #{_lambda_.5} parent=0
    _
  %s5 = ssub.s32 1, %s3
  %s6 = scalar_select 0, %s5, %s3
  // Predicated region
  $region2: #{_lambda_.5} parent=0 // pred_check
    _
  $region3: #{_lambda_.5} parent=0 // pred_check_branch
    %8 = sbr.rel (0) target = $region5
  $region4: #{_lambda_.5} parent=0 // pred_region
    _
  $region5: #{_lambda_.5} parent=0 // pred_fallthru
    _
  // Predicated region
  $region6: #{_lambda_.5} parent=0 // pred_check
    _
  $region7: #{_lambda_.5} parent=0 // pred_check_branch
    %10 = sbr.rel (0) target = $region9
  $region8: #{_lambda_.5} parent=0 // pred_region
    _
  $region9: #{_lambda_.5} parent=0 // pred_fallthru
    _
  %v12 = vld [vmem:[%s0] sm:$0xff]
  %v13 = vpack.c.bf16 %v12, %v12
  %v14 = vld [vmem:[%s1] sm:$0xf]
  %vm15 = vcmask 64512
  %v17 = vsel %vm15, %v13, 0
  %vm19 = vcmask 1043456
  %v21 = vsel %vm19, %v14, 0
  %23 = vmatprep.subr.bf16.mxu0 0
  %24 = vmatpush1.bf16.msra.mxu0 %v21
  %25 = vmatprep.subr.bf16.mxu0 0
  %26 = vmatpush1.bf16.msra.mxu0 0
  %27 = vmatprep.subr.bf16.mxu0 0
  %28 = vmatpush1.bf16.msra.mxu0 0
  %29 = vmatprep.subr.bf16.mxu0 0
  %30 = vmatpush1.bf16.msra.mxu0 0
  %31 = vmatprep.subr.bf16.mxu0 0
  %32 = vmatpush1.bf16.msra.mxu0 0
  %33 = vmatprep.subr.bf16.mxu0 0
  %34 = vmatpush1.bf16.msra.mxu0 0
  %35 = vmatprep.subr.bf16.mxu0 0
  %36 = vmatpush1.bf16.msra.mxu0 0
  %37 = vmatprep.subr.bf16.mxu0 0
  %38 = vmatpush1.bf16.msra.mxu0 0
  %39 = vmatprep.subr.bf16.mxu0 0
  %40 = vmatpush1.bf16.msra.mxu0 0
  %41 = vmatprep.subr.bf16.mxu0 0
  %42 = vmatpush1.bf16.msra.mxu0 0
  %43 = vmatprep.subr.bf16.mxu0 0
  %44 = vmatpush1.bf16.msra.mxu0 0
  %45 = vmatprep.subr.bf16.mxu0 0
  %46 = vmatpush1.bf16.msra.mxu0 0
  %47 = vmatprep.subr.bf16.mxu0 0
  %48 = vmatpush1.bf16.msra.mxu0 0
  %49 = vmatprep.subr.bf16.mxu0 0
  %50 = vmatpush1.bf16.msra.mxu0 0
  %51 = vmatprep.subr.bf16.mxu0 0
  %52 = vmatpush1.bf16.msra.mxu0 0
  %53 = vmatprep.subr.bf16.mxu0 0
  %54 = vmatpush1.bf16.msra.mxu0 0
  %55 = vmatprep.mubr.bf16.mxu0 0
  %56 = vmatmul.mubr.bf16.gmra.mrb[0].mxu0 %v17
  %v57 = vpop.f32.mrb[0].mxu0
  %v58 = vadd.f32 0.0, %v57
  %v59 = vpop.f32.mrb[0].mxu0
  %v60 = vpop.f32.mrb[0].mxu0
  %v61 = vpop.f32.mrb[0].mxu0
  %62 = vdwg.mxu0
  %vm63 = vcmask 523264
  %64 = vst.msk [vmem:[%s2] sm:$0xff] %vm63, %v58
  // Predicated region
  $region10: #{_lambda_.5} parent=0 // pred_check
    _
  $region11: #{_lambda_.5} parent=0 // pred_check_branch
    %66 = sbr.rel (0) target = $region13
  $region12: #{_lambda_.5} parent=0 // pred_region
    _
  $region13: #{_lambda_.5} parent=0 // pred_fallthru
    _
  // Predicated region
  $region14: #{_lambda_.5} parent=0 // pred_check
    _
  $region15: #{_lambda_.5} parent=0 // pred_check_branch
    %68 = sbr.rel (0) target = $region17
  $region16: #{_lambda_.5} parent=0 // pred_region
    _
  $region17: #{_lambda_.5} parent=0 // pred_fallthru
    _

// kernel: _lambda_.6
$region0: #{_lambda_.6}
  #allocation0 [shape = 'u32[]', space=smem, size = 0x4, offset = 0x4, fixed_abs, tag = 'smem constant byte address 0x4 - core index']
  #allocation1 [shape = 'u32[144,128]{1,0:T(1,128)}', space=vmem, size = 0x12000, scoped, tag = 'internal scratch']
  %s0 = inlined_call_operand.vmem [shape: f32[4,64,2], index: 0, kind: input, shape index: {}]
  %s1 = inlined_call_operand.vmem [shape: f32[4,3,256], index: 1, kind: input, shape index: {}]
  %s2 = inlined_call_operand.vmem [shape: f32[64,256], index: 2, kind: input, shape index: {}]
  %s3 = inlined_call_operand.vmem [shape: bf16[4,64], index: 3, kind: input, shape index: {}]
  %s4 = inlined_call_operand.vmem [shape: f32[4,1], index: 4, kind: input, shape index: {}]
  %s5 = inlined_call_operand.vmem [shape: f32[4,3,256], index: 5, kind: output, shape index: {0}]
  %s6 = inlined_call_operand.vmem [shape: f32[4,1,128], index: 6, kind: output, shape index: {1}]
  %s7 = inlined_call_operand.vmem [shape: f32[4,1,128], index: 7, kind: output, shape index: {2}]
  %8 = xla_tuple %s5, %s6, %s7
  %s9 = sld [smem:[#allocation0]]
  $region69: #{_lambda_.6} parent=0
    _
  %s11 = ssub.s32 1, %s9
  %s12 = scalar_select 0, %s11, %s9
  loop: start=0, step=1, limit=6
  $region2: #{_lambda_.6} parent=0 // loop_pre_header
    _
  $region3: #{_lambda_.6} parent=0 // loop_header
    %s14 = sphi 0, %s18
    %p15 = scmp.ge.s32.totalorder %s14, 6
    %s21 = sphi 0, %s33
    %s22 = sphi 0, %s29
    %s23 = sphi 0, %s21
    %s24 = sphi 0, %s22
    %s25 = sphi 0, %s23
    %s26 = sphi 0, %s24
    %s40 = sphi 0, %s42
    %s43 = sphi 0, %s40
    %s44 = sphi 0, %s43
    %s60 = sphi 0, %s44
    %s66 = sphi 0, %s68
    %s69 = sphi 0, %s66
    %s70 = sphi 0, %s69
    %s86 = sphi 0, %s70
    %s90 = sphi 0, %s90
    %s92 = sphi 0, %s90
    %s93 = sphi 0, %s92
    %s107 = sphi 0, %s93
    %s111 = sphi 0, %s111
    %s113 = sphi 0, %s111
    %s114 = sphi 0, %s113
    %s128 = sphi 0, %s114
    %s132 = sphi 0, %s132
    %s134 = sphi 0, %s132
    %s135 = sphi 0, %s134
    %s149 = sphi 0, %s135
    %s159 = sphi 0, %s161
    %s162 = sphi 0, %s159
    %s163 = sphi 0, %s162
    %s179 = sphi 0, %s163
    %s189 = sphi 0, %s191
    %s192 = sphi 0, %s189
    %s193 = sphi 0, %s192
    %s209 = sphi 0, %s193
    %s219 = sphi 0, %s221
    %s222 = sphi 0, %s219
    %s223 = sphi 0, %s222
    %s239 = sphi 0, %s223
  $region4: #{_lambda_.6} parent=0 // loop_header_branch
    %17 = sbr.rel (%p15) target = $region8
  $region5: #{_lambda_.6} parent=0 // loop_body
    %s19 = ssub.s32 %s14, 1
    %s20 = ssub.s32 %s14, 2
    %s27 = sadd.s32 1, %s22
    %p28 = scmp.ge.s32.totalorder %s27, 4
    %s29 = scalar_select %p28, 0, %s27
    %s30 = sadd.s32 1, %s21
    %s31 = scalar_select %p28, %s30, %s21
    %p32 = scmp.ge.s32.totalorder %s31, 1
    %s33 = scalar_select %p32, 0, %s31
    %s34 = smul.u32 %s21, 4
    %s35 = sadd.s32 %s34, %s22
    %s36 = smul.u32 %s33, 4
    %s37 = sadd.s32 %s36, %s29
    %s38 = ssub.s32 %s35, %s37
    %p39 = scmp.eq.s32.totalorder %s38, 0
    %s41 = sadd.s32 %s40, 1
    %s42 = scalar_select %p39, %s40, %s41
    %p45 = pneg %p39
    %p46 = scmp.eq.s32.totalorder %s14, 3
    %p47 = por %p45, %p46
    %p48 = scmp.ne.s32.totalorder %s40, %s43
    %p49 = scmp.eq.s32.totalorder %s14, 0
    %p50 = por %p48, %p49
    %p51 = scmp.ne.s32.totalorder %s40, %s43
    %p52 = scmp.eq.s32.totalorder %s19, 3
    %p53 = por %p51, %p52
    %p54 = scmp.ne.s32.totalorder %s43, %s44
    %p55 = scmp.eq.s32.totalorder %s19, 0
    %p56 = por %p54, %p55
    %p57 = scmp.ne.s32.totalorder %s43, %s44
    %p58 = scmp.eq.s32.totalorder %s20, 3
    %p59 = por %p57, %p58
    %p61 = scmp.ne.s32.totalorder %s44, %s60
    %p62 = scmp.eq.s32.totalorder %s20, 0
    %p63 = por %p61, %p62
    %s64 = ssub.s32 %s22, %s29
    %p65 = scmp.eq.s32.totalorder %s64, 0
    %s67 = sadd.s32 %s66, 1
    %s68 = scalar_select %p65, %s66, %s67
    %p71 = pneg %p65
    %p72 = scmp.eq.s32.totalorder %s14, 3
    %p73 = por %p71, %p72
    %p74 = scmp.ne.s32.totalorder %s66, %s69
    %p75 = scmp.eq.s32.totalorder %s14, 0
    %p76 = por %p74, %p75
    %p77 = scmp.ne.s32.totalorder %s66, %s69
    %p78 = scmp.eq.s32.totalorder %s19, 3
    %p79 = por %p77, %p78
    %p80 = scmp.ne.s32.totalorder %s69, %s70
    %p81 = scmp.eq.s32.totalorder %s19, 0
    %p82 = por %p80, %p81
    %p83 = scmp.ne.s32.totalorder %s69, %s70
    %p84 = scmp.eq.s32.totalorder %s20, 3
    %p85 = por %p83, %p84
    %p87 = scmp.ne.s32.totalorder %s70, %s86
    %p88 = scmp.eq.s32.totalorder %s20, 0
    %p89 = por %p87, %p88
    %s91 = sadd.s32 %s90, 1
    %p94 = scmp.eq.s32.totalorder %s14, 3
    %p95 = scmp.ne.s32.totalorder %s90, %s92
    %p96 = scmp.eq.s32.totalorder %s14, 0
    %p97 = por %p95, %p96
    %p98 = scmp.ne.s32.totalorder %s90, %s92
    %p99 = scmp.eq.s32.totalorder %s19, 3
    %p100 = por %p98, %p99
    %p101 = scmp.ne.s32.totalorder %s92, %s93
    %p102 = scmp.eq.s32.totalorder %s19, 0
    %p103 = por %p101, %p102
    %p104 = scmp.ne.s32.totalorder %s92, %s93
    %p105 = scmp.eq.s32.totalorder %s20, 3
    %p106 = por %p104, %p105
    %p108 = scmp.ne.s32.totalorder %s93, %s107
    %p109 = scmp.eq.s32.totalorder %s20, 0
    %p110 = por %p108, %p109
    %s112 = sadd.s32 %s111, 1
    %p115 = scmp.eq.s32.totalorder %s14, 3
    %p116 = scmp.ne.s32.totalorder %s111, %s113
    %p117 = scmp.eq.s32.totalorder %s14, 0
    %p118 = por %p116, %p117
    %p119 = scmp.ne.s32.totalorder %s111, %s113
    %p120 = scmp.eq.s32.totalorder %s19, 3
    %p121 = por %p119, %p120
    %p122 = scmp.ne.s32.totalorder %s113, %s114
    %p123 = scmp.eq.s32.totalorder %s19, 0
    %p124 = por %p122, %p123
    %p125 = scmp.ne.s32.totalorder %s113, %s114
    %p126 = scmp.eq.s32.totalorder %s20, 3
    %p127 = por %p125, %p126
    %p129 = scmp.ne.s32.totalorder %s114, %s128
    %p130 = scmp.eq.s32.totalorder %s20, 0
    %p131 = por %p129, %p130
    %s133 = sadd.s32 %s132, 1
    %p136 = scmp.eq.s32.totalorder %s14, 3
    %p137 = scmp.ne.s32.totalorder %s132, %s134
    %p138 = scmp.eq.s32.totalorder %s14, 0
    %p139 = por %p137, %p138
    %p140 = scmp.ne.s32.totalorder %s132, %s134
    %p141 = scmp.eq.s32.totalorder %s19, 3
    %p142 = por %p140, %p141
    %p143 = scmp.ne.s32.totalorder %s134, %s135
    %p144 = scmp.eq.s32.totalorder %s19, 0
    %p145 = por %p143, %p144
    %p146 = scmp.ne.s32.totalorder %s134, %s135
    %p147 = scmp.eq.s32.totalorder %s20, 3
    %p148 = por %p146, %p147
    %p150 = scmp.ne.s32.totalorder %s135, %s149
    %p151 = scmp.eq.s32.totalorder %s20, 0
    %p152 = por %p150, %p151
    %s153 = smul.u32 %s21, 4
    %s154 = sadd.s32 %s153, %s22
    %s155 = smul.u32 %s33, 4
    %s156 = sadd.s32 %s155, %s29
    %s157 = ssub.s32 %s154, %s156
    %p158 = scmp.eq.s32.totalorder %s157, 0
    %s160 = sadd.s32 %s159, 1
    %s161 = scalar_select %p158, %s159, %s160
    %p164 = pneg %p158
    %p165 = scmp.eq.s32.totalorder %s14, 3
    %p166 = por %p164, %p165
    %p167 = scmp.ne.s32.totalorder %s159, %s162
    %p168 = scmp.eq.s32.totalorder %s14, 0
    %p169 = por %p167, %p168
    %p170 = scmp.ne.s32.totalorder %s159, %s162
    %p171 = scmp.eq.s32.totalorder %s19, 3
    %p172 = por %p170, %p171
    %p173 = scmp.ne.s32.totalorder %s162, %s163
    %p174 = scmp.eq.s32.totalorder %s19, 0
    %p175 = por %p173, %p174
    %p176 = scmp.ne.s32.totalorder %s162, %s163
    %p177 = scmp.eq.s32.totalorder %s20, 3
    %p178 = por %p176, %p177
    %p180 = scmp.ne.s32.totalorder %s163, %s179
    %p181 = scmp.eq.s32.totalorder %s20, 0
    %p182 = por %p180, %p181
    %s183 = smul.u32 %s21, 4
    %s184 = sadd.s32 %s183, %s22
    %s185 = smul.u32 %s33, 4
    %s186 = sadd.s32 %s185, %s29
    %s187 = ssub.s32 %s184, %s186
    %p188 = scmp.eq.s32.totalorder %s187, 0
    %s190 = sadd.s32 %s189, 1
    %s191 = scalar_select %p188, %s189, %s190
    %p194 = pneg %p188
    %p195 = scmp.eq.s32.totalorder %s14, 3
    %p196 = por %p194, %p195
    %p197 = scmp.ne.s32.totalorder %s189, %s192
    %p198 = scmp.eq.s32.totalorder %s14, 0
    %p199 = por %p197, %p198
    %p200 = scmp.ne.s32.totalorder %s189, %s192
    %p201 = scmp.eq.s32.totalorder %s19, 3
    %p202 = por %p200, %p201
    %p203 = scmp.ne.s32.totalorder %s192, %s193
    %p204 = scmp.eq.s32.totalorder %s19, 0
    %p205 = por %p203, %p204
    %p206 = scmp.ne.s32.totalorder %s192, %s193
    %p207 = scmp.eq.s32.totalorder %s20, 3
    %p208 = por %p206, %p207
    %p210 = scmp.ne.s32.totalorder %s193, %s209
    %p211 = scmp.eq.s32.totalorder %s20, 0
    %p212 = por %p210, %p211
    %s213 = smul.u32 %s21, 4
    %s214 = sadd.s32 %s213, %s22
    %s215 = smul.u32 %s33, 4
    %s216 = sadd.s32 %s215, %s29
    %s217 = ssub.s32 %s214, %s216
    %p218 = scmp.eq.s32.totalorder %s217, 0
    %s220 = sadd.s32 %s219, 1
    %s221 = scalar_select %p218, %s219, %s220
    %p224 = pneg %p218
    %p225 = scmp.eq.s32.totalorder %s14, 3
    %p226 = por %p224, %p225
    %p227 = scmp.ne.s32.totalorder %s219, %s222
    %p228 = scmp.eq.s32.totalorder %s14, 0
    %p229 = por %p227, %p228
    %p230 = scmp.ne.s32.totalorder %s219, %s222
    %p231 = scmp.eq.s32.totalorder %s19, 3
    %p232 = por %p230, %p231
    %p233 = scmp.ne.s32.totalorder %s222, %s223
    %p234 = scmp.eq.s32.totalorder %s19, 0
    %p235 = por %p233, %p234
    %p236 = scmp.ne.s32.totalorder %s222, %s223
    %p237 = scmp.eq.s32.totalorder %s20, 3
    %p238 = por %p236, %p237
    %p240 = scmp.ne.s32.totalorder %s223, %s239
    %p241 = scmp.eq.s32.totalorder %s20, 0
    %p242 = por %p240, %p241
    %p243 = scmp.le.s32.totalorder 1, %s14
    %p244 = scmp.lt.s32.totalorder %s14, 5
    %p245 = pnand %p243, %p244
    %p246 = pneg %p245
    // Predicated region
    $region9: #{_lambda_.6} parent=5 // pred_check
      _
    $region10: #{_lambda_.6} parent=5 // pred_check_branch
      %248 = sbr.rel (%p245) target = $region12
    $region11: #{_lambda_.6} parent=5 // pred_region
      %s249 = ssub.s32 %s14, 1
      // Predicated region
      $region13: #{_lambda_.6} parent=11 // pred_check
        %p250 = pneg %p103
      $region14: #{_lambda_.6} parent=11 // pred_check_branch
        %252 = sbr.rel (%p250) target = $region16
      $region15: #{_lambda_.6} parent=11 // pred_region
        _
      $region16: #{_lambda_.6} parent=11 // pred_fallthru
        _
      // Predicated region
      $region17: #{_lambda_.6} parent=11 // pred_check
        %p253 = pneg %p124
      $region18: #{_lambda_.6} parent=11 // pred_check_branch
        %255 = sbr.rel (%p253) target = $region20
      $region19: #{_lambda_.6} parent=11 // pred_region
        _
      $region20: #{_lambda_.6} parent=11 // pred_fallthru
        _
      // Predicated region
      $region21: #{_lambda_.6} parent=11 // pred_check
        %p256 = pneg %p145
      $region22: #{_lambda_.6} parent=11 // pred_check_branch
        %258 = sbr.rel (%p256) target = $region24
      $region23: #{_lambda_.6} parent=11 // pred_region
        _
      $region24: #{_lambda_.6} parent=11 // pred_fallthru
        _
    $region12: #{_lambda_.6} parent=5 // pred_fallthru
      _
    %p259 = scmp.lt.s32.totalorder %s14, 4
    // Predicated region
    $region25: #{_lambda_.6} parent=5 // pred_check
      %p260 = pneg %p259
    $region26: #{_lambda_.6} parent=5 // pred_check_branch
      %262 = sbr.rel (%p260) target = $region28
    $region27: #{_lambda_.6} parent=5 // pred_region
      // Predicated region
      $region29: #{_lambda_.6} parent=27 // pred_check
        %p263 = pneg %p50
      $region30: #{_lambda_.6} parent=27 // pred_check_branch
        %265 = sbr.rel (%p263) target = $region32
      $region31: #{_lambda_.6} parent=27 // pred_region
        %s266 = smul.u32 %s21, 4
        %s267 = sadd.s32 %s266, %s22
        %p268 = scmp.lt.s32.totalorder %s267, 3
        %s269 = scalar_select %p268, %s267, 3
        %s270 = smul.addr %s269, 8
        %s271 = smul.addr %s270, 8
        %s272 = scalar_lea.vmem %s0, %s271
        %s273 = smul.u32 %s21, 4
        %s274 = sadd.s32 %s273, %s22
      $region32: #{_lambda_.6} parent=27 // pred_fallthru
        _
      // Predicated region
      $region33: #{_lambda_.6} parent=27 // pred_check
        %p275 = pneg %p76
      $region34: #{_lambda_.6} parent=27 // pred_check_branch
        %277 = sbr.rel (%p275) target = $region36
      $region35: #{_lambda_.6} parent=27 // pred_region
        %p278 = scmp.lt.s32.totalorder %s22, 3
        %s279 = scalar_select %p278, %s22, 3
        %s280 = smul.addr %s279, 2
        %s281 = smul.addr %s280, 4
        %s282 = scalar_lea.vmem %s1, %s281
      $region36: #{_lambda_.6} parent=27 // pred_fallthru
        _
    $region28: #{_lambda_.6} parent=5 // pred_fallthru
      _
    %p283 = scmp.le.s32.totalorder 1, %s14
    %p284 = scmp.lt.s32.totalorder %s14, 5
    %p285 = pnand %p283, %p284
    %p286 = pneg %p285
    // Predicated region
    $region37: #{_lambda_.6} parent=5 // pred_check
      _
    $region38: #{_lambda_.6} parent=5 // pred_check_branch
      %288 = sbr.rel (%p285) target = $region40
    $region39: #{_lambda_.6} parent=5 // pred_region
      %s289 = ssub.s32 %s14, 1
      %s290 = smul.u32 %s23, 4
      %s291 = sadd.s32 %s290, %s24
      %p292 = scmp.lt.s32.totalorder %s291, 3
      %s293 = scalar_select %p292, %s291, 3
      %s294 = smul.addr %s293, 8
      %s295 = smul.addr %s294, 8
      %s296 = scalar_lea.vmem %s0, %s295
      %p297 = pneg %p56
      %p298 = pneg %p53
      %p299 = scmp.lt.s32.totalorder %s24, 3
      %s300 = scalar_select %p299, %s24, 3
      %s301 = smul.addr %s300, 2
      %s302 = smul.addr %s301, 4
      %s303 = scalar_lea.vmem %s1, %s302
      %p304 = pneg %p82
      %p305 = pneg %p79
      %p306 = pneg %p103
      %p307 = pneg %p100
      %p308 = pneg %p124
      %p309 = pneg %p121
      %p310 = pneg %p145
      %p311 = pneg %p142
      %p312 = pneg %p175
      %p313 = pneg %p172
      %s314 = smul.u32 %s23, 4
      %s315 = sadd.s32 %s314, %s24
      %p316 = scmp.lt.s32.totalorder %s315, 3
      %s317 = scalar_select %p316, %s315, 3
      %s318 = smul.addr %s317, 2
      %s319 = smul.addr %s318, 4
      %s320 = scalar_lea.vmem %s5, %s319
      %p321 = pneg %p205
      %p322 = pneg %p202
      %s323 = smul.u32 %s23, 4
      %s324 = sadd.s32 %s323, %s24
      %p325 = scmp.lt.s32.totalorder %s324, 3
      %s326 = scalar_select %p325, %s324, 3
      %s327 = scalar_lea.vmem %s6, %s326
      %p328 = pneg %p235
      %p329 = pneg %p232
      %s330 = smul.u32 %s23, 4
      %s331 = sadd.s32 %s330, %s24
      %p332 = scmp.lt.s32.totalorder %s331, 3
      %s333 = scalar_select %p332, %s331, 3
      %s334 = scalar_lea.vmem %s7, %s333
      %s335 = smul.u32 %s23, 4
      %s336 = sadd.s32 %s335, %s24
      %p337 = scmp.lt.s32.totalorder %s336, 3
      %s338 = scalar_select %p337, %s336, 3
      %s339 = smul.addr %s338, 8
      %s340 = smul.addr %s339, 8
      %s341 = scalar_lea.vmem %s0, %s340
      %s342 = smul.u32 %s23, 4
      %s343 = sadd.s32 %s342, %s24
      %p344 = scmp.lt.s32.totalorder %s24, 3
      %s345 = scalar_select %p344, %s24, 3
      %s346 = smul.addr %s345, 2
      %s347 = smul.addr %s346, 4
      %s348 = scalar_lea.vmem %s1, %s347
      %s349 = smul.u32 %s23, 4
      %s350 = sadd.s32 %s349, %s24
      %p351 = scmp.lt.s32.totalorder %s350, 3
      %s352 = scalar_select %p351, %s350, 3
      %s353 = smul.addr %s352, 2
      %s354 = smul.addr %s353, 4
      %s355 = scalar_lea.vmem %s5, %s354
      %s356 = smul.u32 %s23, 4
      %s357 = sadd.s32 %s356, %s24
      %s358 = smul.u32 %s23, 4
      %s359 = sadd.s32 %s358, %s24
      %p360 = scmp.lt.s32.totalorder %s359, 3
      %s361 = scalar_select %p360, %s359, 3
      %s362 = scalar_lea.vmem %s6, %s361
      %s363 = smul.u32 %s23, 4
      %s364 = sadd.s32 %s363, %s24
      %s365 = smul.u32 %s23, 4
      %s366 = sadd.s32 %s365, %s24
      %p367 = scmp.lt.s32.totalorder %s366, 3
      %s368 = scalar_select %p367, %s366, 3
      %s369 = scalar_lea.vmem %s7, %s368
      %s370 = smul.u32 %s23, 4
      %s371 = sadd.s32 %s370, %s24
      %v373 = vld [vmem:[%s341] sm:$0xff]
      %v374 = vld [vmem:[%s341 + $0x8] sm:$0xff]
      %v375 = vld [vmem:[%s341 + $0x10] sm:$0xff]
      %v376 = vld [vmem:[%s341 + $0x18] sm:$0xff]
      %v377 = vld [vmem:[%s341 + $0x20] sm:$0xff]
      %v378 = vld [vmem:[%s341 + $0x28] sm:$0xff]
      %v379 = vld [vmem:[%s341 + $0x30] sm:$0xff]
      %v380 = vld [vmem:[%s341 + $0x38] sm:$0xff]
      %v381 = vld [vmem:[%s2] sm:$0xff]
      %v382 = vld [vmem:[%s2 + $0x8] sm:$0xff]
      %v383 = vld [vmem:[%s2 + $0x10] sm:$0xff]
      %v384 = vld [vmem:[%s2 + $0x18] sm:$0xff]
      %v385 = vld [vmem:[%s2 + $0x20] sm:$0xff]
      %v386 = vld [vmem:[%s2 + $0x28] sm:$0xff]
      %v387 = vld [vmem:[%s2 + $0x30] sm:$0xff]
      %v388 = vld [vmem:[%s2 + $0x38] sm:$0xff]
      %v389 = vld [vmem:[%s2 + $0x40] sm:$0xff]
      %v390 = vld [vmem:[%s2 + $0x48] sm:$0xff]
      %v391 = vld [vmem:[%s2 + $0x50] sm:$0xff]
      %v392 = vld [vmem:[%s2 + $0x58] sm:$0xff]
      %v393 = vld [vmem:[%s2 + $0x60] sm:$0xff]
      %v394 = vld [vmem:[%s2 + $0x68] sm:$0xff]
      %v395 = vld [vmem:[%s2 + $0x70] sm:$0xff]
      %v396 = vld [vmem:[%s2 + $0x78] sm:$0xff]
      %v397 = vld [vmem:[%s348] sm:$0x77]
      %399 = vset.pattern.permute.xlu0 0
      %400 = vperm.xlu0 %399, %v373
      %v401 = vpop.permute.xlu0 %400
      %404 = vset.pattern.permute.xlu0 0
      %405 = vperm.xlu0 %404, %v374
      %v406 = vpop.permute.xlu0 %405
      %409 = vset.pattern.permute.xlu0 0
      %410 = vperm.xlu0 %409, %v375
      %v411 = vpop.permute.xlu0 %410
      %414 = vset.pattern.permute.xlu0 0
      %415 = vperm.xlu0 %414, %v376
      %v416 = vpop.permute.xlu0 %415
      %419 = vset.pattern.permute.xlu0 0
      %420 = vperm.xlu0 %419, %v377
      %v421 = vpop.permute.xlu0 %420
      %424 = vset.pattern.permute.xlu0 0
      %425 = vperm.xlu0 %424, %v378
      %v426 = vpop.permute.xlu0 %425
      %429 = vset.pattern.permute.xlu0 0
      %430 = vperm.xlu0 %429, %v379
      %v431 = vpop.permute.xlu0 %430
      %434 = vset.pattern.permute.xlu0 0
      %435 = vperm.xlu0 %434, %v380
      %v436 = vpop.permute.xlu0 %435
      %v438 = vadd.f32 %v401, %v381
      %v439 = vadd.f32 %v401, %v382
      %v440 = vadd.f32 %v406, %v383
      %v441 = vadd.f32 %v406, %v384
      %v442 = vadd.f32 %v411, %v385
      %v443 = vadd.f32 %v411, %v386
      %v444 = vadd.f32 %v416, %v387
      %v445 = vadd.f32 %v416, %v388
      %v446 = vadd.f32 %v421, %v389
      %v447 = vadd.f32 %v421, %v390
      %v448 = vadd.f32 %v426, %v391
      %v449 = vadd.f32 %v426, %v392
      %v450 = vadd.f32 %v431, %v393
      %v451 = vadd.f32 %v431, %v394
      %v452 = vadd.f32 %v436, %v395
      %v453 = vadd.f32 %v436, %v396
      %454 = vset.pattern.permute.xlu0 1
      %455 = vperm.xlu0 %454, %v373
      %v456 = vpop.permute.xlu0 %455
      %458 = vset.pattern.permute.xlu0 1
      %459 = vperm.xlu0 %458, %v374
      %v460 = vpop.permute.xlu0 %459
      %462 = vset.pattern.permute.xlu0 1
      %463 = vperm.xlu0 %462, %v375
      %v464 = vpop.permute.xlu0 %463
      %466 = vset.pattern.permute.xlu0 1
      %467 = vperm.xlu0 %466, %v376
      %v468 = vpop.permute.xlu0 %467
      %470 = vset.pattern.permute.xlu0 1
      %471 = vperm.xlu0 %470, %v377
      %v472 = vpop.permute.xlu0 %471
      %474 = vset.pattern.permute.xlu0 1
      %475 = vperm.xlu0 %474, %v378
      %v476 = vpop.permute.xlu0 %475
      %478 = vset.pattern.permute.xlu0 1
      %479 = vperm.xlu0 %478, %v379
      %v480 = vpop.permute.xlu0 %479
      %482 = vset.pattern.permute.xlu0 1
      %483 = vperm.xlu0 %482, %v380
      %v484 = vpop.permute.xlu0 %483
      %v486 = vadd.f32 %v456, %v381
      %v487 = vadd.f32 %v456, %v382
      %v488 = vadd.f32 %v460, %v383
      %v489 = vadd.f32 %v460, %v384
      %v490 = vadd.f32 %v464, %v385
      %v491 = vadd.f32 %v464, %v386
      %v492 = vadd.f32 %v468, %v387
      %v493 = vadd.f32 %v468, %v388
      %v494 = vadd.f32 %v472, %v389
      %v495 = vadd.f32 %v472, %v390
      %v496 = vadd.f32 %v476, %v391
      %v497 = vadd.f32 %v476, %v392
      %v498 = vadd.f32 %v480, %v393
      %v499 = vadd.f32 %v480, %v394
      %v500 = vadd.f32 %v484, %v395
      %v501 = vadd.f32 %v484, %v396
      %vm502 = vcmp.gt.f32.partialorder %v438, 0.0
      %vm503 = vcmp.gt.f32.partialorder %v439, 0.0
      %vm504 = vcmp.gt.f32.partialorder %v486, 0.0
      %vm505 = vcmp.gt.f32.partialorder %v487, 0.0
      %vm506 = vcmp.gt.f32.partialorder %v440, 0.0
      %vm507 = vcmp.gt.f32.partialorder %v441, 0.0
      %vm508 = vcmp.gt.f32.partialorder %v488, 0.0
      %vm509 = vcmp.gt.f32.partialorder %v489, 0.0
      %vm510 = vcmp.gt.f32.partialorder %v442, 0.0
      %vm511 = vcmp.gt.f32.partialorder %v443, 0.0
      %vm512 = vcmp.gt.f32.partialorder %v490, 0.0
      %vm513 = vcmp.gt.f32.partialorder %v491, 0.0
      %vm514 = vcmp.gt.f32.partialorder %v444, 0.0
      %vm515 = vcmp.gt.f32.partialorder %v445, 0.0
      %vm516 = vcmp.gt.f32.partialorder %v492, 0.0
      %vm517 = vcmp.gt.f32.partialorder %v493, 0.0
      %vm518 = vcmp.gt.f32.partialorder %v446, 0.0
      %vm519 = vcmp.gt.f32.partialorder %v447, 0.0
      %vm520 = vcmp.gt.f32.partialorder %v494, 0.0
      %vm521 = vcmp.gt.f32.partialorder %v495, 0.0
      %vm522 = vcmp.gt.f32.partialorder %v448, 0.0
      %vm523 = vcmp.gt.f32.partialorder %v449, 0.0
      %vm524 = vcmp.gt.f32.partialorder %v496, 0.0
      %vm525 = vcmp.gt.f32.partialorder %v497, 0.0
      %vm526 = vcmp.gt.f32.partialorder %v450, 0.0
      %vm527 = vcmp.gt.f32.partialorder %v451, 0.0
      %vm528 = vcmp.gt.f32.partialorder %v498, 0.0
      %vm529 = vcmp.gt.f32.partialorder %v499, 0.0
      %vm530 = vcmp.gt.f32.partialorder %v452, 0.0
      %vm531 = vcmp.gt.f32.partialorder %v453, 0.0
      %vm532 = vcmp.gt.f32.partialorder %v500, 0.0
      %vm533 = vcmp.gt.f32.partialorder %v501, 0.0
      %v534 = vmin.f32 %v438, 0.0
      %v535 = vmin.f32 %v439, 0.0
      %v536 = vmin.f32 %v486, 0.0
      %v537 = vmin.f32 %v487, 0.0
      %v538 = vmin.f32 %v440, 0.0
      %v539 = vmin.f32 %v441, 0.0
      %v540 = vmin.f32 %v488, 0.0
      %v541 = vmin.f32 %v489, 0.0
      %v542 = vmin.f32 %v442, 0.0
      %v543 = vmin.f32 %v443, 0.0
      %v544 = vmin.f32 %v490, 0.0
      %v545 = vmin.f32 %v491, 0.0
      %v546 = vmin.f32 %v444, 0.0
      %v547 = vmin.f32 %v445, 0.0
      %v548 = vmin.f32 %v492, 0.0
      %v549 = vmin.f32 %v493, 0.0
      %v550 = vmin.f32 %v446, 0.0
      %v551 = vmin.f32 %v447, 0.0
      %v552 = vmin.f32 %v494, 0.0
      %v553 = vmin.f32 %v495, 0.0
      %v554 = vmin.f32 %v448, 0.0
      %v555 = vmin.f32 %v449, 0.0
      %v556 = vmin.f32 %v496, 0.0
      %v557 = vmin.f32 %v497, 0.0
      %v558 = vmin.f32 %v450, 0.0
      %v559 = vmin.f32 %v451, 0.0
      %v560 = vmin.f32 %v498, 0.0
      %v561 = vmin.f32 %v499, 0.0
      %v562 = vmin.f32 %v452, 0.0
      %v563 = vmin.f32 %v453, 0.0
      %v564 = vmin.f32 %v500, 0.0
      %v565 = vmin.f32 %v501, 0.0
      %v566 = vmul.f32 %v534, 1.442695
      %v567 = vpow.pop %v566
      %v568 = vmul.f32 %v535, 1.442695
      %v569 = vpow.pop %v568
      %v570 = vmul.f32 %v536, 1.442695
      %v571 = vpow.pop %v570
      %v572 = vmul.f32 %v537, 1.442695
      %v573 = vpow.pop %v572
      %v574 = vmul.f32 %v538, 1.442695
      %v575 = vpow.pop %v574
      %v576 = vmul.f32 %v539, 1.442695
      %v577 = vpow.pop %v576
      %v578 = vmul.f32 %v540, 1.442695
      %v579 = vpow.pop %v578
      %v580 = vmul.f32 %v541, 1.442695
      %v581 = vpow.pop %v580
      %v582 = vmul.f32 %v542, 1.442695
      %v583 = vpow.pop %v582
      %v584 = vmul.f32 %v543, 1.442695
      %v585 = vpow.pop %v584
      %v586 = vmul.f32 %v544, 1.442695
      %v587 = vpow.pop %v586
      %v588 = vmul.f32 %v545, 1.442695
      %v589 = vpow.pop %v588
      %v590 = vmul.f32 %v546, 1.442695
      %v591 = vpow.pop %v590
      %v592 = vmul.f32 %v547, 1.442695
      %v593 = vpow.pop %v592
      %v594 = vmul.f32 %v548, 1.442695
      %v595 = vpow.pop %v594
      %v596 = vmul.f32 %v549, 1.442695
      %v597 = vpow.pop %v596
      %v598 = vmul.f32 %v550, 1.442695
      %v599 = vpow.pop %v598
      %v600 = vmul.f32 %v551, 1.442695
      %v601 = vpow.pop %v600
      %v602 = vmul.f32 %v552, 1.442695
      %v603 = vpow.pop %v602
      %v604 = vmul.f32 %v553, 1.442695
      %v605 = vpow.pop %v604
      %v606 = vmul.f32 %v554, 1.442695
      %v607 = vpow.pop %v606
      %v608 = vmul.f32 %v555, 1.442695
      %v609 = vpow.pop %v608
      %v610 = vmul.f32 %v556, 1.442695
      %v611 = vpow.pop %v610
      %v612 = vmul.f32 %v557, 1.442695
      %v613 = vpow.pop %v612
      %v614 = vmul.f32 %v558, 1.442695
      %v615 = vpow.pop %v614
      %v616 = vmul.f32 %v559, 1.442695
      %v617 = vpow.pop %v616
      %v618 = vmul.f32 %v560, 1.442695
      %v619 = vpow.pop %v618
      %v620 = vmul.f32 %v561, 1.442695
      %v621 = vpow.pop %v620
      %v622 = vmul.f32 %v562, 1.442695
      %v623 = vpow.pop %v622
      %v624 = vmul.f32 %v563, 1.442695
      %v625 = vpow.pop %v624
      %v626 = vmul.f32 %v564, 1.442695
      %v627 = vpow.pop %v626
      %v628 = vmul.f32 %v565, 1.442695
      %v629 = vpow.pop %v628
      %v630 = vsub.f32 %v567, 1.0
      %v631 = vsub.f32 %v569, 1.0
      %v632 = vsub.f32 %v571, 1.0
      %v633 = vsub.f32 %v573, 1.0
      %v634 = vsub.f32 %v575, 1.0
      %v635 = vsub.f32 %v577, 1.0
      %v636 = vsub.f32 %v579, 1.0
      %v637 = vsub.f32 %v581, 1.0
      %v638 = vsub.f32 %v583, 1.0
      %v639 = vsub.f32 %v585, 1.0
      %v640 = vsub.f32 %v587, 1.0
      %v641 = vsub.f32 %v589, 1.0
      %v642 = vsub.f32 %v591, 1.0
      %v643 = vsub.f32 %v593, 1.0
      %v644 = vsub.f32 %v595, 1.0
      %v645 = vsub.f32 %v597, 1.0
      %v646 = vsub.f32 %v599, 1.0
      %v647 = vsub.f32 %v601, 1.0
      %v648 = vsub.f32 %v603, 1.0
      %v649 = vsub.f32 %v605, 1.0
      %v650 = vsub.f32 %v607, 1.0
      %v651 = vsub.f32 %v609, 1.0
      %v652 = vsub.f32 %v611, 1.0
      %v653 = vsub.f32 %v613, 1.0
      %v654 = vsub.f32 %v615, 1.0
      %v655 = vsub.f32 %v617, 1.0
      %v656 = vsub.f32 %v619, 1.0
      %v657 = vsub.f32 %v621, 1.0
      %v658 = vsub.f32 %v623, 1.0
      %v659 = vsub.f32 %v625, 1.0
      %v660 = vsub.f32 %v627, 1.0
      %v661 = vsub.f32 %v629, 1.0
      %v662 = vsel %vm502, %v438, %v630
      %v663 = vsel %vm503, %v439, %v631
      %v664 = vsel %vm504, %v486, %v632
      %v665 = vsel %vm505, %v487, %v633
      %v666 = vsel %vm506, %v440, %v634
      %v667 = vsel %vm507, %v441, %v635
      %v668 = vsel %vm508, %v488, %v636
      %v669 = vsel %vm509, %v489, %v637
      %v670 = vsel %vm510, %v442, %v638
      %v671 = vsel %vm511, %v443, %v639
      %v672 = vsel %vm512, %v490, %v640
      %v673 = vsel %vm513, %v491, %v641
      %v674 = vsel %vm514, %v444, %v642
      %v675 = vsel %vm515, %v445, %v643
      %v676 = vsel %vm516, %v492, %v644
      %v677 = vsel %vm517, %v493, %v645
      %v678 = vsel %vm518, %v446, %v646
      %v679 = vsel %vm519, %v447, %v647
      %v680 = vsel %vm520, %v494, %v648
      %v681 = vsel %vm521, %v495, %v649
      %v682 = vsel %vm522, %v448, %v650
      %v683 = vsel %vm523, %v449, %v651
      %v684 = vsel %vm524, %v496, %v652
      %v685 = vsel %vm525, %v497, %v653
      %v686 = vsel %vm526, %v450, %v654
      %v687 = vsel %vm527, %v451, %v655
      %v688 = vsel %vm528, %v498, %v656
      %v689 = vsel %vm529, %v499, %v657
      %v690 = vsel %vm530, %v452, %v658
      %v691 = vsel %vm531, %v453, %v659
      %v692 = vsel %vm532, %v500, %v660
      %v693 = vsel %vm533, %v501, %v661
      %v694 = vld [vmem:[%s3] sm:$0x3]
      %v695 = vpack.c.bf16 %v666, %v662
      %v696 = vpack.c.bf16 %v667, %v663
      %v697 = vpack.c.bf16 %v668, %v664
      %v698 = vpack.c.bf16 %v669, %v665
      %v699 = vpack.c.bf16 %v674, %v670
      %v700 = vpack.c.bf16 %v675, %v671
      %v701 = vpack.c.bf16 %v676, %v672
      %v702 = vpack.c.bf16 %v677, %v673
      %v703 = vpack.c.bf16 %v682, %v678
      %v704 = vpack.c.bf16 %v683, %v679
      %v705 = vpack.c.bf16 %v684, %v680
      %v706 = vpack.c.bf16 %v685, %v681
      %v707 = vpack.c.bf16 %v690, %v686
      %v708 = vpack.c.bf16 %v691, %v687
      %v709 = vpack.c.bf16 %v692, %v688
      %v710 = vpack.c.bf16 %v693, %v689
      %v711 = vld [vmem:[%s4] sm:$0xf]
      %713 = vset.pattern.permute.xlu0 0
      %714 = vperm.xlu0 %713, %v711
      %v715 = vpop.permute.xlu0 %714
      %vm717 = vcmask 523264
      %v719 = vsel %vm717, %v694, 0
      %721 = vmatprep.subr.bf16.mxu0 %v696
      %722 = vmatpush1.bf16.msra.mxu0 %v695
      %723 = vmatprep.subr.bf16.mxu0 %v700
      %724 = vmatpush1.bf16.msra.mxu0 %v699
      %725 = vmatprep.subr.bf16.mxu0 %v704
      %726 = vmatpush1.bf16.msra.mxu0 %v703
      %727 = vmatprep.subr.bf16.mxu0 %v708
      %728 = vmatpush1.bf16.msra.mxu0 %v707
      %729 = vmatprep.subr.bf16.mxu0 0
      %730 = vmatpush1.bf16.msra.mxu0 0
      %731 = vmatprep.subr.bf16.mxu0 0
      %732 = vmatpush1.bf16.msra.mxu0 0
      %733 = vmatprep.subr.bf16.mxu0 0
      %734 = vmatpush1.bf16.msra.mxu0 0
      %735 = vmatprep.subr.bf16.mxu0 0
      %736 = vmatpush1.bf16.msra.mxu0 0
      %737 = vmatprep.subr.bf16.mxu0 0
      %738 = vmatpush1.bf16.msra.mxu0 0
      %739 = vmatprep.subr.bf16.mxu0 0
      %740 = vmatpush1.bf16.msra.mxu0 0
      %741 = vmatprep.subr.bf16.mxu0 0
      %742 = vmatpush1.bf16.msra.mxu0 0
      %743 = vmatprep.subr.bf16.mxu0 0
      %744 = vmatpush1.bf16.msra.mxu0 0
      %745 = vmatprep.subr.bf16.mxu0 0
      %746 = vmatpush1.bf16.msra.mxu0 0
      %747 = vmatprep.subr.bf16.mxu0 0
      %748 = vmatpush1.bf16.msra.mxu0 0
      %749 = vmatprep.subr.bf16.mxu0 0
      %750 = vmatpush1.bf16.msra.mxu0 0
      %751 = vmatprep.subr.bf16.mxu0 0
      %752 = vmatpush1.bf16.msra.mxu0 0
      %753 = vmatprep.mubr.bf16.mxu0 0
      %754 = vmatmul.mubr.bf16.gmra.mrb[0].mxu0 %v719
      %v755 = vpop.f32.mrb[0].mxu0
      %v756 = vadd.f32 %v715, %v755
      %v757 = vpop.f32.mrb[0].mxu0
      %v758 = vadd.f32 %v715, %v757
      %v759 = vpop.f32.mrb[0].mxu0
      %v760 = vpop.f32.mrb[0].mxu0
      %761 = vdwg.mxu0
      %762 = vmatprep.subr.bf16.mxu0 %v698
      %763 = vmatpush1.bf16.msra.mxu0 %v697
      %764 = vmatprep.subr.bf16.mxu0 %v702
      %765 = vmatpush1.bf16.msra.mxu0 %v701
      %766 = vmatprep.subr.bf16.mxu0 %v706
      %767 = vmatpush1.bf16.msra.mxu0 %v705
      %768 = vmatprep.subr.bf16.mxu0 %v710
      %769 = vmatpush1.bf16.msra.mxu0 %v709
      %770 = vmatprep.subr.bf16.mxu0 0
      %771 = vmatpush1.bf16.msra.mxu0 0
      %772 = vmatprep.subr.bf16.mxu0 0
      %773 = vmatpush1.bf16.msra.mxu0 0
      %774 = vmatprep.subr.bf16.mxu0 0
      %775 = vmatpush1.bf16.msra.mxu0 0
      %776 = vmatprep.subr.bf16.mxu0 0
      %777 = vmatpush1.bf16.msra.mxu0 0
      %778 = vmatprep.subr.bf16.mxu0 0
      %779 = vmatpush1.bf16.msra.mxu0 0
      %780 = vmatprep.subr.bf16.mxu0 0
      %781 = vmatpush1.bf16.msra.mxu0 0
      %782 = vmatprep.subr.bf16.mxu0 0
      %783 = vmatpush1.bf16.msra.mxu0 0
      %784 = vmatprep.subr.bf16.mxu0 0
      %785 = vmatpush1.bf16.msra.mxu0 0
      %786 = vmatprep.subr.bf16.mxu0 0
      %787 = vmatpush1.bf16.msra.mxu0 0
      %788 = vmatprep.subr.bf16.mxu0 0
      %789 = vmatpush1.bf16.msra.mxu0 0
      %790 = vmatprep.subr.bf16.mxu0 0
      %791 = vmatpush1.bf16.msra.mxu0 0
      %792 = vmatprep.subr.bf16.mxu0 0
      %793 = vmatpush1.bf16.msra.mxu0 0
      %794 = vmatprep.mubr.bf16.mxu0 0
      %795 = vmatmul.mubr.bf16.gmra.mrb[0].mxu0 %v719
      %v796 = vpop.f32.mrb[0].mxu0
      %v797 = vadd.f32 %v715, %v796
      %v798 = vpop.f32.mrb[0].mxu0
      %v799 = vadd.f32 %v715, %v798
      %v800 = vpop.f32.mrb[0].mxu0
      %v801 = vpop.f32.mrb[0].mxu0
      %802 = vdwg.mxu0
      %v803 = vmax.f32 %v756, %v797
      %v804 = vmax.f32 %v758, %v799
      %v805 = vsub.f32 %v756, %v803
      %v806 = vsub.f32 %v758, %v804
      %v807 = vmul.f32 %v805, 1.442695
      %v808 = vpow.pop %v807
      %v809 = vmul.f32 %v806, 1.442695
      %v810 = vpow.pop %v809
      %v811 = vsub.f32 %v797, %v803
      %v812 = vsub.f32 %v799, %v804
      %v813 = vmul.f32 %v811, 1.442695
      %v814 = vpow.pop %v813
      %v815 = vmul.f32 %v812, 1.442695
      %v816 = vpow.pop %v815
      %v817 = vadd.f32 %v808, %v814
      %v818 = vadd.f32 %v810, %v816
      %v819 = vrcp.pop %v817
      %v820 = vmul.f32 1.0, %v819
      %v821 = vrcp.pop %v818
      %v822 = vmul.f32 1.0, %v821
      %v823 = vlog2.pop %v817
      %v824 = vmul.f32 %v823, 0.6931472
      %v825 = vlog2.pop %v818
      %v826 = vmul.f32 %v825, 0.6931472
      %v828 = vcombine.high %v397, %v397
      %v830 = vsub.f32 %v756, %v397
      %v831 = vsub.f32 %v758, %v828
      %v832 = vmul.f32 %v830, %v830
      %v833 = vmul.f32 %v831, %v831
      %v834 = vmul.f32 %v832, -1.6666666
      %v835 = vmul.f32 %v833, -1.6666666
      %v836 = vlaneseq
      %v837 = vshrl.u32 %v836, 7
      %v838 = vsub.s32 3, %v837
      %v839 = vrot.slane %v805, %v838
      %v840 = vlaneseq
      %v841 = vshrl.u32 %v840, 7
      %v842 = vsub.s32 3, %v841
      %v843 = vrot.slane %v806, %v842
      %v844 = vadd.f32 %v834, %v839
      %v845 = vadd.f32 %v835, %v843
      %v846 = vlaneseq
      %v847 = vshrl.u32 %v846, 7
      %v848 = vsub.s32 3, %v847
      %v849 = vrot.slane %v824, %v848
      %v850 = vlaneseq
      %v851 = vshrl.u32 %v850, 7
      %v852 = vsub.s32 3, %v851
      %v853 = vrot.slane %v826, %v852
      %v854 = vsub.f32 %v844, %v849
      %v855 = vsub.f32 %v845, %v853
      %v856 = vsub.f32 %v797, %v397
      %v857 = vsub.f32 %v799, %v828
      %v858 = vmul.f32 %v856, %v856
      %v859 = vmul.f32 %v857, %v857
      %v860 = vmul.f32 %v858, -1.6666666
      %v861 = vmul.f32 %v859, -1.6666666
      %v862 = vlaneseq
      %v863 = vshrl.u32 %v862, 7
      %v864 = vsub.s32 3, %v863
      %v865 = vrot.slane %v811, %v864
      %v866 = vlaneseq
      %v867 = vshrl.u32 %v866, 7
      %v868 = vsub.s32 3, %v867
      %v869 = vrot.slane %v812, %v868
      %v870 = vadd.f32 %v860, %v865
      %v871 = vadd.f32 %v861, %v869
      %v872 = vsub.f32 %v870, %v849
      %v873 = vsub.f32 %v871, %v853
      %v874 = vmax.f32 %v854, %v872
      %v875 = vmax.f32 %v855, %v873
      %v876 = vsub.f32 %v854, %v874
      %v877 = vsub.f32 %v855, %v875
      %v878 = vmul.f32 %v876, 1.442695
      %v879 = vpow.pop %v878
      %v880 = vmul.f32 %v877, 1.442695
      %v881 = vpow.pop %v880
      %v882 = vsub.f32 %v872, %v874
      %v883 = vsub.f32 %v873, %v875
      %v884 = vmul.f32 %v882, 1.442695
      %v885 = vpow.pop %v884
      %v886 = vmul.f32 %v883, 1.442695
      %v887 = vpow.pop %v886
      %v888 = vadd.f32 %v879, %v885
      %v889 = vadd.f32 %v881, %v887
      %v890 = vlog2.pop %v888
      %v891 = vmul.f32 %v890, 0.6931472
      %v892 = vlog2.pop %v889
      %v893 = vmul.f32 %v892, 0.6931472
      %v894 = vadd.f32 %v874, %v891
      %v895 = vadd.f32 %v875, %v893
      %vm896 = vcmask 1042432
      %v897 = vsel %vm896, %v894, 0.0
      %v898 = vsel %vm896, %v895, 0.0
      %v899 = vadd.f32 %v897, %v898
      %900 = vadd.xlane.f32.xlu0 %v899
      %v901 = vpop.xlane.xlu0 %900
      %v902 = vrot.slane %v901, 4
      %v903 = vadd.f32 %v901, %v902
      %v904 = vrot.slane %v903, 2
      %v905 = vadd.f32 %v903, %v904
      %v906 = vrot.slane %v905, 1
      %v907 = vadd.f32 %v905, %v906
      %s908 = vtos %v907
      %v909 = vmul.f32 %v808, %v820
      %v910 = vmul.f32 %v810, %v822
      %v911 = vlaneseq
      %v912 = vshrl.u32 %v911, 7
      %v913 = vsub.s32 3, %v912
      %v914 = vrot.slane %v909, %v913
      %v915 = vlaneseq
      %v916 = vshrl.u32 %v915, 7
      %v917 = vsub.s32 3, %v916
      %v918 = vrot.slane %v910, %v917
      %v919 = vmul.f32 %v914, %v756
      %v920 = vmul.f32 %v918, %v758
      %v921 = vmul.f32 %v814, %v820
      %v922 = vmul.f32 %v816, %v822
      %v923 = vlaneseq
      %v924 = vshrl.u32 %v923, 7
      %v925 = vsub.s32 3, %v924
      %v926 = vrot.slane %v921, %v925
      %v927 = vlaneseq
      %v928 = vshrl.u32 %v927, 7
      %v929 = vsub.s32 3, %v928
      %v930 = vrot.slane %v922, %v929
      %v931 = vmul.f32 %v926, %v797
      %v932 = vmul.f32 %v930, %v799
      %v933 = vadd.f32 %v919, %v931
      %v934 = vadd.f32 %v920, %v932
      %v935 = vsub.f32 %v933, %v397
      %v936 = vsub.f32 %v934, %v828
      %v937 = vmul.f32 %v935, %v935
      %v938 = vmul.f32 %v936, %v936
      %v939 = vsel %vm896, %v937, 0.0
      %v940 = vsel %vm896, %v938, 0.0
      %v941 = vadd.f32 %v939, %v940
      %942 = vadd.xlane.f32.xlu0 %v941
      %v943 = vpop.xlane.xlu0 %942
      %v944 = vrot.slane %v943, 4
      %v945 = vadd.f32 %v943, %v944
      %v946 = vrot.slane %v945, 2
      %v947 = vadd.f32 %v945, %v946
      %v948 = vrot.slane %v947, 1
      %v949 = vadd.f32 %v947, %v948
      %s950 = vtos %v949
      %v953 = vcombine.low %v933, %v934
      %955 = vst [vmem:[%s355] sm:$0x77] %v953
      %v956 = vstv %s908
      %957 = vst [vmem:[%s362] sm:$0x1] %v956
      %v958 = vstv %s950
      %959 = vst [vmem:[%s369] sm:$0x1] %v958
      %s960 = smul.u32 %s23, 4
      %s961 = sadd.s32 %s960, %s24
      %p962 = scmp.lt.s32.totalorder %s961, 3
      %s963 = scalar_select %p962, %s961, 3
      %s964 = smul.addr %s963, 2
      %s965 = smul.addr %s964, 4
      %s966 = scalar_lea.vmem %s5, %s965
      %s967 = smul.u32 %s23, 4
      %s968 = sadd.s32 %s967, %s24
      %p969 = scmp.lt.s32.totalorder %s968, 3
      %s970 = scalar_select %p969, %s968, 3
      %s971 = scalar_lea.vmem %s6, %s970
      %s972 = smul.u32 %s23, 4
      %s973 = sadd.s32 %s972, %s24
      %p974 = scmp.lt.s32.totalorder %s973, 3
      %s975 = scalar_select %p974, %s973, 3
      %s976 = scalar_lea.vmem %s7, %s975
      // Predicated region
      $region41: #{_lambda_.6} parent=39 // pred_check
        %p977 = pneg %p172
      $region42: #{_lambda_.6} parent=39 // pred_check_branch
        %979 = sbr.rel (%p977) target = $region44
      $region43: #{_lambda_.6} parent=39 // pred_region
        %s980 = smul.u32 %s23, 4
        %s981 = sadd.s32 %s980, %s24
      $region44: #{_lambda_.6} parent=39 // pred_fallthru
        _
      // Predicated region
      $region45: #{_lambda_.6} parent=39 // pred_check
        %p982 = pneg %p202
      $region46: #{_lambda_.6} parent=39 // pred_check_branch
        %984 = sbr.rel (%p982) target = $region48
      $region47: #{_lambda_.6} parent=39 // pred_region
        %s985 = smul.u32 %s23, 4
        %s986 = sadd.s32 %s985, %s24
      $region48: #{_lambda_.6} parent=39 // pred_fallthru
        _
      // Predicated region
      $region49: #{_lambda_.6} parent=39 // pred_check
        %p987 = pneg %p232
      $region50: #{_lambda_.6} parent=39 // pred_check_branch
        %989 = sbr.rel (%p987) target = $region52
      $region51: #{_lambda_.6} parent=39 // pred_region
        %s990 = smul.u32 %s23, 4
        %s991 = sadd.s32 %s990, %s24
      $region52: #{_lambda_.6} parent=39 // pred_fallthru
        _
    $region40: #{_lambda_.6} parent=5 // pred_fallthru
      _
    %p992 = scmp.le.s32.totalorder 2, %s14
    // Predicated region
    $region53: #{_lambda_.6} parent=5 // pred_check
      %p993 = pneg %p992
    $region54: #{_lambda_.6} parent=5 // pred_check_branch
      %995 = sbr.rel (%p993) target = $region56
    $region55: #{_lambda_.6} parent=5 // pred_region
      %s996 = ssub.s32 %s14, 2
      // Predicated region
      $region57: #{_lambda_.6} parent=55 // pred_check
        %p997 = pneg %p178
      $region58: #{_lambda_.6} parent=55 // pred_check_branch
        %999 = sbr.rel (%p997) target = $region60
      $region59: #{_lambda_.6} parent=55 // pred_region
        %s1000 = smul.u32 %s25, 4
        %s1001 = sadd.s32 %s1000, %s26
        %p1002 = scmp.lt.s32.totalorder %s1001, 3
        %s1003 = scalar_select %p1002, %s1001, 3
        %s1004 = smul.addr %s1003, 2
        %s1005 = smul.addr %s1004, 4
        %s1006 = scalar_lea.vmem %s5, %s1005
      $region60: #{_lambda_.6} parent=55 // pred_fallthru
        _
      // Predicated region
      $region61: #{_lambda_.6} parent=55 // pred_check
        %p1007 = pneg %p208
      $region62: #{_lambda_.6} parent=55 // pred_check_branch
        %1009 = sbr.rel (%p1007) target = $region64
      $region63: #{_lambda_.6} parent=55 // pred_region
        %s1010 = smul.u32 %s25, 4
        %s1011 = sadd.s32 %s1010, %s26
        %p1012 = scmp.lt.s32.totalorder %s1011, 3
        %s1013 = scalar_select %p1012, %s1011, 3
        %s1014 = scalar_lea.vmem %s6, %s1013
      $region64: #{_lambda_.6} parent=55 // pred_fallthru
        _
      // Predicated region
      $region65: #{_lambda_.6} parent=55 // pred_check
        %p1015 = pneg %p238
      $region66: #{_lambda_.6} parent=55 // pred_check_branch
        %1017 = sbr.rel (%p1015) target = $region68
      $region67: #{_lambda_.6} parent=55 // pred_region
        %s1018 = smul.u32 %s25, 4
        %s1019 = sadd.s32 %s1018, %s26
        %p1020 = scmp.lt.s32.totalorder %s1019, 3
        %s1021 = scalar_select %p1020, %s1019, 3
        %s1022 = scalar_lea.vmem %s7, %s1021
      $region68: #{_lambda_.6} parent=55 // pred_fallthru
        _
    $region56: #{_lambda_.6} parent=5 // pred_fallthru
      _
  $region6: #{_lambda_.6} parent=0 // loop_footer
    %s18 = sadd.s32 1, %s14
  $region7: #{_lambda_.6} parent=0 // loop_footer_branch
    %13 = sbr.rel target = $region3
  $region8: #{_lambda_.6} parent=0 // loop_exit
    _

// kernel: _lambda_.7
$region0: #{_lambda_.7}
  #allocation0 [shape = 'u32[]', space=smem, size = 0x4, offset = 0x4, fixed_abs, tag = 'smem constant byte address 0x4 - core index']
  #allocation1 [shape = 'u32[144,128]{1,0:T(1,128)}', space=vmem, size = 0x12000, scoped, tag = 'internal scratch']
  %s0 = inlined_call_operand.vmem [shape: f32[24,8], index: 0, kind: input, shape index: {}]
  %s1 = inlined_call_operand.vmem [shape: bf16[8,64], index: 1, kind: input, shape index: {}]
  %s2 = inlined_call_operand.vmem [shape: f32[24,64], index: 2, kind: output, shape index: {}]
  %s3 = sld [smem:[#allocation0]]
  $region18: #{_lambda_.7} parent=0
    _
  %s5 = ssub.s32 1, %s3
  %s6 = scalar_select 0, %s5, %s3
  // Predicated region
  $region2: #{_lambda_.7} parent=0 // pred_check
    _
  $region3: #{_lambda_.7} parent=0 // pred_check_branch
    %8 = sbr.rel (0) target = $region5
  $region4: #{_lambda_.7} parent=0 // pred_region
    _
  $region5: #{_lambda_.7} parent=0 // pred_fallthru
    _
  // Predicated region
  $region6: #{_lambda_.7} parent=0 // pred_check
    _
  $region7: #{_lambda_.7} parent=0 // pred_check_branch
    %10 = sbr.rel (0) target = $region9
  $region8: #{_lambda_.7} parent=0 // pred_region
    _
  $region9: #{_lambda_.7} parent=0 // pred_fallthru
    _
  %v12 = vld [vmem:[%s0] sm:$0xff]
  %v13 = vld [vmem:[%s0 + $0x8] sm:$0xff]
  %v14 = vld [vmem:[%s0 + $0x10] sm:$0xff]
  %v15 = vpack.c.bf16 %v13, %v12
  %v16 = vpack.c.bf16 %v14, %v14
  %v17 = vld [vmem:[%s1] sm:$0xf]
  %vm18 = vcmask 64512
  %v20 = vsel %vm18, %v15, 0
  %v23 = vsel %vm18, %v16, 0
  %vm25 = vcmask 1043456
  %v27 = vsel %vm25, %v17, 0
  %29 = vmatprep.subr.bf16.mxu0 0
  %30 = vmatpush1.bf16.msra.mxu0 %v27
  %31 = vmatprep.subr.bf16.mxu0 0
  %32 = vmatpush1.bf16.msra.mxu0 0
  %33 = vmatprep.subr.bf16.mxu0 0
  %34 = vmatpush1.bf16.msra.mxu0 0
  %35 = vmatprep.subr.bf16.mxu0 0
  %36 = vmatpush1.bf16.msra.mxu0 0
  %37 = vmatprep.subr.bf16.mxu0 0
  %38 = vmatpush1.bf16.msra.mxu0 0
  %39 = vmatprep.subr.bf16.mxu0 0
  %40 = vmatpush1.bf16.msra.mxu0 0
  %41 = vmatprep.subr.bf16.mxu0 0
  %42 = vmatpush1.bf16.msra.mxu0 0
  %43 = vmatprep.subr.bf16.mxu0 0
  %44 = vmatpush1.bf16.msra.mxu0 0
  %45 = vmatprep.subr.bf16.mxu0 0
  %46 = vmatpush1.bf16.msra.mxu0 0
  %47 = vmatprep.subr.bf16.mxu0 0
  %48 = vmatpush1.bf16.msra.mxu0 0
  %49 = vmatprep.subr.bf16.mxu0 0
  %50 = vmatpush1.bf16.msra.mxu0 0
  %51 = vmatprep.subr.bf16.mxu0 0
  %52 = vmatpush1.bf16.msra.mxu0 0
  %53 = vmatprep.subr.bf16.mxu0 0
  %54 = vmatpush1.bf16.msra.mxu0 0
  %55 = vmatprep.subr.bf16.mxu0 0
  %56 = vmatpush1.bf16.msra.mxu0 0
  %57 = vmatprep.subr.bf16.mxu0 0
  %58 = vmatpush1.bf16.msra.mxu0 0
  %59 = vmatprep.subr.bf16.mxu0 0
  %60 = vmatpush1.bf16.msra.mxu0 0
  %61 = vmatprep.mubr.bf16.mxu0 0
  %62 = vmatmul.mubr.bf16.gmra.mrb[0].mxu0 %v20
  %v63 = vpop.f32.mrb[0].mxu0
  %v64 = vadd.f32 0.0, %v63
  %v65 = vpop.f32.mrb[0].mxu0
  %v66 = vpop.f32.mrb[0].mxu0
  %v67 = vadd.f32 0.0, %v66
  %v68 = vpop.f32.mrb[0].mxu0
  %69 = vmatprep.mubr.bf16.mxu0 0
  %70 = vmatmul.mubr.bf16.gmra.mrb[0].mxu0 %v23
  %v71 = vpop.f32.mrb[0].mxu0
  %v72 = vadd.f32 0.0, %v71
  %v73 = vpop.f32.mrb[0].mxu0
  %v74 = vpop.f32.mrb[0].mxu0
  %v75 = vpop.f32.mrb[0].mxu0
  %76 = vdwg.mxu0
  %vm77 = vcmask 523264
  %78 = vst.msk [vmem:[%s2] sm:$0xff] %vm77, %v64
  %79 = vst.msk [vmem:[%s2 + $0x8] sm:$0xff] %vm77, %v67
  %80 = vst.msk [vmem:[%s2 + $0x10] sm:$0xff] %vm77, %v72
  // Predicated region
  $region10: #{_lambda_.7} parent=0 // pred_check
    _
  $region11: #{_lambda_.7} parent=0 // pred_check_branch
    %82 = sbr.rel (0) target = $region13
  $region12: #{_lambda_.7} parent=0 // pred_region
    _
  $region13: #{_lambda_.7} parent=0 // pred_fallthru
    _
  // Predicated region
  $region14: #{_lambda_.7} parent=0 // pred_check
    _
  $region15: #{_lambda_.7} parent=0 // pred_check_branch
    %84 = sbr.rel (0) target = $region17
  $region16: #{_lambda_.7} parent=0 // pred_region
    _
  $region17: #{_lambda_.7} parent=0 // pred_fallthru
    _

// kernel: squeeze.11
$region0: #{squeeze.11}
  %s0 = inlined_call_operand.vmem [shape: f32[12], index: 0, kind: input, shape index: {}]
  %s1 = inlined_call_operand.vmem [shape: f32[2,6], index: 1, kind: output, shape index: {}]
  $region1: #{squeeze.11} parent=0
    #allocation0 [shape = 'u8[4096]{0}', space=vmem, size = 0x1000, scoped, tag = 'scoped mem for output reshape']
    #allocation1 [shape = 'u8[4096]{0}', space=vmem, size = 0x1000, scoped, tag = 'scoped mem for input reshape']
    %s3 = sshllo.u32 0, 1
    %v4 = vld [vmem:[%s0] sm:%s3]
    %5 = vst [vmem:[#allocation1] sm:%s3] %v4
    %v6 = vld [vmem:[#allocation1] sm:$0x1]
    %vm7 = vcmask 48128
    %8 = vst.msk [vmem:[#allocation0] sm:$0x1] %vm7, %v6
    %v9 = vld [vmem:[#allocation1] sm:$0x1]
    %10 = vrot.lane.b32.xlu0 %v9, 122
    %v11 = vpop.permute.xlu0 %10
    %vm12 = vcmask 48128
    %s13 = scalar_lea.vmem [#allocation0], 1
    %14 = vst.msk [vmem:[%s13] sm:$0x1] %vm12, %v11
    %s16 = sshllo.u32 0, 2
    %v18 = vld [vmem:[#allocation0] sm:%s16]
    %s19 = sshllo.u32 0, 2
    %20 = vst [vmem:[%s1] sm:%s19] %v18

// kernel: _lambda_.9
$region0: #{_lambda_.9}
  #allocation0 [shape = 'u32[]', space=smem, size = 0x4, offset = 0x4, fixed_abs, tag = 'smem constant byte address 0x4 - core index']
  #allocation1 [shape = 'u32[144,128]{1,0:T(1,128)}', space=vmem, size = 0x12000, scoped, tag = 'internal scratch']
  %s0 = inlined_call_operand.vmem [shape: f32[1,8], index: 0, kind: input, shape index: {}]
  %s1 = inlined_call_operand.vmem [shape: f32[1,8], index: 1, kind: input, shape index: {}]
  %s2 = inlined_call_operand.hbm [shape: f32[1,1], index: 2, kind: output, shape index: {}]
  %s3 = sld [smem:[#allocation0]]
  $region18: #{_lambda_.9} parent=0
    _
  %s5 = ssub.s32 1, %s3
  %s6 = scalar_select 0, %s5, %s3
  $region1: #{_lambda_.9} parent=0
    #allocation2 [shape = 'u8[512]{0}', space=vmem, size = 0x400, scoped, tag = 'output window, operand 0, single buffered']
    #allocation3 [shape = 's32[1]{0}', space=sflag, size = 0x4, scoped, tag = 'scoped memory for _lambda_.9']
    %7 = vsyncpa [#allocation3], 0
    // Predicated region
    $region2: #{_lambda_.9} parent=1 // pred_check
      _
    $region3: #{_lambda_.9} parent=1 // pred_check_branch
      %9 = sbr.rel (0) target = $region5
    $region4: #{_lambda_.9} parent=1 // pred_region
      _
    $region5: #{_lambda_.9} parent=1 // pred_fallthru
      _
    // Predicated region
    $region6: #{_lambda_.9} parent=1 // pred_check
      _
    $region7: #{_lambda_.9} parent=1 // pred_check_branch
      %11 = sbr.rel (0) target = $region9
    $region8: #{_lambda_.9} parent=1 // pred_region
      _
    $region9: #{_lambda_.9} parent=1 // pred_fallthru
      _
    %v12 = vld [vmem:[%s0] sm:$0x1]
    %v13 = vld [vmem:[%s1] sm:$0x1]
    %v14 = vadd.f32 %v13, 1.0
    %v15 = vmul.f32 %v13, 1.442695
    %v16 = vpow.pop %v15
    %v17 = vsub.f32 %v14, %v16
    %v18 = vmul.f32 %v12, %v12
    %v19 = vsub.f32 %v17, %v18
    %v20 = vmul.f32 %v19, -0.5
    %vm21 = vcmask 57344
    %v22 = vsel %vm21, %v20, 0.0
    %23 = vadd.xlane.f32.xlu0 %v22
    %v24 = vpop.xlane.xlu0 %23
    %v25 = vrot.slane %v24, 4
    %v26 = vadd.f32 %v24, %v25
    %v27 = vrot.slane %v26, 2
    %v28 = vadd.f32 %v26, %v27
    %v29 = vrot.slane %v28, 1
    %v30 = vadd.f32 %v28, %v29
    %s31 = vtos %v30
    %v32 = vstv %s31
    %vm33 = vcmask 0
    %34 = vst.msk [vmem:[#allocation2] sm:$0x1] %vm33, %v32
    // Predicated region
    $region10: #{_lambda_.9} parent=1 // pred_check
      _
    $region11: #{_lambda_.9} parent=1 // pred_check_branch
      %36 = sbr.rel (0) target = $region13
    $region12: #{_lambda_.9} parent=1 // pred_region
      %s38 = ssub.s32 16, 16
      %39 = vsyncadd [#allocation3], %s38
      %s41 = sshll.u32 [#allocation2], 4
      %s42 = int_to_ptr.vmem [resolvable:$true] %s41
      %44 = dma.vmem_to_hbm [thread:$0]  %s42, 16, %s2, [#allocation3]
    $region13: #{_lambda_.9} parent=1 // pred_fallthru
      _
    // Predicated region
    $region14: #{_lambda_.9} parent=1 // pred_check
      _
    $region15: #{_lambda_.9} parent=1 // pred_check_branch
      %46 = sbr.rel (0) target = $region17
    $region16: #{_lambda_.9} parent=1 // pred_region
      %47 = dma.done [#allocation3], 16
    $region17: #{_lambda_.9} parent=1 // pred_fallthru
      _
    %48 = vsyncpa [#allocation3], 1

// kernel: _lambda_.8
$region0: #{_lambda_.8}
  #allocation0 [shape = 'u32[]', space=smem, size = 0x4, offset = 0x4, fixed_abs, tag = 'smem constant byte address 0x4 - core index']
  #allocation1 [shape = 'u32[144,128]{1,0:T(1,128)}', space=vmem, size = 0x12000, scoped, tag = 'internal scratch']
  %s0 = inlined_call_operand.vmem [shape: f32[12,64,2], index: 0, kind: input, shape index: {}]
  %s1 = inlined_call_operand.vmem [shape: f32[6,3,256], index: 1, kind: input, shape index: {}]
  %s2 = inlined_call_operand.vmem [shape: f32[64,256], index: 2, kind: input, shape index: {}]
  %s3 = inlined_call_operand.vmem [shape: bf16[4,64], index: 3, kind: input, shape index: {}]
  %s4 = inlined_call_operand.vmem [shape: f32[4,1], index: 4, kind: input, shape index: {}]
  %s5 = inlined_call_operand.vmem [shape: f32[12,3,256], index: 5, kind: output, shape index: {0}]
  %s6 = inlined_call_operand.vmem [shape: f32[12,1,128], index: 6, kind: output, shape index: {1}]
  %s7 = inlined_call_operand.vmem [shape: f32[12,1,128], index: 7, kind: output, shape index: {2}]
  %8 = xla_tuple %s5, %s6, %s7
  %s9 = sld [smem:[#allocation0]]
  $region69: #{_lambda_.8} parent=0
    _
  %s11 = ssub.s32 1, %s9
  %s12 = scalar_select 0, %s11, %s9
  loop: start=0, step=1, limit=14
  $region2: #{_lambda_.8} parent=0 // loop_pre_header
    _
  $region3: #{_lambda_.8} parent=0 // loop_header
    %s14 = sphi 0, %s18
    %p15 = scmp.ge.s32.totalorder %s14, 14
    %s21 = sphi 0, %s33
    %s22 = sphi 0, %s29
    %s23 = sphi 0, %s21
    %s24 = sphi 0, %s22
    %s25 = sphi 0, %s23
    %s26 = sphi 0, %s24
    %s40 = sphi 0, %s42
    %s43 = sphi 0, %s40
    %s44 = sphi 0, %s43
    %s60 = sphi 0, %s44
    %s66 = sphi 0, %s68
    %s69 = sphi 0, %s66
    %s70 = sphi 0, %s69
    %s86 = sphi 0, %s70
    %s90 = sphi 0, %s90
    %s92 = sphi 0, %s90
    %s93 = sphi 0, %s92
    %s107 = sphi 0, %s93
    %s111 = sphi 0, %s111
    %s113 = sphi 0, %s111
    %s114 = sphi 0, %s113
    %s128 = sphi 0, %s114
    %s132 = sphi 0, %s132
    %s134 = sphi 0, %s132
    %s135 = sphi 0, %s134
    %s149 = sphi 0, %s135
    %s159 = sphi 0, %s161
    %s162 = sphi 0, %s159
    %s163 = sphi 0, %s162
    %s179 = sphi 0, %s163
    %s189 = sphi 0, %s191
    %s192 = sphi 0, %s189
    %s193 = sphi 0, %s192
    %s209 = sphi 0, %s193
    %s219 = sphi 0, %s221
    %s222 = sphi 0, %s219
    %s223 = sphi 0, %s222
    %s239 = sphi 0, %s223
  $region4: #{_lambda_.8} parent=0 // loop_header_branch
    %17 = sbr.rel (%p15) target = $region8
  $region5: #{_lambda_.8} parent=0 // loop_body
    %s19 = ssub.s32 %s14, 1
    %s20 = ssub.s32 %s14, 2
    %s27 = sadd.s32 1, %s22
    %p28 = scmp.ge.s32.totalorder %s27, 6
    %s29 = scalar_select %p28, 0, %s27
    %s30 = sadd.s32 1, %s21
    %s31 = scalar_select %p28, %s30, %s21
    %p32 = scmp.ge.s32.totalorder %s31, 2
    %s33 = scalar_select %p32, 0, %s31
    %s34 = smul.u32 %s21, 6
    %s35 = sadd.s32 %s34, %s22
    %s36 = smul.u32 %s33, 6
    %s37 = sadd.s32 %s36, %s29
    %s38 = ssub.s32 %s35, %s37
    %p39 = scmp.eq.s32.totalorder %s38, 0
    %s41 = sadd.s32 %s40, 1
    %s42 = scalar_select %p39, %s40, %s41
    %p45 = pneg %p39
    %p46 = scmp.eq.s32.totalorder %s14, 11
    %p47 = por %p45, %p46
    %p48 = scmp.ne.s32.totalorder %s40, %s43
    %p49 = scmp.eq.s32.totalorder %s14, 0
    %p50 = por %p48, %p49
    %p51 = scmp.ne.s32.totalorder %s40, %s43
    %p52 = scmp.eq.s32.totalorder %s19, 11
    %p53 = por %p51, %p52
    %p54 = scmp.ne.s32.totalorder %s43, %s44
    %p55 = scmp.eq.s32.totalorder %s19, 0
    %p56 = por %p54, %p55
    %p57 = scmp.ne.s32.totalorder %s43, %s44
    %p58 = scmp.eq.s32.totalorder %s20, 11
    %p59 = por %p57, %p58
    %p61 = scmp.ne.s32.totalorder %s44, %s60
    %p62 = scmp.eq.s32.totalorder %s20, 0
    %p63 = por %p61, %p62
    %s64 = ssub.s32 %s22, %s29
    %p65 = scmp.eq.s32.totalorder %s64, 0
    %s67 = sadd.s32 %s66, 1
    %s68 = scalar_select %p65, %s66, %s67
    %p71 = pneg %p65
    %p72 = scmp.eq.s32.totalorder %s14, 11
    %p73 = por %p71, %p72
    %p74 = scmp.ne.s32.totalorder %s66, %s69
    %p75 = scmp.eq.s32.totalorder %s14, 0
    %p76 = por %p74, %p75
    %p77 = scmp.ne.s32.totalorder %s66, %s69
    %p78 = scmp.eq.s32.totalorder %s19, 11
    %p79 = por %p77, %p78
    %p80 = scmp.ne.s32.totalorder %s69, %s70
    %p81 = scmp.eq.s32.totalorder %s19, 0
    %p82 = por %p80, %p81
    %p83 = scmp.ne.s32.totalorder %s69, %s70
    %p84 = scmp.eq.s32.totalorder %s20, 11
    %p85 = por %p83, %p84
    %p87 = scmp.ne.s32.totalorder %s70, %s86
    %p88 = scmp.eq.s32.totalorder %s20, 0
    %p89 = por %p87, %p88
    %s91 = sadd.s32 %s90, 1
    %p94 = scmp.eq.s32.totalorder %s14, 11
    %p95 = scmp.ne.s32.totalorder %s90, %s92
    %p96 = scmp.eq.s32.totalorder %s14, 0
    %p97 = por %p95, %p96
    %p98 = scmp.ne.s32.totalorder %s90, %s92
    %p99 = scmp.eq.s32.totalorder %s19, 11
    %p100 = por %p98, %p99
    %p101 = scmp.ne.s32.totalorder %s92, %s93
    %p102 = scmp.eq.s32.totalorder %s19, 0
    %p103 = por %p101, %p102
    %p104 = scmp.ne.s32.totalorder %s92, %s93
    %p105 = scmp.eq.s32.totalorder %s20, 11
    %p106 = por %p104, %p105
    %p108 = scmp.ne.s32.totalorder %s93, %s107
    %p109 = scmp.eq.s32.totalorder %s20, 0
    %p110 = por %p108, %p109
    %s112 = sadd.s32 %s111, 1
    %p115 = scmp.eq.s32.totalorder %s14, 11
    %p116 = scmp.ne.s32.totalorder %s111, %s113
    %p117 = scmp.eq.s32.totalorder %s14, 0
    %p118 = por %p116, %p117
    %p119 = scmp.ne.s32.totalorder %s111, %s113
    %p120 = scmp.eq.s32.totalorder %s19, 11
    %p121 = por %p119, %p120
    %p122 = scmp.ne.s32.totalorder %s113, %s114
    %p123 = scmp.eq.s32.totalorder %s19, 0
    %p124 = por %p122, %p123
    %p125 = scmp.ne.s32.totalorder %s113, %s114
    %p126 = scmp.eq.s32.totalorder %s20, 11
    %p127 = por %p125, %p126
    %p129 = scmp.ne.s32.totalorder %s114, %s128
    %p130 = scmp.eq.s32.totalorder %s20, 0
    %p131 = por %p129, %p130
    %s133 = sadd.s32 %s132, 1
    %p136 = scmp.eq.s32.totalorder %s14, 11
    %p137 = scmp.ne.s32.totalorder %s132, %s134
    %p138 = scmp.eq.s32.totalorder %s14, 0
    %p139 = por %p137, %p138
    %p140 = scmp.ne.s32.totalorder %s132, %s134
    %p141 = scmp.eq.s32.totalorder %s19, 11
    %p142 = por %p140, %p141
    %p143 = scmp.ne.s32.totalorder %s134, %s135
    %p144 = scmp.eq.s32.totalorder %s19, 0
    %p145 = por %p143, %p144
    %p146 = scmp.ne.s32.totalorder %s134, %s135
    %p147 = scmp.eq.s32.totalorder %s20, 11
    %p148 = por %p146, %p147
    %p150 = scmp.ne.s32.totalorder %s135, %s149
    %p151 = scmp.eq.s32.totalorder %s20, 0
    %p152 = por %p150, %p151
    %s153 = smul.u32 %s21, 6
    %s154 = sadd.s32 %s153, %s22
    %s155 = smul.u32 %s33, 6
    %s156 = sadd.s32 %s155, %s29
    %s157 = ssub.s32 %s154, %s156
    %p158 = scmp.eq.s32.totalorder %s157, 0
    %s160 = sadd.s32 %s159, 1
    %s161 = scalar_select %p158, %s159, %s160
    %p164 = pneg %p158
    %p165 = scmp.eq.s32.totalorder %s14, 11
    %p166 = por %p164, %p165
    %p167 = scmp.ne.s32.totalorder %s159, %s162
    %p168 = scmp.eq.s32.totalorder %s14, 0
    %p169 = por %p167, %p168
    %p170 = scmp.ne.s32.totalorder %s159, %s162
    %p171 = scmp.eq.s32.totalorder %s19, 11
    %p172 = por %p170, %p171
    %p173 = scmp.ne.s32.totalorder %s162, %s163
    %p174 = scmp.eq.s32.totalorder %s19, 0
    %p175 = por %p173, %p174
    %p176 = scmp.ne.s32.totalorder %s162, %s163
    %p177 = scmp.eq.s32.totalorder %s20, 11
    %p178 = por %p176, %p177
    %p180 = scmp.ne.s32.totalorder %s163, %s179
    %p181 = scmp.eq.s32.totalorder %s20, 0
    %p182 = por %p180, %p181
    %s183 = smul.u32 %s21, 6
    %s184 = sadd.s32 %s183, %s22
    %s185 = smul.u32 %s33, 6
    %s186 = sadd.s32 %s185, %s29
    %s187 = ssub.s32 %s184, %s186
    %p188 = scmp.eq.s32.totalorder %s187, 0
    %s190 = sadd.s32 %s189, 1
    %s191 = scalar_select %p188, %s189, %s190
    %p194 = pneg %p188
    %p195 = scmp.eq.s32.totalorder %s14, 11
    %p196 = por %p194, %p195
    %p197 = scmp.ne.s32.totalorder %s189, %s192
    %p198 = scmp.eq.s32.totalorder %s14, 0
    %p199 = por %p197, %p198
    %p200 = scmp.ne.s32.totalorder %s189, %s192
    %p201 = scmp.eq.s32.totalorder %s19, 11
    %p202 = por %p200, %p201
    %p203 = scmp.ne.s32.totalorder %s192, %s193
    %p204 = scmp.eq.s32.totalorder %s19, 0
    %p205 = por %p203, %p204
    %p206 = scmp.ne.s32.totalorder %s192, %s193
    %p207 = scmp.eq.s32.totalorder %s20, 11
    %p208 = por %p206, %p207
    %p210 = scmp.ne.s32.totalorder %s193, %s209
    %p211 = scmp.eq.s32.totalorder %s20, 0
    %p212 = por %p210, %p211
    %s213 = smul.u32 %s21, 6
    %s214 = sadd.s32 %s213, %s22
    %s215 = smul.u32 %s33, 6
    %s216 = sadd.s32 %s215, %s29
    %s217 = ssub.s32 %s214, %s216
    %p218 = scmp.eq.s32.totalorder %s217, 0
    %s220 = sadd.s32 %s219, 1
    %s221 = scalar_select %p218, %s219, %s220
    %p224 = pneg %p218
    %p225 = scmp.eq.s32.totalorder %s14, 11
    %p226 = por %p224, %p225
    %p227 = scmp.ne.s32.totalorder %s219, %s222
    %p228 = scmp.eq.s32.totalorder %s14, 0
    %p229 = por %p227, %p228
    %p230 = scmp.ne.s32.totalorder %s219, %s222
    %p231 = scmp.eq.s32.totalorder %s19, 11
    %p232 = por %p230, %p231
    %p233 = scmp.ne.s32.totalorder %s222, %s223
    %p234 = scmp.eq.s32.totalorder %s19, 0
    %p235 = por %p233, %p234
    %p236 = scmp.ne.s32.totalorder %s222, %s223
    %p237 = scmp.eq.s32.totalorder %s20, 11
    %p238 = por %p236, %p237
    %p240 = scmp.ne.s32.totalorder %s223, %s239
    %p241 = scmp.eq.s32.totalorder %s20, 0
    %p242 = por %p240, %p241
    %p243 = scmp.le.s32.totalorder 1, %s14
    %p244 = scmp.lt.s32.totalorder %s14, 13
    %p245 = pnand %p243, %p244
    %p246 = pneg %p245
    // Predicated region
    $region9: #{_lambda_.8} parent=5 // pred_check
      _
    $region10: #{_lambda_.8} parent=5 // pred_check_branch
      %248 = sbr.rel (%p245) target = $region12
    $region11: #{_lambda_.8} parent=5 // pred_region
      %s249 = ssub.s32 %s14, 1
      // Predicated region
      $region13: #{_lambda_.8} parent=11 // pred_check
        %p250 = pneg %p103
      $region14: #{_lambda_.8} parent=11 // pred_check_branch
        %252 = sbr.rel (%p250) target = $region16
      $region15: #{_lambda_.8} parent=11 // pred_region
        _
      $region16: #{_lambda_.8} parent=11 // pred_fallthru
        _
      // Predicated region
      $region17: #{_lambda_.8} parent=11 // pred_check
        %p253 = pneg %p124
      $region18: #{_lambda_.8} parent=11 // pred_check_branch
        %255 = sbr.rel (%p253) target = $region20
      $region19: #{_lambda_.8} parent=11 // pred_region
        _
      $region20: #{_lambda_.8} parent=11 // pred_fallthru
        _
      // Predicated region
      $region21: #{_lambda_.8} parent=11 // pred_check
        %p256 = pneg %p145
      $region22: #{_lambda_.8} parent=11 // pred_check_branch
        %258 = sbr.rel (%p256) target = $region24
      $region23: #{_lambda_.8} parent=11 // pred_region
        _
      $region24: #{_lambda_.8} parent=11 // pred_fallthru
        _
    $region12: #{_lambda_.8} parent=5 // pred_fallthru
      _
    %p259 = scmp.lt.s32.totalorder %s14, 12
    // Predicated region
    $region25: #{_lambda_.8} parent=5 // pred_check
      %p260 = pneg %p259
    $region26: #{_lambda_.8} parent=5 // pred_check_branch
      %262 = sbr.rel (%p260) target = $region28
    $region27: #{_lambda_.8} parent=5 // pred_region
      // Predicated region
      $region29: #{_lambda_.8} parent=27 // pred_check
        %p263 = pneg %p50
      $region30: #{_lambda_.8} parent=27 // pred_check_branch
        %265 = sbr.rel (%p263) target = $region32
      $region31: #{_lambda_.8} parent=27 // pred_region
        %s266 = smul.u32 %s21, 6
        %s267 = sadd.s32 %s266, %s22
        %p268 = scmp.lt.s32.totalorder %s267, 11
        %s269 = scalar_select %p268, %s267, 11
        %s270 = smul.addr %s269, 8
        %s271 = smul.addr %s270, 8
        %s272 = scalar_lea.vmem %s0, %s271
        %s273 = smul.u32 %s21, 6
        %s274 = sadd.s32 %s273, %s22
      $region32: #{_lambda_.8} parent=27 // pred_fallthru
        _
      // Predicated region
      $region33: #{_lambda_.8} parent=27 // pred_check
        %p275 = pneg %p76
      $region34: #{_lambda_.8} parent=27 // pred_check_branch
        %277 = sbr.rel (%p275) target = $region36
      $region35: #{_lambda_.8} parent=27 // pred_region
        %p278 = scmp.lt.s32.totalorder %s22, 5
        %s279 = scalar_select %p278, %s22, 5
        %s280 = smul.addr %s279, 2
        %s281 = smul.addr %s280, 4
        %s282 = scalar_lea.vmem %s1, %s281
      $region36: #{_lambda_.8} parent=27 // pred_fallthru
        _
    $region28: #{_lambda_.8} parent=5 // pred_fallthru
      _
    %p283 = scmp.le.s32.totalorder 1, %s14
    %p284 = scmp.lt.s32.totalorder %s14, 13
    %p285 = pnand %p283, %p284
    %p286 = pneg %p285
    // Predicated region
    $region37: #{_lambda_.8} parent=5 // pred_check
      _
    $region38: #{_lambda_.8} parent=5 // pred_check_branch
      %288 = sbr.rel (%p285) target = $region40
    $region39: #{_lambda_.8} parent=5 // pred_region
      %s289 = ssub.s32 %s14, 1
      %s290 = smul.u32 %s23, 6
      %s291 = sadd.s32 %s290, %s24
      %p292 = scmp.lt.s32.totalorder %s291, 11
      %s293 = scalar_select %p292, %s291, 11
      %s294 = smul.addr %s293, 8
      %s295 = smul.addr %s294, 8
      %s296 = scalar_lea.vmem %s0, %s295
      %p297 = pneg %p56
      %p298 = pneg %p53
      %p299 = scmp.lt.s32.totalorder %s24, 5
      %s300 = scalar_select %p299, %s24, 5
      %s301 = smul.addr %s300, 2
      %s302 = smul.addr %s301, 4
      %s303 = scalar_lea.vmem %s1, %s302
      %p304 = pneg %p82
      %p305 = pneg %p79
      %p306 = pneg %p103
      %p307 = pneg %p100
      %p308 = pneg %p124
      %p309 = pneg %p121
      %p310 = pneg %p145
      %p311 = pneg %p142
      %p312 = pneg %p175
      %p313 = pneg %p172
      %s314 = smul.u32 %s23, 6
      %s315 = sadd.s32 %s314, %s24
      %p316 = scmp.lt.s32.totalorder %s315, 11
      %s317 = scalar_select %p316, %s315, 11
      %s318 = smul.addr %s317, 2
      %s319 = smul.addr %s318, 4
      %s320 = scalar_lea.vmem %s5, %s319
      %p321 = pneg %p205
      %p322 = pneg %p202
      %s323 = smul.u32 %s23, 6
      %s324 = sadd.s32 %s323, %s24
      %p325 = scmp.lt.s32.totalorder %s324, 11
      %s326 = scalar_select %p325, %s324, 11
      %s327 = scalar_lea.vmem %s6, %s326
      %p328 = pneg %p235
      %p329 = pneg %p232
      %s330 = smul.u32 %s23, 6
      %s331 = sadd.s32 %s330, %s24
      %p332 = scmp.lt.s32.totalorder %s331, 11
      %s333 = scalar_select %p332, %s331, 11
      %s334 = scalar_lea.vmem %s7, %s333
      %s335 = smul.u32 %s23, 6
      %s336 = sadd.s32 %s335, %s24
      %p337 = scmp.lt.s32.totalorder %s336, 11
      %s338 = scalar_select %p337, %s336, 11
      %s339 = smul.addr %s338, 8
      %s340 = smul.addr %s339, 8
      %s341 = scalar_lea.vmem %s0, %s340
      %s342 = smul.u32 %s23, 6
      %s343 = sadd.s32 %s342, %s24
      %p344 = scmp.lt.s32.totalorder %s24, 5
      %s345 = scalar_select %p344, %s24, 5
      %s346 = smul.addr %s345, 2
      %s347 = smul.addr %s346, 4
      %s348 = scalar_lea.vmem %s1, %s347
      %s349 = smul.u32 %s23, 6
      %s350 = sadd.s32 %s349, %s24
      %p351 = scmp.lt.s32.totalorder %s350, 11
      %s352 = scalar_select %p351, %s350, 11
      %s353 = smul.addr %s352, 2
      %s354 = smul.addr %s353, 4
      %s355 = scalar_lea.vmem %s5, %s354
      %s356 = smul.u32 %s23, 6
      %s357 = sadd.s32 %s356, %s24
      %s358 = smul.u32 %s23, 6
      %s359 = sadd.s32 %s358, %s24
      %p360 = scmp.lt.s32.totalorder %s359, 11
      %s361 = scalar_select %p360, %s359, 11
      %s362 = scalar_lea.vmem %s6, %s361
      %s363 = smul.u32 %s23, 6
      %s364 = sadd.s32 %s363, %s24
      %s365 = smul.u32 %s23, 6
      %s366 = sadd.s32 %s365, %s24
      %p367 = scmp.lt.s32.totalorder %s366, 11
      %s368 = scalar_select %p367, %s366, 11
      %s369 = scalar_lea.vmem %s7, %s368
      %s370 = smul.u32 %s23, 6
      %s371 = sadd.s32 %s370, %s24
      %v373 = vld [vmem:[%s341] sm:$0xff]
      %v374 = vld [vmem:[%s341 + $0x8] sm:$0xff]
      %v375 = vld [vmem:[%s341 + $0x10] sm:$0xff]
      %v376 = vld [vmem:[%s341 + $0x18] sm:$0xff]
      %v377 = vld [vmem:[%s341 + $0x20] sm:$0xff]
      %v378 = vld [vmem:[%s341 + $0x28] sm:$0xff]
      %v379 = vld [vmem:[%s341 + $0x30] sm:$0xff]
      %v380 = vld [vmem:[%s341 + $0x38] sm:$0xff]
      %v381 = vld [vmem:[%s2] sm:$0xff]
      %v382 = vld [vmem:[%s2 + $0x8] sm:$0xff]
      %v383 = vld [vmem:[%s2 + $0x10] sm:$0xff]
      %v384 = vld [vmem:[%s2 + $0x18] sm:$0xff]
      %v385 = vld [vmem:[%s2 + $0x20] sm:$0xff]
      %v386 = vld [vmem:[%s2 + $0x28] sm:$0xff]
      %v387 = vld [vmem:[%s2 + $0x30] sm:$0xff]
      %v388 = vld [vmem:[%s2 + $0x38] sm:$0xff]
      %v389 = vld [vmem:[%s2 + $0x40] sm:$0xff]
      %v390 = vld [vmem:[%s2 + $0x48] sm:$0xff]
      %v391 = vld [vmem:[%s2 + $0x50] sm:$0xff]
      %v392 = vld [vmem:[%s2 + $0x58] sm:$0xff]
      %v393 = vld [vmem:[%s2 + $0x60] sm:$0xff]
      %v394 = vld [vmem:[%s2 + $0x68] sm:$0xff]
      %v395 = vld [vmem:[%s2 + $0x70] sm:$0xff]
      %v396 = vld [vmem:[%s2 + $0x78] sm:$0xff]
      %v397 = vld [vmem:[%s348] sm:$0x77]
      %399 = vset.pattern.permute.xlu0 0
      %400 = vperm.xlu0 %399, %v373
      %v401 = vpop.permute.xlu0 %400
      %404 = vset.pattern.permute.xlu0 0
      %405 = vperm.xlu0 %404, %v374
      %v406 = vpop.permute.xlu0 %405
      %409 = vset.pattern.permute.xlu0 0
      %410 = vperm.xlu0 %409, %v375
      %v411 = vpop.permute.xlu0 %410
      %414 = vset.pattern.permute.xlu0 0
      %415 = vperm.xlu0 %414, %v376
      %v416 = vpop.permute.xlu0 %415
      %419 = vset.pattern.permute.xlu0 0
      %420 = vperm.xlu0 %419, %v377
      %v421 = vpop.permute.xlu0 %420
      %424 = vset.pattern.permute.xlu0 0
      %425 = vperm.xlu0 %424, %v378
      %v426 = vpop.permute.xlu0 %425
      %429 = vset.pattern.permute.xlu0 0
      %430 = vperm.xlu0 %429, %v379
      %v431 = vpop.permute.xlu0 %430
      %434 = vset.pattern.permute.xlu0 0
      %435 = vperm.xlu0 %434, %v380
      %v436 = vpop.permute.xlu0 %435
      %v438 = vadd.f32 %v401, %v381
      %v439 = vadd.f32 %v401, %v382
      %v440 = vadd.f32 %v406, %v383
      %v441 = vadd.f32 %v406, %v384
      %v442 = vadd.f32 %v411, %v385
      %v443 = vadd.f32 %v411, %v386
      %v444 = vadd.f32 %v416, %v387
      %v445 = vadd.f32 %v416, %v388
      %v446 = vadd.f32 %v421, %v389
      %v447 = vadd.f32 %v421, %v390
      %v448 = vadd.f32 %v426, %v391
      %v449 = vadd.f32 %v426, %v392
      %v450 = vadd.f32 %v431, %v393
      %v451 = vadd.f32 %v431, %v394
      %v452 = vadd.f32 %v436, %v395
      %v453 = vadd.f32 %v436, %v396
      %454 = vset.pattern.permute.xlu0 1
      %455 = vperm.xlu0 %454, %v373
      %v456 = vpop.permute.xlu0 %455
      %458 = vset.pattern.permute.xlu0 1
      %459 = vperm.xlu0 %458, %v374
      %v460 = vpop.permute.xlu0 %459
      %462 = vset.pattern.permute.xlu0 1
      %463 = vperm.xlu0 %462, %v375
      %v464 = vpop.permute.xlu0 %463
      %466 = vset.pattern.permute.xlu0 1
      %467 = vperm.xlu0 %466, %v376
      %v468 = vpop.permute.xlu0 %467
      %470 = vset.pattern.permute.xlu0 1
      %471 = vperm.xlu0 %470, %v377
      %v472 = vpop.permute.xlu0 %471
      %474 = vset.pattern.permute.xlu0 1
      %475 = vperm.xlu0 %474, %v378
      %v476 = vpop.permute.xlu0 %475
      %478 = vset.pattern.permute.xlu0 1
      %479 = vperm.xlu0 %478, %v379
      %v480 = vpop.permute.xlu0 %479
      %482 = vset.pattern.permute.xlu0 1
      %483 = vperm.xlu0 %482, %v380
      %v484 = vpop.permute.xlu0 %483
      %v486 = vadd.f32 %v456, %v381
      %v487 = vadd.f32 %v456, %v382
      %v488 = vadd.f32 %v460, %v383
      %v489 = vadd.f32 %v460, %v384
      %v490 = vadd.f32 %v464, %v385
      %v491 = vadd.f32 %v464, %v386
      %v492 = vadd.f32 %v468, %v387
      %v493 = vadd.f32 %v468, %v388
      %v494 = vadd.f32 %v472, %v389
      %v495 = vadd.f32 %v472, %v390
      %v496 = vadd.f32 %v476, %v391
      %v497 = vadd.f32 %v476, %v392
      %v498 = vadd.f32 %v480, %v393
      %v499 = vadd.f32 %v480, %v394
      %v500 = vadd.f32 %v484, %v395
      %v501 = vadd.f32 %v484, %v396
      %vm502 = vcmp.gt.f32.partialorder %v438, 0.0
      %vm503 = vcmp.gt.f32.partialorder %v439, 0.0
      %vm504 = vcmp.gt.f32.partialorder %v486, 0.0
      %vm505 = vcmp.gt.f32.partialorder %v487, 0.0
      %vm506 = vcmp.gt.f32.partialorder %v440, 0.0
      %vm507 = vcmp.gt.f32.partialorder %v441, 0.0
      %vm508 = vcmp.gt.f32.partialorder %v488, 0.0
      %vm509 = vcmp.gt.f32.partialorder %v489, 0.0
      %vm510 = vcmp.gt.f32.partialorder %v442, 0.0
      %vm511 = vcmp.gt.f32.partialorder %v443, 0.0
      %vm512 = vcmp.gt.f32.partialorder %v490, 0.0
      %vm513 = vcmp.gt.f32.partialorder %v491, 0.0
      %vm514 = vcmp.gt.f32.partialorder %v444, 0.0
      %vm515 = vcmp.gt.f32.partialorder %v445, 0.0
      %vm516 = vcmp.gt.f32.partialorder %v492, 0.0
      %vm517 = vcmp.gt.f32.partialorder %v493, 0.0
      %vm518 = vcmp.gt.f32.partialorder %v446, 0.0
      %vm519 = vcmp.gt.f32.partialorder %v447, 0.0
      %vm520 = vcmp.gt.f32.partialorder %v494, 0.0
      %vm521 = vcmp.gt.f32.partialorder %v495, 0.0
      %vm522 = vcmp.gt.f32.partialorder %v448, 0.0
      %vm523 = vcmp.gt.f32.partialorder %v449, 0.0
      %vm524 = vcmp.gt.f32.partialorder %v496, 0.0
      %vm525 = vcmp.gt.f32.partialorder %v497, 0.0
      %vm526 = vcmp.gt.f32.partialorder %v450, 0.0
      %vm527 = vcmp.gt.f32.partialorder %v451, 0.0
      %vm528 = vcmp.gt.f32.partialorder %v498, 0.0
      %vm529 = vcmp.gt.f32.partialorder %v499, 0.0
      %vm530 = vcmp.gt.f32.partialorder %v452, 0.0
      %vm531 = vcmp.gt.f32.partialorder %v453, 0.0
      %vm532 = vcmp.gt.f32.partialorder %v500, 0.0
      %vm533 = vcmp.gt.f32.partialorder %v501, 0.0
      %v534 = vmin.f32 %v438, 0.0
      %v535 = vmin.f32 %v439, 0.0
      %v536 = vmin.f32 %v486, 0.0
      %v537 = vmin.f32 %v487, 0.0
      %v538 = vmin.f32 %v440, 0.0
      %v539 = vmin.f32 %v441, 0.0
      %v540 = vmin.f32 %v488, 0.0
      %v541 = vmin.f32 %v489, 0.0
      %v542 = vmin.f32 %v442, 0.0
      %v543 = vmin.f32 %v443, 0.0
      %v544 = vmin.f32 %v490, 0.0
      %v545 = vmin.f32 %v491, 0.0
      %v546 = vmin.f32 %v444, 0.0
      %v547 = vmin.f32 %v445, 0.0
      %v548 = vmin.f32 %v492, 0.0
      %v549 = vmin.f32 %v493, 0.0
      %v550 = vmin.f32 %v446, 0.0
      %v551 = vmin.f32 %v447, 0.0
      %v552 = vmin.f32 %v494, 0.0
      %v553 = vmin.f32 %v495, 0.0
      %v554 = vmin.f32 %v448, 0.0
      %v555 = vmin.f32 %v449, 0.0
      %v556 = vmin.f32 %v496, 0.0
      %v557 = vmin.f32 %v497, 0.0
      %v558 = vmin.f32 %v450, 0.0
      %v559 = vmin.f32 %v451, 0.0
      %v560 = vmin.f32 %v498, 0.0
      %v561 = vmin.f32 %v499, 0.0
      %v562 = vmin.f32 %v452, 0.0
      %v563 = vmin.f32 %v453, 0.0
      %v564 = vmin.f32 %v500, 0.0
      %v565 = vmin.f32 %v501, 0.0
      %v566 = vmul.f32 %v534, 1.442695
      %v567 = vpow.pop %v566
      %v568 = vmul.f32 %v535, 1.442695
      %v569 = vpow.pop %v568
      %v570 = vmul.f32 %v536, 1.442695
      %v571 = vpow.pop %v570
      %v572 = vmul.f32 %v537, 1.442695
      %v573 = vpow.pop %v572
      %v574 = vmul.f32 %v538, 1.442695
      %v575 = vpow.pop %v574
      %v576 = vmul.f32 %v539, 1.442695
      %v577 = vpow.pop %v576
      %v578 = vmul.f32 %v540, 1.442695
      %v579 = vpow.pop %v578
      %v580 = vmul.f32 %v541, 1.442695
      %v581 = vpow.pop %v580
      %v582 = vmul.f32 %v542, 1.442695
      %v583 = vpow.pop %v582
      %v584 = vmul.f32 %v543, 1.442695
      %v585 = vpow.pop %v584
      %v586 = vmul.f32 %v544, 1.442695
      %v587 = vpow.pop %v586
      %v588 = vmul.f32 %v545, 1.442695
      %v589 = vpow.pop %v588
      %v590 = vmul.f32 %v546, 1.442695
      %v591 = vpow.pop %v590
      %v592 = vmul.f32 %v547, 1.442695
      %v593 = vpow.pop %v592
      %v594 = vmul.f32 %v548, 1.442695
      %v595 = vpow.pop %v594
      %v596 = vmul.f32 %v549, 1.442695
      %v597 = vpow.pop %v596
      %v598 = vmul.f32 %v550, 1.442695
      %v599 = vpow.pop %v598
      %v600 = vmul.f32 %v551, 1.442695
      %v601 = vpow.pop %v600
      %v602 = vmul.f32 %v552, 1.442695
      %v603 = vpow.pop %v602
      %v604 = vmul.f32 %v553, 1.442695
      %v605 = vpow.pop %v604
      %v606 = vmul.f32 %v554, 1.442695
      %v607 = vpow.pop %v606
      %v608 = vmul.f32 %v555, 1.442695
      %v609 = vpow.pop %v608
      %v610 = vmul.f32 %v556, 1.442695
      %v611 = vpow.pop %v610
      %v612 = vmul.f32 %v557, 1.442695
      %v613 = vpow.pop %v612
      %v614 = vmul.f32 %v558, 1.442695
      %v615 = vpow.pop %v614
      %v616 = vmul.f32 %v559, 1.442695
      %v617 = vpow.pop %v616
      %v618 = vmul.f32 %v560, 1.442695
      %v619 = vpow.pop %v618
      %v620 = vmul.f32 %v561, 1.442695
      %v621 = vpow.pop %v620
      %v622 = vmul.f32 %v562, 1.442695
      %v623 = vpow.pop %v622
      %v624 = vmul.f32 %v563, 1.442695
      %v625 = vpow.pop %v624
      %v626 = vmul.f32 %v564, 1.442695
      %v627 = vpow.pop %v626
      %v628 = vmul.f32 %v565, 1.442695
      %v629 = vpow.pop %v628
      %v630 = vsub.f32 %v567, 1.0
      %v631 = vsub.f32 %v569, 1.0
      %v632 = vsub.f32 %v571, 1.0
      %v633 = vsub.f32 %v573, 1.0
      %v634 = vsub.f32 %v575, 1.0
      %v635 = vsub.f32 %v577, 1.0
      %v636 = vsub.f32 %v579, 1.0
      %v637 = vsub.f32 %v581, 1.0
      %v638 = vsub.f32 %v583, 1.0
      %v639 = vsub.f32 %v585, 1.0
      %v640 = vsub.f32 %v587, 1.0
      %v641 = vsub.f32 %v589, 1.0
      %v642 = vsub.f32 %v591, 1.0
      %v643 = vsub.f32 %v593, 1.0
      %v644 = vsub.f32 %v595, 1.0
      %v645 = vsub.f32 %v597, 1.0
      %v646 = vsub.f32 %v599, 1.0
      %v647 = vsub.f32 %v601, 1.0
      %v648 = vsub.f32 %v603, 1.0
      %v649 = vsub.f32 %v605, 1.0
      %v650 = vsub.f32 %v607, 1.0
      %v651 = vsub.f32 %v609, 1.0
      %v652 = vsub.f32 %v611, 1.0
      %v653 = vsub.f32 %v613, 1.0
      %v654 = vsub.f32 %v615, 1.0
      %v655 = vsub.f32 %v617, 1.0
      %v656 = vsub.f32 %v619, 1.0
      %v657 = vsub.f32 %v621, 1.0
      %v658 = vsub.f32 %v623, 1.0
      %v659 = vsub.f32 %v625, 1.0
      %v660 = vsub.f32 %v627, 1.0
      %v661 = vsub.f32 %v629, 1.0
      %v662 = vsel %vm502, %v438, %v630
      %v663 = vsel %vm503, %v439, %v631
      %v664 = vsel %vm504, %v486, %v632
      %v665 = vsel %vm505, %v487, %v633
      %v666 = vsel %vm506, %v440, %v634
      %v667 = vsel %vm507, %v441, %v635
      %v668 = vsel %vm508, %v488, %v636
      %v669 = vsel %vm509, %v489, %v637
      %v670 = vsel %vm510, %v442, %v638
      %v671 = vsel %vm511, %v443, %v639
      %v672 = vsel %vm512, %v490, %v640
      %v673 = vsel %vm513, %v491, %v641
      %v674 = vsel %vm514, %v444, %v642
      %v675 = vsel %vm515, %v445, %v643
      %v676 = vsel %vm516, %v492, %v644
      %v677 = vsel %vm517, %v493, %v645
      %v678 = vsel %vm518, %v446, %v646
      %v679 = vsel %vm519, %v447, %v647
      %v680 = vsel %vm520, %v494, %v648
      %v681 = vsel %vm521, %v495, %v649
      %v682 = vsel %vm522, %v448, %v650
      %v683 = vsel %vm523, %v449, %v651
      %v684 = vsel %vm524, %v496, %v652
      %v685 = vsel %vm525, %v497, %v653
      %v686 = vsel %vm526, %v450, %v654
      %v687 = vsel %vm527, %v451, %v655
      %v688 = vsel %vm528, %v498, %v656
      %v689 = vsel %vm529, %v499, %v657
      %v690 = vsel %vm530, %v452, %v658
      %v691 = vsel %vm531, %v453, %v659
      %v692 = vsel %vm532, %v500, %v660
      %v693 = vsel %vm533, %v501, %v661
      %v694 = vld [vmem:[%s3] sm:$0x3]
      %v695 = vpack.c.bf16 %v666, %v662
      %v696 = vpack.c.bf16 %v667, %v663
      %v697 = vpack.c.bf16 %v668, %v664
      %v698 = vpack.c.bf16 %v669, %v665
      %v699 = vpack.c.bf16 %v674, %v670
      %v700 = vpack.c.bf16 %v675, %v671
      %v701 = vpack.c.bf16 %v676, %v672
      %v702 = vpack.c.bf16 %v677, %v673
      %v703 = vpack.c.bf16 %v682, %v678
      %v704 = vpack.c.bf16 %v683, %v679
      %v705 = vpack.c.bf16 %v684, %v680
      %v706 = vpack.c.bf16 %v685, %v681
      %v707 = vpack.c.bf16 %v690, %v686
      %v708 = vpack.c.bf16 %v691, %v687
      %v709 = vpack.c.bf16 %v692, %v688
      %v710 = vpack.c.bf16 %v693, %v689
      %v711 = vld [vmem:[%s4] sm:$0xf]
      %713 = vset.pattern.permute.xlu0 0
      %714 = vperm.xlu0 %713, %v711
      %v715 = vpop.permute.xlu0 %714
      %vm717 = vcmask 523264
      %v719 = vsel %vm717, %v694, 0
      %721 = vmatprep.subr.bf16.mxu0 %v696
      %722 = vmatpush1.bf16.msra.mxu0 %v695
      %723 = vmatprep.subr.bf16.mxu0 %v700
      %724 = vmatpush1.bf16.msra.mxu0 %v699
      %725 = vmatprep.subr.bf16.mxu0 %v704
      %726 = vmatpush1.bf16.msra.mxu0 %v703
      %727 = vmatprep.subr.bf16.mxu0 %v708
      %728 = vmatpush1.bf16.msra.mxu0 %v707
      %729 = vmatprep.subr.bf16.mxu0 0
      %730 = vmatpush1.bf16.msra.mxu0 0
      %731 = vmatprep.subr.bf16.mxu0 0
      %732 = vmatpush1.bf16.msra.mxu0 0
      %733 = vmatprep.subr.bf16.mxu0 0
      %734 = vmatpush1.bf16.msra.mxu0 0
      %735 = vmatprep.subr.bf16.mxu0 0
      %736 = vmatpush1.bf16.msra.mxu0 0
      %737 = vmatprep.subr.bf16.mxu0 0
      %738 = vmatpush1.bf16.msra.mxu0 0
      %739 = vmatprep.subr.bf16.mxu0 0
      %740 = vmatpush1.bf16.msra.mxu0 0
      %741 = vmatprep.subr.bf16.mxu0 0
      %742 = vmatpush1.bf16.msra.mxu0 0
      %743 = vmatprep.subr.bf16.mxu0 0
      %744 = vmatpush1.bf16.msra.mxu0 0
      %745 = vmatprep.subr.bf16.mxu0 0
      %746 = vmatpush1.bf16.msra.mxu0 0
      %747 = vmatprep.subr.bf16.mxu0 0
      %748 = vmatpush1.bf16.msra.mxu0 0
      %749 = vmatprep.subr.bf16.mxu0 0
      %750 = vmatpush1.bf16.msra.mxu0 0
      %751 = vmatprep.subr.bf16.mxu0 0
      %752 = vmatpush1.bf16.msra.mxu0 0
      %753 = vmatprep.mubr.bf16.mxu0 0
      %754 = vmatmul.mubr.bf16.gmra.mrb[0].mxu0 %v719
      %v755 = vpop.f32.mrb[0].mxu0
      %v756 = vadd.f32 %v715, %v755
      %v757 = vpop.f32.mrb[0].mxu0
      %v758 = vadd.f32 %v715, %v757
      %v759 = vpop.f32.mrb[0].mxu0
      %v760 = vpop.f32.mrb[0].mxu0
      %761 = vdwg.mxu0
      %762 = vmatprep.subr.bf16.mxu0 %v698
      %763 = vmatpush1.bf16.msra.mxu0 %v697
      %764 = vmatprep.subr.bf16.mxu0 %v702
      %765 = vmatpush1.bf16.msra.mxu0 %v701
      %766 = vmatprep.subr.bf16.mxu0 %v706
      %767 = vmatpush1.bf16.msra.mxu0 %v705
      %768 = vmatprep.subr.bf16.mxu0 %v710
      %769 = vmatpush1.bf16.msra.mxu0 %v709
      %770 = vmatprep.subr.bf16.mxu0 0
      %771 = vmatpush1.bf16.msra.mxu0 0
      %772 = vmatprep.subr.bf16.mxu0 0
      %773 = vmatpush1.bf16.msra.mxu0 0
      %774 = vmatprep.subr.bf16.mxu0 0
      %775 = vmatpush1.bf16.msra.mxu0 0
      %776 = vmatprep.subr.bf16.mxu0 0
      %777 = vmatpush1.bf16.msra.mxu0 0
      %778 = vmatprep.subr.bf16.mxu0 0
      %779 = vmatpush1.bf16.msra.mxu0 0
      %780 = vmatprep.subr.bf16.mxu0 0
      %781 = vmatpush1.bf16.msra.mxu0 0
      %782 = vmatprep.subr.bf16.mxu0 0
      %783 = vmatpush1.bf16.msra.mxu0 0
      %784 = vmatprep.subr.bf16.mxu0 0
      %785 = vmatpush1.bf16.msra.mxu0 0
      %786 = vmatprep.subr.bf16.mxu0 0
      %787 = vmatpush1.bf16.msra.mxu0 0
      %788 = vmatprep.subr.bf16.mxu0 0
      %789 = vmatpush1.bf16.msra.mxu0 0
      %790 = vmatprep.subr.bf16.mxu0 0
      %791 = vmatpush1.bf16.msra.mxu0 0
      %792 = vmatprep.subr.bf16.mxu0 0
      %793 = vmatpush1.bf16.msra.mxu0 0
      %794 = vmatprep.mubr.bf16.mxu0 0
      %795 = vmatmul.mubr.bf16.gmra.mrb[0].mxu0 %v719
      %v796 = vpop.f32.mrb[0].mxu0
      %v797 = vadd.f32 %v715, %v796
      %v798 = vpop.f32.mrb[0].mxu0
      %v799 = vadd.f32 %v715, %v798
      %v800 = vpop.f32.mrb[0].mxu0
      %v801 = vpop.f32.mrb[0].mxu0
      %802 = vdwg.mxu0
      %v803 = vmax.f32 %v756, %v797
      %v804 = vmax.f32 %v758, %v799
      %v805 = vsub.f32 %v756, %v803
      %v806 = vsub.f32 %v758, %v804
      %v807 = vmul.f32 %v805, 1.442695
      %v808 = vpow.pop %v807
      %v809 = vmul.f32 %v806, 1.442695
      %v810 = vpow.pop %v809
      %v811 = vsub.f32 %v797, %v803
      %v812 = vsub.f32 %v799, %v804
      %v813 = vmul.f32 %v811, 1.442695
      %v814 = vpow.pop %v813
      %v815 = vmul.f32 %v812, 1.442695
      %v816 = vpow.pop %v815
      %v817 = vadd.f32 %v808, %v814
      %v818 = vadd.f32 %v810, %v816
      %v819 = vrcp.pop %v817
      %v820 = vmul.f32 1.0, %v819
      %v821 = vrcp.pop %v818
      %v822 = vmul.f32 1.0, %v821
      %v823 = vlog2.pop %v817
      %v824 = vmul.f32 %v823, 0.6931472
      %v825 = vlog2.pop %v818
      %v826 = vmul.f32 %v825, 0.6931472
      %v828 = vcombine.high %v397, %v397
      %v830 = vsub.f32 %v756, %v397
      %v831 = vsub.f32 %v758, %v828
      %v832 = vmul.f32 %v830, %v830
      %v833 = vmul.f32 %v831, %v831
      %v834 = vmul.f32 %v832, -1.6666666
      %v835 = vmul.f32 %v833, -1.6666666
      %v836 = vlaneseq
      %v837 = vshrl.u32 %v836, 7
      %v838 = vsub.s32 3, %v837
      %v839 = vrot.slane %v805, %v838
      %v840 = vlaneseq
      %v841 = vshrl.u32 %v840, 7
      %v842 = vsub.s32 3, %v841
      %v843 = vrot.slane %v806, %v842
      %v844 = vadd.f32 %v834, %v839
      %v845 = vadd.f32 %v835, %v843
      %v846 = vlaneseq
      %v847 = vshrl.u32 %v846, 7
      %v848 = vsub.s32 3, %v847
      %v849 = vrot.slane %v824, %v848
      %v850 = vlaneseq
      %v851 = vshrl.u32 %v850, 7
      %v852 = vsub.s32 3, %v851
      %v853 = vrot.slane %v826, %v852
      %v854 = vsub.f32 %v844, %v849
      %v855 = vsub.f32 %v845, %v853
      %v856 = vsub.f32 %v797, %v397
      %v857 = vsub.f32 %v799, %v828
      %v858 = vmul.f32 %v856, %v856
      %v859 = vmul.f32 %v857, %v857
      %v860 = vmul.f32 %v858, -1.6666666
      %v861 = vmul.f32 %v859, -1.6666666
      %v862 = vlaneseq
      %v863 = vshrl.u32 %v862, 7
      %v864 = vsub.s32 3, %v863
      %v865 = vrot.slane %v811, %v864
      %v866 = vlaneseq
      %v867 = vshrl.u32 %v866, 7
      %v868 = vsub.s32 3, %v867
      %v869 = vrot.slane %v812, %v868
      %v870 = vadd.f32 %v860, %v865
      %v871 = vadd.f32 %v861, %v869
      %v872 = vsub.f32 %v870, %v849
      %v873 = vsub.f32 %v871, %v853
      %v874 = vmax.f32 %v854, %v872
      %v875 = vmax.f32 %v855, %v873
      %v876 = vsub.f32 %v854, %v874
      %v877 = vsub.f32 %v855, %v875
      %v878 = vmul.f32 %v876, 1.442695
      %v879 = vpow.pop %v878
      %v880 = vmul.f32 %v877, 1.442695
      %v881 = vpow.pop %v880
      %v882 = vsub.f32 %v872, %v874
      %v883 = vsub.f32 %v873, %v875
      %v884 = vmul.f32 %v882, 1.442695
      %v885 = vpow.pop %v884
      %v886 = vmul.f32 %v883, 1.442695
      %v887 = vpow.pop %v886
      %v888 = vadd.f32 %v879, %v885
      %v889 = vadd.f32 %v881, %v887
      %v890 = vlog2.pop %v888
      %v891 = vmul.f32 %v890, 0.6931472
      %v892 = vlog2.pop %v889
      %v893 = vmul.f32 %v892, 0.6931472
      %v894 = vadd.f32 %v874, %v891
      %v895 = vadd.f32 %v875, %v893
      %vm896 = vcmask 1042432
      %v897 = vsel %vm896, %v894, 0.0
      %v898 = vsel %vm896, %v895, 0.0
      %v899 = vadd.f32 %v897, %v898
      %900 = vadd.xlane.f32.xlu0 %v899
      %v901 = vpop.xlane.xlu0 %900
      %v902 = vrot.slane %v901, 4
      %v903 = vadd.f32 %v901, %v902
      %v904 = vrot.slane %v903, 2
      %v905 = vadd.f32 %v903, %v904
      %v906 = vrot.slane %v905, 1
      %v907 = vadd.f32 %v905, %v906
      %s908 = vtos %v907
      %v909 = vmul.f32 %v808, %v820
      %v910 = vmul.f32 %v810, %v822
      %v911 = vlaneseq
      %v912 = vshrl.u32 %v911, 7
      %v913 = vsub.s32 3, %v912
      %v914 = vrot.slane %v909, %v913
      %v915 = vlaneseq
      %v916 = vshrl.u32 %v915, 7
      %v917 = vsub.s32 3, %v916
      %v918 = vrot.slane %v910, %v917
      %v919 = vmul.f32 %v914, %v756
      %v920 = vmul.f32 %v918, %v758
      %v921 = vmul.f32 %v814, %v820
      %v922 = vmul.f32 %v816, %v822
      %v923 = vlaneseq
      %v924 = vshrl.u32 %v923, 7
      %v925 = vsub.s32 3, %v924
      %v926 = vrot.slane %v921, %v925
      %v927 = vlaneseq
      %v928 = vshrl.u32 %v927, 7
      %v929 = vsub.s32 3, %v928
      %v930 = vrot.slane %v922, %v929
      %v931 = vmul.f32 %v926, %v797
      %v932 = vmul.f32 %v930, %v799
      %v933 = vadd.f32 %v919, %v931
      %v934 = vadd.f32 %v920, %v932
      %v935 = vsub.f32 %v933, %v397
      %v936 = vsub.f32 %v934, %v828
      %v937 = vmul.f32 %v935, %v935
      %v938 = vmul.f32 %v936, %v936
      %v939 = vsel %vm896, %v937, 0.0
      %v940 = vsel %vm896, %v938, 0.0
      %v941 = vadd.f32 %v939, %v940
      %942 = vadd.xlane.f32.xlu0 %v941
      %v943 = vpop.xlane.xlu0 %942
      %v944 = vrot.slane %v943, 4
      %v945 = vadd.f32 %v943, %v944
      %v946 = vrot.slane %v945, 2
      %v947 = vadd.f32 %v945, %v946
      %v948 = vrot.slane %v947, 1
      %v949 = vadd.f32 %v947, %v948
      %s950 = vtos %v949
      %v953 = vcombine.low %v933, %v934
      %955 = vst [vmem:[%s355] sm:$0x77] %v953
      %v956 = vstv %s908
      %957 = vst [vmem:[%s362] sm:$0x1] %v956
      %v958 = vstv %s950
      %959 = vst [vmem:[%s369] sm:$0x1] %v958
      %s960 = smul.u32 %s23, 6
      %s961 = sadd.s32 %s960, %s24
      %p962 = scmp.lt.s32.totalorder %s961, 11
      %s963 = scalar_select %p962, %s961, 11
      %s964 = smul.addr %s963, 2
      %s965 = smul.addr %s964, 4
      %s966 = scalar_lea.vmem %s5, %s965
      %s967 = smul.u32 %s23, 6
      %s968 = sadd.s32 %s967, %s24
      %p969 = scmp.lt.s32.totalorder %s968, 11
      %s970 = scalar_select %p969, %s968, 11
      %s971 = scalar_lea.vmem %s6, %s970
      %s972 = smul.u32 %s23, 6
      %s973 = sadd.s32 %s972, %s24
      %p974 = scmp.lt.s32.totalorder %s973, 11
      %s975 = scalar_select %p974, %s973, 11
      %s976 = scalar_lea.vmem %s7, %s975
      // Predicated region
      $region41: #{_lambda_.8} parent=39 // pred_check
        %p977 = pneg %p172
      $region42: #{_lambda_.8} parent=39 // pred_check_branch
        %979 = sbr.rel (%p977) target = $region44
      $region43: #{_lambda_.8} parent=39 // pred_region
        %s980 = smul.u32 %s23, 6
        %s981 = sadd.s32 %s980, %s24
      $region44: #{_lambda_.8} parent=39 // pred_fallthru
        _
      // Predicated region
      $region45: #{_lambda_.8} parent=39 // pred_check
        %p982 = pneg %p202
      $region46: #{_lambda_.8} parent=39 // pred_check_branch
        %984 = sbr.rel (%p982) target = $region48
      $region47: #{_lambda_.8} parent=39 // pred_region
        %s985 = smul.u32 %s23, 6
        %s986 = sadd.s32 %s985, %s24
      $region48: #{_lambda_.8} parent=39 // pred_fallthru
        _
      // Predicated region
      $region49: #{_lambda_.8} parent=39 // pred_check
        %p987 = pneg %p232
      $region50: #{_lambda_.8} parent=39 // pred_check_branch
        %989 = sbr.rel (%p987) target = $region52
      $region51: #{_lambda_.8} parent=39 // pred_region
        %s990 = smul.u32 %s23, 6
        %s991 = sadd.s32 %s990, %s24
      $region52: #{_lambda_.8} parent=39 // pred_fallthru
        _
    $region40: #{_lambda_.8} parent=5 // pred_fallthru
      _
    %p992 = scmp.le.s32.totalorder 2, %s14
    // Predicated region
    $region53: #{_lambda_.8} parent=5 // pred_check
      %p993 = pneg %p992
    $region54: #{_lambda_.8} parent=5 // pred_check_branch
      %995 = sbr.rel (%p993) target = $region56
    $region55: #{_lambda_.8} parent=5 // pred_region
      %s996 = ssub.s32 %s14, 2
      // Predicated region
      $region57: #{_lambda_.8} parent=55 // pred_check
        %p997 = pneg %p178
      $region58: #{_lambda_.8} parent=55 // pred_check_branch
        %999 = sbr.rel (%p997) target = $region60
      $region59: #{_lambda_.8} parent=55 // pred_region
        %s1000 = smul.u32 %s25, 6
        %s1001 = sadd.s32 %s1000, %s26
        %p1002 = scmp.lt.s32.totalorder %s1001, 11
        %s1003 = scalar_select %p1002, %s1001, 11
        %s1004 = smul.addr %s1003, 2
        %s1005 = smul.addr %s1004, 4
        %s1006 = scalar_lea.vmem %s5, %s1005
      $region60: #{_lambda_.8} parent=55 // pred_fallthru
        _
      // Predicated region
      $region61: #{_lambda_.8} parent=55 // pred_check
        %p1007 = pneg %p208
      $region62: #{_lambda_.8} parent=55 // pred_check_branch
        %1009 = sbr.rel (%p1007) target = $region64
      $region63: #{_lambda_.8} parent=55 // pred_region
        %s1010 = smul.u32 %s25, 6
        %s1011 = sadd.s32 %s1010, %s26
        %p1012 = scmp.lt.s32.totalorder %s1011, 11
        %s1013 = scalar_select %p1012, %s1011, 11
        %s1014 = scalar_lea.vmem %s6, %s1013
      $region64: #{_lambda_.8} parent=55 // pred_fallthru
        _
      // Predicated region
      $region65: #{_lambda_.8} parent=55 // pred_check
        %p1015 = pneg %p238
      $region66: #{_lambda_.8} parent=55 // pred_check_branch
        %1017 = sbr.rel (%p1015) target = $region68
      $region67: #{_lambda_.8} parent=55 // pred_region
        %s1018 = smul.u32 %s25, 6
        %s1019 = sadd.s32 %s1018, %s26
        %p1020 = scmp.lt.s32.totalorder %s1019, 11
        %s1021 = scalar_select %p1020, %s1019, 11
        %s1022 = scalar_lea.vmem %s7, %s1021
      $region68: #{_lambda_.8} parent=55 // pred_fallthru
        _
    $region56: #{_lambda_.8} parent=5 // pred_fallthru
      _
  $region6: #{_lambda_.8} parent=0 // loop_footer
    %s18 = sadd.s32 1, %s14
  $region7: #{_lambda_.8} parent=0 // loop_footer_branch
    %13 = sbr.rel target = $region3
  $region8: #{_lambda_.8} parent=0 // loop_exit
    _

// kernel: closed_call.6
$region0: #{closed_call.6}
  #allocation0 [shape = 'u32[]', space=smem, size = 0x4, offset = 0x4, fixed_abs, tag = 'smem constant byte address 0x4 - core index']
  #allocation1 [shape = 'u32[144,128]{1,0:T(1,128)}', space=vmem, size = 0x12000, scoped, tag = 'internal scratch']
  %s0 = inlined_call_operand.vmem [shape: f32[12,8], index: 0, kind: input, shape index: {}]
  %s1 = inlined_call_operand.vmem [shape: f32[12,128], index: 1, kind: input, shape index: {}]
  %s2 = inlined_call_operand.vmem [shape: f32[12,12], index: 2, kind: input, shape index: {}]
  %s3 = inlined_call_operand.vmem [shape: bf16[8,128], index: 3, kind: input, shape index: {}]
  %s4 = inlined_call_operand.vmem [shape: f32[1,128], index: 4, kind: input, shape index: {}]
  %s5 = inlined_call_operand.vmem [shape: bf16[2,128,384], index: 5, kind: input, shape index: {}]
  %s6 = inlined_call_operand.vmem [shape: f32[2,1,384], index: 6, kind: input, shape index: {}]
  %s7 = inlined_call_operand.vmem [shape: bf16[2,128,128], index: 7, kind: input, shape index: {}]
  %s8 = inlined_call_operand.vmem [shape: f32[2,1,128], index: 8, kind: input, shape index: {}]
  %s9 = inlined_call_operand.vmem [shape: f32[2,1,128], index: 9, kind: input, shape index: {}]
  %s10 = inlined_call_operand.vmem [shape: f32[2,1,128], index: 10, kind: input, shape index: {}]
  %s11 = inlined_call_operand.vmem [shape: bf16[2,128,256], index: 11, kind: input, shape index: {}]
  %s12 = inlined_call_operand.vmem [shape: f32[2,1,256], index: 12, kind: input, shape index: {}]
  %s13 = inlined_call_operand.vmem [shape: bf16[2,256,128], index: 13, kind: input, shape index: {}]
  %s14 = inlined_call_operand.vmem [shape: f32[2,1,128], index: 14, kind: input, shape index: {}]
  %s15 = inlined_call_operand.vmem [shape: f32[2,1,128], index: 15, kind: input, shape index: {}]
  %s16 = inlined_call_operand.vmem [shape: f32[2,1,128], index: 16, kind: input, shape index: {}]
  %s17 = inlined_call_operand.vmem [shape: bf16[128,8], index: 17, kind: input, shape index: {}]
  %s18 = inlined_call_operand.vmem [shape: f32[1,8], index: 18, kind: input, shape index: {}]
  %s19 = inlined_call_operand.vmem [shape: f32[4,8], index: 19, kind: output, shape index: {}]
  %s20 = sld [smem:[#allocation0]]
  $region86: #{closed_call.6} parent=0
    _
  %s22 = ssub.s32 1, %s20
  %s23 = scalar_select 0, %s22, %s20
  // Predicated region
  $region2: #{closed_call.6} parent=0 // pred_check
    _
  $region3: #{closed_call.6} parent=0 // pred_check_branch
    %25 = sbr.rel (0) target = $region5
  $region4: #{closed_call.6} parent=0 // pred_region
    _
  $region5: #{closed_call.6} parent=0 // pred_fallthru
    _
  // Predicated region
  $region6: #{closed_call.6} parent=0 // pred_check
    _
  $region7: #{closed_call.6} parent=0 // pred_check_branch
    %27 = sbr.rel (0) target = $region9
  $region8: #{closed_call.6} parent=0 // pred_region
    _
  $region9: #{closed_call.6} parent=0 // pred_fallthru
    _
  // Predicated region
  $region10: #{closed_call.6} parent=0 // pred_check
    _
  $region11: #{closed_call.6} parent=0 // pred_check_branch
    %29 = sbr.rel (0) target = $region13
  $region12: #{closed_call.6} parent=0 // pred_region
    _
  $region13: #{closed_call.6} parent=0 // pred_fallthru
    _
  // Predicated region
  $region14: #{closed_call.6} parent=0 // pred_check
    _
  $region15: #{closed_call.6} parent=0 // pred_check_branch
    %31 = sbr.rel (0) target = $region17
  $region16: #{closed_call.6} parent=0 // pred_region
    _
  $region17: #{closed_call.6} parent=0 // pred_fallthru
    _
  // Predicated region
  $region18: #{closed_call.6} parent=0 // pred_check
    _
  $region19: #{closed_call.6} parent=0 // pred_check_branch
    %33 = sbr.rel (0) target = $region21
  $region20: #{closed_call.6} parent=0 // pred_region
    _
  $region21: #{closed_call.6} parent=0 // pred_fallthru
    _
  // Predicated region
  $region22: #{closed_call.6} parent=0 // pred_check
    _
  $region23: #{closed_call.6} parent=0 // pred_check_branch
    %35 = sbr.rel (0) target = $region25
  $region24: #{closed_call.6} parent=0 // pred_region
    _
  $region25: #{closed_call.6} parent=0 // pred_fallthru
    _
  // Predicated region
  $region26: #{closed_call.6} parent=0 // pred_check
    _
  $region27: #{closed_call.6} parent=0 // pred_check_branch
    %37 = sbr.rel (0) target = $region29
  $region28: #{closed_call.6} parent=0 // pred_region
    _
  $region29: #{closed_call.6} parent=0 // pred_fallthru
    _
  // Predicated region
  $region30: #{closed_call.6} parent=0 // pred_check
    _
  $region31: #{closed_call.6} parent=0 // pred_check_branch
    %39 = sbr.rel (0) target = $region33
  $region32: #{closed_call.6} parent=0 // pred_region
    _
  $region33: #{closed_call.6} parent=0 // pred_fallthru
    _
  // Predicated region
  $region34: #{closed_call.6} parent=0 // pred_check
    _
  $region35: #{closed_call.6} parent=0 // pred_check_branch
    %41 = sbr.rel (0) target = $region37
  $region36: #{closed_call.6} parent=0 // pred_region
    _
  $region37: #{closed_call.6} parent=0 // pred_fallthru
    _
  // Predicated region
  $region38: #{closed_call.6} parent=0 // pred_check
    _
  $region39: #{closed_call.6} parent=0 // pred_check_branch
    %43 = sbr.rel (0) target = $region41
  $region40: #{closed_call.6} parent=0 // pred_region
    _
  $region41: #{closed_call.6} parent=0 // pred_fallthru
    _
  // Predicated region
  $region42: #{closed_call.6} parent=0 // pred_check
    _
  $region43: #{closed_call.6} parent=0 // pred_check_branch
    %45 = sbr.rel (0) target = $region45
  $region44: #{closed_call.6} parent=0 // pred_region
    _
  $region45: #{closed_call.6} parent=0 // pred_fallthru
    _
  // Predicated region
  $region46: #{closed_call.6} parent=0 // pred_check
    _
  $region47: #{closed_call.6} parent=0 // pred_check_branch
    %47 = sbr.rel (0) target = $region49
  $region48: #{closed_call.6} parent=0 // pred_region
    _
  $region49: #{closed_call.6} parent=0 // pred_fallthru
    _
  // Predicated region
  $region50: #{closed_call.6} parent=0 // pred_check
    _
  $region51: #{closed_call.6} parent=0 // pred_check_branch
    %49 = sbr.rel (0) target = $region53
  $region52: #{closed_call.6} parent=0 // pred_region
    _
  $region53: #{closed_call.6} parent=0 // pred_fallthru
    _
  // Predicated region
  $region54: #{closed_call.6} parent=0 // pred_check
    _
  $region55: #{closed_call.6} parent=0 // pred_check_branch
    %51 = sbr.rel (0) target = $region57
  $region56: #{closed_call.6} parent=0 // pred_region
    _
  $region57: #{closed_call.6} parent=0 // pred_fallthru
    _
  // Predicated region
  $region58: #{closed_call.6} parent=0 // pred_check
    _
  $region59: #{closed_call.6} parent=0 // pred_check_branch
    %53 = sbr.rel (0) target = $region61
  $region60: #{closed_call.6} parent=0 // pred_region
    _
  $region61: #{closed_call.6} parent=0 // pred_fallthru
    _
  // Predicated region
  $region62: #{closed_call.6} parent=0 // pred_check
    _
  $region63: #{closed_call.6} parent=0 // pred_check_branch
    %55 = sbr.rel (0) target = $region65
  $region64: #{closed_call.6} parent=0 // pred_region
    _
  $region65: #{closed_call.6} parent=0 // pred_fallthru
    _
  // Predicated region
  $region66: #{closed_call.6} parent=0 // pred_check
    _
  $region67: #{closed_call.6} parent=0 // pred_check_branch
    %57 = sbr.rel (0) target = $region69
  $region68: #{closed_call.6} parent=0 // pred_region
    _
  $region69: #{closed_call.6} parent=0 // pred_fallthru
    _
  // Predicated region
  $region70: #{closed_call.6} parent=0 // pred_check
    _
  $region71: #{closed_call.6} parent=0 // pred_check_branch
    %59 = sbr.rel (0) target = $region73
  $region72: #{closed_call.6} parent=0 // pred_region
    _
  $region73: #{closed_call.6} parent=0 // pred_fallthru
    _
  // Predicated region
  $region74: #{closed_call.6} parent=0 // pred_check
    _
  $region75: #{closed_call.6} parent=0 // pred_check_branch
    %61 = sbr.rel (0) target = $region77
  $region76: #{closed_call.6} parent=0 // pred_region
    _
  $region77: #{closed_call.6} parent=0 // pred_fallthru
    _
  %v63 = vld [vmem:[%s2] sm:$0xff]
  %v64 = vld [vmem:[%s2 + $0x8] sm:$0xf]
  %v65 = vld [vmem:[%s0] sm:$0xff]
  %v66 = vld [vmem:[%s0 + $0x8] sm:$0xf]
  %v67 = vpack.c.bf16 %v66, %v65
  %v68 = vld [vmem:[%s3] sm:$0xf]
  %v69 = vld [vmem:[%s4] sm:$0x1]
  %v71 = vlaneseq
  %v72 = vshrl.u32 %v71, 7
  %v73 = vsub.s32 0, %v72
  %v74 = vrot.slane %v69, %v73
  %vm76 = vcmask 64512
  %v78 = vsel %vm76, %v67, 0
  %vm80 = vcmask 1043456
  %v82 = vsel %vm80, %v68, 0
  %84 = vmatprep.subr.bf16.mxu0 0
  %85 = vmatpush1.bf16.msra.mxu0 %v82
  %86 = vmatprep.subr.bf16.mxu0 0
  %87 = vmatpush1.bf16.msra.mxu0 0
  %88 = vmatprep.subr.bf16.mxu0 0
  %89 = vmatpush1.bf16.msra.mxu0 0
  %90 = vmatprep.subr.bf16.mxu0 0
  %91 = vmatpush1.bf16.msra.mxu0 0
  %92 = vmatprep.subr.bf16.mxu0 0
  %93 = vmatpush1.bf16.msra.mxu0 0
  %94 = vmatprep.subr.bf16.mxu0 0
  %95 = vmatpush1.bf16.msra.mxu0 0
  %96 = vmatprep.subr.bf16.mxu0 0
  %97 = vmatpush1.bf16.msra.mxu0 0
  %98 = vmatprep.subr.bf16.mxu0 0
  %99 = vmatpush1.bf16.msra.mxu0 0
  %100 = vmatprep.subr.bf16.mxu0 0
  %101 = vmatpush1.bf16.msra.mxu0 0
  %102 = vmatprep.subr.bf16.mxu0 0
  %103 = vmatpush1.bf16.msra.mxu0 0
  %104 = vmatprep.subr.bf16.mxu0 0
  %105 = vmatpush1.bf16.msra.mxu0 0
  %106 = vmatprep.subr.bf16.mxu0 0
  %107 = vmatpush1.bf16.msra.mxu0 0
  %108 = vmatprep.subr.bf16.mxu0 0
  %109 = vmatpush1.bf16.msra.mxu0 0
  %110 = vmatprep.subr.bf16.mxu0 0
  %111 = vmatpush1.bf16.msra.mxu0 0
  %112 = vmatprep.subr.bf16.mxu0 0
  %113 = vmatpush1.bf16.msra.mxu0 0
  %114 = vmatprep.subr.bf16.mxu0 0
  %115 = vmatpush1.bf16.msra.mxu0 0
  %116 = vmatprep.mubr.bf16.mxu0 0
  %117 = vmatmul.mubr.bf16.gmra.mrb[0].mxu0 %v78
  %v118 = vpop.f32.mrb[0].mxu0
  %v119 = vadd.f32 %v74, %v118
  %v120 = vpop.f32.mrb[0].mxu0
  %v121 = vpop.f32.mrb[0].mxu0
  %v122 = vadd.f32 %v74, %v121
  %v123 = vpop.f32.mrb[0].mxu0
  %124 = vdwg.mxu0
  %v125 = vld [vmem:[%s1] sm:$0xff]
  %v126 = vld [vmem:[%s1 + $0x8] sm:$0xf]
  %v127 = vadd.f32 %v119, %v125
  %v128 = vadd.f32 %v122, %v126
  %v129 = vpack.c.bf16 %v128, %v127
  %v130 = vld [vmem:[%s5] sm:$0xff]
  %v131 = vld [vmem:[%s5 + $0x8] sm:$0xf]
  %v132 = vld [vmem:[%s5 + $0xc] sm:$0xff]
  %v133 = vld [vmem:[%s5 + $0x14] sm:$0xf]
  %v134 = vld [vmem:[%s5 + $0x18] sm:$0xff]
  %v135 = vld [vmem:[%s5 + $0x20] sm:$0xf]
  %v136 = vld [vmem:[%s5 + $0x24] sm:$0xff]
  %v137 = vld [vmem:[%s5 + $0x2c] sm:$0xf]
  %v138 = vld [vmem:[%s5 + $0x30] sm:$0xff]
  %v139 = vld [vmem:[%s5 + $0x38] sm:$0xf]
  %v140 = vld [vmem:[%s5 + $0x3c] sm:$0xff]
  %v141 = vld [vmem:[%s5 + $0x44] sm:$0xf]
  %v142 = vld [vmem:[%s5 + $0x48] sm:$0xff]
  %v143 = vld [vmem:[%s5 + $0x50] sm:$0xf]
  %v144 = vld [vmem:[%s5 + $0x54] sm:$0xff]
  %v145 = vld [vmem:[%s5 + $0x5c] sm:$0xf]
  %v146 = vld [vmem:[%s5 + $0x60] sm:$0xff]
  %v147 = vld [vmem:[%s5 + $0x68] sm:$0xf]
  %v148 = vld [vmem:[%s5 + $0x6c] sm:$0xff]
  %v149 = vld [vmem:[%s5 + $0x74] sm:$0xf]
  %v150 = vld [vmem:[%s5 + $0x78] sm:$0xff]
  %v151 = vld [vmem:[%s5 + $0x80] sm:$0xf]
  %v152 = vld [vmem:[%s5 + $0x84] sm:$0xff]
  %v153 = vld [vmem:[%s5 + $0x8c] sm:$0xf]
  %v154 = vld [vmem:[%s5 + $0x90] sm:$0xff]
  %v155 = vld [vmem:[%s5 + $0x98] sm:$0xf]
  %v156 = vld [vmem:[%s5 + $0x9c] sm:$0xff]
  %v157 = vld [vmem:[%s5 + $0xa4] sm:$0xf]
  %v158 = vld [vmem:[%s5 + $0xa8] sm:$0xff]
  %v159 = vld [vmem:[%s5 + $0xb0] sm:$0xf]
  %v160 = vld [vmem:[%s5 + $0xb4] sm:$0xff]
  %v161 = vld [vmem:[%s5 + $0xbc] sm:$0xf]
  %v162 = vld [vmem:[%s6] sm:$0x7]
  %v164 = vlaneseq
  %v165 = vshrl.u32 %v164, 7
  %v166 = vsub.s32 0, %v165
  %v167 = vrot.slane %v162, %v166
  %v168 = vlaneseq
  %v169 = vshrl.u32 %v168, 7
  %v170 = vsub.s32 1, %v169
  %v171 = vrot.slane %v162, %v170
  %v172 = vlaneseq
  %v173 = vshrl.u32 %v172, 7
  %v174 = vsub.s32 2, %v173
  %v175 = vrot.slane %v162, %v174
  %v211 = vunpack.c.l.b16 %v130
  %v212 = vunpack.c.h.b16 %v130
  %v213 = vunpack.c.l.b16 %v131
  %v214 = vunpack.c.l.b16 %v132
  %v215 = vunpack.c.h.b16 %v132
  %v216 = vunpack.c.l.b16 %v133
  %v217 = vunpack.c.l.b16 %v134
  %v218 = vunpack.c.h.b16 %v134
  %v219 = vunpack.c.l.b16 %v135
  %v220 = vunpack.c.l.b16 %v136
  %v221 = vunpack.c.h.b16 %v136
  %v222 = vunpack.c.l.b16 %v137
  %v223 = vunpack.c.l.b16 %v138
  %v224 = vunpack.c.h.b16 %v138
  %v225 = vunpack.c.l.b16 %v139
  %v226 = vunpack.c.l.b16 %v140
  %v227 = vunpack.c.h.b16 %v140
  %v228 = vunpack.c.l.b16 %v141
  %v229 = vunpack.c.l.b16 %v142
  %v230 = vunpack.c.h.b16 %v142
  %v231 = vunpack.c.l.b16 %v143
  %v232 = vunpack.c.l.b16 %v144
  %v233 = vunpack.c.h.b16 %v144
  %v234 = vunpack.c.l.b16 %v145
  %v235 = vunpack.c.l.b16 %v146
  %v236 = vunpack.c.h.b16 %v146
  %v237 = vunpack.c.l.b16 %v147
  %v238 = vunpack.c.l.b16 %v148
  %v239 = vunpack.c.h.b16 %v148
  %v240 = vunpack.c.l.b16 %v149
  %v241 = vunpack.c.l.b16 %v150
  %v242 = vunpack.c.h.b16 %v150
  %v243 = vunpack.c.l.b16 %v151
  %v244 = vunpack.c.l.b16 %v152
  %v245 = vunpack.c.h.b16 %v152
  %v246 = vunpack.c.l.b16 %v153
  %v247 = vunpack.c.l.b16 %v154
  %v248 = vunpack.c.h.b16 %v154
  %v249 = vunpack.c.l.b16 %v155
  %v250 = vunpack.c.l.b16 %v156
  %v251 = vunpack.c.h.b16 %v156
  %v252 = vunpack.c.l.b16 %v157
  %v253 = vunpack.c.l.b16 %v158
  %v254 = vunpack.c.h.b16 %v158
  %v255 = vunpack.c.l.b16 %v159
  %v256 = vunpack.c.l.b16 %v160
  %v257 = vunpack.c.h.b16 %v160
  %v258 = vunpack.c.l.b16 %v161
  %v259 = vpack.c.b16 %v214, %v211
  %v260 = vpack.c.b16 %v215, %v212
  %v261 = vpack.c.b16 %v216, %v213
  %v262 = vpack.c.b16 %v220, %v217
  %v263 = vpack.c.b16 %v221, %v218
  %v264 = vpack.c.b16 %v222, %v219
  %v265 = vpack.c.b16 %v226, %v223
  %v266 = vpack.c.b16 %v227, %v224
  %v267 = vpack.c.b16 %v228, %v225
  %v268 = vpack.c.b16 %v232, %v229
  %v269 = vpack.c.b16 %v233, %v230
  %v270 = vpack.c.b16 %v234, %v231
  %v271 = vpack.c.b16 %v238, %v235
  %v272 = vpack.c.b16 %v239, %v236
  %v273 = vpack.c.b16 %v240, %v237
  %v274 = vpack.c.b16 %v244, %v241
  %v275 = vpack.c.b16 %v245, %v242
  %v276 = vpack.c.b16 %v246, %v243
  %v277 = vpack.c.b16 %v250, %v247
  %v278 = vpack.c.b16 %v251, %v248
  %v279 = vpack.c.b16 %v252, %v249
  %v280 = vpack.c.b16 %v256, %v253
  %v281 = vpack.c.b16 %v257, %v254
  %v282 = vpack.c.b16 %v258, %v255
  %307 = vmatprep.subr.bf16.mxu0 %v260
  %308 = vmatpush1.bf16.msra.mxu0 %v259
  %309 = vmatprep.subr.bf16.mxu0 %v263
  %310 = vmatpush1.bf16.msra.mxu0 %v262
  %311 = vmatprep.subr.bf16.mxu0 %v266
  %312 = vmatpush1.bf16.msra.mxu0 %v265
  %313 = vmatprep.subr.bf16.mxu0 %v269
  %314 = vmatpush1.bf16.msra.mxu0 %v268
  %315 = vmatprep.subr.bf16.mxu0 %v272
  %316 = vmatpush1.bf16.msra.mxu0 %v271
  %317 = vmatprep.subr.bf16.mxu0 %v275
  %318 = vmatpush1.bf16.msra.mxu0 %v274
  %319 = vmatprep.subr.bf16.mxu0 %v278
  %320 = vmatpush1.bf16.msra.mxu0 %v277
  %321 = vmatprep.subr.bf16.mxu0 %v281
  %322 = vmatpush1.bf16.msra.mxu0 %v280
  %323 = vmatprep.subr.bf16.mxu0 0
  %324 = vmatpush1.bf16.msra.mxu0 0
  %325 = vmatprep.subr.bf16.mxu0 0
  %326 = vmatpush1.bf16.msra.mxu0 0
  %327 = vmatprep.subr.bf16.mxu0 0
  %328 = vmatpush1.bf16.msra.mxu0 0
  %329 = vmatprep.subr.bf16.mxu0 0
  %330 = vmatpush1.bf16.msra.mxu0 0
  %331 = vmatprep.subr.bf16.mxu0 0
  %332 = vmatpush1.bf16.msra.mxu0 0
  %333 = vmatprep.subr.bf16.mxu0 0
  %334 = vmatpush1.bf16.msra.mxu0 0
  %335 = vmatprep.subr.bf16.mxu0 0
  %336 = vmatpush1.bf16.msra.mxu0 0
  %337 = vmatprep.subr.bf16.mxu0 0
  %338 = vmatpush1.bf16.msra.mxu0 0
  %339 = vmatprep.mubr.bf16.mxu0 0
  %340 = vmatmul.mubr.bf16.gmra.mrb[0].mxu0 %v129
  %v341 = vpop.f32.mrb[0].mxu0
  %v342 = vadd.f32 %v167, %v341
  %v343 = vpop.f32.mrb[0].mxu0
  %v344 = vadd.f32 %v171, %v343
  %v345 = vpop.f32.mrb[0].mxu0
  %v346 = vadd.f32 %v167, %v345
  %v347 = vpop.f32.mrb[0].mxu0
  %v348 = vadd.f32 %v171, %v347
  %349 = vdwg.mxu0
  %350 = vmatprep.subr.bf16.mxu0 0
  %351 = vmatpush1.bf16.msra.mxu0 %v261
  %352 = vmatprep.subr.bf16.mxu0 0
  %353 = vmatpush1.bf16.msra.mxu0 %v264
  %354 = vmatprep.subr.bf16.mxu0 0
  %355 = vmatpush1.bf16.msra.mxu0 %v267
  %356 = vmatprep.subr.bf16.mxu0 0
  %357 = vmatpush1.bf16.msra.mxu0 %v270
  %358 = vmatprep.subr.bf16.mxu0 0
  %359 = vmatpush1.bf16.msra.mxu0 %v273
  %360 = vmatprep.subr.bf16.mxu0 0
  %361 = vmatpush1.bf16.msra.mxu0 %v276
  %362 = vmatprep.subr.bf16.mxu0 0
  %363 = vmatpush1.bf16.msra.mxu0 %v279
  %364 = vmatprep.subr.bf16.mxu0 0
  %365 = vmatpush1.bf16.msra.mxu0 %v282
  %366 = vmatprep.subr.bf16.mxu0 0
  %367 = vmatpush1.bf16.msra.mxu0 0
  %368 = vmatprep.subr.bf16.mxu0 0
  %369 = vmatpush1.bf16.msra.mxu0 0
  %370 = vmatprep.subr.bf16.mxu0 0
  %371 = vmatpush1.bf16.msra.mxu0 0
  %372 = vmatprep.subr.bf16.mxu0 0
  %373 = vmatpush1.bf16.msra.mxu0 0
  %374 = vmatprep.subr.bf16.mxu0 0
  %375 = vmatpush1.bf16.msra.mxu0 0
  %376 = vmatprep.subr.bf16.mxu0 0
  %377 = vmatpush1.bf16.msra.mxu0 0
  %378 = vmatprep.subr.bf16.mxu0 0
  %379 = vmatpush1.bf16.msra.mxu0 0
  %380 = vmatprep.subr.bf16.mxu0 0
  %381 = vmatpush1.bf16.msra.mxu0 0
  %382 = vmatprep.mubr.bf16.mxu0 0
  %383 = vmatmul.mubr.bf16.gmra.mrb[0].mxu0 %v129
  %v384 = vpop.f32.mrb[0].mxu0
  %v385 = vadd.f32 %v175, %v384
  %v386 = vpop.f32.mrb[0].mxu0
  %v387 = vpop.f32.mrb[0].mxu0
  %v388 = vadd.f32 %v175, %v387
  %v389 = vpop.f32.mrb[0].mxu0
  %390 = vdwg.mxu0
  %v391 = vmul.f32 %v342, 0.25
  %v392 = vmul.f32 %v346, 0.25
  %v393 = vpack.c.bf16 %v392, %v391
  %v394 = vpack.c.bf16 %v348, %v344
  %v395 = vpack.c.bf16 %v388, %v385
  %vm396 = vcmask 130048
  %v398 = vsel %vm396, %v393, 0
  %v401 = vsel %vm396, %v394, 0
  %403 = vmatprep.subr.bf16.mxu0 0
  %404 = vmatpush1.bf16.xpose.msra.mxu0 %v401
  %405 = vmatprep.subr.bf16.mxu0 0
  %406 = vmatpush1.bf16.xpose.msra.mxu0 0
  %407 = vmatprep.subr.bf16.mxu0 0
  %408 = vmatpush1.bf16.xpose.msra.mxu0 0
  %409 = vmatprep.subr.bf16.mxu0 0
  %410 = vmatpush1.bf16.xpose.msra.mxu0 0
  %411 = vmatprep.subr.bf16.mxu0 0
  %412 = vmatpush1.bf16.xpose.msra.mxu0 0
  %413 = vmatprep.subr.bf16.mxu0 0
  %414 = vmatpush1.bf16.xpose.msra.mxu0 0
  %415 = vmatprep.subr.bf16.mxu0 0
  %416 = vmatpush1.bf16.xpose.msra.mxu0 0
  %417 = vmatprep.subr.bf16.mxu0 0
  %418 = vmatpush1.bf16.xpose.msra.mxu0 0
  %419 = vmatprep.subr.bf16.mxu0 0
  %420 = vmatpush1.bf16.xpose.msra.mxu0 0
  %421 = vmatprep.subr.bf16.mxu0 0
  %422 = vmatpush1.bf16.xpose.msra.mxu0 0
  %423 = vmatprep.subr.bf16.mxu0 0
  %424 = vmatpush1.bf16.xpose.msra.mxu0 0
  %425 = vmatprep.subr.bf16.mxu0 0
  %426 = vmatpush1.bf16.xpose.msra.mxu0 0
  %427 = vmatprep.subr.bf16.mxu0 0
  %428 = vmatpush1.bf16.xpose.msra.mxu0 0
  %429 = vmatprep.subr.bf16.mxu0 0
  %430 = vmatpush1.bf16.xpose.msra.mxu0 0
  %431 = vmatprep.subr.bf16.mxu0 0
  %432 = vmatpush1.bf16.xpose.msra.mxu0 0
  %433 = vmatprep.subr.bf16.mxu0 0
  %434 = vmatpush1.bf16.xpose.msra.mxu0 0
  %435 = vmatprep.mubr.bf16.mxu0 0
  %436 = vmatmul.mubr.bf16.gmra.mrb[0].mxu0 %v398
  %v437 = vpop.f32.mrb[0].mxu0
  %v438 = vadd.f32 %v63, %v437
  %v439 = vpop.f32.mrb[0].mxu0
  %v440 = vpop.f32.mrb[0].mxu0
  %v441 = vadd.f32 %v64, %v440
  %v442 = vpop.f32.mrb[0].mxu0
  %443 = vdwg.mxu0
  %vm444 = vcmask 97280
  %v445 = vsel %vm444, %v438, -inf
  %446 = vmax.xlane.f32.xlu0 %v445
  %v447 = vpop.xlane.xlu0 %446
  %vm448 = vcmask 93184
  %v449 = vsel %vm448, %v441, -inf
  %450 = vmax.xlane.f32.xlu0 %v449
  %v451 = vpop.xlane.xlu0 %450
  %v452 = vsub.f32 %v438, %v447
  %v453 = vsub.f32 %v441, %v451
  %v454 = vmul.f32 %v452, 1.442695
  %v455 = vpow.pop %v454
  %v456 = vmul.f32 %v453, 1.442695
  %v457 = vpow.pop %v456
  %v458 = vsel %vm444, %v455, 0.0
  %459 = vadd.xlane.f32.xlu0 %v458
  %v460 = vpop.xlane.xlu0 %459
  %v461 = vsel %vm448, %v457, 0.0
  %462 = vadd.xlane.f32.xlu0 %v461
  %v463 = vpop.xlane.xlu0 %462
  %v464 = vrcp.pop %v460
  %v465 = vmul.f32 1.0, %v464
  %v466 = vrcp.pop %v463
  %v467 = vmul.f32 1.0, %v466
  %v468 = vmul.f32 %v455, %v465
  %v469 = vmul.f32 %v457, %v467
  %v470 = vpack.c.bf16 %v469, %v468
  %v472 = vsel %vm444, %v470, 0
  %vm474 = vcmask 1045504
  %v476 = vsel %vm474, %v395, 0
  %478 = vmatprep.subr.bf16.mxu0 0
  %479 = vmatpush1.bf16.msra.mxu0 %v476
  %480 = vmatprep.subr.bf16.mxu0 0
  %481 = vmatpush1.bf16.msra.mxu0 0
  %482 = vmatprep.subr.bf16.mxu0 0
  %483 = vmatpush1.bf16.msra.mxu0 0
  %484 = vmatprep.subr.bf16.mxu0 0
  %485 = vmatpush1.bf16.msra.mxu0 0
  %486 = vmatprep.subr.bf16.mxu0 0
  %487 = vmatpush1.bf16.msra.mxu0 0
  %488 = vmatprep.subr.bf16.mxu0 0
  %489 = vmatpush1.bf16.msra.mxu0 0
  %490 = vmatprep.subr.bf16.mxu0 0
  %491 = vmatpush1.bf16.msra.mxu0 0
  %492 = vmatprep.subr.bf16.mxu0 0
  %493 = vmatpush1.bf16.msra.mxu0 0
  %494 = vmatprep.subr.bf16.mxu0 0
  %495 = vmatpush1.bf16.msra.mxu0 0
  %496 = vmatprep.subr.bf16.mxu0 0
  %497 = vmatpush1.bf16.msra.mxu0 0
  %498 = vmatprep.subr.bf16.mxu0 0
  %499 = vmatpush1.bf16.msra.mxu0 0
  %500 = vmatprep.subr.bf16.mxu0 0
  %501 = vmatpush1.bf16.msra.mxu0 0
  %502 = vmatprep.subr.bf16.mxu0 0
  %503 = vmatpush1.bf16.msra.mxu0 0
  %504 = vmatprep.subr.bf16.mxu0 0
  %505 = vmatpush1.bf16.msra.mxu0 0
  %506 = vmatprep.subr.bf16.mxu0 0
  %507 = vmatpush1.bf16.msra.mxu0 0
  %508 = vmatprep.subr.bf16.mxu0 0
  %509 = vmatpush1.bf16.msra.mxu0 0
  %510 = vmatprep.mubr.bf16.mxu0 0
  %511 = vmatmul.mubr.bf16.gmra.mrb[0].mxu0 %v472
  %v512 = vpop.f32.mrb[0].mxu0
  %v513 = vadd.f32 0.0, %v512
  %v514 = vpop.f32.mrb[0].mxu0
  %v515 = vpop.f32.mrb[0].mxu0
  %v516 = vadd.f32 0.0, %v515
  %v517 = vpop.f32.mrb[0].mxu0
  %518 = vdwg.mxu0
  %520 = vrot.lane.b32.xlu0 %v393, 112
  %v521 = vpop.permute.xlu0 %520
  %523 = vrot.lane.b32.xlu0 %v394, 112
  %v524 = vpop.permute.xlu0 %523
  %v526 = vsel %vm396, %v521, 0
  %v529 = vsel %vm396, %v524, 0
  %531 = vmatprep.subr.bf16.mxu0 0
  %532 = vmatpush1.bf16.xpose.msra.mxu0 %v529
  %533 = vmatprep.subr.bf16.mxu0 0
  %534 = vmatpush1.bf16.xpose.msra.mxu0 0
  %535 = vmatprep.subr.bf16.mxu0 0
  %536 = vmatpush1.bf16.xpose.msra.mxu0 0
  %537 = vmatprep.subr.bf16.mxu0 0
  %538 = vmatpush1.bf16.xpose.msra.mxu0 0
  %539 = vmatprep.subr.bf16.mxu0 0
  %540 = vmatpush1.bf16.xpose.msra.mxu0 0
  %541 = vmatprep.subr.bf16.mxu0 0
  %542 = vmatpush1.bf16.xpose.msra.mxu0 0
  %543 = vmatprep.subr.bf16.mxu0 0
  %544 = vmatpush1.bf16.xpose.msra.mxu0 0
  %545 = vmatprep.subr.bf16.mxu0 0
  %546 = vmatpush1.bf16.xpose.msra.mxu0 0
  %547 = vmatprep.subr.bf16.mxu0 0
  %548 = vmatpush1.bf16.xpose.msra.mxu0 0
  %549 = vmatprep.subr.bf16.mxu0 0
  %550 = vmatpush1.bf16.xpose.msra.mxu0 0
  %551 = vmatprep.subr.bf16.mxu0 0
  %552 = vmatpush1.bf16.xpose.msra.mxu0 0
  %553 = vmatprep.subr.bf16.mxu0 0
  %554 = vmatpush1.bf16.xpose.msra.mxu0 0
  %555 = vmatprep.subr.bf16.mxu0 0
  %556 = vmatpush1.bf16.xpose.msra.mxu0 0
  %557 = vmatprep.subr.bf16.mxu0 0
  %558 = vmatpush1.bf16.xpose.msra.mxu0 0
  %559 = vmatprep.subr.bf16.mxu0 0
  %560 = vmatpush1.bf16.xpose.msra.mxu0 0
  %561 = vmatprep.subr.bf16.mxu0 0
  %562 = vmatpush1.bf16.xpose.msra.mxu0 0
  %563 = vmatprep.mubr.bf16.mxu0 0
  %564 = vmatmul.mubr.bf16.gmra.mrb[0].mxu0 %v526
  %v565 = vpop.f32.mrb[0].mxu0
  %v566 = vadd.f32 %v63, %v565
  %v567 = vpop.f32.mrb[0].mxu0
  %v568 = vpop.f32.mrb[0].mxu0
  %v569 = vadd.f32 %v64, %v568
  %v570 = vpop.f32.mrb[0].mxu0
  %571 = vdwg.mxu0
  %v572 = vsel %vm444, %v566, -inf
  %573 = vmax.xlane.f32.xlu0 %v572
  %v574 = vpop.xlane.xlu0 %573
  %v575 = vsel %vm448, %v569, -inf
  %576 = vmax.xlane.f32.xlu0 %v575
  %v577 = vpop.xlane.xlu0 %576
  %v578 = vsub.f32 %v566, %v574
  %v579 = vsub.f32 %v569, %v577
  %v580 = vmul.f32 %v578, 1.442695
  %v581 = vpow.pop %v580
  %v582 = vmul.f32 %v579, 1.442695
  %v583 = vpow.pop %v582
  %v584 = vsel %vm444, %v581, 0.0
  %585 = vadd.xlane.f32.xlu0 %v584
  %v586 = vpop.xlane.xlu0 %585
  %v587 = vsel %vm448, %v583, 0.0
  %588 = vadd.xlane.f32.xlu0 %v587
  %v589 = vpop.xlane.xlu0 %588
  %v590 = vrcp.pop %v586
  %v591 = vmul.f32 1.0, %v590
  %v592 = vrcp.pop %v589
  %v593 = vmul.f32 1.0, %v592
  %v594 = vmul.f32 %v581, %v591
  %v595 = vmul.f32 %v583, %v593
  %v596 = vpack.c.bf16 %v595, %v594
  %598 = vrot.lane.b32.xlu0 %v395, 112
  %v599 = vpop.permute.xlu0 %598
  %v601 = vsel %vm444, %v596, 0
  %v604 = vsel %vm474, %v599, 0
  %606 = vmatprep.subr.bf16.mxu0 0
  %607 = vmatpush1.bf16.msra.mxu0 %v604
  %608 = vmatprep.subr.bf16.mxu0 0
  %609 = vmatpush1.bf16.msra.mxu0 0
  %610 = vmatprep.subr.bf16.mxu0 0
  %611 = vmatpush1.bf16.msra.mxu0 0
  %612 = vmatprep.subr.bf16.mxu0 0
  %613 = vmatpush1.bf16.msra.mxu0 0
  %614 = vmatprep.subr.bf16.mxu0 0
  %615 = vmatpush1.bf16.msra.mxu0 0
  %616 = vmatprep.subr.bf16.mxu0 0
  %617 = vmatpush1.bf16.msra.mxu0 0
  %618 = vmatprep.subr.bf16.mxu0 0
  %619 = vmatpush1.bf16.msra.mxu0 0
  %620 = vmatprep.subr.bf16.mxu0 0
  %621 = vmatpush1.bf16.msra.mxu0 0
  %622 = vmatprep.subr.bf16.mxu0 0
  %623 = vmatpush1.bf16.msra.mxu0 0
  %624 = vmatprep.subr.bf16.mxu0 0
  %625 = vmatpush1.bf16.msra.mxu0 0
  %626 = vmatprep.subr.bf16.mxu0 0
  %627 = vmatpush1.bf16.msra.mxu0 0
  %628 = vmatprep.subr.bf16.mxu0 0
  %629 = vmatpush1.bf16.msra.mxu0 0
  %630 = vmatprep.subr.bf16.mxu0 0
  %631 = vmatpush1.bf16.msra.mxu0 0
  %632 = vmatprep.subr.bf16.mxu0 0
  %633 = vmatpush1.bf16.msra.mxu0 0
  %634 = vmatprep.subr.bf16.mxu0 0
  %635 = vmatpush1.bf16.msra.mxu0 0
  %636 = vmatprep.subr.bf16.mxu0 0
  %637 = vmatpush1.bf16.msra.mxu0 0
  %638 = vmatprep.mubr.bf16.mxu0 0
  %639 = vmatmul.mubr.bf16.gmra.mrb[0].mxu0 %v601
  %v640 = vpop.f32.mrb[0].mxu0
  %v641 = vadd.f32 0.0, %v640
  %v642 = vpop.f32.mrb[0].mxu0
  %v643 = vpop.f32.mrb[0].mxu0
  %v644 = vadd.f32 0.0, %v643
  %v645 = vpop.f32.mrb[0].mxu0
  %646 = vdwg.mxu0
  %647 = vrot.lane.b32.xlu0 %v393, 96
  %v648 = vpop.permute.xlu0 %647
  %649 = vrot.lane.b32.xlu0 %v394, 96
  %v650 = vpop.permute.xlu0 %649
  %v652 = vsel %vm396, %v648, 0
  %v655 = vsel %vm396, %v650, 0
  %657 = vmatprep.subr.bf16.mxu0 0
  %658 = vmatpush1.bf16.xpose.msra.mxu0 %v655
  %659 = vmatprep.subr.bf16.mxu0 0
  %660 = vmatpush1.bf16.xpose.msra.mxu0 0
  %661 = vmatprep.subr.bf16.mxu0 0
  %662 = vmatpush1.bf16.xpose.msra.mxu0 0
  %663 = vmatprep.subr.bf16.mxu0 0
  %664 = vmatpush1.bf16.xpose.msra.mxu0 0
  %665 = vmatprep.subr.bf16.mxu0 0
  %666 = vmatpush1.bf16.xpose.msra.mxu0 0
  %667 = vmatprep.subr.bf16.mxu0 0
  %668 = vmatpush1.bf16.xpose.msra.mxu0 0
  %669 = vmatprep.subr.bf16.mxu0 0
  %670 = vmatpush1.bf16.xpose.msra.mxu0 0
  %671 = vmatprep.subr.bf16.mxu0 0
  %672 = vmatpush1.bf16.xpose.msra.mxu0 0
  %673 = vmatprep.subr.bf16.mxu0 0
  %674 = vmatpush1.bf16.xpose.msra.mxu0 0
  %675 = vmatprep.subr.bf16.mxu0 0
  %676 = vmatpush1.bf16.xpose.msra.mxu0 0
  %677 = vmatprep.subr.bf16.mxu0 0
  %678 = vmatpush1.bf16.xpose.msra.mxu0 0
  %679 = vmatprep.subr.bf16.mxu0 0
  %680 = vmatpush1.bf16.xpose.msra.mxu0 0
  %681 = vmatprep.subr.bf16.mxu0 0
  %682 = vmatpush1.bf16.xpose.msra.mxu0 0
  %683 = vmatprep.subr.bf16.mxu0 0
  %684 = vmatpush1.bf16.xpose.msra.mxu0 0
  %685 = vmatprep.subr.bf16.mxu0 0
  %686 = vmatpush1.bf16.xpose.msra.mxu0 0
  %687 = vmatprep.subr.bf16.mxu0 0
  %688 = vmatpush1.bf16.xpose.msra.mxu0 0
  %689 = vmatprep.mubr.bf16.mxu0 0
  %690 = vmatmul.mubr.bf16.gmra.mrb[0].mxu0 %v652
  %v691 = vpop.f32.mrb[0].mxu0
  %v692 = vadd.f32 %v63, %v691
  %v693 = vpop.f32.mrb[0].mxu0
  %v694 = vpop.f32.mrb[0].mxu0
  %v695 = vadd.f32 %v64, %v694
  %v696 = vpop.f32.mrb[0].mxu0
  %697 = vdwg.mxu0
  %v698 = vsel %vm444, %v692, -inf
  %699 = vmax.xlane.f32.xlu0 %v698
  %v700 = vpop.xlane.xlu0 %699
  %v701 = vsel %vm448, %v695, -inf
  %702 = vmax.xlane.f32.xlu0 %v701
  %v703 = vpop.xlane.xlu0 %702
  %v704 = vsub.f32 %v692, %v700
  %v705 = vsub.f32 %v695, %v703
  %v706 = vmul.f32 %v704, 1.442695
  %v707 = vpow.pop %v706
  %v708 = vmul.f32 %v705, 1.442695
  %v709 = vpow.pop %v708
  %v710 = vsel %vm444, %v707, 0.0
  %711 = vadd.xlane.f32.xlu0 %v710
  %v712 = vpop.xlane.xlu0 %711
  %v713 = vsel %vm448, %v709, 0.0
  %714 = vadd.xlane.f32.xlu0 %v713
  %v715 = vpop.xlane.xlu0 %714
  %v716 = vrcp.pop %v712
  %v717 = vmul.f32 1.0, %v716
  %v718 = vrcp.pop %v715
  %v719 = vmul.f32 1.0, %v718
  %v720 = vmul.f32 %v707, %v717
  %v721 = vmul.f32 %v709, %v719
  %v722 = vpack.c.bf16 %v721, %v720
  %723 = vrot.lane.b32.xlu0 %v395, 96
  %v724 = vpop.permute.xlu0 %723
  %v726 = vsel %vm444, %v722, 0
  %v729 = vsel %vm474, %v724, 0
  %731 = vmatprep.subr.bf16.mxu0 0
  %732 = vmatpush1.bf16.msra.mxu0 %v729
  %733 = vmatprep.subr.bf16.mxu0 0
  %734 = vmatpush1.bf16.msra.mxu0 0
  %735 = vmatprep.subr.bf16.mxu0 0
  %736 = vmatpush1.bf16.msra.mxu0 0
  %737 = vmatprep.subr.bf16.mxu0 0
  %738 = vmatpush1.bf16.msra.mxu0 0
  %739 = vmatprep.subr.bf16.mxu0 0
  %740 = vmatpush1.bf16.msra.mxu0 0
  %741 = vmatprep.subr.bf16.mxu0 0
  %742 = vmatpush1.bf16.msra.mxu0 0
  %743 = vmatprep.subr.bf16.mxu0 0
  %744 = vmatpush1.bf16.msra.mxu0 0
  %745 = vmatprep.subr.bf16.mxu0 0
  %746 = vmatpush1.bf16.msra.mxu0 0
  %747 = vmatprep.subr.bf16.mxu0 0
  %748 = vmatpush1.bf16.msra.mxu0 0
  %749 = vmatprep.subr.bf16.mxu0 0
  %750 = vmatpush1.bf16.msra.mxu0 0
  %751 = vmatprep.subr.bf16.mxu0 0
  %752 = vmatpush1.bf16.msra.mxu0 0
  %753 = vmatprep.subr.bf16.mxu0 0
  %754 = vmatpush1.bf16.msra.mxu0 0
  %755 = vmatprep.subr.bf16.mxu0 0
  %756 = vmatpush1.bf16.msra.mxu0 0
  %757 = vmatprep.subr.bf16.mxu0 0
  %758 = vmatpush1.bf16.msra.mxu0 0
  %759 = vmatprep.subr.bf16.mxu0 0
  %760 = vmatpush1.bf16.msra.mxu0 0
  %761 = vmatprep.subr.bf16.mxu0 0
  %762 = vmatpush1.bf16.msra.mxu0 0
  %763 = vmatprep.mubr.bf16.mxu0 0
  %764 = vmatmul.mubr.bf16.gmra.mrb[0].mxu0 %v726
  %v765 = vpop.f32.mrb[0].mxu0
  %v766 = vadd.f32 0.0, %v765
  %v767 = vpop.f32.mrb[0].mxu0
  %v768 = vpop.f32.mrb[0].mxu0
  %v769 = vadd.f32 0.0, %v768
  %v770 = vpop.f32.mrb[0].mxu0
  %771 = vdwg.mxu0
  %772 = vrot.lane.b32.xlu0 %v393, 80
  %v773 = vpop.permute.xlu0 %772
  %774 = vrot.lane.b32.xlu0 %v394, 80
  %v775 = vpop.permute.xlu0 %774
  %v777 = vsel %vm396, %v773, 0
  %v780 = vsel %vm396, %v775, 0
  %782 = vmatprep.subr.bf16.mxu0 0
  %783 = vmatpush1.bf16.xpose.msra.mxu0 %v780
  %784 = vmatprep.subr.bf16.mxu0 0
  %785 = vmatpush1.bf16.xpose.msra.mxu0 0
  %786 = vmatprep.subr.bf16.mxu0 0
  %787 = vmatpush1.bf16.xpose.msra.mxu0 0
  %788 = vmatprep.subr.bf16.mxu0 0
  %789 = vmatpush1.bf16.xpose.msra.mxu0 0
  %790 = vmatprep.subr.bf16.mxu0 0
  %791 = vmatpush1.bf16.xpose.msra.mxu0 0
  %792 = vmatprep.subr.bf16.mxu0 0
  %793 = vmatpush1.bf16.xpose.msra.mxu0 0
  %794 = vmatprep.subr.bf16.mxu0 0
  %795 = vmatpush1.bf16.xpose.msra.mxu0 0
  %796 = vmatprep.subr.bf16.mxu0 0
  %797 = vmatpush1.bf16.xpose.msra.mxu0 0
  %798 = vmatprep.subr.bf16.mxu0 0
  %799 = vmatpush1.bf16.xpose.msra.mxu0 0
  %800 = vmatprep.subr.bf16.mxu0 0
  %801 = vmatpush1.bf16.xpose.msra.mxu0 0
  %802 = vmatprep.subr.bf16.mxu0 0
  %803 = vmatpush1.bf16.xpose.msra.mxu0 0
  %804 = vmatprep.subr.bf16.mxu0 0
  %805 = vmatpush1.bf16.xpose.msra.mxu0 0
  %806 = vmatprep.subr.bf16.mxu0 0
  %807 = vmatpush1.bf16.xpose.msra.mxu0 0
  %808 = vmatprep.subr.bf16.mxu0 0
  %809 = vmatpush1.bf16.xpose.msra.mxu0 0
  %810 = vmatprep.subr.bf16.mxu0 0
  %811 = vmatpush1.bf16.xpose.msra.mxu0 0
  %812 = vmatprep.subr.bf16.mxu0 0
  %813 = vmatpush1.bf16.xpose.msra.mxu0 0
  %814 = vmatprep.mubr.bf16.mxu0 0
  %815 = vmatmul.mubr.bf16.gmra.mrb[0].mxu0 %v777
  %v816 = vpop.f32.mrb[0].mxu0
  %v817 = vadd.f32 %v63, %v816
  %v818 = vpop.f32.mrb[0].mxu0
  %v819 = vpop.f32.mrb[0].mxu0
  %v820 = vadd.f32 %v64, %v819
  %v821 = vpop.f32.mrb[0].mxu0
  %822 = vdwg.mxu0
  %v823 = vsel %vm444, %v817, -inf
  %824 = vmax.xlane.f32.xlu0 %v823
  %v825 = vpop.xlane.xlu0 %824
  %v826 = vsel %vm448, %v820, -inf
  %827 = vmax.xlane.f32.xlu0 %v826
  %v828 = vpop.xlane.xlu0 %827
  %v829 = vsub.f32 %v817, %v825
  %v830 = vsub.f32 %v820, %v828
  %v831 = vmul.f32 %v829, 1.442695
  %v832 = vpow.pop %v831
  %v833 = vmul.f32 %v830, 1.442695
  %v834 = vpow.pop %v833
  %v835 = vsel %vm444, %v832, 0.0
  %836 = vadd.xlane.f32.xlu0 %v835
  %v837 = vpop.xlane.xlu0 %836
  %v838 = vsel %vm448, %v834, 0.0
  %839 = vadd.xlane.f32.xlu0 %v838
  %v840 = vpop.xlane.xlu0 %839
  %v841 = vrcp.pop %v837
  %v842 = vmul.f32 1.0, %v841
  %v843 = vrcp.pop %v840
  %v844 = vmul.f32 1.0, %v843
  %v845 = vmul.f32 %v832, %v842
  %v846 = vmul.f32 %v834, %v844
  %v847 = vpack.c.bf16 %v846, %v845
  %848 = vrot.lane.b32.xlu0 %v395, 80
  %v849 = vpop.permute.xlu0 %848
  %v851 = vsel %vm444, %v847, 0
  %v854 = vsel %vm474, %v849, 0
  %856 = vmatprep.subr.bf16.mxu0 0
  %857 = vmatpush1.bf16.msra.mxu0 %v854
  %858 = vmatprep.subr.bf16.mxu0 0
  %859 = vmatpush1.bf16.msra.mxu0 0
  %860 = vmatprep.subr.bf16.mxu0 0
  %861 = vmatpush1.bf16.msra.mxu0 0
  %862 = vmatprep.subr.bf16.mxu0 0
  %863 = vmatpush1.bf16.msra.mxu0 0
  %864 = vmatprep.subr.bf16.mxu0 0
  %865 = vmatpush1.bf16.msra.mxu0 0
  %866 = vmatprep.subr.bf16.mxu0 0
  %867 = vmatpush1.bf16.msra.mxu0 0
  %868 = vmatprep.subr.bf16.mxu0 0
  %869 = vmatpush1.bf16.msra.mxu0 0
  %870 = vmatprep.subr.bf16.mxu0 0
  %871 = vmatpush1.bf16.msra.mxu0 0
  %872 = vmatprep.subr.bf16.mxu0 0
  %873 = vmatpush1.bf16.msra.mxu0 0
  %874 = vmatprep.subr.bf16.mxu0 0
  %875 = vmatpush1.bf16.msra.mxu0 0
  %876 = vmatprep.subr.bf16.mxu0 0
  %877 = vmatpush1.bf16.msra.mxu0 0
  %878 = vmatprep.subr.bf16.mxu0 0
  %879 = vmatpush1.bf16.msra.mxu0 0
  %880 = vmatprep.subr.bf16.mxu0 0
  %881 = vmatpush1.bf16.msra.mxu0 0
  %882 = vmatprep.subr.bf16.mxu0 0
  %883 = vmatpush1.bf16.msra.mxu0 0
  %884 = vmatprep.subr.bf16.mxu0 0
  %885 = vmatpush1.bf16.msra.mxu0 0
  %886 = vmatprep.subr.bf16.mxu0 0
  %887 = vmatpush1.bf16.msra.mxu0 0
  %888 = vmatprep.mubr.bf16.mxu0 0
  %889 = vmatmul.mubr.bf16.gmra.mrb[0].mxu0 %v851
  %v890 = vpop.f32.mrb[0].mxu0
  %v891 = vadd.f32 0.0, %v890
  %v892 = vpop.f32.mrb[0].mxu0
  %v893 = vpop.f32.mrb[0].mxu0
  %v894 = vadd.f32 0.0, %v893
  %v895 = vpop.f32.mrb[0].mxu0
  %896 = vdwg.mxu0
  %897 = vrot.lane.b32.xlu0 %v393, 64
  %v898 = vpop.permute.xlu0 %897
  %899 = vrot.lane.b32.xlu0 %v394, 64
  %v900 = vpop.permute.xlu0 %899
  %v902 = vsel %vm396, %v898, 0
  %v905 = vsel %vm396, %v900, 0
  %907 = vmatprep.subr.bf16.mxu0 0
  %908 = vmatpush1.bf16.xpose.msra.mxu0 %v905
  %909 = vmatprep.subr.bf16.mxu0 0
  %910 = vmatpush1.bf16.xpose.msra.mxu0 0
  %911 = vmatprep.subr.bf16.mxu0 0
  %912 = vmatpush1.bf16.xpose.msra.mxu0 0
  %913 = vmatprep.subr.bf16.mxu0 0
  %914 = vmatpush1.bf16.xpose.msra.mxu0 0
  %915 = vmatprep.subr.bf16.mxu0 0
  %916 = vmatpush1.bf16.xpose.msra.mxu0 0
  %917 = vmatprep.subr.bf16.mxu0 0
  %918 = vmatpush1.bf16.xpose.msra.mxu0 0
  %919 = vmatprep.subr.bf16.mxu0 0
  %920 = vmatpush1.bf16.xpose.msra.mxu0 0
  %921 = vmatprep.subr.bf16.mxu0 0
  %922 = vmatpush1.bf16.xpose.msra.mxu0 0
  %923 = vmatprep.subr.bf16.mxu0 0
  %924 = vmatpush1.bf16.xpose.msra.mxu0 0
  %925 = vmatprep.subr.bf16.mxu0 0
  %926 = vmatpush1.bf16.xpose.msra.mxu0 0
  %927 = vmatprep.subr.bf16.mxu0 0
  %928 = vmatpush1.bf16.xpose.msra.mxu0 0
  %929 = vmatprep.subr.bf16.mxu0 0
  %930 = vmatpush1.bf16.xpose.msra.mxu0 0
  %931 = vmatprep.subr.bf16.mxu0 0
  %932 = vmatpush1.bf16.xpose.msra.mxu0 0
  %933 = vmatprep.subr.bf16.mxu0 0
  %934 = vmatpush1.bf16.xpose.msra.mxu0 0
  %935 = vmatprep.subr.bf16.mxu0 0
  %936 = vmatpush1.bf16.xpose.msra.mxu0 0
  %937 = vmatprep.subr.bf16.mxu0 0
  %938 = vmatpush1.bf16.xpose.msra.mxu0 0
  %939 = vmatprep.mubr.bf16.mxu0 0
  %940 = vmatmul.mubr.bf16.gmra.mrb[0].mxu0 %v902
  %v941 = vpop.f32.mrb[0].mxu0
  %v942 = vadd.f32 %v63, %v941
  %v943 = vpop.f32.mrb[0].mxu0
  %v944 = vpop.f32.mrb[0].mxu0
  %v945 = vadd.f32 %v64, %v944
  %v946 = vpop.f32.mrb[0].mxu0
  %947 = vdwg.mxu0
  %v948 = vsel %vm444, %v942, -inf
  %949 = vmax.xlane.f32.xlu0 %v948
  %v950 = vpop.xlane.xlu0 %949
  %v951 = vsel %vm448, %v945, -inf
  %952 = vmax.xlane.f32.xlu0 %v951
  %v953 = vpop.xlane.xlu0 %952
  %v954 = vsub.f32 %v942, %v950
  %v955 = vsub.f32 %v945, %v953
  %v956 = vmul.f32 %v954, 1.442695
  %v957 = vpow.pop %v956
  %v958 = vmul.f32 %v955, 1.442695
  %v959 = vpow.pop %v958
  %v960 = vsel %vm444, %v957, 0.0
  %961 = vadd.xlane.f32.xlu0 %v960
  %v962 = vpop.xlane.xlu0 %961
  %v963 = vsel %vm448, %v959, 0.0
  %964 = vadd.xlane.f32.xlu0 %v963
  %v965 = vpop.xlane.xlu0 %964
  %v966 = vrcp.pop %v962
  %v967 = vmul.f32 1.0, %v966
  %v968 = vrcp.pop %v965
  %v969 = vmul.f32 1.0, %v968
  %v970 = vmul.f32 %v957, %v967
  %v971 = vmul.f32 %v959, %v969
  %v972 = vpack.c.bf16 %v971, %v970
  %973 = vrot.lane.b32.xlu0 %v395, 64
  %v974 = vpop.permute.xlu0 %973
  %v976 = vsel %vm444, %v972, 0
  %v979 = vsel %vm474, %v974, 0
  %981 = vmatprep.subr.bf16.mxu0 0
  %982 = vmatpush1.bf16.msra.mxu0 %v979
  %983 = vmatprep.subr.bf16.mxu0 0
  %984 = vmatpush1.bf16.msra.mxu0 0
  %985 = vmatprep.subr.bf16.mxu0 0
  %986 = vmatpush1.bf16.msra.mxu0 0
  %987 = vmatprep.subr.bf16.mxu0 0
  %988 = vmatpush1.bf16.msra.mxu0 0
  %989 = vmatprep.subr.bf16.mxu0 0
  %990 = vmatpush1.bf16.msra.mxu0 0
  %991 = vmatprep.subr.bf16.mxu0 0
  %992 = vmatpush1.bf16.msra.mxu0 0
  %993 = vmatprep.subr.bf16.mxu0 0
  %994 = vmatpush1.bf16.msra.mxu0 0
  %995 = vmatprep.subr.bf16.mxu0 0
  %996 = vmatpush1.bf16.msra.mxu0 0
  %997 = vmatprep.subr.bf16.mxu0 0
  %998 = vmatpush1.bf16.msra.mxu0 0
  %999 = vmatprep.subr.bf16.mxu0 0
  %1000 = vmatpush1.bf16.msra.mxu0 0
  %1001 = vmatprep.subr.bf16.mxu0 0
  %1002 = vmatpush1.bf16.msra.mxu0 0
  %1003 = vmatprep.subr.bf16.mxu0 0
  %1004 = vmatpush1.bf16.msra.mxu0 0
  %1005 = vmatprep.subr.bf16.mxu0 0
  %1006 = vmatpush1.bf16.msra.mxu0 0
  %1007 = vmatprep.subr.bf16.mxu0 0
  %1008 = vmatpush1.bf16.msra.mxu0 0
  %1009 = vmatprep.subr.bf16.mxu0 0
  %1010 = vmatpush1.bf16.msra.mxu0 0
  %1011 = vmatprep.subr.bf16.mxu0 0
  %1012 = vmatpush1.bf16.msra.mxu0 0
  %1013 = vmatprep.mubr.bf16.mxu0 0
  %1014 = vmatmul.mubr.bf16.gmra.mrb[0].mxu0 %v976
  %v1015 = vpop.f32.mrb[0].mxu0
  %v1016 = vadd.f32 0.0, %v1015
  %v1017 = vpop.f32.mrb[0].mxu0
  %v1018 = vpop.f32.mrb[0].mxu0
  %v1019 = vadd.f32 0.0, %v1018
  %v1020 = vpop.f32.mrb[0].mxu0
  %1021 = vdwg.mxu0
  %1022 = vrot.lane.b32.xlu0 %v393, 48
  %v1023 = vpop.permute.xlu0 %1022
  %1024 = vrot.lane.b32.xlu0 %v394, 48
  %v1025 = vpop.permute.xlu0 %1024
  %v1027 = vsel %vm396, %v1023, 0
  %v1030 = vsel %vm396, %v1025, 0
  %1032 = vmatprep.subr.bf16.mxu0 0
  %1033 = vmatpush1.bf16.xpose.msra.mxu0 %v1030
  %1034 = vmatprep.subr.bf16.mxu0 0
  %1035 = vmatpush1.bf16.xpose.msra.mxu0 0
  %1036 = vmatprep.subr.bf16.mxu0 0
  %1037 = vmatpush1.bf16.xpose.msra.mxu0 0
  %1038 = vmatprep.subr.bf16.mxu0 0
  %1039 = vmatpush1.bf16.xpose.msra.mxu0 0
  %1040 = vmatprep.subr.bf16.mxu0 0
  %1041 = vmatpush1.bf16.xpose.msra.mxu0 0
  %1042 = vmatprep.subr.bf16.mxu0 0
  %1043 = vmatpush1.bf16.xpose.msra.mxu0 0
  %1044 = vmatprep.subr.bf16.mxu0 0
  %1045 = vmatpush1.bf16.xpose.msra.mxu0 0
  %1046 = vmatprep.subr.bf16.mxu0 0
  %1047 = vmatpush1.bf16.xpose.msra.mxu0 0
  %1048 = vmatprep.subr.bf16.mxu0 0
  %1049 = vmatpush1.bf16.xpose.msra.mxu0 0
  %1050 = vmatprep.subr.bf16.mxu0 0
  %1051 = vmatpush1.bf16.xpose.msra.mxu0 0
  %1052 = vmatprep.subr.bf16.mxu0 0
  %1053 = vmatpush1.bf16.xpose.msra.mxu0 0
  %1054 = vmatprep.subr.bf16.mxu0 0
  %1055 = vmatpush1.bf16.xpose.msra.mxu0 0
  %1056 = vmatprep.subr.bf16.mxu0 0
  %1057 = vmatpush1.bf16.xpose.msra.mxu0 0
  %1058 = vmatprep.subr.bf16.mxu0 0
  %1059 = vmatpush1.bf16.xpose.msra.mxu0 0
  %1060 = vmatprep.subr.bf16.mxu0 0
  %1061 = vmatpush1.bf16.xpose.msra.mxu0 0
  %1062 = vmatprep.subr.bf16.mxu0 0
  %1063 = vmatpush1.bf16.xpose.msra.mxu0 0
  %1064 = vmatprep.mubr.bf16.mxu0 0
  %1065 = vmatmul.mubr.bf16.gmra.mrb[0].mxu0 %v1027
  %v1066 = vpop.f32.mrb[0].mxu0
  %v1067 = vadd.f32 %v63, %v1066
  %v1068 = vpop.f32.mrb[0].mxu0
  %v1069 = vpop.f32.mrb[0].mxu0
  %v1070 = vadd.f32 %v64, %v1069
  %v1071 = vpop.f32.mrb[0].mxu0
  %1072 = vdwg.mxu0
  %v1073 = vsel %vm444, %v1067, -inf
  %1074 = vmax.xlane.f32.xlu0 %v1073
  %v1075 = vpop.xlane.xlu0 %1074
  %v1076 = vsel %vm448, %v1070, -inf
  %1077 = vmax.xlane.f32.xlu0 %v1076
  %v1078 = vpop.xlane.xlu0 %1077
  %v1079 = vsub.f32 %v1067, %v1075
  %v1080 = vsub.f32 %v1070, %v1078
  %v1081 = vmul.f32 %v1079, 1.442695
  %v1082 = vpow.pop %v1081
  %v1083 = vmul.f32 %v1080, 1.442695
  %v1084 = vpow.pop %v1083
  %v1085 = vsel %vm444, %v1082, 0.0
  %1086 = vadd.xlane.f32.xlu0 %v1085
  %v1087 = vpop.xlane.xlu0 %1086
  %v1088 = vsel %vm448, %v1084, 0.0
  %1089 = vadd.xlane.f32.xlu0 %v1088
  %v1090 = vpop.xlane.xlu0 %1089
  %v1091 = vrcp.pop %v1087
  %v1092 = vmul.f32 1.0, %v1091
  %v1093 = vrcp.pop %v1090
  %v1094 = vmul.f32 1.0, %v1093
  %v1095 = vmul.f32 %v1082, %v1092
  %v1096 = vmul.f32 %v1084, %v1094
  %v1097 = vpack.c.bf16 %v1096, %v1095
  %1098 = vrot.lane.b32.xlu0 %v395, 48
  %v1099 = vpop.permute.xlu0 %1098
  %v1101 = vsel %vm444, %v1097, 0
  %v1104 = vsel %vm474, %v1099, 0
  %1106 = vmatprep.subr.bf16.mxu0 0
  %1107 = vmatpush1.bf16.msra.mxu0 %v1104
  %1108 = vmatprep.subr.bf16.mxu0 0
  %1109 = vmatpush1.bf16.msra.mxu0 0
  %1110 = vmatprep.subr.bf16.mxu0 0
  %1111 = vmatpush1.bf16.msra.mxu0 0
  %1112 = vmatprep.subr.bf16.mxu0 0
  %1113 = vmatpush1.bf16.msra.mxu0 0
  %1114 = vmatprep.subr.bf16.mxu0 0
  %1115 = vmatpush1.bf16.msra.mxu0 0
  %1116 = vmatprep.subr.bf16.mxu0 0
  %1117 = vmatpush1.bf16.msra.mxu0 0
  %1118 = vmatprep.subr.bf16.mxu0 0
  %1119 = vmatpush1.bf16.msra.mxu0 0
  %1120 = vmatprep.subr.bf16.mxu0 0
  %1121 = vmatpush1.bf16.msra.mxu0 0
  %1122 = vmatprep.subr.bf16.mxu0 0
  %1123 = vmatpush1.bf16.msra.mxu0 0
  %1124 = vmatprep.subr.bf16.mxu0 0
  %1125 = vmatpush1.bf16.msra.mxu0 0
  %1126 = vmatprep.subr.bf16.mxu0 0
  %1127 = vmatpush1.bf16.msra.mxu0 0
  %1128 = vmatprep.subr.bf16.mxu0 0
  %1129 = vmatpush1.bf16.msra.mxu0 0
  %1130 = vmatprep.subr.bf16.mxu0 0
  %1131 = vmatpush1.bf16.msra.mxu0 0
  %1132 = vmatprep.subr.bf16.mxu0 0
  %1133 = vmatpush1.bf16.msra.mxu0 0
  %1134 = vmatprep.subr.bf16.mxu0 0
  %1135 = vmatpush1.bf16.msra.mxu0 0
  %1136 = vmatprep.subr.bf16.mxu0 0
  %1137 = vmatpush1.bf16.msra.mxu0 0
  %1138 = vmatprep.mubr.bf16.mxu0 0
  %1139 = vmatmul.mubr.bf16.gmra.mrb[0].mxu0 %v1101
  %v1140 = vpop.f32.mrb[0].mxu0
  %v1141 = vadd.f32 0.0, %v1140
  %v1142 = vpop.f32.mrb[0].mxu0
  %v1143 = vpop.f32.mrb[0].mxu0
  %v1144 = vadd.f32 0.0, %v1143
  %v1145 = vpop.f32.mrb[0].mxu0
  %1146 = vdwg.mxu0
  %1147 = vrot.lane.b32.xlu0 %v393, 32
  %v1148 = vpop.permute.xlu0 %1147
  %1149 = vrot.lane.b32.xlu0 %v394, 32
  %v1150 = vpop.permute.xlu0 %1149
  %v1152 = vsel %vm396, %v1148, 0
  %v1155 = vsel %vm396, %v1150, 0
  %1157 = vmatprep.subr.bf16.mxu0 0
  %1158 = vmatpush1.bf16.xpose.msra.mxu0 %v1155
  %1159 = vmatprep.subr.bf16.mxu0 0
  %1160 = vmatpush1.bf16.xpose.msra.mxu0 0
  %1161 = vmatprep.subr.bf16.mxu0 0
  %1162 = vmatpush1.bf16.xpose.msra.mxu0 0
  %1163 = vmatprep.subr.bf16.mxu0 0
  %1164 = vmatpush1.bf16.xpose.msra.mxu0 0
  %1165 = vmatprep.subr.bf16.mxu0 0
  %1166 = vmatpush1.bf16.xpose.msra.mxu0 0
  %1167 = vmatprep.subr.bf16.mxu0 0
  %1168 = vmatpush1.bf16.xpose.msra.mxu0 0
  %1169 = vmatprep.subr.bf16.mxu0 0
  %1170 = vmatpush1.bf16.xpose.msra.mxu0 0
  %1171 = vmatprep.subr.bf16.mxu0 0
  %1172 = vmatpush1.bf16.xpose.msra.mxu0 0
  %1173 = vmatprep.subr.bf16.mxu0 0
  %1174 = vmatpush1.bf16.xpose.msra.mxu0 0
  %1175 = vmatprep.subr.bf16.mxu0 0
  %1176 = vmatpush1.bf16.xpose.msra.mxu0 0
  %1177 = vmatprep.subr.bf16.mxu0 0
  %1178 = vmatpush1.bf16.xpose.msra.mxu0 0
  %1179 = vmatprep.subr.bf16.mxu0 0
  %1180 = vmatpush1.bf16.xpose.msra.mxu0 0
  %1181 = vmatprep.subr.bf16.mxu0 0
  %1182 = vmatpush1.bf16.xpose.msra.mxu0 0
  %1183 = vmatprep.subr.bf16.mxu0 0
  %1184 = vmatpush1.bf16.xpose.msra.mxu0 0
  %1185 = vmatprep.subr.bf16.mxu0 0
  %1186 = vmatpush1.bf16.xpose.msra.mxu0 0
  %1187 = vmatprep.subr.bf16.mxu0 0
  %1188 = vmatpush1.bf16.xpose.msra.mxu0 0
  %1189 = vmatprep.mubr.bf16.mxu0 0
  %1190 = vmatmul.mubr.bf16.gmra.mrb[0].mxu0 %v1152
  %v1191 = vpop.f32.mrb[0].mxu0
  %v1192 = vadd.f32 %v63, %v1191
  %v1193 = vpop.f32.mrb[0].mxu0
  %v1194 = vpop.f32.mrb[0].mxu0
  %v1195 = vadd.f32 %v64, %v1194
  %v1196 = vpop.f32.mrb[0].mxu0
  %1197 = vdwg.mxu0
  %v1198 = vsel %vm444, %v1192, -inf
  %1199 = vmax.xlane.f32.xlu0 %v1198
  %v1200 = vpop.xlane.xlu0 %1199
  %v1201 = vsel %vm448, %v1195, -inf
  %1202 = vmax.xlane.f32.xlu0 %v1201
  %v1203 = vpop.xlane.xlu0 %1202
  %v1204 = vsub.f32 %v1192, %v1200
  %v1205 = vsub.f32 %v1195, %v1203
  %v1206 = vmul.f32 %v1204, 1.442695
  %v1207 = vpow.pop %v1206
  %v1208 = vmul.f32 %v1205, 1.442695
  %v1209 = vpow.pop %v1208
  %v1210 = vsel %vm444, %v1207, 0.0
  %1211 = vadd.xlane.f32.xlu0 %v1210
  %v1212 = vpop.xlane.xlu0 %1211
  %v1213 = vsel %vm448, %v1209, 0.0
  %1214 = vadd.xlane.f32.xlu0 %v1213
  %v1215 = vpop.xlane.xlu0 %1214
  %v1216 = vrcp.pop %v1212
  %v1217 = vmul.f32 1.0, %v1216
  %v1218 = vrcp.pop %v1215
  %v1219 = vmul.f32 1.0, %v1218
  %v1220 = vmul.f32 %v1207, %v1217
  %v1221 = vmul.f32 %v1209, %v1219
  %v1222 = vpack.c.bf16 %v1221, %v1220
  %1223 = vrot.lane.b32.xlu0 %v395, 32
  %v1224 = vpop.permute.xlu0 %1223
  %v1226 = vsel %vm444, %v1222, 0
  %v1229 = vsel %vm474, %v1224, 0
  %1231 = vmatprep.subr.bf16.mxu0 0
  %1232 = vmatpush1.bf16.msra.mxu0 %v1229
  %1233 = vmatprep.subr.bf16.mxu0 0
  %1234 = vmatpush1.bf16.msra.mxu0 0
  %1235 = vmatprep.subr.bf16.mxu0 0
  %1236 = vmatpush1.bf16.msra.mxu0 0
  %1237 = vmatprep.subr.bf16.mxu0 0
  %1238 = vmatpush1.bf16.msra.mxu0 0
  %1239 = vmatprep.subr.bf16.mxu0 0
  %1240 = vmatpush1.bf16.msra.mxu0 0
  %1241 = vmatprep.subr.bf16.mxu0 0
  %1242 = vmatpush1.bf16.msra.mxu0 0
  %1243 = vmatprep.subr.bf16.mxu0 0
  %1244 = vmatpush1.bf16.msra.mxu0 0
  %1245 = vmatprep.subr.bf16.mxu0 0
  %1246 = vmatpush1.bf16.msra.mxu0 0
  %1247 = vmatprep.subr.bf16.mxu0 0
  %1248 = vmatpush1.bf16.msra.mxu0 0
  %1249 = vmatprep.subr.bf16.mxu0 0
  %1250 = vmatpush1.bf16.msra.mxu0 0
  %1251 = vmatprep.subr.bf16.mxu0 0
  %1252 = vmatpush1.bf16.msra.mxu0 0
  %1253 = vmatprep.subr.bf16.mxu0 0
  %1254 = vmatpush1.bf16.msra.mxu0 0
  %1255 = vmatprep.subr.bf16.mxu0 0
  %1256 = vmatpush1.bf16.msra.mxu0 0
  %1257 = vmatprep.subr.bf16.mxu0 0
  %1258 = vmatpush1.bf16.msra.mxu0 0
  %1259 = vmatprep.subr.bf16.mxu0 0
  %1260 = vmatpush1.bf16.msra.mxu0 0
  %1261 = vmatprep.subr.bf16.mxu0 0
  %1262 = vmatpush1.bf16.msra.mxu0 0
  %1263 = vmatprep.mubr.bf16.mxu0 0
  %1264 = vmatmul.mubr.bf16.gmra.mrb[0].mxu0 %v1226
  %v1265 = vpop.f32.mrb[0].mxu0
  %v1266 = vadd.f32 0.0, %v1265
  %v1267 = vpop.f32.mrb[0].mxu0
  %v1268 = vpop.f32.mrb[0].mxu0
  %v1269 = vadd.f32 0.0, %v1268
  %v1270 = vpop.f32.mrb[0].mxu0
  %1271 = vdwg.mxu0
  %1272 = vrot.lane.b32.xlu0 %v393, 16
  %v1273 = vpop.permute.xlu0 %1272
  %1274 = vrot.lane.b32.xlu0 %v394, 16
  %v1275 = vpop.permute.xlu0 %1274
  %v1277 = vsel %vm396, %v1273, 0
  %v1280 = vsel %vm396, %v1275, 0
  %1282 = vmatprep.subr.bf16.mxu0 0
  %1283 = vmatpush1.bf16.xpose.msra.mxu0 %v1280
  %1284 = vmatprep.subr.bf16.mxu0 0
  %1285 = vmatpush1.bf16.xpose.msra.mxu0 0
  %1286 = vmatprep.subr.bf16.mxu0 0
  %1287 = vmatpush1.bf16.xpose.msra.mxu0 0
  %1288 = vmatprep.subr.bf16.mxu0 0
  %1289 = vmatpush1.bf16.xpose.msra.mxu0 0
  %1290 = vmatprep.subr.bf16.mxu0 0
  %1291 = vmatpush1.bf16.xpose.msra.mxu0 0
  %1292 = vmatprep.subr.bf16.mxu0 0
  %1293 = vmatpush1.bf16.xpose.msra.mxu0 0
  %1294 = vmatprep.subr.bf16.mxu0 0
  %1295 = vmatpush1.bf16.xpose.msra.mxu0 0
  %1296 = vmatprep.subr.bf16.mxu0 0
  %1297 = vmatpush1.bf16.xpose.msra.mxu0 0
  %1298 = vmatprep.subr.bf16.mxu0 0
  %1299 = vmatpush1.bf16.xpose.msra.mxu0 0
  %1300 = vmatprep.subr.bf16.mxu0 0
  %1301 = vmatpush1.bf16.xpose.msra.mxu0 0
  %1302 = vmatprep.subr.bf16.mxu0 0
  %1303 = vmatpush1.bf16.xpose.msra.mxu0 0
  %1304 = vmatprep.subr.bf16.mxu0 0
  %1305 = vmatpush1.bf16.xpose.msra.mxu0 0
  %1306 = vmatprep.subr.bf16.mxu0 0
  %1307 = vmatpush1.bf16.xpose.msra.mxu0 0
  %1308 = vmatprep.subr.bf16.mxu0 0
  %1309 = vmatpush1.bf16.xpose.msra.mxu0 0
  %1310 = vmatprep.subr.bf16.mxu0 0
  %1311 = vmatpush1.bf16.xpose.msra.mxu0 0
  %1312 = vmatprep.subr.bf16.mxu0 0
  %1313 = vmatpush1.bf16.xpose.msra.mxu0 0
  %1314 = vmatprep.mubr.bf16.mxu0 0
  %1315 = vmatmul.mubr.bf16.gmra.mrb[0].mxu0 %v1277
  %v1316 = vpop.f32.mrb[0].mxu0
  %v1317 = vadd.f32 %v63, %v1316
  %v1318 = vpop.f32.mrb[0].mxu0
  %v1319 = vpop.f32.mrb[0].mxu0
  %v1320 = vadd.f32 %v64, %v1319
  %v1321 = vpop.f32.mrb[0].mxu0
  %1322 = vdwg.mxu0
  %v1323 = vsel %vm444, %v1317, -inf
  %1324 = vmax.xlane.f32.xlu0 %v1323
  %v1325 = vpop.xlane.xlu0 %1324
  %v1326 = vsel %vm448, %v1320, -inf
  %1327 = vmax.xlane.f32.xlu0 %v1326
  %v1328 = vpop.xlane.xlu0 %1327
  %v1329 = vsub.f32 %v1317, %v1325
  %v1330 = vsub.f32 %v1320, %v1328
  %v1331 = vmul.f32 %v1329, 1.442695
  %v1332 = vpow.pop %v1331
  %v1333 = vmul.f32 %v1330, 1.442695
  %v1334 = vpow.pop %v1333
  %v1335 = vsel %vm444, %v1332, 0.0
  %1336 = vadd.xlane.f32.xlu0 %v1335
  %v1337 = vpop.xlane.xlu0 %1336
  %v1338 = vsel %vm448, %v1334, 0.0
  %1339 = vadd.xlane.f32.xlu0 %v1338
  %v1340 = vpop.xlane.xlu0 %1339
  %v1341 = vrcp.pop %v1337
  %v1342 = vmul.f32 1.0, %v1341
  %v1343 = vrcp.pop %v1340
  %v1344 = vmul.f32 1.0, %v1343
  %v1345 = vmul.f32 %v1332, %v1342
  %v1346 = vmul.f32 %v1334, %v1344
  %v1347 = vpack.c.bf16 %v1346, %v1345
  %1348 = vrot.lane.b32.xlu0 %v395, 16
  %v1349 = vpop.permute.xlu0 %1348
  %v1351 = vsel %vm444, %v1347, 0
  %v1354 = vsel %vm474, %v1349, 0
  %1356 = vmatprep.subr.bf16.mxu0 0
  %1357 = vmatpush1.bf16.msra.mxu0 %v1354
  %1358 = vmatprep.subr.bf16.mxu0 0
  %1359 = vmatpush1.bf16.msra.mxu0 0
  %1360 = vmatprep.subr.bf16.mxu0 0
  %1361 = vmatpush1.bf16.msra.mxu0 0
  %1362 = vmatprep.subr.bf16.mxu0 0
  %1363 = vmatpush1.bf16.msra.mxu0 0
  %1364 = vmatprep.subr.bf16.mxu0 0
  %1365 = vmatpush1.bf16.msra.mxu0 0
  %1366 = vmatprep.subr.bf16.mxu0 0
  %1367 = vmatpush1.bf16.msra.mxu0 0
  %1368 = vmatprep.subr.bf16.mxu0 0
  %1369 = vmatpush1.bf16.msra.mxu0 0
  %1370 = vmatprep.subr.bf16.mxu0 0
  %1371 = vmatpush1.bf16.msra.mxu0 0
  %1372 = vmatprep.subr.bf16.mxu0 0
  %1373 = vmatpush1.bf16.msra.mxu0 0
  %1374 = vmatprep.subr.bf16.mxu0 0
  %1375 = vmatpush1.bf16.msra.mxu0 0
  %1376 = vmatprep.subr.bf16.mxu0 0
  %1377 = vmatpush1.bf16.msra.mxu0 0
  %1378 = vmatprep.subr.bf16.mxu0 0
  %1379 = vmatpush1.bf16.msra.mxu0 0
  %1380 = vmatprep.subr.bf16.mxu0 0
  %1381 = vmatpush1.bf16.msra.mxu0 0
  %1382 = vmatprep.subr.bf16.mxu0 0
  %1383 = vmatpush1.bf16.msra.mxu0 0
  %1384 = vmatprep.subr.bf16.mxu0 0
  %1385 = vmatpush1.bf16.msra.mxu0 0
  %1386 = vmatprep.subr.bf16.mxu0 0
  %1387 = vmatpush1.bf16.msra.mxu0 0
  %1388 = vmatprep.mubr.bf16.mxu0 0
  %1389 = vmatmul.mubr.bf16.gmra.mrb[0].mxu0 %v1351
  %v1390 = vpop.f32.mrb[0].mxu0
  %v1391 = vadd.f32 0.0, %v1390
  %v1392 = vpop.f32.mrb[0].mxu0
  %v1393 = vpop.f32.mrb[0].mxu0
  %v1394 = vadd.f32 0.0, %v1393
  %v1395 = vpop.f32.mrb[0].mxu0
  %1396 = vdwg.mxu0
  %1399 = vrot.lane.b32.xlu0 %v641, 16
  %v1400 = vpop.permute.xlu0 %1399
  %1401 = vrot.lane.b32.xlu0 %v644, 16
  %v1402 = vpop.permute.xlu0 %1401
  %1407 = vrot.lane.b32.xlu0 %v766, 32
  %v1408 = vpop.permute.xlu0 %1407
  %1409 = vrot.lane.b32.xlu0 %v769, 32
  %v1410 = vpop.permute.xlu0 %1409
  %1415 = vrot.lane.b32.xlu0 %v891, 48
  %v1416 = vpop.permute.xlu0 %1415
  %1417 = vrot.lane.b32.xlu0 %v894, 48
  %v1418 = vpop.permute.xlu0 %1417
  %1423 = vrot.lane.b32.xlu0 %v1016, 64
  %v1424 = vpop.permute.xlu0 %1423
  %1425 = vrot.lane.b32.xlu0 %v1019, 64
  %v1426 = vpop.permute.xlu0 %1425
  %1431 = vrot.lane.b32.xlu0 %v1141, 80
  %v1432 = vpop.permute.xlu0 %1431
  %1433 = vrot.lane.b32.xlu0 %v1144, 80
  %v1434 = vpop.permute.xlu0 %1433
  %1439 = vrot.lane.b32.xlu0 %v1266, 96
  %v1440 = vpop.permute.xlu0 %1439
  %1441 = vrot.lane.b32.xlu0 %v1269, 96
  %v1442 = vpop.permute.xlu0 %1441
  %1447 = vrot.lane.b32.xlu0 %v1391, 112
  %v1448 = vpop.permute.xlu0 %1447
  %1449 = vrot.lane.b32.xlu0 %v1394, 112
  %v1450 = vpop.permute.xlu0 %1449
  %v1453 = vsel %vm396, %v513, %v1400
  %v1454 = vsel %vm396, %v516, %v1402
  %vm1455 = vcmask 261120
  %v1456 = vsel %vm1455, %v1453, %v1408
  %v1457 = vsel %vm1455, %v1454, %v1410
  %vm1458 = vcmask 392192
  %v1459 = vsel %vm1458, %v1456, %v1416
  %v1460 = vsel %vm1458, %v1457, %v1418
  %vm1461 = vcmask 523264
  %v1462 = vsel %vm1461, %v1459, %v1424
  %v1463 = vsel %vm1461, %v1460, %v1426
  %vm1464 = vcmask 654336
  %v1465 = vsel %vm1464, %v1462, %v1432
  %v1466 = vsel %vm1464, %v1463, %v1434
  %vm1467 = vcmask 785408
  %v1468 = vsel %vm1467, %v1465, %v1440
  %v1469 = vsel %vm1467, %v1466, %v1442
  %vm1470 = vcmask 916480
  %v1471 = vsel %vm1470, %v1468, %v1448
  %v1472 = vsel %vm1470, %v1469, %v1450
  %v1473 = vpack.c.bf16 %v1472, %v1471
  %v1474 = vld [vmem:[%s7] sm:$0xf]
  %v1475 = vld [vmem:[%s7 + $0x4] sm:$0xf]
  %v1476 = vld [vmem:[%s7 + $0x8] sm:$0xf]
  %v1477 = vld [vmem:[%s7 + $0xc] sm:$0xf]
  %v1478 = vld [vmem:[%s7 + $0x10] sm:$0xf]
  %v1479 = vld [vmem:[%s7 + $0x14] sm:$0xf]
  %v1480 = vld [vmem:[%s7 + $0x18] sm:$0xf]
  %v1481 = vld [vmem:[%s7 + $0x1c] sm:$0xf]
  %v1482 = vld [vmem:[%s7 + $0x20] sm:$0xf]
  %v1483 = vld [vmem:[%s7 + $0x24] sm:$0xf]
  %v1484 = vld [vmem:[%s7 + $0x28] sm:$0xf]
  %v1485 = vld [vmem:[%s7 + $0x2c] sm:$0xf]
  %v1486 = vld [vmem:[%s7 + $0x30] sm:$0xf]
  %v1487 = vld [vmem:[%s7 + $0x34] sm:$0xf]
  %v1488 = vld [vmem:[%s7 + $0x38] sm:$0xf]
  %v1489 = vld [vmem:[%s7 + $0x3c] sm:$0xf]
  %v1490 = vld [vmem:[%s8] sm:$0x1]
  %v1492 = vlaneseq
  %v1493 = vshrl.u32 %v1492, 7
  %v1494 = vsub.s32 0, %v1493
  %v1495 = vrot.slane %v1490, %v1494
  %v1513 = vunpack.c.l.b16 %v1474
  %v1514 = vunpack.c.l.b16 %v1475
  %v1515 = vunpack.c.l.b16 %v1476
  %v1516 = vunpack.c.l.b16 %v1477
  %v1517 = vunpack.c.l.b16 %v1478
  %v1518 = vunpack.c.l.b16 %v1479
  %v1519 = vunpack.c.l.b16 %v1480
  %v1520 = vunpack.c.l.b16 %v1481
  %v1521 = vunpack.c.l.b16 %v1482
  %v1522 = vunpack.c.l.b16 %v1483
  %v1523 = vunpack.c.l.b16 %v1484
  %v1524 = vunpack.c.l.b16 %v1485
  %v1525 = vunpack.c.l.b16 %v1486
  %v1526 = vunpack.c.l.b16 %v1487
  %v1527 = vunpack.c.l.b16 %v1488
  %v1528 = vunpack.c.l.b16 %v1489
  %v1529 = vpack.c.b16 %v1514, %v1513
  %v1530 = vpack.c.b16 %v1516, %v1515
  %v1531 = vpack.c.b16 %v1518, %v1517
  %v1532 = vpack.c.b16 %v1520, %v1519
  %v1533 = vpack.c.b16 %v1522, %v1521
  %v1534 = vpack.c.b16 %v1524, %v1523
  %v1535 = vpack.c.b16 %v1526, %v1525
  %v1536 = vpack.c.b16 %v1528, %v1527
  %1545 = vmatprep.subr.bf16.mxu0 0
  %1546 = vmatpush1.bf16.msra.mxu0 %v1529
  %1547 = vmatprep.subr.bf16.mxu0 0
  %1548 = vmatpush1.bf16.msra.mxu0 %v1530
  %1549 = vmatprep.subr.bf16.mxu0 0
  %1550 = vmatpush1.bf16.msra.mxu0 %v1531
  %1551 = vmatprep.subr.bf16.mxu0 0
  %1552 = vmatpush1.bf16.msra.mxu0 %v1532
  %1553 = vmatprep.subr.bf16.mxu0 0
  %1554 = vmatpush1.bf16.msra.mxu0 %v1533
  %1555 = vmatprep.subr.bf16.mxu0 0
  %1556 = vmatpush1.bf16.msra.mxu0 %v1534
  %1557 = vmatprep.subr.bf16.mxu0 0
  %1558 = vmatpush1.bf16.msra.mxu0 %v1535
  %1559 = vmatprep.subr.bf16.mxu0 0
  %1560 = vmatpush1.bf16.msra.mxu0 %v1536
  %1561 = vmatprep.subr.bf16.mxu0 0
  %1562 = vmatpush1.bf16.msra.mxu0 0
  %1563 = vmatprep.subr.bf16.mxu0 0
  %1564 = vmatpush1.bf16.msra.mxu0 0
  %1565 = vmatprep.subr.bf16.mxu0 0
  %1566 = vmatpush1.bf16.msra.mxu0 0
  %1567 = vmatprep.subr.bf16.mxu0 0
  %1568 = vmatpush1.bf16.msra.mxu0 0
  %1569 = vmatprep.subr.bf16.mxu0 0
  %1570 = vmatpush1.bf16.msra.mxu0 0
  %1571 = vmatprep.subr.bf16.mxu0 0
  %1572 = vmatpush1.bf16.msra.mxu0 0
  %1573 = vmatprep.subr.bf16.mxu0 0
  %1574 = vmatpush1.bf16.msra.mxu0 0
  %1575 = vmatprep.subr.bf16.mxu0 0
  %1576 = vmatpush1.bf16.msra.mxu0 0
  %1577 = vmatprep.mubr.bf16.mxu0 0
  %1578 = vmatmul.mubr.bf16.gmra.mrb[0].mxu0 %v1473
  %v1579 = vpop.f32.mrb[0].mxu0
  %v1580 = vadd.f32 %v1495, %v1579
  %v1581 = vpop.f32.mrb[0].mxu0
  %v1582 = vpop.f32.mrb[0].mxu0
  %v1583 = vadd.f32 %v1495, %v1582
  %v1584 = vpop.f32.mrb[0].mxu0
  %1585 = vdwg.mxu0
  %v1586 = vadd.f32 %v1580, %v127
  %v1587 = vadd.f32 %v1583, %v128
  %v1588 = vld [vmem:[%s9] sm:$0x1]
  %v1589 = vld [vmem:[%s10] sm:$0x1]
  %1590 = vadd.xlane.f32.xlu0 %v1586
  %v1591 = vpop.xlane.xlu0 %1590
  %v1592 = vsel %vm80, %v1587, 0.0
  %1593 = vadd.xlane.f32.xlu0 %v1592
  %v1594 = vpop.xlane.xlu0 %1593
  %v1595 = vrcp.pop 128.0
  %v1596 = vmul.f32 %v1591, %v1595
  %v1597 = vmul.f32 %v1594, %v1595
  %v1598 = vsub.f32 %v1586, %v1596
  %v1599 = vsub.f32 %v1587, %v1597
  %v1600 = vmul.f32 %v1598, %v1598
  %v1601 = vmul.f32 %v1599, %v1599
  %1602 = vadd.xlane.f32.xlu0 %v1600
  %v1603 = vpop.xlane.xlu0 %1602
  %v1604 = vsel %vm80, %v1601, 0.0
  %1605 = vadd.xlane.f32.xlu0 %v1604
  %v1606 = vpop.xlane.xlu0 %1605
  %v1607 = vmul.f32 %v1603, %v1595
  %v1608 = vmul.f32 %v1606, %v1595
  %v1609 = vadd.f32 %v1607, 1e-05
  %v1610 = vadd.f32 %v1608, 1e-05
  %v1611 = vrsqrt.pop %v1609
  %v1612 = vrsqrt.pop %v1610
  %v1613 = vmul.f32 %v1598, %v1611
  %v1614 = vmul.f32 %v1599, %v1612
  %v1616 = vlaneseq
  %v1617 = vshrl.u32 %v1616, 7
  %v1618 = vsub.s32 0, %v1617
  %v1619 = vrot.slane %v1588, %v1618
  %v1621 = vmul.f32 %v1613, %v1619
  %v1622 = vmul.f32 %v1614, %v1619
  %v1624 = vlaneseq
  %v1625 = vshrl.u32 %v1624, 7
  %v1626 = vsub.s32 0, %v1625
  %v1627 = vrot.slane %v1589, %v1626
  %v1629 = vadd.f32 %v1621, %v1627
  %v1630 = vadd.f32 %v1622, %v1627
  %v1631 = vpack.c.bf16 %v1630, %v1629
  %v1632 = vld [vmem:[%s11] sm:$0xff]
  %v1633 = vld [vmem:[%s11 + $0x8] sm:$0xff]
  %v1634 = vld [vmem:[%s11 + $0x10] sm:$0xff]
  %v1635 = vld [vmem:[%s11 + $0x18] sm:$0xff]
  %v1636 = vld [vmem:[%s11 + $0x20] sm:$0xff]
  %v1637 = vld [vmem:[%s11 + $0x28] sm:$0xff]
  %v1638 = vld [vmem:[%s11 + $0x30] sm:$0xff]
  %v1639 = vld [vmem:[%s11 + $0x38] sm:$0xff]
  %v1640 = vld [vmem:[%s11 + $0x40] sm:$0xff]
  %v1641 = vld [vmem:[%s11 + $0x48] sm:$0xff]
  %v1642 = vld [vmem:[%s11 + $0x50] sm:$0xff]
  %v1643 = vld [vmem:[%s11 + $0x58] sm:$0xff]
  %v1644 = vld [vmem:[%s11 + $0x60] sm:$0xff]
  %v1645 = vld [vmem:[%s11 + $0x68] sm:$0xff]
  %v1646 = vld [vmem:[%s11 + $0x70] sm:$0xff]
  %v1647 = vld [vmem:[%s11 + $0x78] sm:$0xff]
  %v1648 = vld [vmem:[%s12] sm:$0x3]
  %v1650 = vlaneseq
  %v1651 = vshrl.u32 %v1650, 7
  %v1652 = vsub.s32 0, %v1651
  %v1653 = vrot.slane %v1648, %v1652
  %v1654 = vlaneseq
  %v1655 = vshrl.u32 %v1654, 7
  %v1656 = vsub.s32 1, %v1655
  %v1657 = vrot.slane %v1648, %v1656
  %v1676 = vunpack.c.l.b16 %v1632
  %v1677 = vunpack.c.h.b16 %v1632
  %v1678 = vunpack.c.l.b16 %v1633
  %v1679 = vunpack.c.h.b16 %v1633
  %v1680 = vunpack.c.l.b16 %v1634
  %v1681 = vunpack.c.h.b16 %v1634
  %v1682 = vunpack.c.l.b16 %v1635
  %v1683 = vunpack.c.h.b16 %v1635
  %v1684 = vunpack.c.l.b16 %v1636
  %v1685 = vunpack.c.h.b16 %v1636
  %v1686 = vunpack.c.l.b16 %v1637
  %v1687 = vunpack.c.h.b16 %v1637
  %v1688 = vunpack.c.l.b16 %v1638
  %v1689 = vunpack.c.h.b16 %v1638
  %v1690 = vunpack.c.l.b16 %v1639
  %v1691 = vunpack.c.h.b16 %v1639
  %v1692 = vunpack.c.l.b16 %v1640
  %v1693 = vunpack.c.h.b16 %v1640
  %v1694 = vunpack.c.l.b16 %v1641
  %v1695 = vunpack.c.h.b16 %v1641
  %v1696 = vunpack.c.l.b16 %v1642
  %v1697 = vunpack.c.h.b16 %v1642
  %v1698 = vunpack.c.l.b16 %v1643
  %v1699 = vunpack.c.h.b16 %v1643
  %v1700 = vunpack.c.l.b16 %v1644
  %v1701 = vunpack.c.h.b16 %v1644
  %v1702 = vunpack.c.l.b16 %v1645
  %v1703 = vunpack.c.h.b16 %v1645
  %v1704 = vunpack.c.l.b16 %v1646
  %v1705 = vunpack.c.h.b16 %v1646
  %v1706 = vunpack.c.l.b16 %v1647
  %v1707 = vunpack.c.h.b16 %v1647
  %v1708 = vpack.c.b16 %v1678, %v1676
  %v1709 = vpack.c.b16 %v1679, %v1677
  %v1710 = vpack.c.b16 %v1682, %v1680
  %v1711 = vpack.c.b16 %v1683, %v1681
  %v1712 = vpack.c.b16 %v1686, %v1684
  %v1713 = vpack.c.b16 %v1687, %v1685
  %v1714 = vpack.c.b16 %v1690, %v1688
  %v1715 = vpack.c.b16 %v1691, %v1689
  %v1716 = vpack.c.b16 %v1694, %v1692
  %v1717 = vpack.c.b16 %v1695, %v1693
  %v1718 = vpack.c.b16 %v1698, %v1696
  %v1719 = vpack.c.b16 %v1699, %v1697
  %v1720 = vpack.c.b16 %v1702, %v1700
  %v1721 = vpack.c.b16 %v1703, %v1701
  %v1722 = vpack.c.b16 %v1706, %v1704
  %v1723 = vpack.c.b16 %v1707, %v1705
  %1740 = vmatprep.subr.bf16.mxu0 %v1709
  %1741 = vmatpush1.bf16.msra.mxu0 %v1708
  %1742 = vmatprep.subr.bf16.mxu0 %v1711
  %1743 = vmatpush1.bf16.msra.mxu0 %v1710
  %1744 = vmatprep.subr.bf16.mxu0 %v1713
  %1745 = vmatpush1.bf16.msra.mxu0 %v1712
  %1746 = vmatprep.subr.bf16.mxu0 %v1715
  %1747 = vmatpush1.bf16.msra.mxu0 %v1714
  %1748 = vmatprep.subr.bf16.mxu0 %v1717
  %1749 = vmatpush1.bf16.msra.mxu0 %v1716
  %1750 = vmatprep.subr.bf16.mxu0 %v1719
  %1751 = vmatpush1.bf16.msra.mxu0 %v1718
  %1752 = vmatprep.subr.bf16.mxu0 %v1721
  %1753 = vmatpush1.bf16.msra.mxu0 %v1720
  %1754 = vmatprep.subr.bf16.mxu0 %v1723
  %1755 = vmatpush1.bf16.msra.mxu0 %v1722
  %1756 = vmatprep.subr.bf16.mxu0 0
  %1757 = vmatpush1.bf16.msra.mxu0 0
  %1758 = vmatprep.subr.bf16.mxu0 0
  %1759 = vmatpush1.bf16.msra.mxu0 0
  %1760 = vmatprep.subr.bf16.mxu0 0
  %1761 = vmatpush1.bf16.msra.mxu0 0
  %1762 = vmatprep.subr.bf16.mxu0 0
  %1763 = vmatpush1.bf16.msra.mxu0 0
  %1764 = vmatprep.subr.bf16.mxu0 0
  %1765 = vmatpush1.bf16.msra.mxu0 0
  %1766 = vmatprep.subr.bf16.mxu0 0
  %1767 = vmatpush1.bf16.msra.mxu0 0
  %1768 = vmatprep.subr.bf16.mxu0 0
  %1769 = vmatpush1.bf16.msra.mxu0 0
  %1770 = vmatprep.subr.bf16.mxu0 0
  %1771 = vmatpush1.bf16.msra.mxu0 0
  %1772 = vmatprep.mubr.bf16.mxu0 0
  %1773 = vmatmul.mubr.bf16.gmra.mrb[0].mxu0 %v1631
  %v1774 = vpop.f32.mrb[0].mxu0
  %v1775 = vadd.f32 %v1653, %v1774
  %v1776 = vpop.f32.mrb[0].mxu0
  %v1777 = vadd.f32 %v1657, %v1776
  %v1778 = vpop.f32.mrb[0].mxu0
  %v1779 = vadd.f32 %v1653, %v1778
  %v1780 = vpop.f32.mrb[0].mxu0
  %v1781 = vadd.f32 %v1657, %v1780
  %1782 = vdwg.mxu0
  %v1783 = vmax.f32 %v1775, 0.0
  %v1784 = vmax.f32 %v1777, 0.0
  %v1785 = vmax.f32 %v1779, 0.0
  %v1786 = vmax.f32 %v1781, 0.0
  %v1787 = vpack.c.bf16 %v1785, %v1783
  %v1788 = vpack.c.bf16 %v1786, %v1784
  %v1789 = vld [vmem:[%s13] sm:$0xf]
  %v1790 = vld [vmem:[%s13 + $0x4] sm:$0xf]
  %v1791 = vld [vmem:[%s13 + $0x8] sm:$0xf]
  %v1792 = vld [vmem:[%s13 + $0xc] sm:$0xf]
  %v1793 = vld [vmem:[%s13 + $0x10] sm:$0xf]
  %v1794 = vld [vmem:[%s13 + $0x14] sm:$0xf]
  %v1795 = vld [vmem:[%s13 + $0x18] sm:$0xf]
  %v1796 = vld [vmem:[%s13 + $0x1c] sm:$0xf]
  %v1797 = vld [vmem:[%s13 + $0x20] sm:$0xf]
  %v1798 = vld [vmem:[%s13 + $0x24] sm:$0xf]
  %v1799 = vld [vmem:[%s13 + $0x28] sm:$0xf]
  %v1800 = vld [vmem:[%s13 + $0x2c] sm:$0xf]
  %v1801 = vld [vmem:[%s13 + $0x30] sm:$0xf]
  %v1802 = vld [vmem:[%s13 + $0x34] sm:$0xf]
  %v1803 = vld [vmem:[%s13 + $0x38] sm:$0xf]
  %v1804 = vld [vmem:[%s13 + $0x3c] sm:$0xf]
  %v1805 = vld [vmem:[%s13 + $0x40] sm:$0xf]
  %v1806 = vld [vmem:[%s13 + $0x44] sm:$0xf]
  %v1807 = vld [vmem:[%s13 + $0x48] sm:$0xf]
  %v1808 = vld [vmem:[%s13 + $0x4c] sm:$0xf]
  %v1809 = vld [vmem:[%s13 + $0x50] sm:$0xf]
  %v1810 = vld [vmem:[%s13 + $0x54] sm:$0xf]
  %v1811 = vld [vmem:[%s13 + $0x58] sm:$0xf]
  %v1812 = vld [vmem:[%s13 + $0x5c] sm:$0xf]
  %v1813 = vld [vmem:[%s13 + $0x60] sm:$0xf]
  %v1814 = vld [vmem:[%s13 + $0x64] sm:$0xf]
  %v1815 = vld [vmem:[%s13 + $0x68] sm:$0xf]
  %v1816 = vld [vmem:[%s13 + $0x6c] sm:$0xf]
  %v1817 = vld [vmem:[%s13 + $0x70] sm:$0xf]
  %v1818 = vld [vmem:[%s13 + $0x74] sm:$0xf]
  %v1819 = vld [vmem:[%s13 + $0x78] sm:$0xf]
  %v1820 = vld [vmem:[%s13 + $0x7c] sm:$0xf]
  %v1821 = vld [vmem:[%s14] sm:$0x1]
  %v1823 = vlaneseq
  %v1824 = vshrl.u32 %v1823, 7
  %v1825 = vsub.s32 0, %v1824
  %v1826 = vrot.slane %v1821, %v1825
  %v1860 = vunpack.c.l.b16 %v1789
  %v1861 = vunpack.c.l.b16 %v1790
  %v1862 = vunpack.c.l.b16 %v1791
  %v1863 = vunpack.c.l.b16 %v1792
  %v1864 = vunpack.c.l.b16 %v1793
  %v1865 = vunpack.c.l.b16 %v1794
  %v1866 = vunpack.c.l.b16 %v1795
  %v1867 = vunpack.c.l.b16 %v1796
  %v1868 = vunpack.c.l.b16 %v1797
  %v1869 = vunpack.c.l.b16 %v1798
  %v1870 = vunpack.c.l.b16 %v1799
  %v1871 = vunpack.c.l.b16 %v1800
  %v1872 = vunpack.c.l.b16 %v1801
  %v1873 = vunpack.c.l.b16 %v1802
  %v1874 = vunpack.c.l.b16 %v1803
  %v1875 = vunpack.c.l.b16 %v1804
  %v1876 = vunpack.c.l.b16 %v1805
  %v1877 = vunpack.c.l.b16 %v1806
  %v1878 = vunpack.c.l.b16 %v1807
  %v1879 = vunpack.c.l.b16 %v1808
  %v1880 = vunpack.c.l.b16 %v1809
  %v1881 = vunpack.c.l.b16 %v1810
  %v1882 = vunpack.c.l.b16 %v1811
  %v1883 = vunpack.c.l.b16 %v1812
  %v1884 = vunpack.c.l.b16 %v1813
  %v1885 = vunpack.c.l.b16 %v1814
  %v1886 = vunpack.c.l.b16 %v1815
  %v1887 = vunpack.c.l.b16 %v1816
  %v1888 = vunpack.c.l.b16 %v1817
  %v1889 = vunpack.c.l.b16 %v1818
  %v1890 = vunpack.c.l.b16 %v1819
  %v1891 = vunpack.c.l.b16 %v1820
  %v1892 = vpack.c.b16 %v1861, %v1860
  %v1893 = vpack.c.b16 %v1863, %v1862
  %v1894 = vpack.c.b16 %v1865, %v1864
  %v1895 = vpack.c.b16 %v1867, %v1866
  %v1896 = vpack.c.b16 %v1869, %v1868
  %v1897 = vpack.c.b16 %v1871, %v1870
  %v1898 = vpack.c.b16 %v1873, %v1872
  %v1899 = vpack.c.b16 %v1875, %v1874
  %v1900 = vpack.c.b16 %v1877, %v1876
  %v1901 = vpack.c.b16 %v1879, %v1878
  %v1902 = vpack.c.b16 %v1881, %v1880
  %v1903 = vpack.c.b16 %v1883, %v1882
  %v1904 = vpack.c.b16 %v1885, %v1884
  %v1905 = vpack.c.b16 %v1887, %v1886
  %v1906 = vpack.c.b16 %v1889, %v1888
  %v1907 = vpack.c.b16 %v1891, %v1890
  %1924 = vmatprep.subr.bf16.mxu0 0
  %1925 = vmatpush1.bf16.msra.mxu0 %v1892
  %1926 = vmatprep.subr.bf16.mxu0 0
  %1927 = vmatpush1.bf16.msra.mxu0 %v1893
  %1928 = vmatprep.subr.bf16.mxu0 0
  %1929 = vmatpush1.bf16.msra.mxu0 %v1894
  %1930 = vmatprep.subr.bf16.mxu0 0
  %1931 = vmatpush1.bf16.msra.mxu0 %v1895
  %1932 = vmatprep.subr.bf16.mxu0 0
  %1933 = vmatpush1.bf16.msra.mxu0 %v1896
  %1934 = vmatprep.subr.bf16.mxu0 0
  %1935 = vmatpush1.bf16.msra.mxu0 %v1897
  %1936 = vmatprep.subr.bf16.mxu0 0
  %1937 = vmatpush1.bf16.msra.mxu0 %v1898
  %1938 = vmatprep.subr.bf16.mxu0 0
  %1939 = vmatpush1.bf16.msra.mxu0 %v1899
  %1940 = vmatprep.subr.bf16.mxu0 0
  %1941 = vmatpush1.bf16.msra.mxu0 %v1900
  %1942 = vmatprep.subr.bf16.mxu0 0
  %1943 = vmatpush1.bf16.msra.mxu0 %v1901
  %1944 = vmatprep.subr.bf16.mxu0 0
  %1945 = vmatpush1.bf16.msra.mxu0 %v1902
  %1946 = vmatprep.subr.bf16.mxu0 0
  %1947 = vmatpush1.bf16.msra.mxu0 %v1903
  %1948 = vmatprep.subr.bf16.mxu0 0
  %1949 = vmatpush1.bf16.msra.mxu0 %v1904
  %1950 = vmatprep.subr.bf16.mxu0 0
  %1951 = vmatpush1.bf16.msra.mxu0 %v1905
  %1952 = vmatprep.subr.bf16.mxu0 0
  %1953 = vmatpush1.bf16.msra.mxu0 %v1906
  %1954 = vmatprep.subr.bf16.mxu0 0
  %1955 = vmatpush1.bf16.msra.mxu0 %v1907
  %1956 = vmatprep.mubr.bf16.mxu0 %v1788
  %1957 = vmatmul.mubr.bf16.gmra.mrb[0].mxu0 %v1787
  %v1958 = vpop.f32.mrb[0].mxu0
  %v1959 = vadd.f32 %v1826, %v1958
  %v1960 = vpop.f32.mrb[0].mxu0
  %v1961 = vpop.f32.mrb[0].mxu0
  %v1962 = vadd.f32 %v1826, %v1961
  %v1963 = vpop.f32.mrb[0].mxu0
  %1964 = vdwg.mxu0
  %v1965 = vadd.f32 %v1629, %v1959
  %v1966 = vadd.f32 %v1630, %v1962
  %v1967 = vld [vmem:[%s15] sm:$0x1]
  %v1968 = vld [vmem:[%s16] sm:$0x1]
  %1969 = vadd.xlane.f32.xlu0 %v1965
  %v1970 = vpop.xlane.xlu0 %1969
  %v1971 = vsel %vm80, %v1966, 0.0
  %1972 = vadd.xlane.f32.xlu0 %v1971
  %v1973 = vpop.xlane.xlu0 %1972
  %v1974 = vmul.f32 %v1970, %v1595
  %v1975 = vmul.f32 %v1973, %v1595
  %v1976 = vsub.f32 %v1965, %v1974
  %v1977 = vsub.f32 %v1966, %v1975
  %v1978 = vmul.f32 %v1976, %v1976
  %v1979 = vmul.f32 %v1977, %v1977
  %1980 = vadd.xlane.f32.xlu0 %v1978
  %v1981 = vpop.xlane.xlu0 %1980
  %v1982 = vsel %vm80, %v1979, 0.0
  %1983 = vadd.xlane.f32.xlu0 %v1982
  %v1984 = vpop.xlane.xlu0 %1983
  %v1985 = vmul.f32 %v1981, %v1595
  %v1986 = vmul.f32 %v1984, %v1595
  %v1987 = vadd.f32 %v1985, 1e-05
  %v1988 = vadd.f32 %v1986, 1e-05
  %v1989 = vrsqrt.pop %v1987
  %v1990 = vrsqrt.pop %v1988
  %v1991 = vmul.f32 %v1976, %v1989
  %v1992 = vmul.f32 %v1977, %v1990
  %v1994 = vlaneseq
  %v1995 = vshrl.u32 %v1994, 7
  %v1996 = vsub.s32 0, %v1995
  %v1997 = vrot.slane %v1967, %v1996
  %v1999 = vmul.f32 %v1991, %v1997
  %v2000 = vmul.f32 %v1992, %v1997
  %v2002 = vlaneseq
  %v2003 = vshrl.u32 %v2002, 7
  %v2004 = vsub.s32 0, %v2003
  %v2005 = vrot.slane %v1968, %v2004
  %v2007 = vadd.f32 %v1999, %v2005
  %v2008 = vadd.f32 %v2000, %v2005
  %v2009 = vpack.c.bf16 %v2008, %v2007
  %s2010 = scalar_lea.vmem %s5, 192
  %v2011 = vld [vmem:[%s2010] sm:$0xff]
  %v2012 = vld [vmem:[%s2010 + $0x8] sm:$0xf]
  %v2013 = vld [vmem:[%s2010 + $0xc] sm:$0xff]
  %v2014 = vld [vmem:[%s2010 + $0x14] sm:$0xf]
  %v2015 = vld [vmem:[%s2010 + $0x18] sm:$0xff]
  %v2016 = vld [vmem:[%s2010 + $0x20] sm:$0xf]
  %v2017 = vld [vmem:[%s2010 + $0x24] sm:$0xff]
  %v2018 = vld [vmem:[%s2010 + $0x2c] sm:$0xf]
  %v2019 = vld [vmem:[%s2010 + $0x30] sm:$0xff]
  %v2020 = vld [vmem:[%s2010 + $0x38] sm:$0xf]
  %v2021 = vld [vmem:[%s2010 + $0x3c] sm:$0xff]
  %v2022 = vld [vmem:[%s2010 + $0x44] sm:$0xf]
  %v2023 = vld [vmem:[%s2010 + $0x48] sm:$0xff]
  %v2024 = vld [vmem:[%s2010 + $0x50] sm:$0xf]
  %v2025 = vld [vmem:[%s2010 + $0x54] sm:$0xff]
  %v2026 = vld [vmem:[%s2010 + $0x5c] sm:$0xf]
  %v2027 = vld [vmem:[%s2010 + $0x60] sm:$0xff]
  %v2028 = vld [vmem:[%s2010 + $0x68] sm:$0xf]
  %v2029 = vld [vmem:[%s2010 + $0x6c] sm:$0xff]
  %v2030 = vld [vmem:[%s2010 + $0x74] sm:$0xf]
  %v2031 = vld [vmem:[%s2010 + $0x78] sm:$0xff]
  %v2032 = vld [vmem:[%s2010 + $0x80] sm:$0xf]
  %v2033 = vld [vmem:[%s2010 + $0x84] sm:$0xff]
  %v2034 = vld [vmem:[%s2010 + $0x8c] sm:$0xf]
  %v2035 = vld [vmem:[%s2010 + $0x90] sm:$0xff]
  %v2036 = vld [vmem:[%s2010 + $0x98] sm:$0xf]
  %v2037 = vld [vmem:[%s2010 + $0x9c] sm:$0xff]
  %v2038 = vld [vmem:[%s2010 + $0xa4] sm:$0xf]
  %v2039 = vld [vmem:[%s2010 + $0xa8] sm:$0xff]
  %v2040 = vld [vmem:[%s2010 + $0xb0] sm:$0xf]
  %v2041 = vld [vmem:[%s2010 + $0xb4] sm:$0xff]
  %v2042 = vld [vmem:[%s2010 + $0xbc] sm:$0xf]
  %s2043 = scalar_lea.vmem %s6, 3
  %v2044 = vld [vmem:[%s2043] sm:$0x7]
  %v2046 = vlaneseq
  %v2047 = vshrl.u32 %v2046, 7
  %v2048 = vsub.s32 0, %v2047
  %v2049 = vrot.slane %v2044, %v2048
  %v2050 = vlaneseq
  %v2051 = vshrl.u32 %v2050, 7
  %v2052 = vsub.s32 1, %v2051
  %v2053 = vrot.slane %v2044, %v2052
  %v2054 = vlaneseq
  %v2055 = vshrl.u32 %v2054, 7
  %v2056 = vsub.s32 2, %v2055
  %v2057 = vrot.slane %v2044, %v2056
  %v2093 = vunpack.c.l.b16 %v2011
  %v2094 = vunpack.c.h.b16 %v2011
  %v2095 = vunpack.c.l.b16 %v2012
  %v2096 = vunpack.c.l.b16 %v2013
  %v2097 = vunpack.c.h.b16 %v2013
  %v2098 = vunpack.c.l.b16 %v2014
  %v2099 = vunpack.c.l.b16 %v2015
  %v2100 = vunpack.c.h.b16 %v2015
  %v2101 = vunpack.c.l.b16 %v2016
  %v2102 = vunpack.c.l.b16 %v2017
  %v2103 = vunpack.c.h.b16 %v2017
  %v2104 = vunpack.c.l.b16 %v2018
  %v2105 = vunpack.c.l.b16 %v2019
  %v2106 = vunpack.c.h.b16 %v2019
  %v2107 = vunpack.c.l.b16 %v2020
  %v2108 = vunpack.c.l.b16 %v2021
  %v2109 = vunpack.c.h.b16 %v2021
  %v2110 = vunpack.c.l.b16 %v2022
  %v2111 = vunpack.c.l.b16 %v2023
  %v2112 = vunpack.c.h.b16 %v2023
  %v2113 = vunpack.c.l.b16 %v2024
  %v2114 = vunpack.c.l.b16 %v2025
  %v2115 = vunpack.c.h.b16 %v2025
  %v2116 = vunpack.c.l.b16 %v2026
  %v2117 = vunpack.c.l.b16 %v2027
  %v2118 = vunpack.c.h.b16 %v2027
  %v2119 = vunpack.c.l.b16 %v2028
  %v2120 = vunpack.c.l.b16 %v2029
  %v2121 = vunpack.c.h.b16 %v2029
  %v2122 = vunpack.c.l.b16 %v2030
  %v2123 = vunpack.c.l.b16 %v2031
  %v2124 = vunpack.c.h.b16 %v2031
  %v2125 = vunpack.c.l.b16 %v2032
  %v2126 = vunpack.c.l.b16 %v2033
  %v2127 = vunpack.c.h.b16 %v2033
  %v2128 = vunpack.c.l.b16 %v2034
  %v2129 = vunpack.c.l.b16 %v2035
  %v2130 = vunpack.c.h.b16 %v2035
  %v2131 = vunpack.c.l.b16 %v2036
  %v2132 = vunpack.c.l.b16 %v2037
  %v2133 = vunpack.c.h.b16 %v2037
  %v2134 = vunpack.c.l.b16 %v2038
  %v2135 = vunpack.c.l.b16 %v2039
  %v2136 = vunpack.c.h.b16 %v2039
  %v2137 = vunpack.c.l.b16 %v2040
  %v2138 = vunpack.c.l.b16 %v2041
  %v2139 = vunpack.c.h.b16 %v2041
  %v2140 = vunpack.c.l.b16 %v2042
  %v2141 = vpack.c.b16 %v2096, %v2093
  %v2142 = vpack.c.b16 %v2097, %v2094
  %v2143 = vpack.c.b16 %v2098, %v2095
  %v2144 = vpack.c.b16 %v2102, %v2099
  %v2145 = vpack.c.b16 %v2103, %v2100
  %v2146 = vpack.c.b16 %v2104, %v2101
  %v2147 = vpack.c.b16 %v2108, %v2105
  %v2148 = vpack.c.b16 %v2109, %v2106
  %v2149 = vpack.c.b16 %v2110, %v2107
  %v2150 = vpack.c.b16 %v2114, %v2111
  %v2151 = vpack.c.b16 %v2115, %v2112
  %v2152 = vpack.c.b16 %v2116, %v2113
  %v2153 = vpack.c.b16 %v2120, %v2117
  %v2154 = vpack.c.b16 %v2121, %v2118
  %v2155 = vpack.c.b16 %v2122, %v2119
  %v2156 = vpack.c.b16 %v2126, %v2123
  %v2157 = vpack.c.b16 %v2127, %v2124
  %v2158 = vpack.c.b16 %v2128, %v2125
  %v2159 = vpack.c.b16 %v2132, %v2129
  %v2160 = vpack.c.b16 %v2133, %v2130
  %v2161 = vpack.c.b16 %v2134, %v2131
  %v2162 = vpack.c.b16 %v2138, %v2135
  %v2163 = vpack.c.b16 %v2139, %v2136
  %v2164 = vpack.c.b16 %v2140, %v2137
  %2189 = vmatprep.subr.bf16.mxu0 %v2142
  %2190 = vmatpush1.bf16.msra.mxu0 %v2141
  %2191 = vmatprep.subr.bf16.mxu0 %v2145
  %2192 = vmatpush1.bf16.msra.mxu0 %v2144
  %2193 = vmatprep.subr.bf16.mxu0 %v2148
  %2194 = vmatpush1.bf16.msra.mxu0 %v2147
  %2195 = vmatprep.subr.bf16.mxu0 %v2151
  %2196 = vmatpush1.bf16.msra.mxu0 %v2150
  %2197 = vmatprep.subr.bf16.mxu0 %v2154
  %2198 = vmatpush1.bf16.msra.mxu0 %v2153
  %2199 = vmatprep.subr.bf16.mxu0 %v2157
  %2200 = vmatpush1.bf16.msra.mxu0 %v2156
  %2201 = vmatprep.subr.bf16.mxu0 %v2160
  %2202 = vmatpush1.bf16.msra.mxu0 %v2159
  %2203 = vmatprep.subr.bf16.mxu0 %v2163
  %2204 = vmatpush1.bf16.msra.mxu0 %v2162
  %2205 = vmatprep.subr.bf16.mxu0 0
  %2206 = vmatpush1.bf16.msra.mxu0 0
  %2207 = vmatprep.subr.bf16.mxu0 0
  %2208 = vmatpush1.bf16.msra.mxu0 0
  %2209 = vmatprep.subr.bf16.mxu0 0
  %2210 = vmatpush1.bf16.msra.mxu0 0
  %2211 = vmatprep.subr.bf16.mxu0 0
  %2212 = vmatpush1.bf16.msra.mxu0 0
  %2213 = vmatprep.subr.bf16.mxu0 0
  %2214 = vmatpush1.bf16.msra.mxu0 0
  %2215 = vmatprep.subr.bf16.mxu0 0
  %2216 = vmatpush1.bf16.msra.mxu0 0
  %2217 = vmatprep.subr.bf16.mxu0 0
  %2218 = vmatpush1.bf16.msra.mxu0 0
  %2219 = vmatprep.subr.bf16.mxu0 0
  %2220 = vmatpush1.bf16.msra.mxu0 0
  %2221 = vmatprep.mubr.bf16.mxu0 0
  %2222 = vmatmul.mubr.bf16.gmra.mrb[0].mxu0 %v2009
  %v2223 = vpop.f32.mrb[0].mxu0
  %v2224 = vadd.f32 %v2049, %v2223
  %v2225 = vpop.f32.mrb[0].mxu0
  %v2226 = vadd.f32 %v2053, %v2225
  %v2227 = vpop.f32.mrb[0].mxu0
  %v2228 = vadd.f32 %v2049, %v2227
  %v2229 = vpop.f32.mrb[0].mxu0
  %v2230 = vadd.f32 %v2053, %v2229
  %2231 = vdwg.mxu0
  %2232 = vmatprep.subr.bf16.mxu0 0
  %2233 = vmatpush1.bf16.msra.mxu0 %v2143
  %2234 = vmatprep.subr.bf16.mxu0 0
  %2235 = vmatpush1.bf16.msra.mxu0 %v2146
  %2236 = vmatprep.subr.bf16.mxu0 0
  %2237 = vmatpush1.bf16.msra.mxu0 %v2149
  %2238 = vmatprep.subr.bf16.mxu0 0
  %2239 = vmatpush1.bf16.msra.mxu0 %v2152
  %2240 = vmatprep.subr.bf16.mxu0 0
  %2241 = vmatpush1.bf16.msra.mxu0 %v2155
  %2242 = vmatprep.subr.bf16.mxu0 0
  %2243 = vmatpush1.bf16.msra.mxu0 %v2158
  %2244 = vmatprep.subr.bf16.mxu0 0
  %2245 = vmatpush1.bf16.msra.mxu0 %v2161
  %2246 = vmatprep.subr.bf16.mxu0 0
  %2247 = vmatpush1.bf16.msra.mxu0 %v2164
  %2248 = vmatprep.subr.bf16.mxu0 0
  %2249 = vmatpush1.bf16.msra.mxu0 0
  %2250 = vmatprep.subr.bf16.mxu0 0
  %2251 = vmatpush1.bf16.msra.mxu0 0
  %2252 = vmatprep.subr.bf16.mxu0 0
  %2253 = vmatpush1.bf16.msra.mxu0 0
  %2254 = vmatprep.subr.bf16.mxu0 0
  %2255 = vmatpush1.bf16.msra.mxu0 0
  %2256 = vmatprep.subr.bf16.mxu0 0
  %2257 = vmatpush1.bf16.msra.mxu0 0
  %2258 = vmatprep.subr.bf16.mxu0 0
  %2259 = vmatpush1.bf16.msra.mxu0 0
  %2260 = vmatprep.subr.bf16.mxu0 0
  %2261 = vmatpush1.bf16.msra.mxu0 0
  %2262 = vmatprep.subr.bf16.mxu0 0
  %2263 = vmatpush1.bf16.msra.mxu0 0
  %2264 = vmatprep.mubr.bf16.mxu0 0
  %2265 = vmatmul.mubr.bf16.gmra.mrb[0].mxu0 %v2009
  %v2266 = vpop.f32.mrb[0].mxu0
  %v2267 = vadd.f32 %v2057, %v2266
  %v2268 = vpop.f32.mrb[0].mxu0
  %v2269 = vpop.f32.mrb[0].mxu0
  %v2270 = vadd.f32 %v2057, %v2269
  %v2271 = vpop.f32.mrb[0].mxu0
  %2272 = vdwg.mxu0
  %v2273 = vmul.f32 %v2224, 0.25
  %v2274 = vmul.f32 %v2228, 0.25
  %v2275 = vpack.c.bf16 %v2274, %v2273
  %v2276 = vpack.c.bf16 %v2230, %v2226
  %v2277 = vpack.c.bf16 %v2270, %v2267
  %v2279 = vsel %vm396, %v2275, 0
  %v2282 = vsel %vm396, %v2276, 0
  %2284 = vmatprep.subr.bf16.mxu0 0
  %2285 = vmatpush1.bf16.xpose.msra.mxu0 %v2282
  %2286 = vmatprep.subr.bf16.mxu0 0
  %2287 = vmatpush1.bf16.xpose.msra.mxu0 0
  %2288 = vmatprep.subr.bf16.mxu0 0
  %2289 = vmatpush1.bf16.xpose.msra.mxu0 0
  %2290 = vmatprep.subr.bf16.mxu0 0
  %2291 = vmatpush1.bf16.xpose.msra.mxu0 0
  %2292 = vmatprep.subr.bf16.mxu0 0
  %2293 = vmatpush1.bf16.xpose.msra.mxu0 0
  %2294 = vmatprep.subr.bf16.mxu0 0
  %2295 = vmatpush1.bf16.xpose.msra.mxu0 0
  %2296 = vmatprep.subr.bf16.mxu0 0
  %2297 = vmatpush1.bf16.xpose.msra.mxu0 0
  %2298 = vmatprep.subr.bf16.mxu0 0
  %2299 = vmatpush1.bf16.xpose.msra.mxu0 0
  %2300 = vmatprep.subr.bf16.mxu0 0
  %2301 = vmatpush1.bf16.xpose.msra.mxu0 0
  %2302 = vmatprep.subr.bf16.mxu0 0
  %2303 = vmatpush1.bf16.xpose.msra.mxu0 0
  %2304 = vmatprep.subr.bf16.mxu0 0
  %2305 = vmatpush1.bf16.xpose.msra.mxu0 0
  %2306 = vmatprep.subr.bf16.mxu0 0
  %2307 = vmatpush1.bf16.xpose.msra.mxu0 0
  %2308 = vmatprep.subr.bf16.mxu0 0
  %2309 = vmatpush1.bf16.xpose.msra.mxu0 0
  %2310 = vmatprep.subr.bf16.mxu0 0
  %2311 = vmatpush1.bf16.xpose.msra.mxu0 0
  %2312 = vmatprep.subr.bf16.mxu0 0
  %2313 = vmatpush1.bf16.xpose.msra.mxu0 0
  %2314 = vmatprep.subr.bf16.mxu0 0
  %2315 = vmatpush1.bf16.xpose.msra.mxu0 0
  %2316 = vmatprep.mubr.bf16.mxu0 0
  %2317 = vmatmul.mubr.bf16.gmra.mrb[0].mxu0 %v2279
  %v2318 = vpop.f32.mrb[0].mxu0
  %v2319 = vadd.f32 %v63, %v2318
  %v2320 = vpop.f32.mrb[0].mxu0
  %v2321 = vpop.f32.mrb[0].mxu0
  %v2322 = vadd.f32 %v64, %v2321
  %v2323 = vpop.f32.mrb[0].mxu0
  %2324 = vdwg.mxu0
  %v2325 = vsel %vm444, %v2319, -inf
  %2326 = vmax.xlane.f32.xlu0 %v2325
  %v2327 = vpop.xlane.xlu0 %2326
  %v2328 = vsel %vm448, %v2322, -inf
  %2329 = vmax.xlane.f32.xlu0 %v2328
  %v2330 = vpop.xlane.xlu0 %2329
  %v2331 = vsub.f32 %v2319, %v2327
  %v2332 = vsub.f32 %v2322, %v2330
  %v2333 = vmul.f32 %v2331, 1.442695
  %v2334 = vpow.pop %v2333
  %v2335 = vmul.f32 %v2332, 1.442695
  %v2336 = vpow.pop %v2335
  %v2337 = vsel %vm444, %v2334, 0.0
  %2338 = vadd.xlane.f32.xlu0 %v2337
  %v2339 = vpop.xlane.xlu0 %2338
  %v2340 = vsel %vm448, %v2336, 0.0
  %2341 = vadd.xlane.f32.xlu0 %v2340
  %v2342 = vpop.xlane.xlu0 %2341
  %v2343 = vrcp.pop %v2339
  %v2344 = vmul.f32 1.0, %v2343
  %v2345 = vrcp.pop %v2342
  %v2346 = vmul.f32 1.0, %v2345
  %v2347 = vmul.f32 %v2334, %v2344
  %v2348 = vmul.f32 %v2336, %v2346
  %v2349 = vpack.c.bf16 %v2348, %v2347
  %v2351 = vsel %vm444, %v2349, 0
  %v2354 = vsel %vm474, %v2277, 0
  %2356 = vmatprep.subr.bf16.mxu0 0
  %2357 = vmatpush1.bf16.msra.mxu0 %v2354
  %2358 = vmatprep.subr.bf16.mxu0 0
  %2359 = vmatpush1.bf16.msra.mxu0 0
  %2360 = vmatprep.subr.bf16.mxu0 0
  %2361 = vmatpush1.bf16.msra.mxu0 0
  %2362 = vmatprep.subr.bf16.mxu0 0
  %2363 = vmatpush1.bf16.msra.mxu0 0
  %2364 = vmatprep.subr.bf16.mxu0 0
  %2365 = vmatpush1.bf16.msra.mxu0 0
  %2366 = vmatprep.subr.bf16.mxu0 0
  %2367 = vmatpush1.bf16.msra.mxu0 0
  %2368 = vmatprep.subr.bf16.mxu0 0
  %2369 = vmatpush1.bf16.msra.mxu0 0
  %2370 = vmatprep.subr.bf16.mxu0 0
  %2371 = vmatpush1.bf16.msra.mxu0 0
  %2372 = vmatprep.subr.bf16.mxu0 0
  %2373 = vmatpush1.bf16.msra.mxu0 0
  %2374 = vmatprep.subr.bf16.mxu0 0
  %2375 = vmatpush1.bf16.msra.mxu0 0
  %2376 = vmatprep.subr.bf16.mxu0 0
  %2377 = vmatpush1.bf16.msra.mxu0 0
  %2378 = vmatprep.subr.bf16.mxu0 0
  %2379 = vmatpush1.bf16.msra.mxu0 0
  %2380 = vmatprep.subr.bf16.mxu0 0
  %2381 = vmatpush1.bf16.msra.mxu0 0
  %2382 = vmatprep.subr.bf16.mxu0 0
  %2383 = vmatpush1.bf16.msra.mxu0 0
  %2384 = vmatprep.subr.bf16.mxu0 0
  %2385 = vmatpush1.bf16.msra.mxu0 0
  %2386 = vmatprep.subr.bf16.mxu0 0
  %2387 = vmatpush1.bf16.msra.mxu0 0
  %2388 = vmatprep.mubr.bf16.mxu0 0
  %2389 = vmatmul.mubr.bf16.gmra.mrb[0].mxu0 %v2351
  %v2390 = vpop.f32.mrb[0].mxu0
  %v2391 = vadd.f32 0.0, %v2390
  %v2392 = vpop.f32.mrb[0].mxu0
  %v2393 = vpop.f32.mrb[0].mxu0
  %v2394 = vadd.f32 0.0, %v2393
  %v2395 = vpop.f32.mrb[0].mxu0
  %2396 = vdwg.mxu0
  %2398 = vrot.lane.b32.xlu0 %v2275, 112
  %v2399 = vpop.permute.xlu0 %2398
  %2401 = vrot.lane.b32.xlu0 %v2276, 112
  %v2402 = vpop.permute.xlu0 %2401
  %v2404 = vsel %vm396, %v2399, 0
  %v2407 = vsel %vm396, %v2402, 0
  %2409 = vmatprep.subr.bf16.mxu0 0
  %2410 = vmatpush1.bf16.xpose.msra.mxu0 %v2407
  %2411 = vmatprep.subr.bf16.mxu0 0
  %2412 = vmatpush1.bf16.xpose.msra.mxu0 0
  %2413 = vmatprep.subr.bf16.mxu0 0
  %2414 = vmatpush1.bf16.xpose.msra.mxu0 0
  %2415 = vmatprep.subr.bf16.mxu0 0
  %2416 = vmatpush1.bf16.xpose.msra.mxu0 0
  %2417 = vmatprep.subr.bf16.mxu0 0
  %2418 = vmatpush1.bf16.xpose.msra.mxu0 0
  %2419 = vmatprep.subr.bf16.mxu0 0
  %2420 = vmatpush1.bf16.xpose.msra.mxu0 0
  %2421 = vmatprep.subr.bf16.mxu0 0
  %2422 = vmatpush1.bf16.xpose.msra.mxu0 0
  %2423 = vmatprep.subr.bf16.mxu0 0
  %2424 = vmatpush1.bf16.xpose.msra.mxu0 0
  %2425 = vmatprep.subr.bf16.mxu0 0
  %2426 = vmatpush1.bf16.xpose.msra.mxu0 0
  %2427 = vmatprep.subr.bf16.mxu0 0
  %2428 = vmatpush1.bf16.xpose.msra.mxu0 0
  %2429 = vmatprep.subr.bf16.mxu0 0
  %2430 = vmatpush1.bf16.xpose.msra.mxu0 0
  %2431 = vmatprep.subr.bf16.mxu0 0
  %2432 = vmatpush1.bf16.xpose.msra.mxu0 0
  %2433 = vmatprep.subr.bf16.mxu0 0
  %2434 = vmatpush1.bf16.xpose.msra.mxu0 0
  %2435 = vmatprep.subr.bf16.mxu0 0
  %2436 = vmatpush1.bf16.xpose.msra.mxu0 0
  %2437 = vmatprep.subr.bf16.mxu0 0
  %2438 = vmatpush1.bf16.xpose.msra.mxu0 0
  %2439 = vmatprep.subr.bf16.mxu0 0
  %2440 = vmatpush1.bf16.xpose.msra.mxu0 0
  %2441 = vmatprep.mubr.bf16.mxu0 0
  %2442 = vmatmul.mubr.bf16.gmra.mrb[0].mxu0 %v2404
  %v2443 = vpop.f32.mrb[0].mxu0
  %v2444 = vadd.f32 %v63, %v2443
  %v2445 = vpop.f32.mrb[0].mxu0
  %v2446 = vpop.f32.mrb[0].mxu0
  %v2447 = vadd.f32 %v64, %v2446
  %v2448 = vpop.f32.mrb[0].mxu0
  %2449 = vdwg.mxu0
  %v2450 = vsel %vm444, %v2444, -inf
  %2451 = vmax.xlane.f32.xlu0 %v2450
  %v2452 = vpop.xlane.xlu0 %2451
  %v2453 = vsel %vm448, %v2447, -inf
  %2454 = vmax.xlane.f32.xlu0 %v2453
  %v2455 = vpop.xlane.xlu0 %2454
  %v2456 = vsub.f32 %v2444, %v2452
  %v2457 = vsub.f32 %v2447, %v2455
  %v2458 = vmul.f32 %v2456, 1.442695
  %v2459 = vpow.pop %v2458
  %v2460 = vmul.f32 %v2457, 1.442695
  %v2461 = vpow.pop %v2460
  %v2462 = vsel %vm444, %v2459, 0.0
  %2463 = vadd.xlane.f32.xlu0 %v2462
  %v2464 = vpop.xlane.xlu0 %2463
  %v2465 = vsel %vm448, %v2461, 0.0
  %2466 = vadd.xlane.f32.xlu0 %v2465
  %v2467 = vpop.xlane.xlu0 %2466
  %v2468 = vrcp.pop %v2464
  %v2469 = vmul.f32 1.0, %v2468
  %v2470 = vrcp.pop %v2467
  %v2471 = vmul.f32 1.0, %v2470
  %v2472 = vmul.f32 %v2459, %v2469
  %v2473 = vmul.f32 %v2461, %v2471
  %v2474 = vpack.c.bf16 %v2473, %v2472
  %2476 = vrot.lane.b32.xlu0 %v2277, 112
  %v2477 = vpop.permute.xlu0 %2476
  %v2479 = vsel %vm444, %v2474, 0
  %v2482 = vsel %vm474, %v2477, 0
  %2484 = vmatprep.subr.bf16.mxu0 0
  %2485 = vmatpush1.bf16.msra.mxu0 %v2482
  %2486 = vmatprep.subr.bf16.mxu0 0
  %2487 = vmatpush1.bf16.msra.mxu0 0
  %2488 = vmatprep.subr.bf16.mxu0 0
  %2489 = vmatpush1.bf16.msra.mxu0 0
  %2490 = vmatprep.subr.bf16.mxu0 0
  %2491 = vmatpush1.bf16.msra.mxu0 0
  %2492 = vmatprep.subr.bf16.mxu0 0
  %2493 = vmatpush1.bf16.msra.mxu0 0
  %2494 = vmatprep.subr.bf16.mxu0 0
  %2495 = vmatpush1.bf16.msra.mxu0 0
  %2496 = vmatprep.subr.bf16.mxu0 0
  %2497 = vmatpush1.bf16.msra.mxu0 0
  %2498 = vmatprep.subr.bf16.mxu0 0
  %2499 = vmatpush1.bf16.msra.mxu0 0
  %2500 = vmatprep.subr.bf16.mxu0 0
  %2501 = vmatpush1.bf16.msra.mxu0 0
  %2502 = vmatprep.subr.bf16.mxu0 0
  %2503 = vmatpush1.bf16.msra.mxu0 0
  %2504 = vmatprep.subr.bf16.mxu0 0
  %2505 = vmatpush1.bf16.msra.mxu0 0
  %2506 = vmatprep.subr.bf16.mxu0 0
  %2507 = vmatpush1.bf16.msra.mxu0 0
  %2508 = vmatprep.subr.bf16.mxu0 0
  %2509 = vmatpush1.bf16.msra.mxu0 0
  %2510 = vmatprep.subr.bf16.mxu0 0
  %2511 = vmatpush1.bf16.msra.mxu0 0
  %2512 = vmatprep.subr.bf16.mxu0 0
  %2513 = vmatpush1.bf16.msra.mxu0 0
  %2514 = vmatprep.subr.bf16.mxu0 0
  %2515 = vmatpush1.bf16.msra.mxu0 0
  %2516 = vmatprep.mubr.bf16.mxu0 0
  %2517 = vmatmul.mubr.bf16.gmra.mrb[0].mxu0 %v2479
  %v2518 = vpop.f32.mrb[0].mxu0
  %v2519 = vadd.f32 0.0, %v2518
  %v2520 = vpop.f32.mrb[0].mxu0
  %v2521 = vpop.f32.mrb[0].mxu0
  %v2522 = vadd.f32 0.0, %v2521
  %v2523 = vpop.f32.mrb[0].mxu0
  %2524 = vdwg.mxu0
  %2525 = vrot.lane.b32.xlu0 %v2275, 96
  %v2526 = vpop.permute.xlu0 %2525
  %2527 = vrot.lane.b32.xlu0 %v2276, 96
  %v2528 = vpop.permute.xlu0 %2527
  %v2530 = vsel %vm396, %v2526, 0
  %v2533 = vsel %vm396, %v2528, 0
  %2535 = vmatprep.subr.bf16.mxu0 0
  %2536 = vmatpush1.bf16.xpose.msra.mxu0 %v2533
  %2537 = vmatprep.subr.bf16.mxu0 0
  %2538 = vmatpush1.bf16.xpose.msra.mxu0 0
  %2539 = vmatprep.subr.bf16.mxu0 0
  %2540 = vmatpush1.bf16.xpose.msra.mxu0 0
  %2541 = vmatprep.subr.bf16.mxu0 0
  %2542 = vmatpush1.bf16.xpose.msra.mxu0 0
  %2543 = vmatprep.subr.bf16.mxu0 0
  %2544 = vmatpush1.bf16.xpose.msra.mxu0 0
  %2545 = vmatprep.subr.bf16.mxu0 0
  %2546 = vmatpush1.bf16.xpose.msra.mxu0 0
  %2547 = vmatprep.subr.bf16.mxu0 0
  %2548 = vmatpush1.bf16.xpose.msra.mxu0 0
  %2549 = vmatprep.subr.bf16.mxu0 0
  %2550 = vmatpush1.bf16.xpose.msra.mxu0 0
  %2551 = vmatprep.subr.bf16.mxu0 0
  %2552 = vmatpush1.bf16.xpose.msra.mxu0 0
  %2553 = vmatprep.subr.bf16.mxu0 0
  %2554 = vmatpush1.bf16.xpose.msra.mxu0 0
  %2555 = vmatprep.subr.bf16.mxu0 0
  %2556 = vmatpush1.bf16.xpose.msra.mxu0 0
  %2557 = vmatprep.subr.bf16.mxu0 0
  %2558 = vmatpush1.bf16.xpose.msra.mxu0 0
  %2559 = vmatprep.subr.bf16.mxu0 0
  %2560 = vmatpush1.bf16.xpose.msra.mxu0 0
  %2561 = vmatprep.subr.bf16.mxu0 0
  %2562 = vmatpush1.bf16.xpose.msra.mxu0 0
  %2563 = vmatprep.subr.bf16.mxu0 0
  %2564 = vmatpush1.bf16.xpose.msra.mxu0 0
  %2565 = vmatprep.subr.bf16.mxu0 0
  %2566 = vmatpush1.bf16.xpose.msra.mxu0 0
  %2567 = vmatprep.mubr.bf16.mxu0 0
  %2568 = vmatmul.mubr.bf16.gmra.mrb[0].mxu0 %v2530
  %v2569 = vpop.f32.mrb[0].mxu0
  %v2570 = vadd.f32 %v63, %v2569
  %v2571 = vpop.f32.mrb[0].mxu0
  %v2572 = vpop.f32.mrb[0].mxu0
  %v2573 = vadd.f32 %v64, %v2572
  %v2574 = vpop.f32.mrb[0].mxu0
  %2575 = vdwg.mxu0
  %v2576 = vsel %vm444, %v2570, -inf
  %2577 = vmax.xlane.f32.xlu0 %v2576
  %v2578 = vpop.xlane.xlu0 %2577
  %v2579 = vsel %vm448, %v2573, -inf
  %2580 = vmax.xlane.f32.xlu0 %v2579
  %v2581 = vpop.xlane.xlu0 %2580
  %v2582 = vsub.f32 %v2570, %v2578
  %v2583 = vsub.f32 %v2573, %v2581
  %v2584 = vmul.f32 %v2582, 1.442695
  %v2585 = vpow.pop %v2584
  %v2586 = vmul.f32 %v2583, 1.442695
  %v2587 = vpow.pop %v2586
  %v2588 = vsel %vm444, %v2585, 0.0
  %2589 = vadd.xlane.f32.xlu0 %v2588
  %v2590 = vpop.xlane.xlu0 %2589
  %v2591 = vsel %vm448, %v2587, 0.0
  %2592 = vadd.xlane.f32.xlu0 %v2591
  %v2593 = vpop.xlane.xlu0 %2592
  %v2594 = vrcp.pop %v2590
  %v2595 = vmul.f32 1.0, %v2594
  %v2596 = vrcp.pop %v2593
  %v2597 = vmul.f32 1.0, %v2596
  %v2598 = vmul.f32 %v2585, %v2595
  %v2599 = vmul.f32 %v2587, %v2597
  %v2600 = vpack.c.bf16 %v2599, %v2598
  %2601 = vrot.lane.b32.xlu0 %v2277, 96
  %v2602 = vpop.permute.xlu0 %2601
  %v2604 = vsel %vm444, %v2600, 0
  %v2607 = vsel %vm474, %v2602, 0
  %2609 = vmatprep.subr.bf16.mxu0 0
  %2610 = vmatpush1.bf16.msra.mxu0 %v2607
  %2611 = vmatprep.subr.bf16.mxu0 0
  %2612 = vmatpush1.bf16.msra.mxu0 0
  %2613 = vmatprep.subr.bf16.mxu0 0
  %2614 = vmatpush1.bf16.msra.mxu0 0
  %2615 = vmatprep.subr.bf16.mxu0 0
  %2616 = vmatpush1.bf16.msra.mxu0 0
  %2617 = vmatprep.subr.bf16.mxu0 0
  %2618 = vmatpush1.bf16.msra.mxu0 0
  %2619 = vmatprep.subr.bf16.mxu0 0
  %2620 = vmatpush1.bf16.msra.mxu0 0
  %2621 = vmatprep.subr.bf16.mxu0 0
  %2622 = vmatpush1.bf16.msra.mxu0 0
  %2623 = vmatprep.subr.bf16.mxu0 0
  %2624 = vmatpush1.bf16.msra.mxu0 0
  %2625 = vmatprep.subr.bf16.mxu0 0
  %2626 = vmatpush1.bf16.msra.mxu0 0
  %2627 = vmatprep.subr.bf16.mxu0 0
  %2628 = vmatpush1.bf16.msra.mxu0 0
  %2629 = vmatprep.subr.bf16.mxu0 0
  %2630 = vmatpush1.bf16.msra.mxu0 0
  %2631 = vmatprep.subr.bf16.mxu0 0
  %2632 = vmatpush1.bf16.msra.mxu0 0
  %2633 = vmatprep.subr.bf16.mxu0 0
  %2634 = vmatpush1.bf16.msra.mxu0 0
  %2635 = vmatprep.subr.bf16.mxu0 0
  %2636 = vmatpush1.bf16.msra.mxu0 0
  %2637 = vmatprep.subr.bf16.mxu0 0
  %2638 = vmatpush1.bf16.msra.mxu0 0
  %2639 = vmatprep.subr.bf16.mxu0 0
  %2640 = vmatpush1.bf16.msra.mxu0 0
  %2641 = vmatprep.mubr.bf16.mxu0 0
  %2642 = vmatmul.mubr.bf16.gmra.mrb[0].mxu0 %v2604
  %v2643 = vpop.f32.mrb[0].mxu0
  %v2644 = vadd.f32 0.0, %v2643
  %v2645 = vpop.f32.mrb[0].mxu0
  %v2646 = vpop.f32.mrb[0].mxu0
  %v2647 = vadd.f32 0.0, %v2646
  %v2648 = vpop.f32.mrb[0].mxu0
  %2649 = vdwg.mxu0
  %2650 = vrot.lane.b32.xlu0 %v2275, 80
  %v2651 = vpop.permute.xlu0 %2650
  %2652 = vrot.lane.b32.xlu0 %v2276, 80
  %v2653 = vpop.permute.xlu0 %2652
  %v2655 = vsel %vm396, %v2651, 0
  %v2658 = vsel %vm396, %v2653, 0
  %2660 = vmatprep.subr.bf16.mxu0 0
  %2661 = vmatpush1.bf16.xpose.msra.mxu0 %v2658
  %2662 = vmatprep.subr.bf16.mxu0 0
  %2663 = vmatpush1.bf16.xpose.msra.mxu0 0
  %2664 = vmatprep.subr.bf16.mxu0 0
  %2665 = vmatpush1.bf16.xpose.msra.mxu0 0
  %2666 = vmatprep.subr.bf16.mxu0 0
  %2667 = vmatpush1.bf16.xpose.msra.mxu0 0
  %2668 = vmatprep.subr.bf16.mxu0 0
  %2669 = vmatpush1.bf16.xpose.msra.mxu0 0
  %2670 = vmatprep.subr.bf16.mxu0 0
  %2671 = vmatpush1.bf16.xpose.msra.mxu0 0
  %2672 = vmatprep.subr.bf16.mxu0 0
  %2673 = vmatpush1.bf16.xpose.msra.mxu0 0
  %2674 = vmatprep.subr.bf16.mxu0 0
  %2675 = vmatpush1.bf16.xpose.msra.mxu0 0
  %2676 = vmatprep.subr.bf16.mxu0 0
  %2677 = vmatpush1.bf16.xpose.msra.mxu0 0
  %2678 = vmatprep.subr.bf16.mxu0 0
  %2679 = vmatpush1.bf16.xpose.msra.mxu0 0
  %2680 = vmatprep.subr.bf16.mxu0 0
  %2681 = vmatpush1.bf16.xpose.msra.mxu0 0
  %2682 = vmatprep.subr.bf16.mxu0 0
  %2683 = vmatpush1.bf16.xpose.msra.mxu0 0
  %2684 = vmatprep.subr.bf16.mxu0 0
  %2685 = vmatpush1.bf16.xpose.msra.mxu0 0
  %2686 = vmatprep.subr.bf16.mxu0 0
  %2687 = vmatpush1.bf16.xpose.msra.mxu0 0
  %2688 = vmatprep.subr.bf16.mxu0 0
  %2689 = vmatpush1.bf16.xpose.msra.mxu0 0
  %2690 = vmatprep.subr.bf16.mxu0 0
  %2691 = vmatpush1.bf16.xpose.msra.mxu0 0
  %2692 = vmatprep.mubr.bf16.mxu0 0
  %2693 = vmatmul.mubr.bf16.gmra.mrb[0].mxu0 %v2655
  %v2694 = vpop.f32.mrb[0].mxu0
  %v2695 = vadd.f32 %v63, %v2694
  %v2696 = vpop.f32.mrb[0].mxu0
  %v2697 = vpop.f32.mrb[0].mxu0
  %v2698 = vadd.f32 %v64, %v2697
  %v2699 = vpop.f32.mrb[0].mxu0
  %2700 = vdwg.mxu0
  %v2701 = vsel %vm444, %v2695, -inf
  %2702 = vmax.xlane.f32.xlu0 %v2701
  %v2703 = vpop.xlane.xlu0 %2702
  %v2704 = vsel %vm448, %v2698, -inf
  %2705 = vmax.xlane.f32.xlu0 %v2704
  %v2706 = vpop.xlane.xlu0 %2705
  %v2707 = vsub.f32 %v2695, %v2703
  %v2708 = vsub.f32 %v2698, %v2706
  %v2709 = vmul.f32 %v2707, 1.442695
  %v2710 = vpow.pop %v2709
  %v2711 = vmul.f32 %v2708, 1.442695
  %v2712 = vpow.pop %v2711
  %v2713 = vsel %vm444, %v2710, 0.0
  %2714 = vadd.xlane.f32.xlu0 %v2713
  %v2715 = vpop.xlane.xlu0 %2714
  %v2716 = vsel %vm448, %v2712, 0.0
  %2717 = vadd.xlane.f32.xlu0 %v2716
  %v2718 = vpop.xlane.xlu0 %2717
  %v2719 = vrcp.pop %v2715
  %v2720 = vmul.f32 1.0, %v2719
  %v2721 = vrcp.pop %v2718
  %v2722 = vmul.f32 1.0, %v2721
  %v2723 = vmul.f32 %v2710, %v2720
  %v2724 = vmul.f32 %v2712, %v2722
  %v2725 = vpack.c.bf16 %v2724, %v2723
  %2726 = vrot.lane.b32.xlu0 %v2277, 80
  %v2727 = vpop.permute.xlu0 %2726
  %v2729 = vsel %vm444, %v2725, 0
  %v2732 = vsel %vm474, %v2727, 0
  %2734 = vmatprep.subr.bf16.mxu0 0
  %2735 = vmatpush1.bf16.msra.mxu0 %v2732
  %2736 = vmatprep.subr.bf16.mxu0 0
  %2737 = vmatpush1.bf16.msra.mxu0 0
  %2738 = vmatprep.subr.bf16.mxu0 0
  %2739 = vmatpush1.bf16.msra.mxu0 0
  %2740 = vmatprep.subr.bf16.mxu0 0
  %2741 = vmatpush1.bf16.msra.mxu0 0
  %2742 = vmatprep.subr.bf16.mxu0 0
  %2743 = vmatpush1.bf16.msra.mxu0 0
  %2744 = vmatprep.subr.bf16.mxu0 0
  %2745 = vmatpush1.bf16.msra.mxu0 0
  %2746 = vmatprep.subr.bf16.mxu0 0
  %2747 = vmatpush1.bf16.msra.mxu0 0
  %2748 = vmatprep.subr.bf16.mxu0 0
  %2749 = vmatpush1.bf16.msra.mxu0 0
  %2750 = vmatprep.subr.bf16.mxu0 0
  %2751 = vmatpush1.bf16.msra.mxu0 0
  %2752 = vmatprep.subr.bf16.mxu0 0
  %2753 = vmatpush1.bf16.msra.mxu0 0
  %2754 = vmatprep.subr.bf16.mxu0 0
  %2755 = vmatpush1.bf16.msra.mxu0 0
  %2756 = vmatprep.subr.bf16.mxu0 0
  %2757 = vmatpush1.bf16.msra.mxu0 0
  %2758 = vmatprep.subr.bf16.mxu0 0
  %2759 = vmatpush1.bf16.msra.mxu0 0
  %2760 = vmatprep.subr.bf16.mxu0 0
  %2761 = vmatpush1.bf16.msra.mxu0 0
  %2762 = vmatprep.subr.bf16.mxu0 0
  %2763 = vmatpush1.bf16.msra.mxu0 0
  %2764 = vmatprep.subr.bf16.mxu0 0
  %2765 = vmatpush1.bf16.msra.mxu0 0
  %2766 = vmatprep.mubr.bf16.mxu0 0
  %2767 = vmatmul.mubr.bf16.gmra.mrb[0].mxu0 %v2729
  %v2768 = vpop.f32.mrb[0].mxu0
  %v2769 = vadd.f32 0.0, %v2768
  %v2770 = vpop.f32.mrb[0].mxu0
  %v2771 = vpop.f32.mrb[0].mxu0
  %v2772 = vadd.f32 0.0, %v2771
  %v2773 = vpop.f32.mrb[0].mxu0
  %2774 = vdwg.mxu0
  %2775 = vrot.lane.b32.xlu0 %v2275, 64
  %v2776 = vpop.permute.xlu0 %2775
  %2777 = vrot.lane.b32.xlu0 %v2276, 64
  %v2778 = vpop.permute.xlu0 %2777
  %v2780 = vsel %vm396, %v2776, 0
  %v2783 = vsel %vm396, %v2778, 0
  %2785 = vmatprep.subr.bf16.mxu0 0
  %2786 = vmatpush1.bf16.xpose.msra.mxu0 %v2783
  %2787 = vmatprep.subr.bf16.mxu0 0
  %2788 = vmatpush1.bf16.xpose.msra.mxu0 0
  %2789 = vmatprep.subr.bf16.mxu0 0
  %2790 = vmatpush1.bf16.xpose.msra.mxu0 0
  %2791 = vmatprep.subr.bf16.mxu0 0
  %2792 = vmatpush1.bf16.xpose.msra.mxu0 0
  %2793 = vmatprep.subr.bf16.mxu0 0
  %2794 = vmatpush1.bf16.xpose.msra.mxu0 0
  %2795 = vmatprep.subr.bf16.mxu0 0
  %2796 = vmatpush1.bf16.xpose.msra.mxu0 0
  %2797 = vmatprep.subr.bf16.mxu0 0
  %2798 = vmatpush1.bf16.xpose.msra.mxu0 0
  %2799 = vmatprep.subr.bf16.mxu0 0
  %2800 = vmatpush1.bf16.xpose.msra.mxu0 0
  %2801 = vmatprep.subr.bf16.mxu0 0
  %2802 = vmatpush1.bf16.xpose.msra.mxu0 0
  %2803 = vmatprep.subr.bf16.mxu0 0
  %2804 = vmatpush1.bf16.xpose.msra.mxu0 0
  %2805 = vmatprep.subr.bf16.mxu0 0
  %2806 = vmatpush1.bf16.xpose.msra.mxu0 0
  %2807 = vmatprep.subr.bf16.mxu0 0
  %2808 = vmatpush1.bf16.xpose.msra.mxu0 0
  %2809 = vmatprep.subr.bf16.mxu0 0
  %2810 = vmatpush1.bf16.xpose.msra.mxu0 0
  %2811 = vmatprep.subr.bf16.mxu0 0
  %2812 = vmatpush1.bf16.xpose.msra.mxu0 0
  %2813 = vmatprep.subr.bf16.mxu0 0
  %2814 = vmatpush1.bf16.xpose.msra.mxu0 0
  %2815 = vmatprep.subr.bf16.mxu0 0
  %2816 = vmatpush1.bf16.xpose.msra.mxu0 0
  %2817 = vmatprep.mubr.bf16.mxu0 0
  %2818 = vmatmul.mubr.bf16.gmra.mrb[0].mxu0 %v2780
  %v2819 = vpop.f32.mrb[0].mxu0
  %v2820 = vadd.f32 %v63, %v2819
  %v2821 = vpop.f32.mrb[0].mxu0
  %v2822 = vpop.f32.mrb[0].mxu0
  %v2823 = vadd.f32 %v64, %v2822
  %v2824 = vpop.f32.mrb[0].mxu0
  %2825 = vdwg.mxu0
  %v2826 = vsel %vm444, %v2820, -inf
  %2827 = vmax.xlane.f32.xlu0 %v2826
  %v2828 = vpop.xlane.xlu0 %2827
  %v2829 = vsel %vm448, %v2823, -inf
  %2830 = vmax.xlane.f32.xlu0 %v2829
  %v2831 = vpop.xlane.xlu0 %2830
  %v2832 = vsub.f32 %v2820, %v2828
  %v2833 = vsub.f32 %v2823, %v2831
  %v2834 = vmul.f32 %v2832, 1.442695
  %v2835 = vpow.pop %v2834
  %v2836 = vmul.f32 %v2833, 1.442695
  %v2837 = vpow.pop %v2836
  %v2838 = vsel %vm444, %v2835, 0.0
  %2839 = vadd.xlane.f32.xlu0 %v2838
  %v2840 = vpop.xlane.xlu0 %2839
  %v2841 = vsel %vm448, %v2837, 0.0
  %2842 = vadd.xlane.f32.xlu0 %v2841
  %v2843 = vpop.xlane.xlu0 %2842
  %v2844 = vrcp.pop %v2840
  %v2845 = vmul.f32 1.0, %v2844
  %v2846 = vrcp.pop %v2843
  %v2847 = vmul.f32 1.0, %v2846
  %v2848 = vmul.f32 %v2835, %v2845
  %v2849 = vmul.f32 %v2837, %v2847
  %v2850 = vpack.c.bf16 %v2849, %v2848
  %2851 = vrot.lane.b32.xlu0 %v2277, 64
  %v2852 = vpop.permute.xlu0 %2851
  %v2854 = vsel %vm444, %v2850, 0
  %v2857 = vsel %vm474, %v2852, 0
  %2859 = vmatprep.subr.bf16.mxu0 0
  %2860 = vmatpush1.bf16.msra.mxu0 %v2857
  %2861 = vmatprep.subr.bf16.mxu0 0
  %2862 = vmatpush1.bf16.msra.mxu0 0
  %2863 = vmatprep.subr.bf16.mxu0 0
  %2864 = vmatpush1.bf16.msra.mxu0 0
  %2865 = vmatprep.subr.bf16.mxu0 0
  %2866 = vmatpush1.bf16.msra.mxu0 0
  %2867 = vmatprep.subr.bf16.mxu0 0
  %2868 = vmatpush1.bf16.msra.mxu0 0
  %2869 = vmatprep.subr.bf16.mxu0 0
  %2870 = vmatpush1.bf16.msra.mxu0 0
  %2871 = vmatprep.subr.bf16.mxu0 0
  %2872 = vmatpush1.bf16.msra.mxu0 0
  %2873 = vmatprep.subr.bf16.mxu0 0
  %2874 = vmatpush1.bf16.msra.mxu0 0
  %2875 = vmatprep.subr.bf16.mxu0 0
  %2876 = vmatpush1.bf16.msra.mxu0 0
  %2877 = vmatprep.subr.bf16.mxu0 0
  %2878 = vmatpush1.bf16.msra.mxu0 0
  %2879 = vmatprep.subr.bf16.mxu0 0
  %2880 = vmatpush1.bf16.msra.mxu0 0
  %2881 = vmatprep.subr.bf16.mxu0 0
  %2882 = vmatpush1.bf16.msra.mxu0 0
  %2883 = vmatprep.subr.bf16.mxu0 0
  %2884 = vmatpush1.bf16.msra.mxu0 0
  %2885 = vmatprep.subr.bf16.mxu0 0
  %2886 = vmatpush1.bf16.msra.mxu0 0
  %2887 = vmatprep.subr.bf16.mxu0 0
  %2888 = vmatpush1.bf16.msra.mxu0 0
  %2889 = vmatprep.subr.bf16.mxu0 0
  %2890 = vmatpush1.bf16.msra.mxu0 0
  %2891 = vmatprep.mubr.bf16.mxu0 0
  %2892 = vmatmul.mubr.bf16.gmra.mrb[0].mxu0 %v2854
  %v2893 = vpop.f32.mrb[0].mxu0
  %v2894 = vadd.f32 0.0, %v2893
  %v2895 = vpop.f32.mrb[0].mxu0
  %v2896 = vpop.f32.mrb[0].mxu0
  %v2897 = vadd.f32 0.0, %v2896
  %v2898 = vpop.f32.mrb[0].mxu0
  %2899 = vdwg.mxu0
  %2900 = vrot.lane.b32.xlu0 %v2275, 48
  %v2901 = vpop.permute.xlu0 %2900
  %2902 = vrot.lane.b32.xlu0 %v2276, 48
  %v2903 = vpop.permute.xlu0 %2902
  %v2905 = vsel %vm396, %v2901, 0
  %v2908 = vsel %vm396, %v2903, 0
  %2910 = vmatprep.subr.bf16.mxu0 0
  %2911 = vmatpush1.bf16.xpose.msra.mxu0 %v2908
  %2912 = vmatprep.subr.bf16.mxu0 0
  %2913 = vmatpush1.bf16.xpose.msra.mxu0 0
  %2914 = vmatprep.subr.bf16.mxu0 0
  %2915 = vmatpush1.bf16.xpose.msra.mxu0 0
  %2916 = vmatprep.subr.bf16.mxu0 0
  %2917 = vmatpush1.bf16.xpose.msra.mxu0 0
  %2918 = vmatprep.subr.bf16.mxu0 0
  %2919 = vmatpush1.bf16.xpose.msra.mxu0 0
  %2920 = vmatprep.subr.bf16.mxu0 0
  %2921 = vmatpush1.bf16.xpose.msra.mxu0 0
  %2922 = vmatprep.subr.bf16.mxu0 0
  %2923 = vmatpush1.bf16.xpose.msra.mxu0 0
  %2924 = vmatprep.subr.bf16.mxu0 0
  %2925 = vmatpush1.bf16.xpose.msra.mxu0 0
  %2926 = vmatprep.subr.bf16.mxu0 0
  %2927 = vmatpush1.bf16.xpose.msra.mxu0 0
  %2928 = vmatprep.subr.bf16.mxu0 0
  %2929 = vmatpush1.bf16.xpose.msra.mxu0 0
  %2930 = vmatprep.subr.bf16.mxu0 0
  %2931 = vmatpush1.bf16.xpose.msra.mxu0 0
  %2932 = vmatprep.subr.bf16.mxu0 0
  %2933 = vmatpush1.bf16.xpose.msra.mxu0 0
  %2934 = vmatprep.subr.bf16.mxu0 0
  %2935 = vmatpush1.bf16.xpose.msra.mxu0 0
  %2936 = vmatprep.subr.bf16.mxu0 0
  %2937 = vmatpush1.bf16.xpose.msra.mxu0 0
  %2938 = vmatprep.subr.bf16.mxu0 0
  %2939 = vmatpush1.bf16.xpose.msra.mxu0 0
  %2940 = vmatprep.subr.bf16.mxu0 0
  %2941 = vmatpush1.bf16.xpose.msra.mxu0 0
  %2942 = vmatprep.mubr.bf16.mxu0 0
  %2943 = vmatmul.mubr.bf16.gmra.mrb[0].mxu0 %v2905
  %v2944 = vpop.f32.mrb[0].mxu0
  %v2945 = vadd.f32 %v63, %v2944
  %v2946 = vpop.f32.mrb[0].mxu0
  %v2947 = vpop.f32.mrb[0].mxu0
  %v2948 = vadd.f32 %v64, %v2947
  %v2949 = vpop.f32.mrb[0].mxu0
  %2950 = vdwg.mxu0
  %v2951 = vsel %vm444, %v2945, -inf
  %2952 = vmax.xlane.f32.xlu0 %v2951
  %v2953 = vpop.xlane.xlu0 %2952
  %v2954 = vsel %vm448, %v2948, -inf
  %2955 = vmax.xlane.f32.xlu0 %v2954
  %v2956 = vpop.xlane.xlu0 %2955
  %v2957 = vsub.f32 %v2945, %v2953
  %v2958 = vsub.f32 %v2948, %v2956
  %v2959 = vmul.f32 %v2957, 1.442695
  %v2960 = vpow.pop %v2959
  %v2961 = vmul.f32 %v2958, 1.442695
  %v2962 = vpow.pop %v2961
  %v2963 = vsel %vm444, %v2960, 0.0
  %2964 = vadd.xlane.f32.xlu0 %v2963
  %v2965 = vpop.xlane.xlu0 %2964
  %v2966 = vsel %vm448, %v2962, 0.0
  %2967 = vadd.xlane.f32.xlu0 %v2966
  %v2968 = vpop.xlane.xlu0 %2967
  %v2969 = vrcp.pop %v2965
  %v2970 = vmul.f32 1.0, %v2969
  %v2971 = vrcp.pop %v2968
  %v2972 = vmul.f32 1.0, %v2971
  %v2973 = vmul.f32 %v2960, %v2970
  %v2974 = vmul.f32 %v2962, %v2972
  %v2975 = vpack.c.bf16 %v2974, %v2973
  %2976 = vrot.lane.b32.xlu0 %v2277, 48
  %v2977 = vpop.permute.xlu0 %2976
  %v2979 = vsel %vm444, %v2975, 0
  %v2982 = vsel %vm474, %v2977, 0
  %2984 = vmatprep.subr.bf16.mxu0 0
  %2985 = vmatpush1.bf16.msra.mxu0 %v2982
  %2986 = vmatprep.subr.bf16.mxu0 0
  %2987 = vmatpush1.bf16.msra.mxu0 0
  %2988 = vmatprep.subr.bf16.mxu0 0
  %2989 = vmatpush1.bf16.msra.mxu0 0
  %2990 = vmatprep.subr.bf16.mxu0 0
  %2991 = vmatpush1.bf16.msra.mxu0 0
  %2992 = vmatprep.subr.bf16.mxu0 0
  %2993 = vmatpush1.bf16.msra.mxu0 0
  %2994 = vmatprep.subr.bf16.mxu0 0
  %2995 = vmatpush1.bf16.msra.mxu0 0
  %2996 = vmatprep.subr.bf16.mxu0 0
  %2997 = vmatpush1.bf16.msra.mxu0 0
  %2998 = vmatprep.subr.bf16.mxu0 0
  %2999 = vmatpush1.bf16.msra.mxu0 0
  %3000 = vmatprep.subr.bf16.mxu0 0
  %3001 = vmatpush1.bf16.msra.mxu0 0
  %3002 = vmatprep.subr.bf16.mxu0 0
  %3003 = vmatpush1.bf16.msra.mxu0 0
  %3004 = vmatprep.subr.bf16.mxu0 0
  %3005 = vmatpush1.bf16.msra.mxu0 0
  %3006 = vmatprep.subr.bf16.mxu0 0
  %3007 = vmatpush1.bf16.msra.mxu0 0
  %3008 = vmatprep.subr.bf16.mxu0 0
  %3009 = vmatpush1.bf16.msra.mxu0 0
  %3010 = vmatprep.subr.bf16.mxu0 0
  %3011 = vmatpush1.bf16.msra.mxu0 0
  %3012 = vmatprep.subr.bf16.mxu0 0
  %3013 = vmatpush1.bf16.msra.mxu0 0
  %3014 = vmatprep.subr.bf16.mxu0 0
  %3015 = vmatpush1.bf16.msra.mxu0 0
  %3016 = vmatprep.mubr.bf16.mxu0 0
  %3017 = vmatmul.mubr.bf16.gmra.mrb[0].mxu0 %v2979
  %v3018 = vpop.f32.mrb[0].mxu0
  %v3019 = vadd.f32 0.0, %v3018
  %v3020 = vpop.f32.mrb[0].mxu0
  %v3021 = vpop.f32.mrb[0].mxu0
  %v3022 = vadd.f32 0.0, %v3021
  %v3023 = vpop.f32.mrb[0].mxu0
  %3024 = vdwg.mxu0
  %3025 = vrot.lane.b32.xlu0 %v2275, 32
  %v3026 = vpop.permute.xlu0 %3025
  %3027 = vrot.lane.b32.xlu0 %v2276, 32
  %v3028 = vpop.permute.xlu0 %3027
  %v3030 = vsel %vm396, %v3026, 0
  %v3033 = vsel %vm396, %v3028, 0
  %3035 = vmatprep.subr.bf16.mxu0 0
  %3036 = vmatpush1.bf16.xpose.msra.mxu0 %v3033
  %3037 = vmatprep.subr.bf16.mxu0 0
  %3038 = vmatpush1.bf16.xpose.msra.mxu0 0
  %3039 = vmatprep.subr.bf16.mxu0 0
  %3040 = vmatpush1.bf16.xpose.msra.mxu0 0
  %3041 = vmatprep.subr.bf16.mxu0 0
  %3042 = vmatpush1.bf16.xpose.msra.mxu0 0
  %3043 = vmatprep.subr.bf16.mxu0 0
  %3044 = vmatpush1.bf16.xpose.msra.mxu0 0
  %3045 = vmatprep.subr.bf16.mxu0 0
  %3046 = vmatpush1.bf16.xpose.msra.mxu0 0
  %3047 = vmatprep.subr.bf16.mxu0 0
  %3048 = vmatpush1.bf16.xpose.msra.mxu0 0
  %3049 = vmatprep.subr.bf16.mxu0 0
  %3050 = vmatpush1.bf16.xpose.msra.mxu0 0
  %3051 = vmatprep.subr.bf16.mxu0 0
  %3052 = vmatpush1.bf16.xpose.msra.mxu0 0
  %3053 = vmatprep.subr.bf16.mxu0 0
  %3054 = vmatpush1.bf16.xpose.msra.mxu0 0
  %3055 = vmatprep.subr.bf16.mxu0 0
  %3056 = vmatpush1.bf16.xpose.msra.mxu0 0
  %3057 = vmatprep.subr.bf16.mxu0 0
  %3058 = vmatpush1.bf16.xpose.msra.mxu0 0
  %3059 = vmatprep.subr.bf16.mxu0 0
  %3060 = vmatpush1.bf16.xpose.msra.mxu0 0
  %3061 = vmatprep.subr.bf16.mxu0 0
  %3062 = vmatpush1.bf16.xpose.msra.mxu0 0
  %3063 = vmatprep.subr.bf16.mxu0 0
  %3064 = vmatpush1.bf16.xpose.msra.mxu0 0
  %3065 = vmatprep.subr.bf16.mxu0 0
  %3066 = vmatpush1.bf16.xpose.msra.mxu0 0
  %3067 = vmatprep.mubr.bf16.mxu0 0
  %3068 = vmatmul.mubr.bf16.gmra.mrb[0].mxu0 %v3030
  %v3069 = vpop.f32.mrb[0].mxu0
  %v3070 = vadd.f32 %v63, %v3069
  %v3071 = vpop.f32.mrb[0].mxu0
  %v3072 = vpop.f32.mrb[0].mxu0
  %v3073 = vadd.f32 %v64, %v3072
  %v3074 = vpop.f32.mrb[0].mxu0
  %3075 = vdwg.mxu0
  %v3076 = vsel %vm444, %v3070, -inf
  %3077 = vmax.xlane.f32.xlu0 %v3076
  %v3078 = vpop.xlane.xlu0 %3077
  %v3079 = vsel %vm448, %v3073, -inf
  %3080 = vmax.xlane.f32.xlu0 %v3079
  %v3081 = vpop.xlane.xlu0 %3080
  %v3082 = vsub.f32 %v3070, %v3078
  %v3083 = vsub.f32 %v3073, %v3081
  %v3084 = vmul.f32 %v3082, 1.442695
  %v3085 = vpow.pop %v3084
  %v3086 = vmul.f32 %v3083, 1.442695
  %v3087 = vpow.pop %v3086
  %v3088 = vsel %vm444, %v3085, 0.0
  %3089 = vadd.xlane.f32.xlu0 %v3088
  %v3090 = vpop.xlane.xlu0 %3089
  %v3091 = vsel %vm448, %v3087, 0.0
  %3092 = vadd.xlane.f32.xlu0 %v3091
  %v3093 = vpop.xlane.xlu0 %3092
  %v3094 = vrcp.pop %v3090
  %v3095 = vmul.f32 1.0, %v3094
  %v3096 = vrcp.pop %v3093
  %v3097 = vmul.f32 1.0, %v3096
  %v3098 = vmul.f32 %v3085, %v3095
  %v3099 = vmul.f32 %v3087, %v3097
  %v3100 = vpack.c.bf16 %v3099, %v3098
  %3101 = vrot.lane.b32.xlu0 %v2277, 32
  %v3102 = vpop.permute.xlu0 %3101
  %v3104 = vsel %vm444, %v3100, 0
  %v3107 = vsel %vm474, %v3102, 0
  %3109 = vmatprep.subr.bf16.mxu0 0
  %3110 = vmatpush1.bf16.msra.mxu0 %v3107
  %3111 = vmatprep.subr.bf16.mxu0 0
  %3112 = vmatpush1.bf16.msra.mxu0 0
  %3113 = vmatprep.subr.bf16.mxu0 0
  %3114 = vmatpush1.bf16.msra.mxu0 0
  %3115 = vmatprep.subr.bf16.mxu0 0
  %3116 = vmatpush1.bf16.msra.mxu0 0
  %3117 = vmatprep.subr.bf16.mxu0 0
  %3118 = vmatpush1.bf16.msra.mxu0 0
  %3119 = vmatprep.subr.bf16.mxu0 0
  %3120 = vmatpush1.bf16.msra.mxu0 0
  %3121 = vmatprep.subr.bf16.mxu0 0
  %3122 = vmatpush1.bf16.msra.mxu0 0
  %3123 = vmatprep.subr.bf16.mxu0 0
  %3124 = vmatpush1.bf16.msra.mxu0 0
  %3125 = vmatprep.subr.bf16.mxu0 0
  %3126 = vmatpush1.bf16.msra.mxu0 0
  %3127 = vmatprep.subr.bf16.mxu0 0
  %3128 = vmatpush1.bf16.msra.mxu0 0
  %3129 = vmatprep.subr.bf16.mxu0 0
  %3130 = vmatpush1.bf16.msra.mxu0 0
  %3131 = vmatprep.subr.bf16.mxu0 0
  %3132 = vmatpush1.bf16.msra.mxu0 0
  %3133 = vmatprep.subr.bf16.mxu0 0
  %3134 = vmatpush1.bf16.msra.mxu0 0
  %3135 = vmatprep.subr.bf16.mxu0 0
  %3136 = vmatpush1.bf16.msra.mxu0 0
  %3137 = vmatprep.subr.bf16.mxu0 0
  %3138 = vmatpush1.bf16.msra.mxu0 0
  %3139 = vmatprep.subr.bf16.mxu0 0
  %3140 = vmatpush1.bf16.msra.mxu0 0
  %3141 = vmatprep.mubr.bf16.mxu0 0
  %3142 = vmatmul.mubr.bf16.gmra.mrb[0].mxu0 %v3104
  %v3143 = vpop.f32.mrb[0].mxu0
  %v3144 = vadd.f32 0.0, %v3143
  %v3145 = vpop.f32.mrb[0].mxu0
  %v3146 = vpop.f32.mrb[0].mxu0
  %v3147 = vadd.f32 0.0, %v3146
  %v3148 = vpop.f32.mrb[0].mxu0
  %3149 = vdwg.mxu0
  %3150 = vrot.lane.b32.xlu0 %v2275, 16
  %v3151 = vpop.permute.xlu0 %3150
  %3152 = vrot.lane.b32.xlu0 %v2276, 16
  %v3153 = vpop.permute.xlu0 %3152
  %v3155 = vsel %vm396, %v3151, 0
  %v3158 = vsel %vm396, %v3153, 0
  %3160 = vmatprep.subr.bf16.mxu0 0
  %3161 = vmatpush1.bf16.xpose.msra.mxu0 %v3158
  %3162 = vmatprep.subr.bf16.mxu0 0
  %3163 = vmatpush1.bf16.xpose.msra.mxu0 0
  %3164 = vmatprep.subr.bf16.mxu0 0
  %3165 = vmatpush1.bf16.xpose.msra.mxu0 0
  %3166 = vmatprep.subr.bf16.mxu0 0
  %3167 = vmatpush1.bf16.xpose.msra.mxu0 0
  %3168 = vmatprep.subr.bf16.mxu0 0
  %3169 = vmatpush1.bf16.xpose.msra.mxu0 0
  %3170 = vmatprep.subr.bf16.mxu0 0
  %3171 = vmatpush1.bf16.xpose.msra.mxu0 0
  %3172 = vmatprep.subr.bf16.mxu0 0
  %3173 = vmatpush1.bf16.xpose.msra.mxu0 0
  %3174 = vmatprep.subr.bf16.mxu0 0
  %3175 = vmatpush1.bf16.xpose.msra.mxu0 0
  %3176 = vmatprep.subr.bf16.mxu0 0
  %3177 = vmatpush1.bf16.xpose.msra.mxu0 0
  %3178 = vmatprep.subr.bf16.mxu0 0
  %3179 = vmatpush1.bf16.xpose.msra.mxu0 0
  %3180 = vmatprep.subr.bf16.mxu0 0
  %3181 = vmatpush1.bf16.xpose.msra.mxu0 0
  %3182 = vmatprep.subr.bf16.mxu0 0
  %3183 = vmatpush1.bf16.xpose.msra.mxu0 0
  %3184 = vmatprep.subr.bf16.mxu0 0
  %3185 = vmatpush1.bf16.xpose.msra.mxu0 0
  %3186 = vmatprep.subr.bf16.mxu0 0
  %3187 = vmatpush1.bf16.xpose.msra.mxu0 0
  %3188 = vmatprep.subr.bf16.mxu0 0
  %3189 = vmatpush1.bf16.xpose.msra.mxu0 0
  %3190 = vmatprep.subr.bf16.mxu0 0
  %3191 = vmatpush1.bf16.xpose.msra.mxu0 0
  %3192 = vmatprep.mubr.bf16.mxu0 0
  %3193 = vmatmul.mubr.bf16.gmra.mrb[0].mxu0 %v3155
  %v3194 = vpop.f32.mrb[0].mxu0
  %v3195 = vadd.f32 %v63, %v3194
  %v3196 = vpop.f32.mrb[0].mxu0
  %v3197 = vpop.f32.mrb[0].mxu0
  %v3198 = vadd.f32 %v64, %v3197
  %v3199 = vpop.f32.mrb[0].mxu0
  %3200 = vdwg.mxu0
  %v3201 = vsel %vm444, %v3195, -inf
  %3202 = vmax.xlane.f32.xlu0 %v3201
  %v3203 = vpop.xlane.xlu0 %3202
  %v3204 = vsel %vm448, %v3198, -inf
  %3205 = vmax.xlane.f32.xlu0 %v3204
  %v3206 = vpop.xlane.xlu0 %3205
  %v3207 = vsub.f32 %v3195, %v3203
  %v3208 = vsub.f32 %v3198, %v3206
  %v3209 = vmul.f32 %v3207, 1.442695
  %v3210 = vpow.pop %v3209
  %v3211 = vmul.f32 %v3208, 1.442695
  %v3212 = vpow.pop %v3211
  %v3213 = vsel %vm444, %v3210, 0.0
  %3214 = vadd.xlane.f32.xlu0 %v3213
  %v3215 = vpop.xlane.xlu0 %3214
  %v3216 = vsel %vm448, %v3212, 0.0
  %3217 = vadd.xlane.f32.xlu0 %v3216
  %v3218 = vpop.xlane.xlu0 %3217
  %v3219 = vrcp.pop %v3215
  %v3220 = vmul.f32 1.0, %v3219
  %v3221 = vrcp.pop %v3218
  %v3222 = vmul.f32 1.0, %v3221
  %v3223 = vmul.f32 %v3210, %v3220
  %v3224 = vmul.f32 %v3212, %v3222
  %v3225 = vpack.c.bf16 %v3224, %v3223
  %3226 = vrot.lane.b32.xlu0 %v2277, 16
  %v3227 = vpop.permute.xlu0 %3226
  %v3229 = vsel %vm444, %v3225, 0
  %v3232 = vsel %vm474, %v3227, 0
  %3234 = vmatprep.subr.bf16.mxu0 0
  %3235 = vmatpush1.bf16.msra.mxu0 %v3232
  %3236 = vmatprep.subr.bf16.mxu0 0
  %3237 = vmatpush1.bf16.msra.mxu0 0
  %3238 = vmatprep.subr.bf16.mxu0 0
  %3239 = vmatpush1.bf16.msra.mxu0 0
  %3240 = vmatprep.subr.bf16.mxu0 0
  %3241 = vmatpush1.bf16.msra.mxu0 0
  %3242 = vmatprep.subr.bf16.mxu0 0
  %3243 = vmatpush1.bf16.msra.mxu0 0
  %3244 = vmatprep.subr.bf16.mxu0 0
  %3245 = vmatpush1.bf16.msra.mxu0 0
  %3246 = vmatprep.subr.bf16.mxu0 0
  %3247 = vmatpush1.bf16.msra.mxu0 0
  %3248 = vmatprep.subr.bf16.mxu0 0
  %3249 = vmatpush1.bf16.msra.mxu0 0
  %3250 = vmatprep.subr.bf16.mxu0 0
  %3251 = vmatpush1.bf16.msra.mxu0 0
  %3252 = vmatprep.subr.bf16.mxu0 0
  %3253 = vmatpush1.bf16.msra.mxu0 0
  %3254 = vmatprep.subr.bf16.mxu0 0
  %3255 = vmatpush1.bf16.msra.mxu0 0
  %3256 = vmatprep.subr.bf16.mxu0 0
  %3257 = vmatpush1.bf16.msra.mxu0 0
  %3258 = vmatprep.subr.bf16.mxu0 0
  %3259 = vmatpush1.bf16.msra.mxu0 0
  %3260 = vmatprep.subr.bf16.mxu0 0
  %3261 = vmatpush1.bf16.msra.mxu0 0
  %3262 = vmatprep.subr.bf16.mxu0 0
  %3263 = vmatpush1.bf16.msra.mxu0 0
  %3264 = vmatprep.subr.bf16.mxu0 0
  %3265 = vmatpush1.bf16.msra.mxu0 0
  %3266 = vmatprep.mubr.bf16.mxu0 0
  %3267 = vmatmul.mubr.bf16.gmra.mrb[0].mxu0 %v3229
  %v3268 = vpop.f32.mrb[0].mxu0
  %v3269 = vadd.f32 0.0, %v3268
  %v3270 = vpop.f32.mrb[0].mxu0
  %v3271 = vpop.f32.mrb[0].mxu0
  %v3272 = vadd.f32 0.0, %v3271
  %v3273 = vpop.f32.mrb[0].mxu0
  %3274 = vdwg.mxu0
  %3277 = vrot.lane.b32.xlu0 %v2519, 16
  %v3278 = vpop.permute.xlu0 %3277
  %3279 = vrot.lane.b32.xlu0 %v2522, 16
  %v3280 = vpop.permute.xlu0 %3279
  %3285 = vrot.lane.b32.xlu0 %v2644, 32
  %v3286 = vpop.permute.xlu0 %3285
  %3287 = vrot.lane.b32.xlu0 %v2647, 32
  %v3288 = vpop.permute.xlu0 %3287
  %3293 = vrot.lane.b32.xlu0 %v2769, 48
  %v3294 = vpop.permute.xlu0 %3293
  %3295 = vrot.lane.b32.xlu0 %v2772, 48
  %v3296 = vpop.permute.xlu0 %3295
  %3301 = vrot.lane.b32.xlu0 %v2894, 64
  %v3302 = vpop.permute.xlu0 %3301
  %3303 = vrot.lane.b32.xlu0 %v2897, 64
  %v3304 = vpop.permute.xlu0 %3303
  %3309 = vrot.lane.b32.xlu0 %v3019, 80
  %v3310 = vpop.permute.xlu0 %3309
  %3311 = vrot.lane.b32.xlu0 %v3022, 80
  %v3312 = vpop.permute.xlu0 %3311
  %3317 = vrot.lane.b32.xlu0 %v3144, 96
  %v3318 = vpop.permute.xlu0 %3317
  %3319 = vrot.lane.b32.xlu0 %v3147, 96
  %v3320 = vpop.permute.xlu0 %3319
  %3325 = vrot.lane.b32.xlu0 %v3269, 112
  %v3326 = vpop.permute.xlu0 %3325
  %3327 = vrot.lane.b32.xlu0 %v3272, 112
  %v3328 = vpop.permute.xlu0 %3327
  %v3331 = vsel %vm396, %v2391, %v3278
  %v3332 = vsel %vm396, %v2394, %v3280
  %v3333 = vsel %vm1455, %v3331, %v3286
  %v3334 = vsel %vm1455, %v3332, %v3288
  %v3335 = vsel %vm1458, %v3333, %v3294
  %v3336 = vsel %vm1458, %v3334, %v3296
  %v3337 = vsel %vm1461, %v3335, %v3302
  %v3338 = vsel %vm1461, %v3336, %v3304
  %v3339 = vsel %vm1464, %v3337, %v3310
  %v3340 = vsel %vm1464, %v3338, %v3312
  %v3341 = vsel %vm1467, %v3339, %v3318
  %v3342 = vsel %vm1467, %v3340, %v3320
  %v3343 = vsel %vm1470, %v3341, %v3326
  %v3344 = vsel %vm1470, %v3342, %v3328
  %v3345 = vpack.c.bf16 %v3344, %v3343
  %s3346 = scalar_lea.vmem %s7, 64
  %v3347 = vld [vmem:[%s3346] sm:$0xf]
  %v3348 = vld [vmem:[%s3346 + $0x4] sm:$0xf]
  %v3349 = vld [vmem:[%s3346 + $0x8] sm:$0xf]
  %v3350 = vld [vmem:[%s3346 + $0xc] sm:$0xf]
  %v3351 = vld [vmem:[%s3346 + $0x10] sm:$0xf]
  %v3352 = vld [vmem:[%s3346 + $0x14] sm:$0xf]
  %v3353 = vld [vmem:[%s3346 + $0x18] sm:$0xf]
  %v3354 = vld [vmem:[%s3346 + $0x1c] sm:$0xf]
  %v3355 = vld [vmem:[%s3346 + $0x20] sm:$0xf]
  %v3356 = vld [vmem:[%s3346 + $0x24] sm:$0xf]
  %v3357 = vld [vmem:[%s3346 + $0x28] sm:$0xf]
  %v3358 = vld [vmem:[%s3346 + $0x2c] sm:$0xf]
  %v3359 = vld [vmem:[%s3346 + $0x30] sm:$0xf]
  %v3360 = vld [vmem:[%s3346 + $0x34] sm:$0xf]
  %v3361 = vld [vmem:[%s3346 + $0x38] sm:$0xf]
  %v3362 = vld [vmem:[%s3346 + $0x3c] sm:$0xf]
  %s3363 = scalar_lea.vmem %s8, 1
  %v3364 = vld [vmem:[%s3363] sm:$0x1]
  %v3366 = vlaneseq
  %v3367 = vshrl.u32 %v3366, 7
  %v3368 = vsub.s32 0, %v3367
  %v3369 = vrot.slane %v3364, %v3368
  %v3387 = vunpack.c.l.b16 %v3347
  %v3388 = vunpack.c.l.b16 %v3348
  %v3389 = vunpack.c.l.b16 %v3349
  %v3390 = vunpack.c.l.b16 %v3350
  %v3391 = vunpack.c.l.b16 %v3351
  %v3392 = vunpack.c.l.b16 %v3352
  %v3393 = vunpack.c.l.b16 %v3353
  %v3394 = vunpack.c.l.b16 %v3354
  %v3395 = vunpack.c.l.b16 %v3355
  %v3396 = vunpack.c.l.b16 %v3356
  %v3397 = vunpack.c.l.b16 %v3357
  %v3398 = vunpack.c.l.b16 %v3358
  %v3399 = vunpack.c.l.b16 %v3359
  %v3400 = vunpack.c.l.b16 %v3360
  %v3401 = vunpack.c.l.b16 %v3361
  %v3402 = vunpack.c.l.b16 %v3362
  %v3403 = vpack.c.b16 %v3388, %v3387
  %v3404 = vpack.c.b16 %v3390, %v3389
  %v3405 = vpack.c.b16 %v3392, %v3391
  %v3406 = vpack.c.b16 %v3394, %v3393
  %v3407 = vpack.c.b16 %v3396, %v3395
  %v3408 = vpack.c.b16 %v3398, %v3397
  %v3409 = vpack.c.b16 %v3400, %v3399
  %v3410 = vpack.c.b16 %v3402, %v3401
  %3419 = vmatprep.subr.bf16.mxu0 0
  %3420 = vmatpush1.bf16.msra.mxu0 %v3403
  %3421 = vmatprep.subr.bf16.mxu0 0
  %3422 = vmatpush1.bf16.msra.mxu0 %v3404
  %3423 = vmatprep.subr.bf16.mxu0 0
  %3424 = vmatpush1.bf16.msra.mxu0 %v3405
  %3425 = vmatprep.subr.bf16.mxu0 0
  %3426 = vmatpush1.bf16.msra.mxu0 %v3406
  %3427 = vmatprep.subr.bf16.mxu0 0
  %3428 = vmatpush1.bf16.msra.mxu0 %v3407
  %3429 = vmatprep.subr.bf16.mxu0 0
  %3430 = vmatpush1.bf16.msra.mxu0 %v3408
  %3431 = vmatprep.subr.bf16.mxu0 0
  %3432 = vmatpush1.bf16.msra.mxu0 %v3409
  %3433 = vmatprep.subr.bf16.mxu0 0
  %3434 = vmatpush1.bf16.msra.mxu0 %v3410
  %3435 = vmatprep.subr.bf16.mxu0 0
  %3436 = vmatpush1.bf16.msra.mxu0 0
  %3437 = vmatprep.subr.bf16.mxu0 0
  %3438 = vmatpush1.bf16.msra.mxu0 0
  %3439 = vmatprep.subr.bf16.mxu0 0
  %3440 = vmatpush1.bf16.msra.mxu0 0
  %3441 = vmatprep.subr.bf16.mxu0 0
  %3442 = vmatpush1.bf16.msra.mxu0 0
  %3443 = vmatprep.subr.bf16.mxu0 0
  %3444 = vmatpush1.bf16.msra.mxu0 0
  %3445 = vmatprep.subr.bf16.mxu0 0
  %3446 = vmatpush1.bf16.msra.mxu0 0
  %3447 = vmatprep.subr.bf16.mxu0 0
  %3448 = vmatpush1.bf16.msra.mxu0 0
  %3449 = vmatprep.subr.bf16.mxu0 0
  %3450 = vmatpush1.bf16.msra.mxu0 0
  %3451 = vmatprep.mubr.bf16.mxu0 0
  %3452 = vmatmul.mubr.bf16.gmra.mrb[0].mxu0 %v3345
  %v3453 = vpop.f32.mrb[0].mxu0
  %v3454 = vadd.f32 %v3369, %v3453
  %v3455 = vpop.f32.mrb[0].mxu0
  %v3456 = vpop.f32.mrb[0].mxu0
  %v3457 = vadd.f32 %v3369, %v3456
  %v3458 = vpop.f32.mrb[0].mxu0
  %3459 = vdwg.mxu0
  %v3460 = vadd.f32 %v3454, %v2007
  %v3461 = vadd.f32 %v3457, %v2008
  %s3462 = scalar_lea.vmem %s9, 1
  %v3463 = vld [vmem:[%s3462] sm:$0x1]
  %s3464 = scalar_lea.vmem %s10, 1
  %v3465 = vld [vmem:[%s3464] sm:$0x1]
  %3466 = vadd.xlane.f32.xlu0 %v3460
  %v3467 = vpop.xlane.xlu0 %3466
  %v3468 = vsel %vm80, %v3461, 0.0
  %3469 = vadd.xlane.f32.xlu0 %v3468
  %v3470 = vpop.xlane.xlu0 %3469
  %v3471 = vmul.f32 %v3467, %v1595
  %v3472 = vmul.f32 %v3470, %v1595
  %v3473 = vsub.f32 %v3460, %v3471
  %v3474 = vsub.f32 %v3461, %v3472
  %v3475 = vmul.f32 %v3473, %v3473
  %v3476 = vmul.f32 %v3474, %v3474
  %3477 = vadd.xlane.f32.xlu0 %v3475
  %v3478 = vpop.xlane.xlu0 %3477
  %v3479 = vsel %vm80, %v3476, 0.0
  %3480 = vadd.xlane.f32.xlu0 %v3479
  %v3481 = vpop.xlane.xlu0 %3480
  %v3482 = vmul.f32 %v3478, %v1595
  %v3483 = vmul.f32 %v3481, %v1595
  %v3484 = vadd.f32 %v3482, 1e-05
  %v3485 = vadd.f32 %v3483, 1e-05
  %v3486 = vrsqrt.pop %v3484
  %v3487 = vrsqrt.pop %v3485
  %v3488 = vmul.f32 %v3473, %v3486
  %v3489 = vmul.f32 %v3474, %v3487
  %v3491 = vlaneseq
  %v3492 = vshrl.u32 %v3491, 7
  %v3493 = vsub.s32 0, %v3492
  %v3494 = vrot.slane %v3463, %v3493
  %v3496 = vmul.f32 %v3488, %v3494
  %v3497 = vmul.f32 %v3489, %v3494
  %v3499 = vlaneseq
  %v3500 = vshrl.u32 %v3499, 7
  %v3501 = vsub.s32 0, %v3500
  %v3502 = vrot.slane %v3465, %v3501
  %v3504 = vadd.f32 %v3496, %v3502
  %v3505 = vadd.f32 %v3497, %v3502
  %v3506 = vpack.c.bf16 %v3505, %v3504
  %s3507 = scalar_lea.vmem %s11, 128
  %v3508 = vld [vmem:[%s3507] sm:$0xff]
  %v3509 = vld [vmem:[%s3507 + $0x8] sm:$0xff]
  %v3510 = vld [vmem:[%s3507 + $0x10] sm:$0xff]
  %v3511 = vld [vmem:[%s3507 + $0x18] sm:$0xff]
  %v3512 = vld [vmem:[%s3507 + $0x20] sm:$0xff]
  %v3513 = vld [vmem:[%s3507 + $0x28] sm:$0xff]
  %v3514 = vld [vmem:[%s3507 + $0x30] sm:$0xff]
  %v3515 = vld [vmem:[%s3507 + $0x38] sm:$0xff]
  %v3516 = vld [vmem:[%s3507 + $0x40] sm:$0xff]
  %v3517 = vld [vmem:[%s3507 + $0x48] sm:$0xff]
  %v3518 = vld [vmem:[%s3507 + $0x50] sm:$0xff]
  %v3519 = vld [vmem:[%s3507 + $0x58] sm:$0xff]
  %v3520 = vld [vmem:[%s3507 + $0x60] sm:$0xff]
  %v3521 = vld [vmem:[%s3507 + $0x68] sm:$0xff]
  %v3522 = vld [vmem:[%s3507 + $0x70] sm:$0xff]
  %v3523 = vld [vmem:[%s3507 + $0x78] sm:$0xff]
  %s3524 = scalar_lea.vmem %s12, 2
  %v3525 = vld [vmem:[%s3524] sm:$0x3]
  %v3527 = vlaneseq
  %v3528 = vshrl.u32 %v3527, 7
  %v3529 = vsub.s32 0, %v3528
  %v3530 = vrot.slane %v3525, %v3529
  %v3531 = vlaneseq
  %v3532 = vshrl.u32 %v3531, 7
  %v3533 = vsub.s32 1, %v3532
  %v3534 = vrot.slane %v3525, %v3533
  %v3553 = vunpack.c.l.b16 %v3508
  %v3554 = vunpack.c.h.b16 %v3508
  %v3555 = vunpack.c.l.b16 %v3509
  %v3556 = vunpack.c.h.b16 %v3509
  %v3557 = vunpack.c.l.b16 %v3510
  %v3558 = vunpack.c.h.b16 %v3510
  %v3559 = vunpack.c.l.b16 %v3511
  %v3560 = vunpack.c.h.b16 %v3511
  %v3561 = vunpack.c.l.b16 %v3512
  %v3562 = vunpack.c.h.b16 %v3512
  %v3563 = vunpack.c.l.b16 %v3513
  %v3564 = vunpack.c.h.b16 %v3513
  %v3565 = vunpack.c.l.b16 %v3514
  %v3566 = vunpack.c.h.b16 %v3514
  %v3567 = vunpack.c.l.b16 %v3515
  %v3568 = vunpack.c.h.b16 %v3515
  %v3569 = vunpack.c.l.b16 %v3516
  %v3570 = vunpack.c.h.b16 %v3516
  %v3571 = vunpack.c.l.b16 %v3517
  %v3572 = vunpack.c.h.b16 %v3517
  %v3573 = vunpack.c.l.b16 %v3518
  %v3574 = vunpack.c.h.b16 %v3518
  %v3575 = vunpack.c.l.b16 %v3519
  %v3576 = vunpack.c.h.b16 %v3519
  %v3577 = vunpack.c.l.b16 %v3520
  %v3578 = vunpack.c.h.b16 %v3520
  %v3579 = vunpack.c.l.b16 %v3521
  %v3580 = vunpack.c.h.b16 %v3521
  %v3581 = vunpack.c.l.b16 %v3522
  %v3582 = vunpack.c.h.b16 %v3522
  %v3583 = vunpack.c.l.b16 %v3523
  %v3584 = vunpack.c.h.b16 %v3523
  %v3585 = vpack.c.b16 %v3555, %v3553
  %v3586 = vpack.c.b16 %v3556, %v3554
  %v3587 = vpack.c.b16 %v3559, %v3557
  %v3588 = vpack.c.b16 %v3560, %v3558
  %v3589 = vpack.c.b16 %v3563, %v3561
  %v3590 = vpack.c.b16 %v3564, %v3562
  %v3591 = vpack.c.b16 %v3567, %v3565
  %v3592 = vpack.c.b16 %v3568, %v3566
  %v3593 = vpack.c.b16 %v3571, %v3569
  %v3594 = vpack.c.b16 %v3572, %v3570
  %v3595 = vpack.c.b16 %v3575, %v3573
  %v3596 = vpack.c.b16 %v3576, %v3574
  %v3597 = vpack.c.b16 %v3579, %v3577
  %v3598 = vpack.c.b16 %v3580, %v3578
  %v3599 = vpack.c.b16 %v3583, %v3581
  %v3600 = vpack.c.b16 %v3584, %v3582
  %3617 = vmatprep.subr.bf16.mxu0 %v3586
  %3618 = vmatpush1.bf16.msra.mxu0 %v3585
  %3619 = vmatprep.subr.bf16.mxu0 %v3588
  %3620 = vmatpush1.bf16.msra.mxu0 %v3587
  %3621 = vmatprep.subr.bf16.mxu0 %v3590
  %3622 = vmatpush1.bf16.msra.mxu0 %v3589
  %3623 = vmatprep.subr.bf16.mxu0 %v3592
  %3624 = vmatpush1.bf16.msra.mxu0 %v3591
  %3625 = vmatprep.subr.bf16.mxu0 %v3594
  %3626 = vmatpush1.bf16.msra.mxu0 %v3593
  %3627 = vmatprep.subr.bf16.mxu0 %v3596
  %3628 = vmatpush1.bf16.msra.mxu0 %v3595
  %3629 = vmatprep.subr.bf16.mxu0 %v3598
  %3630 = vmatpush1.bf16.msra.mxu0 %v3597
  %3631 = vmatprep.subr.bf16.mxu0 %v3600
  %3632 = vmatpush1.bf16.msra.mxu0 %v3599
  %3633 = vmatprep.subr.bf16.mxu0 0
  %3634 = vmatpush1.bf16.msra.mxu0 0
  %3635 = vmatprep.subr.bf16.mxu0 0
  %3636 = vmatpush1.bf16.msra.mxu0 0
  %3637 = vmatprep.subr.bf16.mxu0 0
  %3638 = vmatpush1.bf16.msra.mxu0 0
  %3639 = vmatprep.subr.bf16.mxu0 0
  %3640 = vmatpush1.bf16.msra.mxu0 0
  %3641 = vmatprep.subr.bf16.mxu0 0
  %3642 = vmatpush1.bf16.msra.mxu0 0
  %3643 = vmatprep.subr.bf16.mxu0 0
  %3644 = vmatpush1.bf16.msra.mxu0 0
  %3645 = vmatprep.subr.bf16.mxu0 0
  %3646 = vmatpush1.bf16.msra.mxu0 0
  %3647 = vmatprep.subr.bf16.mxu0 0
  %3648 = vmatpush1.bf16.msra.mxu0 0
  %3649 = vmatprep.mubr.bf16.mxu0 0
  %3650 = vmatmul.mubr.bf16.gmra.mrb[0].mxu0 %v3506
  %v3651 = vpop.f32.mrb[0].mxu0
  %v3652 = vadd.f32 %v3530, %v3651
  %v3653 = vpop.f32.mrb[0].mxu0
  %v3654 = vadd.f32 %v3534, %v3653
  %v3655 = vpop.f32.mrb[0].mxu0
  %v3656 = vadd.f32 %v3530, %v3655
  %v3657 = vpop.f32.mrb[0].mxu0
  %v3658 = vadd.f32 %v3534, %v3657
  %3659 = vdwg.mxu0
  %v3660 = vmax.f32 %v3652, 0.0
  %v3661 = vmax.f32 %v3654, 0.0
  %v3662 = vmax.f32 %v3656, 0.0
  %v3663 = vmax.f32 %v3658, 0.0
  %v3664 = vpack.c.bf16 %v3662, %v3660
  %v3665 = vpack.c.bf16 %v3663, %v3661
  %s3666 = scalar_lea.vmem %s13, 128
  %v3667 = vld [vmem:[%s3666] sm:$0xf]
  %v3668 = vld [vmem:[%s3666 + $0x4] sm:$0xf]
  %v3669 = vld [vmem:[%s3666 + $0x8] sm:$0xf]
  %v3670 = vld [vmem:[%s3666 + $0xc] sm:$0xf]
  %v3671 = vld [vmem:[%s3666 + $0x10] sm:$0xf]
  %v3672 = vld [vmem:[%s3666 + $0x14] sm:$0xf]
  %v3673 = vld [vmem:[%s3666 + $0x18] sm:$0xf]
  %v3674 = vld [vmem:[%s3666 + $0x1c] sm:$0xf]
  %v3675 = vld [vmem:[%s3666 + $0x20] sm:$0xf]
  %v3676 = vld [vmem:[%s3666 + $0x24] sm:$0xf]
  %v3677 = vld [vmem:[%s3666 + $0x28] sm:$0xf]
  %v3678 = vld [vmem:[%s3666 + $0x2c] sm:$0xf]
  %v3679 = vld [vmem:[%s3666 + $0x30] sm:$0xf]
  %v3680 = vld [vmem:[%s3666 + $0x34] sm:$0xf]
  %v3681 = vld [vmem:[%s3666 + $0x38] sm:$0xf]
  %v3682 = vld [vmem:[%s3666 + $0x3c] sm:$0xf]
  %v3683 = vld [vmem:[%s3666 + $0x40] sm:$0xf]
  %v3684 = vld [vmem:[%s3666 + $0x44] sm:$0xf]
  %v3685 = vld [vmem:[%s3666 + $0x48] sm:$0xf]
  %v3686 = vld [vmem:[%s3666 + $0x4c] sm:$0xf]
  %v3687 = vld [vmem:[%s3666 + $0x50] sm:$0xf]
  %v3688 = vld [vmem:[%s3666 + $0x54] sm:$0xf]
  %v3689 = vld [vmem:[%s3666 + $0x58] sm:$0xf]
  %v3690 = vld [vmem:[%s3666 + $0x5c] sm:$0xf]
  %v3691 = vld [vmem:[%s3666 + $0x60] sm:$0xf]
  %v3692 = vld [vmem:[%s3666 + $0x64] sm:$0xf]
  %v3693 = vld [vmem:[%s3666 + $0x68] sm:$0xf]
  %v3694 = vld [vmem:[%s3666 + $0x6c] sm:$0xf]
  %v3695 = vld [vmem:[%s3666 + $0x70] sm:$0xf]
  %v3696 = vld [vmem:[%s3666 + $0x74] sm:$0xf]
  %v3697 = vld [vmem:[%s3666 + $0x78] sm:$0xf]
  %v3698 = vld [vmem:[%s3666 + $0x7c] sm:$0xf]
  %s3699 = scalar_lea.vmem %s14, 1
  %v3700 = vld [vmem:[%s3699] sm:$0x1]
  %v3702 = vlaneseq
  %v3703 = vshrl.u32 %v3702, 7
  %v3704 = vsub.s32 0, %v3703
  %v3705 = vrot.slane %v3700, %v3704
  %v3739 = vunpack.c.l.b16 %v3667
  %v3740 = vunpack.c.l.b16 %v3668
  %v3741 = vunpack.c.l.b16 %v3669
  %v3742 = vunpack.c.l.b16 %v3670
  %v3743 = vunpack.c.l.b16 %v3671
  %v3744 = vunpack.c.l.b16 %v3672
  %v3745 = vunpack.c.l.b16 %v3673
  %v3746 = vunpack.c.l.b16 %v3674
  %v3747 = vunpack.c.l.b16 %v3675
  %v3748 = vunpack.c.l.b16 %v3676
  %v3749 = vunpack.c.l.b16 %v3677
  %v3750 = vunpack.c.l.b16 %v3678
  %v3751 = vunpack.c.l.b16 %v3679
  %v3752 = vunpack.c.l.b16 %v3680
  %v3753 = vunpack.c.l.b16 %v3681
  %v3754 = vunpack.c.l.b16 %v3682
  %v3755 = vunpack.c.l.b16 %v3683
  %v3756 = vunpack.c.l.b16 %v3684
  %v3757 = vunpack.c.l.b16 %v3685
  %v3758 = vunpack.c.l.b16 %v3686
  %v3759 = vunpack.c.l.b16 %v3687
  %v3760 = vunpack.c.l.b16 %v3688
  %v3761 = vunpack.c.l.b16 %v3689
  %v3762 = vunpack.c.l.b16 %v3690
  %v3763 = vunpack.c.l.b16 %v3691
  %v3764 = vunpack.c.l.b16 %v3692
  %v3765 = vunpack.c.l.b16 %v3693
  %v3766 = vunpack.c.l.b16 %v3694
  %v3767 = vunpack.c.l.b16 %v3695
  %v3768 = vunpack.c.l.b16 %v3696
  %v3769 = vunpack.c.l.b16 %v3697
  %v3770 = vunpack.c.l.b16 %v3698
  %v3771 = vpack.c.b16 %v3740, %v3739
  %v3772 = vpack.c.b16 %v3742, %v3741
  %v3773 = vpack.c.b16 %v3744, %v3743
  %v3774 = vpack.c.b16 %v3746, %v3745
  %v3775 = vpack.c.b16 %v3748, %v3747
  %v3776 = vpack.c.b16 %v3750, %v3749
  %v3777 = vpack.c.b16 %v3752, %v3751
  %v3778 = vpack.c.b16 %v3754, %v3753
  %v3779 = vpack.c.b16 %v3756, %v3755
  %v3780 = vpack.c.b16 %v3758, %v3757
  %v3781 = vpack.c.b16 %v3760, %v3759
  %v3782 = vpack.c.b16 %v3762, %v3761
  %v3783 = vpack.c.b16 %v3764, %v3763
  %v3784 = vpack.c.b16 %v3766, %v3765
  %v3785 = vpack.c.b16 %v3768, %v3767
  %v3786 = vpack.c.b16 %v3770, %v3769
  %3803 = vmatprep.subr.bf16.mxu0 0
  %3804 = vmatpush1.bf16.msra.mxu0 %v3771
  %3805 = vmatprep.subr.bf16.mxu0 0
  %3806 = vmatpush1.bf16.msra.mxu0 %v3772
  %3807 = vmatprep.subr.bf16.mxu0 0
  %3808 = vmatpush1.bf16.msra.mxu0 %v3773
  %3809 = vmatprep.subr.bf16.mxu0 0
  %3810 = vmatpush1.bf16.msra.mxu0 %v3774
  %3811 = vmatprep.subr.bf16.mxu0 0
  %3812 = vmatpush1.bf16.msra.mxu0 %v3775
  %3813 = vmatprep.subr.bf16.mxu0 0
  %3814 = vmatpush1.bf16.msra.mxu0 %v3776
  %3815 = vmatprep.subr.bf16.mxu0 0
  %3816 = vmatpush1.bf16.msra.mxu0 %v3777
  %3817 = vmatprep.subr.bf16.mxu0 0
  %3818 = vmatpush1.bf16.msra.mxu0 %v3778
  %3819 = vmatprep.subr.bf16.mxu0 0
  %3820 = vmatpush1.bf16.msra.mxu0 %v3779
  %3821 = vmatprep.subr.bf16.mxu0 0
  %3822 = vmatpush1.bf16.msra.mxu0 %v3780
  %3823 = vmatprep.subr.bf16.mxu0 0
  %3824 = vmatpush1.bf16.msra.mxu0 %v3781
  %3825 = vmatprep.subr.bf16.mxu0 0
  %3826 = vmatpush1.bf16.msra.mxu0 %v3782
  %3827 = vmatprep.subr.bf16.mxu0 0
  %3828 = vmatpush1.bf16.msra.mxu0 %v3783
  %3829 = vmatprep.subr.bf16.mxu0 0
  %3830 = vmatpush1.bf16.msra.mxu0 %v3784
  %3831 = vmatprep.subr.bf16.mxu0 0
  %3832 = vmatpush1.bf16.msra.mxu0 %v3785
  %3833 = vmatprep.subr.bf16.mxu0 0
  %3834 = vmatpush1.bf16.msra.mxu0 %v3786
  %3835 = vmatprep.mubr.bf16.mxu0 %v3665
  %3836 = vmatmul.mubr.bf16.gmra.mrb[0].mxu0 %v3664
  %v3837 = vpop.f32.mrb[0].mxu0
  %v3838 = vadd.f32 %v3705, %v3837
  %v3839 = vpop.f32.mrb[0].mxu0
  %v3840 = vpop.f32.mrb[0].mxu0
  %v3841 = vadd.f32 %v3705, %v3840
  %v3842 = vpop.f32.mrb[0].mxu0
  %3843 = vdwg.mxu0
  %v3844 = vadd.f32 %v3504, %v3838
  %v3845 = vadd.f32 %v3505, %v3841
  %s3846 = scalar_lea.vmem %s15, 1
  %v3847 = vld [vmem:[%s3846] sm:$0x1]
  %s3848 = scalar_lea.vmem %s16, 1
  %v3849 = vld [vmem:[%s3848] sm:$0x1]
  %3850 = vadd.xlane.f32.xlu0 %v3844
  %v3851 = vpop.xlane.xlu0 %3850
  %v3852 = vsel %vm80, %v3845, 0.0
  %3853 = vadd.xlane.f32.xlu0 %v3852
  %v3854 = vpop.xlane.xlu0 %3853
  %v3855 = vmul.f32 %v3851, %v1595
  %v3856 = vmul.f32 %v3854, %v1595
  %v3857 = vsub.f32 %v3844, %v3855
  %v3858 = vsub.f32 %v3845, %v3856
  %v3859 = vmul.f32 %v3857, %v3857
  %v3860 = vmul.f32 %v3858, %v3858
  %3861 = vadd.xlane.f32.xlu0 %v3859
  %v3862 = vpop.xlane.xlu0 %3861
  %v3863 = vsel %vm80, %v3860, 0.0
  %3864 = vadd.xlane.f32.xlu0 %v3863
  %v3865 = vpop.xlane.xlu0 %3864
  %v3866 = vmul.f32 %v3862, %v1595
  %v3867 = vmul.f32 %v3865, %v1595
  %v3868 = vadd.f32 %v3866, 1e-05
  %v3869 = vadd.f32 %v3867, 1e-05
  %v3870 = vrsqrt.pop %v3868
  %v3871 = vrsqrt.pop %v3869
  %v3872 = vmul.f32 %v3857, %v3870
  %v3873 = vmul.f32 %v3858, %v3871
  %v3875 = vlaneseq
  %v3876 = vshrl.u32 %v3875, 7
  %v3877 = vsub.s32 0, %v3876
  %v3878 = vrot.slane %v3847, %v3877
  %v3880 = vmul.f32 %v3872, %v3878
  %v3881 = vmul.f32 %v3873, %v3878
  %v3883 = vlaneseq
  %v3884 = vshrl.u32 %v3883, 7
  %v3885 = vsub.s32 0, %v3884
  %v3886 = vrot.slane %v3849, %v3885
  %v3888 = vadd.f32 %v3880, %v3886
  %v3889 = vadd.f32 %v3881, %v3886
  %v3891 = vrot.slane %v3888, 4
  %vm3893 = vcmask 1041408
  %v3894 = vsel %vm3893, %v3891, %v3889
  %v3895 = vpack.c.bf16 %v3894, %v3894
  %v3896 = vld [vmem:[%s17] sm:$0xf]
  %v3897 = vld [vmem:[%s17 + $0x4] sm:$0xf]
  %v3898 = vld [vmem:[%s17 + $0x8] sm:$0xf]
  %v3899 = vld [vmem:[%s17 + $0xc] sm:$0xf]
  %v3900 = vld [vmem:[%s17 + $0x10] sm:$0xf]
  %v3901 = vld [vmem:[%s17 + $0x14] sm:$0xf]
  %v3902 = vld [vmem:[%s17 + $0x18] sm:$0xf]
  %v3903 = vld [vmem:[%s17 + $0x1c] sm:$0xf]
  %v3904 = vld [vmem:[%s17 + $0x20] sm:$0xf]
  %v3905 = vld [vmem:[%s17 + $0x24] sm:$0xf]
  %v3906 = vld [vmem:[%s17 + $0x28] sm:$0xf]
  %v3907 = vld [vmem:[%s17 + $0x2c] sm:$0xf]
  %v3908 = vld [vmem:[%s17 + $0x30] sm:$0xf]
  %v3909 = vld [vmem:[%s17 + $0x34] sm:$0xf]
  %v3910 = vld [vmem:[%s17 + $0x38] sm:$0xf]
  %v3911 = vld [vmem:[%s17 + $0x3c] sm:$0xf]
  %v3912 = vld [vmem:[%s18] sm:$0x1]
  %v3914 = vlaneseq
  %v3915 = vshrl.u32 %v3914, 7
  %v3916 = vsub.s32 0, %v3915
  %v3917 = vrot.slane %v3912, %v3916
  %v3935 = vunpack.c.l.b16 %v3896
  %v3936 = vunpack.c.l.b16 %v3897
  %v3937 = vunpack.c.l.b16 %v3898
  %v3938 = vunpack.c.l.b16 %v3899
  %v3939 = vunpack.c.l.b16 %v3900
  %v3940 = vunpack.c.l.b16 %v3901
  %v3941 = vunpack.c.l.b16 %v3902
  %v3942 = vunpack.c.l.b16 %v3903
  %v3943 = vunpack.c.l.b16 %v3904
  %v3944 = vunpack.c.l.b16 %v3905
  %v3945 = vunpack.c.l.b16 %v3906
  %v3946 = vunpack.c.l.b16 %v3907
  %v3947 = vunpack.c.l.b16 %v3908
  %v3948 = vunpack.c.l.b16 %v3909
  %v3949 = vunpack.c.l.b16 %v3910
  %v3950 = vunpack.c.l.b16 %v3911
  %v3951 = vpack.c.b16 %v3936, %v3935
  %v3952 = vpack.c.b16 %v3938, %v3937
  %v3953 = vpack.c.b16 %v3940, %v3939
  %v3954 = vpack.c.b16 %v3942, %v3941
  %v3955 = vpack.c.b16 %v3944, %v3943
  %v3956 = vpack.c.b16 %v3946, %v3945
  %v3957 = vpack.c.b16 %v3948, %v3947
  %v3958 = vpack.c.b16 %v3950, %v3949
  %3967 = vmatprep.subr.bf16.mxu0 0
  %3968 = vmatpush1.bf16.msra.mxu0 %v3951
  %3969 = vmatprep.subr.bf16.mxu0 0
  %3970 = vmatpush1.bf16.msra.mxu0 %v3952
  %3971 = vmatprep.subr.bf16.mxu0 0
  %3972 = vmatpush1.bf16.msra.mxu0 %v3953
  %3973 = vmatprep.subr.bf16.mxu0 0
  %3974 = vmatpush1.bf16.msra.mxu0 %v3954
  %3975 = vmatprep.subr.bf16.mxu0 0
  %3976 = vmatpush1.bf16.msra.mxu0 %v3955
  %3977 = vmatprep.subr.bf16.mxu0 0
  %3978 = vmatpush1.bf16.msra.mxu0 %v3956
  %3979 = vmatprep.subr.bf16.mxu0 0
  %3980 = vmatpush1.bf16.msra.mxu0 %v3957
  %3981 = vmatprep.subr.bf16.mxu0 0
  %3982 = vmatpush1.bf16.msra.mxu0 %v3958
  %3983 = vmatprep.subr.bf16.mxu0 0
  %3984 = vmatpush1.bf16.msra.mxu0 0
  %3985 = vmatprep.subr.bf16.mxu0 0
  %3986 = vmatpush1.bf16.msra.mxu0 0
  %3987 = vmatprep.subr.bf16.mxu0 0
  %3988 = vmatpush1.bf16.msra.mxu0 0
  %3989 = vmatprep.subr.bf16.mxu0 0
  %3990 = vmatpush1.bf16.msra.mxu0 0
  %3991 = vmatprep.subr.bf16.mxu0 0
  %3992 = vmatpush1.bf16.msra.mxu0 0
  %3993 = vmatprep.subr.bf16.mxu0 0
  %3994 = vmatpush1.bf16.msra.mxu0 0
  %3995 = vmatprep.subr.bf16.mxu0 0
  %3996 = vmatpush1.bf16.msra.mxu0 0
  %3997 = vmatprep.subr.bf16.mxu0 0
  %3998 = vmatpush1.bf16.msra.mxu0 0
  %3999 = vmatprep.mubr.bf16.mxu0 0
  %4000 = vmatmul.mubr.bf16.gmra.mrb[0].mxu0 %v3895
  %v4001 = vpop.f32.mrb[0].mxu0
  %v4002 = vadd.f32 %v3917, %v4001
  %v4003 = vpop.f32.mrb[0].mxu0
  %v4004 = vpop.f32.mrb[0].mxu0
  %v4005 = vpop.f32.mrb[0].mxu0
  %4006 = vdwg.mxu0
  %vm4007 = vcmask 60416
  %4008 = vst.msk [vmem:[%s19] sm:$0xf] %vm4007, %v4002
  // Predicated region
  $region78: #{closed_call.6} parent=0 // pred_check
    _
  $region79: #{closed_call.6} parent=0 // pred_check_branch
    %4010 = sbr.rel (0) target = $region81
  $region80: #{closed_call.6} parent=0 // pred_region
    _
  $region81: #{closed_call.6} parent=0 // pred_fallthru
    _
  // Predicated region
  $region82: #{closed_call.6} parent=0 // pred_check
    _
  $region83: #{closed_call.6} parent=0 // pred_check_branch
    %4012 = sbr.rel (0) target = $region85
  $region84: #{closed_call.6} parent=0 // pred_region
    _
  $region85: #{closed_call.6} parent=0 // pred_fallthru
    _

</llo_original>
